<compile_context>
chip_gen: v7x
topology: tpu7x:2x2x1
jax: 0.10.0
libtpu: 0.0.40
codegen_flags: <defaults>
</compile_context>

<pallas_src>
import functools

import jax
import jax.numpy as jnp
from jax.experimental import pallas as pl
from jax.experimental.pallas import tpu as pltpu


def _round_up(x, m):
    return (x + m - 1) // m * m


def _vmem_limit_bytes():
    cap = 64 * 1024 * 1024
    try:
        info = pltpu.get_tpu_info()
        cap = int(getattr(info, "vmem_capacity_bytes", cap) or cap)
    except Exception:
        pass
    return cap * 3 // 4          # ~48 MiB on v7x, ~96 MiB on v5e/v6e


_VMEM_LIMIT = _vmem_limit_bytes()


def _pick_m(m):
    """Row-tile (second-to-last axis): multiple of 8, minimal padding, and >=2
    tiles when possible so both v7x TensorCores get parallel work."""
    m8 = _round_up(m, 8)
    if m8 <= 512:
        if m8 >= 128 and m8 % 16 == 0:
            return m8 // 2, m8
        return m8, m8
    best_t, best_key = None, None
    for t in (256, 512, 384, 128):
        pad = _round_up(m8, t) - m8
        key = (pad, 0 if t == 256 else 1, -t)
        if best_key is None or key < best_key:
            best_t, best_key = t, key
    return best_t, _round_up(m8, best_t)


def _nk_tile(dim):
    """Lane-axis tile: full extent unless the dim is large and 128-aligned."""
    if dim % 128 == 0 and dim > 512:
        for t in (512, 384, 256, 128):
            if dim % t == 0:
                return t
    return dim


# --------------------------------------------------------------------------- #
# Tiled matmul + bias (+ optional fused residual), bf16 MXU / f32 accumulate
# --------------------------------------------------------------------------- #
def _matmul_kernel(*refs, has_residual):
    if has_residual:
        x_ref, w_ref, b_ref, r_ref, o_ref, acc_ref = refs
    else:
        x_ref, w_ref, b_ref, o_ref, acc_ref = refs
    k = pl.program_id(2)

    @pl.when(k == 0)
    def _init():
        acc_ref[...] = jnp.zeros_like(acc_ref)

    acc_ref[...] += jnp.dot(x_ref[...], w_ref[...],
                            preferred_element_type=jnp.float32)

    @pl.when(k == pl.num_programs(2) - 1)
    def _fin():
        r = acc_ref[...] + b_ref[...]
        if has_residual:
            r = r + r_ref[...]
        o_ref[...] = r.astype(o_ref.dtype)


def matmul_bias(x2d, w, b, residual=None, out_dtype=jnp.float32):
    """(M,K)@(K,N) + b [+ residual]; no channel zero-padding (full-extent K/N
    blocks are legal), M padded to a multiple-of-8 tile."""
    m, k_dim = x2d.shape
    k2, n = w.shape
    assert k2 == k_dim
    tn = _nk_tile(n)
    tk = _nk_tile(k_dim)
    tm, m_pad = _pick_m(m)

    xp = x2d if m_pad == m else jnp.pad(x2d, ((0, m_pad - m), (0, 0)))
    xp = xp.astype(jnp.bfloat16)
    wp = w.astype(jnp.bfloat16)
    bp = b.reshape(1, n).astype(jnp.float32)

    in_specs = [
        pl.BlockSpec((tm, tk), lambda i, j, kk: (i, kk)),
        pl.BlockSpec((tk, tn), lambda i, j, kk: (kk, j)),
        pl.BlockSpec((1, tn), lambda i, j, kk: (0, j)),
    ]
    args = [xp, wp, bp]
    if residual is not None:
        rp = residual.astype(jnp.float32)
        if m_pad != m:
            rp = jnp.pad(rp, ((0, m_pad - m), (0, 0)))
        in_specs.append(pl.BlockSpec((tm, tn), lambda i, j, kk: (i, j)))
        args.append(rp)

    out_bytes = m_pad * n * jnp.dtype(out_dtype).itemsize
    res_bytes = 0 if residual is None else m_pad * n * 4
    out = pl.pallas_call(
        functools.partial(_matmul_kernel, has_residual=residual is not None),
        grid=(m_pad // tm, n // tn, k_dim // tk),
        in_specs=in_specs,
        out_specs=pl.BlockSpec((tm, tn), lambda i, j, kk: (i, j)),
        out_shape=jax.ShapeDtypeStruct((m_pad, n), out_dtype),
        scratch_shapes=[pltpu.VMEM((tm, tn), jnp.float32)],
        compiler_params=pltpu.CompilerParams(
            dimension_semantics=("parallel", "parallel", "arbitrary"),
            vmem_limit_bytes=_VMEM_LIMIT),
        cost_estimate=pl.CostEstimate(
            flops=int(2 * m_pad * k_dim * n), transcendentals=0,
            bytes_accessed=int(xp.size * 2 + wp.size * 2 + out_bytes + res_bytes)),
    )(*args)
    return out[:m] if m_pad != m else out


# --------------------------------------------------------------------------- #
# "Plane conv" kernel: in-kernel tap accumulation for 3D convs.
# Grid = (N, D_out, KD).  Each step loads one padded depth-plane, flattened to
# 2D rows (hp*W, Cin), and accumulates the in-plane taps as shifted row-slice
# matmuls (wrap columns masked) -- no im2col in HBM, no in-kernel reshapes.
# --------------------------------------------------------------------------- #
def _plane_conv_kernel(*refs, H, W, h_shifts, w_offsets, row0, has_residual):
    if has_residual:
        x_ref, w_ref, b_ref, r_ref, o_ref, acc_ref = refs
    else:
        x_ref, w_ref, b_ref, o_ref, acc_ref = refs
    kd = pl.program_id(2)
    hw = H * W

    @pl.when(kd == 0)
    def _init():
        acc_ref[...] = jnp.zeros_like(acc_ref)

    need_mask = any(c != 0 for c in w_offsets)
    col = None
    if need_mask:
        col = jax.lax.broadcasted_iota(jnp.int32, (hw, 1), 0) % W

    t = 0
    for sh in h_shifts:
        for c in w_offsets:
            start = sh * W + c + row0
            lhs = x_ref[start:start + hw, :]
            if c < 0:
                lhs = jnp.where(col >= -c, lhs, jnp.zeros_like(lhs))
            elif c > 0:
                lhs = jnp.where(col < W - c, lhs, jnp.zeros_like(lhs))
            acc_ref[...] += jnp.dot(lhs, w_ref[t],
                                    preferred_element_type=jnp.float32)
            t += 1

    @pl.when(kd == pl.num_programs(2) - 1)
    def _fin():
        r = acc_ref[...] + b_ref[...]
        if has_residual:
            r = r + r_ref[...]
        o_ref[...] = r.astype(o_ref.dtype)


def _plane_conv(x_ndhwc, w_taps, bias, *, pad_d, pad_h, h_shifts, w_offsets,
                residual=None, out_dtype=jnp.float32):
    """Generic depth-plane conv.  w_taps: (KD, KH*KW, Cin, Cout); bias: (Cout,).
    TODO(synk): very large planes (H*W*Cout f32 accumulator > ~16 MiB) would
    need an extra Cout/row tiling axis."""
    n, d, h, w, cin = x_ndhwc.shape
    kd_taps = w_taps.shape[0]
    taps_hw = w_taps.shape[1]
    cout = w_taps.shape[-1]
    dp = d + pad_d[0] + pad_d[1]
    hp = h + pad_h[0] + pad_h[1]
    hw = h * w

    xp = jnp.pad(x_ndhwc.astype(jnp.bfloat16),
                 ((0, 0), pad_d, pad_h, (0, 0), (0, 0)))
    xp2 = xp.reshape(n * dp, hp * w, cin)
    starts = [sh * w + c for sh in h_shifts for c in w_offsets]
    g_front = max(0, -min(starts))
    g_back = max(0, max(s + hw for s in starts) - hp * w)
    if g_front or g_back:
        xp2 = jnp.pad(xp2, ((0, 0), (g_front, g_back), (0, 0)))
    rows = xp2.shape[1]

    wb = w_taps.astype(jnp.bfloat16)
    bb = bias.reshape(1, cout).astype(jnp.float32)

    in_specs = [
        pl.BlockSpec((None, rows, cin),
                     lambda ni, di, ki: (ni * dp + di + ki, 0, 0)),
        pl.BlockSpec((None, taps_hw, cin, cout),
                     lambda ni, di, ki: (ki, 0, 0, 0)),
        pl.BlockSpec((1, cout), lambda ni, di, ki: (0, 0)),
    ]
    args = [xp2, wb, bb]
    if residual is not None:
        in_specs.append(pl.BlockSpec((None, None, hw, cout),
                                     lambda ni, di, ki: (ni, di, 0, 0)))
        args.append(residual.reshape(n, d, hw, cout).astype(jnp.float32))

    kernel = functools.partial(
        _plane_conv_kernel, H=h, W=w, h_shifts=tuple(h_shifts),
        w_offsets=tuple(w_offsets), row0=g_front,
        has_residual=residual is not None)

    flops = 2 * n * d * hw * cin * cout * kd_taps * taps_hw
    out_bytes = n * d * hw * cout * jnp.dtype(out_dtype).itemsize
    out = pl.pallas_call(
        kernel,
        grid=(n, d, kd_taps),
        in_specs=in_specs,
        out_specs=pl.BlockSpec((None, None, hw, cout),
                               lambda ni, di, ki: (ni, di, 0, 0)),
        out_shape=jax.ShapeDtypeStruct((n, d, hw, cout), out_dtype),
        scratch_shapes=[pltpu.VMEM((hw, cout), jnp.float32)],
        compiler_params=pltpu.CompilerParams(
            dimension_semantics=("parallel", "parallel", "arbitrary"),
            vmem_limit_bytes=_VMEM_LIMIT),
        cost_estimate=pl.CostEstimate(
            flops=int(flops), transcendentals=0,
            bytes_accessed=int(xp2.size * 2 * kd_taps + wb.size * 2 + out_bytes)),
    )(*args)
    return out.reshape(n, d, h, w, cout)


def conv3d_3x3x3(x_ndhwc, w_oi333, b, residual=None, out_dtype=jnp.float32):
    """Conv3d(k=3, s=1, p=1).  PyTorch weight layout (Cout, Cin, 3, 3, 3)."""
    cout, cin = w_oi333.shape[0], w_oi333.shape[1]
    w_taps = jnp.transpose(w_oi333, (2, 3, 4, 1, 0)).reshape(3, 9, cin, cout)
    return _plane_conv(x_ndhwc, w_taps, b,
                       pad_d=(1, 1), pad_h=(1, 1),
                       h_shifts=(0, 1, 2), w_offsets=(-1, 0, 1),
                       residual=residual, out_dtype=out_dtype)


def _convT_dense_weight(wt):
    """(Cin, Cout, 3, 3, 3) ConvTranspose3d weight -> dense 2x2x2 sub-pixel
    conv weight (2, 4, Cin, 8*Cout); phases packed as channel groups."""
    cin, cout = wt.shape[0], wt.shape[1]

    def kidx(p, s):
        if p == 0:
            return 1 if s == 0 else None
        return 2 if s == 0 else 0

    wd = jnp.zeros((2, 2, 2, cin, 8, cout), wt.dtype)
    for sd in range(2):
        for sh in range(2):
            for sw in range(2):
                for pd in range(2):
                    for ph in range(2):
                        for pw in range(2):
                            kd, kh, kw = kidx(pd, sd), kidx(ph, sh), kidx(pw, sw)
                            if kd is None or kh is None or kw is None:
                                continue
                            phase = (pd * 2 + ph) * 2 + pw
                            wd = wd.at[sd, sh, sw, :, phase, :].set(
                                wt[:, :, kd, kh, kw])
    return wd.reshape(2, 4, cin, 8 * cout)


def conv_transpose3d_x2(x_ndhwc, w_io333, b, out_dtype=jnp.float32):
    """ConvTranspose3d(k=3, s=2, p=1, op=1) as a dense 2x2x2 stride-1 conv over
    the un-dilated input (all 8 phases as channel groups) + one contiguous
    depth-to-space interleave.  Weight layout (Cin, Cout, 3, 3, 3)."""
    n, d, h, w, _ = x_ndhwc.shape
    cout = w_io333.shape[1]
    wd = _convT_dense_weight(w_io333)
    slab = _plane_conv(x_ndhwc, wd, jnp.tile(b, 8),
                       pad_d=(0, 1), pad_h=(0, 1),
                       h_shifts=(0, 1), w_offsets=(0, 1),
                       residual=None, out_dtype=out_dtype)
    slab = slab.reshape(n, d, h, w, 2, 2, 2, cout)
    return jnp.transpose(slab, (0, 1, 4, 2, 5, 3, 6, 7)).reshape(
        n, 2 * d, 2 * h, 2 * w, cout)


# --------------------------------------------------------------------------- #
# BatchNorm3d (training-mode, global batch stats) + ReLU6
# --------------------------------------------------------------------------- #
def _scale_shift_relu6_kernel(x_ref, s_ref, t_ref, o_ref):
    xf = x_ref[...].astype(jnp.float32)
    o_ref[...] = jnp.clip(xf * s_ref[...] + t_ref[...], 0.0, 6.0).astype(o_ref.dtype)


def bn_relu6(x_ndhwc, gamma, beta, eps=1e-5, out_dtype=jnp.bfloat16):
    n, d, h, w, c = x_ndhwc.shape
    cnt = n * d * h * w
    # one-pass global batch statistics (tiny reduction, stays in XLA)
    xf = x_ndhwc.astype(jnp.float32)
    s1 = jnp.sum(xf, axis=(0, 1, 2, 3))
    s2 = jnp.sum(xf * xf, axis=(0, 1, 2, 3))
    mean = s1 / cnt
    var = jnp.maximum(s2 / cnt - mean * mean, 0.0)
    scale = gamma * jax.lax.rsqrt(var + eps)
    shift = beta - mean * scale

    rows, lanes = n * d * h, w * c            # lane-dense (W, C) fold
    x2d = x_ndhwc.reshape(rows, lanes)
    s_row = jnp.tile(scale, w).reshape(1, lanes).astype(jnp.float32)
    t_row = jnp.tile(shift, w).reshape(1, lanes).astype(jnp.float32)

    # VMEM-budget-driven row tile (~4 MiB per double-buffered block)
    bpr = lanes * (x2d.dtype.itemsize + jnp.dtype(out_dtype).itemsize) * 2
    tr = max(8, min(_round_up(rows, 8), (4 * 1024 * 1024 // max(bpr, 1)) // 8 * 8, 2048))
    rows_pad = _round_up(rows, tr)
    x2dp = x2d if rows_pad == rows else jnp.pad(x2d, ((0, rows_pad - rows), (0, 0)))

    y = pl.pallas_call(
        _scale_shift_relu6_kernel,
        grid=(rows_pad // tr,),
        in_specs=[pl.BlockSpec((tr, lanes), lambda i: (i, 0)),
                  pl.BlockSpec((1, lanes), lambda i: (0, 0)),
                  pl.BlockSpec((1, lanes), lambda i: (0, 0))],
        out_specs=pl.BlockSpec((tr, lanes), lambda i: (i, 0)),
        out_shape=jax.ShapeDtypeStruct((rows_pad, lanes), out_dtype),
        compiler_params=pltpu.CompilerParams(
            dimension_semantics=("parallel",),
            vmem_limit_bytes=_VMEM_LIMIT),
    )(x2dp, s_row, t_row)
    return y[:rows].reshape(n, d, h, w, c)


# --------------------------------------------------------------------------- #
# Attention: plain-softmax kernel when K/V fit one tile, flash kernel otherwise
# --------------------------------------------------------------------------- #
def _attn_single_kv_kernel(q_ref, k_ref, v_ref, o_ref, *, lk_valid):
    s = jax.lax.dot_general(q_ref[...], k_ref[...], (((1,), (1,)), ((), ())),
                            preferred_element_type=jnp.float32)
    if lk_valid is not None:
        col = jax.lax.broadcasted_iota(jnp.int32, s.shape, 1)
        s = jnp.where(col < lk_valid, s, -1e30)
    m = jnp.max(s, axis=-1, keepdims=True)
    p = jnp.exp(s - m)
    l = jnp.sum(p, axis=-1, keepdims=True)
    acc = jnp.dot(p.astype(v_ref.dtype), v_ref[...],
                  preferred_element_type=jnp.float32)
    o_ref[...] = (acc * pl.reciprocal(l, approx=True)).astype(o_ref.dtype)


def _flash_attn_kernel(q_ref, k_ref, v_ref, o_ref, m_sc, l_sc, acc_sc,
                       *, lk_valid, tk):
    kv = pl.program_id(2)

    @pl.when(kv == 0)
    def _init():
        m_sc[...] = jnp.full_like(m_sc, -1e30)
        l_sc[...] = jnp.zeros_like(l_sc)
        acc_sc[...] = jnp.zeros_like(acc_sc)

    s = jax.lax.dot_general(q_ref[...], k_ref[...], (((1,), (1,)), ((), ())),
                            preferred_element_type=jnp.float32)
    if lk_valid is not None:
        col = jax.lax.broadcasted_iota(jnp.int32, s.shape, 1) + kv * tk
        s = jnp.where(col < lk_valid, s, -1e30)

    m_prev = m_sc[...]
    m_new = jnp.maximum(m_prev, jnp.max(s, axis=-1, keepdims=True))
    alpha = jnp.exp(m_prev - m_new)
    p = jnp.exp(s - m_new)
    l_sc[...] = alpha * l_sc[...] + jnp.sum(p, axis=-1, keepdims=True)
    acc_sc[...] = alpha * acc_sc[...] + jnp.dot(
        p.astype(v_ref.dtype), v_ref[...], preferred_element_type=jnp.float32)
    m_sc[...] = m_new

    @pl.when(kv == pl.num_programs(2) - 1)
    def _fin():
        o_ref[...] = (acc_sc[...] *
                      pl.reciprocal(l_sc[...], approx=True)).astype(o_ref.dtype)


def flash_attention(q, k, v, out_dtype=jnp.bfloat16):
    """q: (B, Lq, Ck) (scale already folded in), k: (B, Lk, Ck), v: (B, Lk, Cv)."""
    bsz, lq, ck = q.shape
    lk, cv = k.shape[1], v.shape[2]

    tq, lq_pad = _pick_m(lq)
    qp = q if lq_pad == lq else jnp.pad(q, ((0, 0), (0, lq_pad - lq), (0, 0)))
    qp = qp.astype(jnp.bfloat16)

    lk_pad = _round_up(lk, 8)
    single = lk_pad <= 2048
    tk = lk_pad if single else 512
    lk_pad = lk_pad if single else _round_up(lk, tk)
    kp = k if lk_pad == lk else jnp.pad(k, ((0, 0), (0, lk_pad - lk), (0, 0)))
    vp = v if lk_pad == lk else jnp.pad(v, ((0, 0), (0, lk_pad - lk), (0, 0)))
    kp, vp = kp.astype(jnp.bfloat16), vp.astype(jnp.bfloat16)
    lk_valid = lk if lk_pad != lk else None

    cost = pl.CostEstimate(
        flops=int(2 * bsz * lq_pad * lk_pad * (ck + cv)),
        transcendentals=int(bsz * lq_pad * lk_pad),
        bytes_accessed=int(qp.size * 2 + kp.size * 2 + vp.size * 2
                           + bsz * lq_pad * cv * jnp.dtype(out_dtype).itemsize))

    if single:
        out = pl.pallas_call(
            functools.partial(_attn_single_kv_kernel, lk_valid=lk_valid),
            grid=(bsz, lq_pad // tq),
            in_specs=[
                pl.BlockSpec((None, tq, ck), lambda b, i: (b, i, 0)),
                pl.BlockSpec((None, lk_pad, ck), lambda b, i: (b, 0, 0)),
                pl.BlockSpec((None, lk_pad, cv), lambda b, i: (b, 0, 0)),
            ],
            out_specs=pl.BlockSpec((None, tq, cv), lambda b, i: (b, i, 0)),
            out_shape=jax.ShapeDtypeStruct((bsz, lq_pad, cv), out_dtype),
            compiler_params=pltpu.CompilerParams(
                dimension_semantics=("parallel", "parallel"),
                vmem_limit_bytes=_VMEM_LIMIT),
            cost_estimate=cost,
        )(qp, kp, vp)
    else:
        out = pl.pallas_call(
            functools.partial(_flash_attn_kernel, lk_valid=lk_valid, tk=tk),
            grid=(bsz, lq_pad // tq, lk_pad // tk),
            in_specs=[
                pl.BlockSpec((None, tq, ck), lambda b, i, j: (b, i, 0)),
                pl.BlockSpec((None, tk, ck), lambda b, i, j: (b, j, 0)),
                pl.BlockSpec((None, tk, cv), lambda b, i, j: (b, j, 0)),
            ],
            out_specs=pl.BlockSpec((None, tq, cv), lambda b, i, j: (b, i, 0)),
            out_shape=jax.ShapeDtypeStruct((bsz, lq_pad, cv), out_dtype),
            scratch_shapes=[pltpu.VMEM((tq, 1), jnp.float32),
                            pltpu.VMEM((tq, 1), jnp.float32),
                            pltpu.VMEM((tq, cv), jnp.float32)],
            compiler_params=pltpu.CompilerParams(
                dimension_semantics=("parallel", "parallel", "arbitrary"),
                vmem_limit_bytes=_VMEM_LIMIT),
            cost_estimate=cost,
        )(qp, kp, vp)
    return out[:, :lq, :]


# --------------------------------------------------------------------------- #
# Model forward (matches AttDecodeingBlockLayer.forward)
# --------------------------------------------------------------------------- #
def multihead_attention_3d(x, p, residual):
    # layer_type='UP', num_heads=1; softmax scale folded into the q projection.
    n, d, h, w, cin = x.shape
    ck = p["k_w"].shape[0]
    cv = p["v_w"].shape[0]
    scale = float(ck) ** -0.5

    q = conv_transpose3d_x2(x, p["q_w"] * scale, p["q_b"] * scale,
                            out_dtype=jnp.bfloat16)          # (n, 2d, 2h, 2w, ck)

    # fused k/v 1x1 projection (shared LHS -> one matmul, lane-denser N)
    kv_w = jnp.concatenate([p["k_w"], p["v_w"]], axis=0).reshape(ck + cv, cin).T
    kv_b = jnp.concatenate([p["k_b"], p["v_b"]], axis=0)
    kv = matmul_bias(x.reshape(-1, cin), kv_w, kv_b, out_dtype=jnp.bfloat16)
    lk = d * h * w
    kf = kv[:, :ck].reshape(n, lk, ck)
    vf = kv[:, ck:].reshape(n, lk, cv)

    dq, hq, wq = 2 * d, 2 * h, 2 * w
    lq = dq * hq * wq
    qf = q.reshape(n, lq, ck)

    o = flash_attention(qf, kf, vf, out_dtype=jnp.bfloat16)

    # output projection with (shortcut + skip_up) fused into the epilogue
    ow = p["attn_out_w"].reshape(p["attn_out_w"].shape[0], cv).T
    y = matmul_bias(o.reshape(n * lq, cv), ow, p["attn_out_b"],
                    residual=residual.reshape(n * lq, -1),
                    out_dtype=jnp.float32)
    return y.reshape(n, dq, hq, wq, -1)


@jax.jit
def att_decoding_block_layer(inputs_ncdhw, skip_ncdhw, p):
    x = jnp.transpose(inputs_ncdhw, (0, 2, 3, 4, 1)).astype(jnp.float32)
    s = jnp.transpose(skip_ncdhw, (0, 2, 3, 4, 1)).astype(jnp.float32)

    # ConvT_ab(x) + ConvT_ps(skip): fuse into ONE transposed conv over the
    # channel-concatenated inputs (linearity) -> the combined residual.
    xs = jnp.concatenate([x, s], axis=-1)
    w_sc = jnp.concatenate([p["ab_ps_w"], p["ps_w"]], axis=0)
    res = conv_transpose3d_x2(xs, w_sc, p["ab_ps_b"] + p["ps_b"],
                              out_dtype=jnp.float32)

    xb = bn_relu6(x, p["ab_bn_g"], p["ab_bn_b"])                   # bf16
    # y = MHA(xb) + shortcut + skip_up   (residual fused into attn_out matmul)
    y = multihead_attention_3d(xb, p, residual=res)                # f32

    # residual block (stride 1, no projection shortcut); "+ y" fused into conv2
    t1 = conv3d_3x3x3(bn_relu6(y, p["rb_bn1_g"], p["rb_bn1_b"]),
                      p["conv1_w"], p["conv1_b"], out_dtype=jnp.bfloat16)
    out = conv3d_3x3x3(bn_relu6(t1, p["rb_bn2_g"], p["rb_bn2_b"]),
                       p["conv2_w"], p["conv2_b"], residual=y,
                       out_dtype=jnp.float32)

    return jnp.transpose(out, (0, 4, 1, 2, 3))                     # back to NCDHW


# --------------------------------------------------------------------------- #
# Deterministic parameter init (PyTorch weight layouts)
# --------------------------------------------------------------------------- #
def make_params(key, in_channels, filters):
    ks = jax.random.split(key, 16)
    nrm = lambda k, shp: 0.1 * jax.random.normal(k, shp, jnp.float32)
    ones = jnp.ones((filters,), jnp.float32)
    zeros = jnp.zeros((filters,), jnp.float32)
    return {
        # outer ConvTranspose3d(in_channels -> filters)
        "ps_w": nrm(ks[0], (in_channels, filters, 3, 3, 3)), "ps_b": nrm(ks[1], (filters,)),
        # attention-block projection shortcut ConvTranspose3d(filters -> filters)
        "ab_ps_w": nrm(ks[2], (filters, filters, 3, 3, 3)), "ab_ps_b": nrm(ks[3], (filters,)),
        # attention-block BatchNorm3d
        "ab_bn_g": ones, "ab_bn_b": zeros,
        # MultiHeadAttention3d projections
        "q_w": nrm(ks[4], (filters, filters, 3, 3, 3)), "q_b": nrm(ks[5], (filters,)),
        "k_w": nrm(ks[6], (filters, filters, 1, 1, 1)), "k_b": zeros,
        "v_w": nrm(ks[7], (filters, filters, 1, 1, 1)), "v_b": zeros,
        "attn_out_w": nrm(ks[8], (filters, filters, 1, 1, 1)), "attn_out_b": zeros,
        # residual block
        "rb_bn1_g": ones, "rb_bn1_b": zeros,
        "rb_bn2_g": ones, "rb_bn2_b": zeros,
        "conv1_w": nrm(ks[9], (filters, filters, 3, 3, 3)), "conv1_b": nrm(ks[10], (filters,)),
        "conv2_w": nrm(ks[11], (filters, filters, 3, 3, 3)), "conv2_b": nrm(ks[12], (filters,)),
    }


# --------------------------------------------------------------------------- #
if __name__ == "__main__":
    N, IN_CH, FILTERS, D = 2, 4, 4, 4      # strides=2 implied by the transposed convs
    key = jax.random.PRNGKey(0)
    k_in, k_skip, k_par = jax.random.split(key, 3)

    inputs = jax.random.normal(k_in, (N, FILTERS, D, D, D), jnp.float32)       # NCDHW
    skip_inputs = jax.random.normal(k_skip, (N, IN_CH, D, D, D), jnp.float32)  # NCDHW
    params = make_params(k_par, IN_CH, FILTERS)

    out = att_decoding_block_layer(inputs, skip_inputs, params)
    out = jax.block_until_ready(out)
    assert out.shape == (N, FILTERS, 2 * D, 2 * D, 2 * D), out.shape
    assert bool(jnp.all(jnp.isfinite(out)))
    print("KERNEL_OK")
</pallas_src>

<mosaic_0001>
module attributes {stable_mosaic.version = 11 : i64} {
  func.func @_scale_shift_relu6_kernel(%arg0: i32, %arg1: memref<32x16xf32, #tpu.memory_space<vmem>>, %arg2: memref<1x16xf32, #tpu.memory_space<vmem>>, %arg3: memref<1x16xf32, #tpu.memory_space<vmem>>, %arg4: memref<32x16xbf16, #tpu.memory_space<vmem>>) attributes {dimension_semantics = [#tpu.dimension_semantics<parallel>], iteration_bounds = array<i64: 1>, scalar_prefetch = 0 : i64, scratch_operands = 0 : i64, tpu.core_type = #tpu.core_type<tc>, window_params = [{transform_indices = @transform_0, window_bounds = array<i64: 32, 16>}, {pipeline_mode = #tpu.pipeline_mode<synchronous>, transform_indices = @transform_1, window_bounds = array<i64: 1, 16>}, {pipeline_mode = #tpu.pipeline_mode<synchronous>, transform_indices = @transform_2, window_bounds = array<i64: 1, 16>}, {transform_indices = @transform_3, window_bounds = array<i64: 32, 16>}]} {
    %c0 = arith.constant 0 : index
    %c0_0 = arith.constant 0 : index
    %0 = vector.load %arg1[%c0, %c0_0] : memref<32x16xf32, #tpu.memory_space<vmem>>, vector<32x16xf32>
    %c0_1 = arith.constant 0 : index
    %c0_2 = arith.constant 0 : index
    %1 = vector.load %arg2[%c0_1, %c0_2] : memref<1x16xf32, #tpu.memory_space<vmem>>, vector<1x16xf32>
    %2 = vector.broadcast %1 : vector<1x16xf32> to vector<32x16xf32>
    %3 = arith.mulf %0, %2 : vector<32x16xf32>
    %c0_3 = arith.constant 0 : index
    %c0_4 = arith.constant 0 : index
    %4 = vector.load %arg3[%c0_3, %c0_4] : memref<1x16xf32, #tpu.memory_space<vmem>>, vector<1x16xf32>
    %5 = vector.broadcast %4 : vector<1x16xf32> to vector<32x16xf32>
    %6 = arith.addf %3, %5 : vector<32x16xf32>
    %cst = arith.constant 0.000000e+00 : f32
    %cst_5 = arith.constant 6.000000e+00 : f32
    %7 = vector.broadcast %cst : f32 to vector<32x16xf32>
    %8 = arith.maximumf %7, %6 : vector<32x16xf32>
    %9 = vector.broadcast %cst_5 : f32 to vector<32x16xf32>
    %10 = arith.minimumf %9, %8 : vector<32x16xf32>
    %11 = arith.truncf %10 : vector<32x16xf32> to vector<32x16xbf16>
    %c0_6 = arith.constant 0 : index
    %c0_7 = arith.constant 0 : index
    %12 = vector.load %arg4[%c0_6, %c0_7] : memref<32x16xbf16, #tpu.memory_space<vmem>>, vector<32x16xbf16>
    tpu.vector_store %arg4[%c0_6, %c0_7], %11 {strides = array<i32>} : memref<32x16xbf16, #tpu.memory_space<vmem>>, vector<32x16xbf16>,
    return
  }
  func.func @transform_0(%arg0: i32) -> (i32, i32) {
    %c0_i32 = arith.constant 0 : i32
    %c0_i32_0 = arith.constant 0 : i32
    return %arg0, %c0_i32 : i32, i32
  }
  func.func @transform_1(%arg0: i32) -> (i32, i32) {
    %c0_i32 = arith.constant 0 : i32
    %c0_i32_0 = arith.constant 0 : i32
    %c0_i32_1 = arith.constant 0 : i32
    return %c0_i32, %c0_i32_0 : i32, i32
  }
  func.func @transform_2(%arg0: i32) -> (i32, i32) {
    %c0_i32 = arith.constant 0 : i32
    %c0_i32_0 = arith.constant 0 : i32
    %c0_i32_1 = arith.constant 0 : i32
    return %c0_i32, %c0_i32_0 : i32, i32
  }
  func.func @transform_3(%arg0: i32) -> (i32, i32) {
    %c0_i32 = arith.constant 0 : i32
    %c0_i32_0 = arith.constant 0 : i32
    return %arg0, %c0_i32 : i32, i32
  }
}

module attributes {stable_mosaic.version = 11 : i64} {
  func.func @_plane_conv_kernel(%arg0: i32, %arg1: i32, %arg2: i32, %arg3: memref<1x21x8xbf16, #tpu.memory_space<vmem>>, %arg4: memref<1x4x8x32xbf16, #tpu.memory_space<vmem>>, %arg5: memref<1x32xf32, #tpu.memory_space<vmem>>, %arg6: memref<1x1x16x32xf32, #tpu.memory_space<vmem>>, %arg7: memref<16x32xf32, #tpu.memory_space<vmem>>) attributes {dimension_semantics = [#tpu.dimension_semantics<parallel>, #tpu.dimension_semantics<parallel>, #tpu.dimension_semantics<arbitrary>], iteration_bounds = array<i64: 2, 4, 2>, scalar_prefetch = 0 : i64, scratch_operands = 1 : i64, tpu.core_type = #tpu.core_type<tc>, window_params = [{transform_indices = @transform_0, window_bounds = array<i64: 1, 21, 8>}, {transform_indices = @transform_1, window_bounds = array<i64: 1, 4, 8, 32>}, {pipeline_mode = #tpu.pipeline_mode<synchronous>, transform_indices = @transform_2, window_bounds = array<i64: 1, 32>}, {transform_indices = @transform_3, window_bounds = array<i64: 1, 1, 16, 32>}]} {
    %c0_i32 = arith.constant 0 : i32
    %0 = arith.cmpi eq, %arg2, %c0_i32 : i32
    %1 = arith.extui %0 : i1 to i32
    %c0_i32_0 = arith.constant 0 : i32
    %2 = arith.cmpi ne, %1, %c0_i32_0 : i32
    scf.if %2 {
      %cst_51 = arith.constant 0.000000e+00 : f32
      %67 = vector.broadcast %cst_51 : f32 to vector<16x32xf32>
      %c0_52 = arith.constant 0 : index
      %c0_53 = arith.constant 0 : index
      %68 = vector.load %arg7[%c0_52, %c0_53] : memref<16x32xf32, #tpu.memory_space<vmem>>, vector<16x32xf32>
      tpu.vector_store %arg7[%c0_52, %c0_53], %67 {strides = array<i32>} : memref<16x32xf32, #tpu.memory_space<vmem>>, vector<16x32xf32>,
    } else {
    }
    %3 = tpu.iota {dimensions = array<i32: 0>} : vector<16x1xi32>
    %c4_i32 = arith.constant 4 : i32
    %c0_i32_1 = arith.constant 0 : i32
    %4 = arith.cmpi eq, %c4_i32, %c0_i32_1 : i32
    %c1_i32 = arith.constant 1 : i32
    %5 = arith.select %4, %c1_i32, %c4_i32 : i32
    %6 = vector.broadcast %5 : i32 to vector<16x1xi32>
    %7 = arith.remsi %3, %6 : vector<16x1xi32>
    %c0_i32_2 = arith.constant 0 : i32
    %8 = vector.broadcast %c0_i32_2 : i32 to vector<16x1xi32>
    %9 = arith.cmpi ne, %7, %8 : vector<16x1xi32>
    %c0_i32_3 = arith.constant 0 : i32
    %10 = vector.broadcast %c0_i32_3 : i32 to vector<16x1xi32>
    %11 = arith.cmpi slt, %7, %10 : vector<16x1xi32>
    %c0_i32_4 = arith.constant 0 : i32
    %12 = arith.cmpi slt, %5, %c0_i32_4 : i32
    %13 = vector.broadcast %12 : i1 to vector<16x1xi1>
    %14 = vector.broadcast %13 : vector<16x1xi1> to vector<16x1xi1>
    %15 = arith.xori %11, %14 : vector<16x1xi1>
    %16 = arith.andi %15, %9 : vector<16x1xi1>
    %17 = vector.broadcast %5 : i32 to vector<16x1xi32>
    %18 = arith.addi %7, %17 : vector<16x1xi32>
    %19 = arith.select %16, %18, %7 : vector<16x1xi1>, vector<16x1xi32>
    %c0 = arith.constant 0 : index
    %c0_5 = arith.constant 0 : index
    %c0_6 = arith.constant 0 : index
    %20 = vector.load %arg3[%c0, %c0_5, %c0_6] : memref<1x21x8xbf16, #tpu.memory_space<vmem>>, vector<1x16x8xbf16>
    %21 = vector.shape_cast %20 : vector<1x16x8xbf16> to vector<16x8xbf16>
    %c0_7 = arith.constant 0 : index
    %c0_8 = arith.constant 0 : index
    %22 = vector.load %arg7[%c0_7, %c0_8] : memref<16x32xf32, #tpu.memory_space<vmem>>, vector<16x32xf32>
    %c0_9 = arith.constant 0 : index
    %c0_10 = arith.constant 0 : index
    %c0_11 = arith.constant 0 : index
    %c0_12 = arith.constant 0 : index
    %23 = vector.load %arg4[%c0_9, %c0_10, %c0_11, %c0_12] : memref<1x4x8x32xbf16, #tpu.memory_space<vmem>>, vector<1x1x8x32xbf16>
    %24 = vector.shape_cast %23 : vector<1x1x8x32xbf16> to vector<8x32xbf16>
    %cst = arith.constant dense<0.000000e+00> : vector<16x32xf32>
    %25 = tpu.matmul %21, %24, %cst {dimension_numbers = #tpu.dot_dimension_numbers<[1], [0], [0], [1], [0, 0, 1, 1], [], []>} : vector<16x8xbf16>, vector<8x32xbf16>, vector<16x32xf32> -> vector<16x32xf32>
    %26 = arith.addf %22, %25 : vector<16x32xf32>
    %c0_13 = arith.constant 0 : index
    %c0_14 = arith.constant 0 : index
    %27 = vector.load %arg7[%c0_13, %c0_14] : memref<16x32xf32, #tpu.memory_space<vmem>>, vector<16x32xf32>
    tpu.vector_store %arg7[%c0_13, %c0_14], %26 {strides = array<i32>} : memref<16x32xf32, #tpu.memory_space<vmem>>, vector<16x32xf32>,
    %c0_15 = arith.constant 0 : index
    %c1 = arith.constant 1 : index
    %c0_16 = arith.constant 0 : index
    %28 = vector.load %arg3[%c0_15, %c1, %c0_16] : memref<1x21x8xbf16, #tpu.memory_space<vmem>>, vector<1x16x8xbf16>
    %29 = vector.shape_cast %28 : vector<1x16x8xbf16> to vector<16x8xbf16>
    %c3_i32 = arith.constant 3 : i32
    %30 = vector.broadcast %c3_i32 : i32 to vector<16x1xi32>
    %31 = arith.cmpi slt, %19, %30 : vector<16x1xi32>
    %cst_17 = arith.constant 0.000000e+00 : bf16
    %32 = vector.broadcast %cst_17 : bf16 to vector<16x8xbf16>
    %33 = vector.shape_cast %31 : vector<16x1xi1> to vector<16x1xi1>
    %34 = vector.broadcast %33 : vector<16x1xi1> to vector<16x8xi1>
    %35 = arith.select %34, %29, %32 : vector<16x8xi1>, vector<16x8xbf16>
    %c0_18 = arith.constant 0 : index
    %c0_19 = arith.constant 0 : index
    %36 = vector.load %arg7[%c0_18, %c0_19] : memref<16x32xf32, #tpu.memory_space<vmem>>, vector<16x32xf32>
    %c0_20 = arith.constant 0 : index
    %c1_21 = arith.constant 1 : index
    %c0_22 = arith.constant 0 : index
    %c0_23 = arith.constant 0 : index
    %37 = vector.load %arg4[%c0_20, %c1_21, %c0_22, %c0_23] : memref<1x4x8x32xbf16, #tpu.memory_space<vmem>>, vector<1x1x8x32xbf16>
    %38 = vector.shape_cast %37 : vector<1x1x8x32xbf16> to vector<8x32xbf16>
    %cst_24 = arith.constant dense<0.000000e+00> : vector<16x32xf32>
    %39 = tpu.matmul %35, %38, %cst_24 {dimension_numbers = #tpu.dot_dimension_numbers<[1], [0], [0], [1], [0, 0, 1, 1], [], []>} : vector<16x8xbf16>, vector<8x32xbf16>, vector<16x32xf32> -> vector<16x32xf32>
    %40 = arith.addf %36, %39 : vector<16x32xf32>
    %c0_25 = arith.constant 0 : index
    %c0_26 = arith.constant 0 : index
    %41 = vector.load %arg7[%c0_25, %c0_26] : memref<16x32xf32, #tpu.memory_space<vmem>>, vector<16x32xf32>
    tpu.vector_store %arg7[%c0_25, %c0_26], %40 {strides = array<i32>} : memref<16x32xf32, #tpu.memory_space<vmem>>, vector<16x32xf32>,
    %c0_27 = arith.constant 0 : index
    %c4 = arith.constant 4 : index
    %c0_28 = arith.constant 0 : index
    %42 = vector.load %arg3[%c0_27, %c4, %c0_28] : memref<1x21x8xbf16, #tpu.memory_space<vmem>>, vector<1x16x8xbf16>
    %43 = vector.shape_cast %42 : vector<1x16x8xbf16> to vector<16x8xbf16>
    %c0_29 = arith.constant 0 : index
    %c0_30 = arith.constant 0 : index
    %44 = vector.load %arg7[%c0_29, %c0_30] : memref<16x32xf32, #tpu.memory_space<vmem>>, vector<16x32xf32>
    %c0_31 = arith.constant 0 : index
    %c2 = arith.constant 2 : index
    %c0_32 = arith.constant 0 : index
    %c0_33 = arith.constant 0 : index
    %45 = vector.load %arg4[%c0_31, %c2, %c0_32, %c0_33] : memref<1x4x8x32xbf16, #tpu.memory_space<vmem>>, vector<1x1x8x32xbf16>
    %46 = vector.shape_cast %45 : vector<1x1x8x32xbf16> to vector<8x32xbf16>
    %cst_34 = arith.constant dense<0.000000e+00> : vector<16x32xf32>
    %47 = tpu.matmul %43, %46, %cst_34 {dimension_numbers = #tpu.dot_dimension_numbers<[1], [0], [0], [1], [0, 0, 1, 1], [], []>} : vector<16x8xbf16>, vector<8x32xbf16>, vector<16x32xf32> -> vector<16x32xf32>
    %48 = arith.addf %44, %47 : vector<16x32xf32>
    %c0_35 = arith.constant 0 : index
    %c0_36 = arith.constant 0 : index
    %49 = vector.load %arg7[%c0_35, %c0_36] : memref<16x32xf32, #tpu.memory_space<vmem>>, vector<16x32xf32>
    tpu.vector_store %arg7[%c0_35, %c0_36], %48 {strides = array<i32>} : memref<16x32xf32, #tpu.memory_space<vmem>>, vector<16x32xf32>,
    %c0_37 = arith.constant 0 : index
    %c5 = arith.constant 5 : index
    %c0_38 = arith.constant 0 : index
    %50 = vector.load %arg3[%c0_37, %c5, %c0_38] : memref<1x21x8xbf16, #tpu.memory_space<vmem>>, vector<1x16x8xbf16>
    %51 = vector.shape_cast %50 : vector<1x16x8xbf16> to vector<16x8xbf16>
    %c3_i32_39 = arith.constant 3 : i32
    %52 = vector.broadcast %c3_i32_39 : i32 to vector<16x1xi32>
    %53 = arith.cmpi slt, %19, %52 : vector<16x1xi32>
    %cst_40 = arith.constant 0.000000e+00 : bf16
    %54 = vector.broadcast %cst_40 : bf16 to vector<16x8xbf16>
    %55 = vector.shape_cast %53 : vector<16x1xi1> to vector<16x1xi1>
    %56 = vector.broadcast %55 : vector<16x1xi1> to vector<16x8xi1>
    %57 = arith.select %56, %51, %54 : vector<16x8xi1>, vector<16x8xbf16>
    %c0_41 = arith.constant 0 : index
    %c0_42 = arith.constant 0 : index
    %58 = vector.load %arg7[%c0_41, %c0_42] : memref<16x32xf32, #tpu.memory_space<vmem>>, vector<16x32xf32>
    %c0_43 = arith.constant 0 : index
    %c3 = arith.constant 3 : index
    %c0_44 = arith.constant 0 : index
    %c0_45 = arith.constant 0 : index
    %59 = vector.load %arg4[%c0_43, %c3, %c0_44, %c0_45] : memref<1x4x8x32xbf16, #tpu.memory_space<vmem>>, vector<1x1x8x32xbf16>
    %60 = vector.shape_cast %59 : vector<1x1x8x32xbf16> to vector<8x32xbf16>
    %cst_46 = arith.constant dense<0.000000e+00> : vector<16x32xf32>
    %61 = tpu.matmul %57, %60, %cst_46 {dimension_numbers = #tpu.dot_dimension_numbers<[1], [0], [0], [1], [0, 0, 1, 1], [], []>} : vector<16x8xbf16>, vector<8x32xbf16>, vector<16x32xf32> -> vector<16x32xf32>
    %62 = arith.addf %58, %61 : vector<16x32xf32>
    %c0_47 = arith.constant 0 : index
    %c0_48 = arith.constant 0 : index
    %63 = vector.load %arg7[%c0_47, %c0_48] : memref<16x32xf32, #tpu.memory_space<vmem>>, vector<16x32xf32>
    tpu.vector_store %arg7[%c0_47, %c0_48], %62 {strides = array<i32>} : memref<16x32xf32, #tpu.memory_space<vmem>>, vector<16x32xf32>,
    %c1_i32_49 = arith.constant 1 : i32
    %64 = arith.cmpi eq, %arg2, %c1_i32_49 : i32
    %65 = arith.extui %64 : i1 to i32
    %c0_i32_50 = arith.constant 0 : i32
    %66 = arith.cmpi ne, %65, %c0_i32_50 : i32
    scf.if %66 {
      %c0_51 = arith.constant 0 : index
      %c0_52 = arith.constant 0 : index
      %67 = vector.load %arg7[%c0_51, %c0_52] : memref<16x32xf32, #tpu.memory_space<vmem>>, vector<16x32xf32>
      %c0_53 = arith.constant 0 : index
      %c0_54 = arith.constant 0 : index
      %68 = vector.load %arg5[%c0_53, %c0_54] : memref<1x32xf32, #tpu.memory_space<vmem>>, vector<1x32xf32>
      %69 = vector.broadcast %68 : vector<1x32xf32> to vector<16x32xf32>
      %70 = arith.addf %67, %69 : vector<16x32xf32>
      %c0_55 = arith.constant 0 : index
      %c0_56 = arith.constant 0 : index
      %c0_57 = arith.constant 0 : index
      %c0_58 = arith.constant 0 : index
      %71 = vector.load %arg6[%c0_55, %c0_56, %c0_57, %c0_58] : memref<1x1x16x32xf32, #tpu.memory_space<vmem>>, vector<1x1x16x32xf32>
      %72 = vector.shape_cast %71 : vector<1x1x16x32xf32> to vector<16x32xf32>
      %73 = vector.shape_cast %70 : vector<16x32xf32> to vector<1x1x16x32xf32>
      tpu.vector_store %arg6[%c0_55, %c0_56, %c0_57, %c0_58], %73 {strides = array<i32>} : memref<1x1x16x32xf32, #tpu.memory_space<vmem>>, vector<1x1x16x32xf32>,
    } else {
    }
    return
  }
  func.func @transform_0(%arg0: i32, %arg1: i32, %arg2: i32) -> (i32, i32, i32) {
    %c5_i32 = arith.constant 5 : i32
    %0 = arith.muli %arg0, %c5_i32 : i32
    %1 = arith.addi %0, %arg1 : i32
    %2 = arith.addi %1, %arg2 : i32
    %c0_i32 = arith.constant 0 : i32
    %c0_i32_0 = arith.constant 0 : i32
    %c0_i32_1 = arith.constant 0 : i32
    return %2, %c0_i32, %c0_i32_0 : i32, i32, i32
  }
  func.func @transform_1(%arg0: i32, %arg1: i32, %arg2: i32) -> (i32, i32, i32, i32) {
    %c0_i32 = arith.constant 0 : i32
    %c0_i32_0 = arith.constant 0 : i32
    %c0_i32_1 = arith.constant 0 : i32
    %c0_i32_2 = arith.constant 0 : i32
    return %arg2, %c0_i32, %c0_i32_0, %c0_i32_1 : i32, i32, i32, i32
  }
  func.func @transform_2(%arg0: i32, %arg1: i32, %arg2: i32) -> (i32, i32) {
    %c0_i32 = arith.constant 0 : i32
    %c0_i32_0 = arith.constant 0 : i32
    %c0_i32_1 = arith.constant 0 : i32
    return %c0_i32, %c0_i32_0 : i32, i32
  }
  func.func @transform_3(%arg0: i32, %arg1: i32, %arg2: i32) -> (i32, i32, i32, i32) {
    %c0_i32 = arith.constant 0 : i32
    %c0_i32_0 = arith.constant 0 : i32
    %c0_i32_1 = arith.constant 0 : i32
    return %arg0, %arg1, %c0_i32, %c0_i32_0 : i32, i32, i32, i32
  }
}

module attributes {stable_mosaic.version = 11 : i64} {
  func.func @_matmul_kernel(%arg0: i32, %arg1: i32, %arg2: i32, %arg3: memref<64x4xbf16, #tpu.memory_space<vmem>>, %arg4: memref<4x8xbf16, #tpu.memory_space<vmem>>, %arg5: memref<1x8xf32, #tpu.memory_space<vmem>>, %arg6: memref<64x8xbf16, #tpu.memory_space<vmem>>, %arg7: memref<64x8xf32, #tpu.memory_space<vmem>>) attributes {dimension_semantics = [#tpu.dimension_semantics<parallel>, #tpu.dimension_semantics<parallel>, #tpu.dimension_semantics<arbitrary>], iteration_bounds = array<i64: 2, 1, 1>, scalar_prefetch = 0 : i64, scratch_operands = 1 : i64, tpu.core_type = #tpu.core_type<tc>, window_params = [{transform_indices = @transform_0, window_bounds = array<i64: 64, 4>}, {transform_indices = @transform_1, window_bounds = array<i64: 4, 8>}, {transform_indices = @transform_2, window_bounds = array<i64: 1, 8>}, {transform_indices = @transform_3, window_bounds = array<i64: 64, 8>}]} {
    %c0_i32 = arith.constant 0 : i32
    %0 = arith.cmpi eq, %arg2, %c0_i32 : i32
    %1 = arith.extui %0 : i1 to i32
    %c0_i32_0 = arith.constant 0 : i32
    %2 = arith.cmpi ne, %1, %c0_i32_0 : i32
    scf.if %2 {
      %cst_10 = arith.constant 0.000000e+00 : f32
      %12 = vector.broadcast %cst_10 : f32 to vector<64x8xf32>
      %c0_11 = arith.constant 0 : index
      %c0_12 = arith.constant 0 : index
      %13 = vector.load %arg7[%c0_11, %c0_12] : memref<64x8xf32, #tpu.memory_space<vmem>>, vector<64x8xf32>
      tpu.vector_store %arg7[%c0_11, %c0_12], %12 {strides = array<i32>} : memref<64x8xf32, #tpu.memory_space<vmem>>, vector<64x8xf32>,
    } else {
    }
    %c0 = arith.constant 0 : index
    %c0_1 = arith.constant 0 : index
    %3 = vector.load %arg7[%c0, %c0_1] : memref<64x8xf32, #tpu.memory_space<vmem>>, vector<64x8xf32>
    %c0_2 = arith.constant 0 : index
    %c0_3 = arith.constant 0 : index
    %4 = vector.load %arg3[%c0_2, %c0_3] : memref<64x4xbf16, #tpu.memory_space<vmem>>, vector<64x4xbf16>
    %c0_4 = arith.constant 0 : index
    %c0_5 = arith.constant 0 : index
    %5 = vector.load %arg4[%c0_4, %c0_5] : memref<4x8xbf16, #tpu.memory_space<vmem>>, vector<4x8xbf16>
    %cst = arith.constant dense<0.000000e+00> : vector<64x8xf32>
    %6 = tpu.matmul %4, %5, %cst {dimension_numbers = #tpu.dot_dimension_numbers<[1], [0], [0], [1], [0, 0, 1, 1], [], []>} : vector<64x4xbf16>, vector<4x8xbf16>, vector<64x8xf32> -> vector<64x8xf32>
    %7 = arith.addf %3, %6 : vector<64x8xf32>
    %c0_6 = arith.constant 0 : index
    %c0_7 = arith.constant 0 : index
    %8 = vector.load %arg7[%c0_6, %c0_7] : memref<64x8xf32, #tpu.memory_space<vmem>>, vector<64x8xf32>
    tpu.vector_store %arg7[%c0_6, %c0_7], %7 {strides = array<i32>} : memref<64x8xf32, #tpu.memory_space<vmem>>, vector<64x8xf32>,
    %c0_i32_8 = arith.constant 0 : i32
    %9 = arith.cmpi eq, %arg2, %c0_i32_8 : i32
    %10 = arith.extui %9 : i1 to i32
    %c0_i32_9 = arith.constant 0 : i32
    %11 = arith.cmpi ne, %10, %c0_i32_9 : i32
    scf.if %11 {
      %c0_10 = arith.constant 0 : index
      %c0_11 = arith.constant 0 : index
      %12 = vector.load %arg7[%c0_10, %c0_11] : memref<64x8xf32, #tpu.memory_space<vmem>>, vector<64x8xf32>
      %c0_12 = arith.constant 0 : index
      %c0_13 = arith.constant 0 : index
      %13 = vector.load %arg5[%c0_12, %c0_13] : memref<1x8xf32, #tpu.memory_space<vmem>>, vector<1x8xf32>
      %14 = vector.broadcast %13 : vector<1x8xf32> to vector<64x8xf32>
      %15 = arith.addf %12, %14 : vector<64x8xf32>
      %16 = arith.truncf %15 : vector<64x8xf32> to vector<64x8xbf16>
      %c0_14 = arith.constant 0 : index
      %c0_15 = arith.constant 0 : index
      %17 = vector.load %arg6[%c0_14, %c0_15] : memref<64x8xbf16, #tpu.memory_space<vmem>>, vector<64x8xbf16>
      tpu.vector_store %arg6[%c0_14, %c0_15], %16 {strides = array<i32>} : memref<64x8xbf16, #tpu.memory_space<vmem>>, vector<64x8xbf16>,
    } else {
    }
    return
  }
  func.func @transform_0(%arg0: i32, %arg1: i32, %arg2: i32) -> (i32, i32) {
    %c0_i32 = arith.constant 0 : i32
    return %arg0, %arg2 : i32, i32
  }
  func.func @transform_1(%arg0: i32, %arg1: i32, %arg2: i32) -> (i32, i32) {
    %c0_i32 = arith.constant 0 : i32
    return %arg2, %arg1 : i32, i32
  }
  func.func @transform_2(%arg0: i32, %arg1: i32, %arg2: i32) -> (i32, i32) {
    %c0_i32 = arith.constant 0 : i32
    %c0_i32_0 = arith.constant 0 : i32
    return %c0_i32, %arg1 : i32, i32
  }
  func.func @transform_3(%arg0: i32, %arg1: i32, %arg2: i32) -> (i32, i32) {
    %c0_i32 = arith.constant 0 : i32
    return %arg0, %arg1 : i32, i32
  }
}

module attributes {stable_mosaic.version = 11 : i64} {
  func.func @_plane_conv_kernel(%arg0: i32, %arg1: i32, %arg2: i32, %arg3: memref<1x21x4xbf16, #tpu.memory_space<vmem>>, %arg4: memref<1x4x4x32xbf16, #tpu.memory_space<vmem>>, %arg5: memref<1x32xf32, #tpu.memory_space<vmem>>, %arg6: memref<1x1x16x32xbf16, #tpu.memory_space<vmem>>, %arg7: memref<16x32xf32, #tpu.memory_space<vmem>>) attributes {dimension_semantics = [#tpu.dimension_semantics<parallel>, #tpu.dimension_semantics<parallel>, #tpu.dimension_semantics<arbitrary>], iteration_bounds = array<i64: 2, 4, 2>, scalar_prefetch = 0 : i64, scratch_operands = 1 : i64, tpu.core_type = #tpu.core_type<tc>, window_params = [{transform_indices = @transform_0, window_bounds = array<i64: 1, 21, 4>}, {transform_indices = @transform_1, window_bounds = array<i64: 1, 4, 4, 32>}, {pipeline_mode = #tpu.pipeline_mode<synchronous>, transform_indices = @transform_2, window_bounds = array<i64: 1, 32>}, {transform_indices = @transform_3, window_bounds = array<i64: 1, 1, 16, 32>}]} {
    %c0_i32 = arith.constant 0 : i32
    %0 = arith.cmpi eq, %arg2, %c0_i32 : i32
    %1 = arith.extui %0 : i1 to i32
    %c0_i32_0 = arith.constant 0 : i32
    %2 = arith.cmpi ne, %1, %c0_i32_0 : i32
    scf.if %2 {
      %cst_51 = arith.constant 0.000000e+00 : f32
      %67 = vector.broadcast %cst_51 : f32 to vector<16x32xf32>
      %c0_52 = arith.constant 0 : index
      %c0_53 = arith.constant 0 : index
      %68 = vector.load %arg7[%c0_52, %c0_53] : memref<16x32xf32, #tpu.memory_space<vmem>>, vector<16x32xf32>
      tpu.vector_store %arg7[%c0_52, %c0_53], %67 {strides = array<i32>} : memref<16x32xf32, #tpu.memory_space<vmem>>, vector<16x32xf32>,
    } else {
    }
    %3 = tpu.iota {dimensions = array<i32: 0>} : vector<16x1xi32>
    %c4_i32 = arith.constant 4 : i32
    %c0_i32_1 = arith.constant 0 : i32
    %4 = arith.cmpi eq, %c4_i32, %c0_i32_1 : i32
    %c1_i32 = arith.constant 1 : i32
    %5 = arith.select %4, %c1_i32, %c4_i32 : i32
    %6 = vector.broadcast %5 : i32 to vector<16x1xi32>
    %7 = arith.remsi %3, %6 : vector<16x1xi32>
    %c0_i32_2 = arith.constant 0 : i32
    %8 = vector.broadcast %c0_i32_2 : i32 to vector<16x1xi32>
    %9 = arith.cmpi ne, %7, %8 : vector<16x1xi32>
    %c0_i32_3 = arith.constant 0 : i32
    %10 = vector.broadcast %c0_i32_3 : i32 to vector<16x1xi32>
    %11 = arith.cmpi slt, %7, %10 : vector<16x1xi32>
    %c0_i32_4 = arith.constant 0 : i32
    %12 = arith.cmpi slt, %5, %c0_i32_4 : i32
    %13 = vector.broadcast %12 : i1 to vector<16x1xi1>
    %14 = vector.broadcast %13 : vector<16x1xi1> to vector<16x1xi1>
    %15 = arith.xori %11, %14 : vector<16x1xi1>
    %16 = arith.andi %15, %9 : vector<16x1xi1>
    %17 = vector.broadcast %5 : i32 to vector<16x1xi32>
    %18 = arith.addi %7, %17 : vector<16x1xi32>
    %19 = arith.select %16, %18, %7 : vector<16x1xi1>, vector<16x1xi32>
    %c0 = arith.constant 0 : index
    %c0_5 = arith.constant 0 : index
    %c0_6 = arith.constant 0 : index
    %20 = vector.load %arg3[%c0, %c0_5, %c0_6] : memref<1x21x4xbf16, #tpu.memory_space<vmem>>, vector<1x16x4xbf16>
    %21 = vector.shape_cast %20 : vector<1x16x4xbf16> to vector<16x4xbf16>
    %c0_7 = arith.constant 0 : index
    %c0_8 = arith.constant 0 : index
    %22 = vector.load %arg7[%c0_7, %c0_8] : memref<16x32xf32, #tpu.memory_space<vmem>>, vector<16x32xf32>
    %c0_9 = arith.constant 0 : index
    %c0_10 = arith.constant 0 : index
    %c0_11 = arith.constant 0 : index
    %c0_12 = arith.constant 0 : index
    %23 = vector.load %arg4[%c0_9, %c0_10, %c0_11, %c0_12] : memref<1x4x4x32xbf16, #tpu.memory_space<vmem>>, vector<1x1x4x32xbf16>
    %24 = vector.shape_cast %23 : vector<1x1x4x32xbf16> to vector<4x32xbf16>
    %cst = arith.constant dense<0.000000e+00> : vector<16x32xf32>
    %25 = tpu.matmul %21, %24, %cst {dimension_numbers = #tpu.dot_dimension_numbers<[1], [0], [0], [1], [0, 0, 1, 1], [], []>} : vector<16x4xbf16>, vector<4x32xbf16>, vector<16x32xf32> -> vector<16x32xf32>
    %26 = arith.addf %22, %25 : vector<16x32xf32>
    %c0_13 = arith.constant 0 : index
    %c0_14 = arith.constant 0 : index
    %27 = vector.load %arg7[%c0_13, %c0_14] : memref<16x32xf32, #tpu.memory_space<vmem>>, vector<16x32xf32>
    tpu.vector_store %arg7[%c0_13, %c0_14], %26 {strides = array<i32>} : memref<16x32xf32, #tpu.memory_space<vmem>>, vector<16x32xf32>,
    %c0_15 = arith.constant 0 : index
    %c1 = arith.constant 1 : index
    %c0_16 = arith.constant 0 : index
    %28 = vector.load %arg3[%c0_15, %c1, %c0_16] : memref<1x21x4xbf16, #tpu.memory_space<vmem>>, vector<1x16x4xbf16>
    %29 = vector.shape_cast %28 : vector<1x16x4xbf16> to vector<16x4xbf16>
    %c3_i32 = arith.constant 3 : i32
    %30 = vector.broadcast %c3_i32 : i32 to vector<16x1xi32>
    %31 = arith.cmpi slt, %19, %30 : vector<16x1xi32>
    %cst_17 = arith.constant 0.000000e+00 : bf16
    %32 = vector.broadcast %cst_17 : bf16 to vector<16x4xbf16>
    %33 = vector.shape_cast %31 : vector<16x1xi1> to vector<16x1xi1>
    %34 = vector.broadcast %33 : vector<16x1xi1> to vector<16x4xi1>
    %35 = arith.select %34, %29, %32 : vector<16x4xi1>, vector<16x4xbf16>
    %c0_18 = arith.constant 0 : index
    %c0_19 = arith.constant 0 : index
    %36 = vector.load %arg7[%c0_18, %c0_19] : memref<16x32xf32, #tpu.memory_space<vmem>>, vector<16x32xf32>
    %c0_20 = arith.constant 0 : index
    %c1_21 = arith.constant 1 : index
    %c0_22 = arith.constant 0 : index
    %c0_23 = arith.constant 0 : index
    %37 = vector.load %arg4[%c0_20, %c1_21, %c0_22, %c0_23] : memref<1x4x4x32xbf16, #tpu.memory_space<vmem>>, vector<1x1x4x32xbf16>
    %38 = vector.shape_cast %37 : vector<1x1x4x32xbf16> to vector<4x32xbf16>
    %cst_24 = arith.constant dense<0.000000e+00> : vector<16x32xf32>
    %39 = tpu.matmul %35, %38, %cst_24 {dimension_numbers = #tpu.dot_dimension_numbers<[1], [0], [0], [1], [0, 0, 1, 1], [], []>} : vector<16x4xbf16>, vector<4x32xbf16>, vector<16x32xf32> -> vector<16x32xf32>
    %40 = arith.addf %36, %39 : vector<16x32xf32>
    %c0_25 = arith.constant 0 : index
    %c0_26 = arith.constant 0 : index
    %41 = vector.load %arg7[%c0_25, %c0_26] : memref<16x32xf32, #tpu.memory_space<vmem>>, vector<16x32xf32>
    tpu.vector_store %arg7[%c0_25, %c0_26], %40 {strides = array<i32>} : memref<16x32xf32, #tpu.memory_space<vmem>>, vector<16x32xf32>,
    %c0_27 = arith.constant 0 : index
    %c4 = arith.constant 4 : index
    %c0_28 = arith.constant 0 : index
    %42 = vector.load %arg3[%c0_27, %c4, %c0_28] : memref<1x21x4xbf16, #tpu.memory_space<vmem>>, vector<1x16x4xbf16>
    %43 = vector.shape_cast %42 : vector<1x16x4xbf16> to vector<16x4xbf16>
    %c0_29 = arith.constant 0 : index
    %c0_30 = arith.constant 0 : index
    %44 = vector.load %arg7[%c0_29, %c0_30] : memref<16x32xf32, #tpu.memory_space<vmem>>, vector<16x32xf32>
    %c0_31 = arith.constant 0 : index
    %c2 = arith.constant 2 : index
    %c0_32 = arith.constant 0 : index
    %c0_33 = arith.constant 0 : index
    %45 = vector.load %arg4[%c0_31, %c2, %c0_32, %c0_33] : memref<1x4x4x32xbf16, #tpu.memory_space<vmem>>, vector<1x1x4x32xbf16>
    %46 = vector.shape_cast %45 : vector<1x1x4x32xbf16> to vector<4x32xbf16>
    %cst_34 = arith.constant dense<0.000000e+00> : vector<16x32xf32>
    %47 = tpu.matmul %43, %46, %cst_34 {dimension_numbers = #tpu.dot_dimension_numbers<[1], [0], [0], [1], [0, 0, 1, 1], [], []>} : vector<16x4xbf16>, vector<4x32xbf16>, vector<16x32xf32> -> vector<16x32xf32>
    %48 = arith.addf %44, %47 : vector<16x32xf32>
    %c0_35 = arith.constant 0 : index
    %c0_36 = arith.constant 0 : index
    %49 = vector.load %arg7[%c0_35, %c0_36] : memref<16x32xf32, #tpu.memory_space<vmem>>, vector<16x32xf32>
    tpu.vector_store %arg7[%c0_35, %c0_36], %48 {strides = array<i32>} : memref<16x32xf32, #tpu.memory_space<vmem>>, vector<16x32xf32>,
    %c0_37 = arith.constant 0 : index
    %c5 = arith.constant 5 : index
    %c0_38 = arith.constant 0 : index
    %50 = vector.load %arg3[%c0_37, %c5, %c0_38] : memref<1x21x4xbf16, #tpu.memory_space<vmem>>, vector<1x16x4xbf16>
    %51 = vector.shape_cast %50 : vector<1x16x4xbf16> to vector<16x4xbf16>
    %c3_i32_39 = arith.constant 3 : i32
    %52 = vector.broadcast %c3_i32_39 : i32 to vector<16x1xi32>
    %53 = arith.cmpi slt, %19, %52 : vector<16x1xi32>
    %cst_40 = arith.constant 0.000000e+00 : bf16
    %54 = vector.broadcast %cst_40 : bf16 to vector<16x4xbf16>
    %55 = vector.shape_cast %53 : vector<16x1xi1> to vector<16x1xi1>
    %56 = vector.broadcast %55 : vector<16x1xi1> to vector<16x4xi1>
    %57 = arith.select %56, %51, %54 : vector<16x4xi1>, vector<16x4xbf16>
    %c0_41 = arith.constant 0 : index
    %c0_42 = arith.constant 0 : index
    %58 = vector.load %arg7[%c0_41, %c0_42] : memref<16x32xf32, #tpu.memory_space<vmem>>, vector<16x32xf32>
    %c0_43 = arith.constant 0 : index
    %c3 = arith.constant 3 : index
    %c0_44 = arith.constant 0 : index
    %c0_45 = arith.constant 0 : index
    %59 = vector.load %arg4[%c0_43, %c3, %c0_44, %c0_45] : memref<1x4x4x32xbf16, #tpu.memory_space<vmem>>, vector<1x1x4x32xbf16>
    %60 = vector.shape_cast %59 : vector<1x1x4x32xbf16> to vector<4x32xbf16>
    %cst_46 = arith.constant dense<0.000000e+00> : vector<16x32xf32>
    %61 = tpu.matmul %57, %60, %cst_46 {dimension_numbers = #tpu.dot_dimension_numbers<[1], [0], [0], [1], [0, 0, 1, 1], [], []>} : vector<16x4xbf16>, vector<4x32xbf16>, vector<16x32xf32> -> vector<16x32xf32>
    %62 = arith.addf %58, %61 : vector<16x32xf32>
    %c0_47 = arith.constant 0 : index
    %c0_48 = arith.constant 0 : index
    %63 = vector.load %arg7[%c0_47, %c0_48] : memref<16x32xf32, #tpu.memory_space<vmem>>, vector<16x32xf32>
    tpu.vector_store %arg7[%c0_47, %c0_48], %62 {strides = array<i32>} : memref<16x32xf32, #tpu.memory_space<vmem>>, vector<16x32xf32>,
    %c1_i32_49 = arith.constant 1 : i32
    %64 = arith.cmpi eq, %arg2, %c1_i32_49 : i32
    %65 = arith.extui %64 : i1 to i32
    %c0_i32_50 = arith.constant 0 : i32
    %66 = arith.cmpi ne, %65, %c0_i32_50 : i32
    scf.if %66 {
      %c0_51 = arith.constant 0 : index
      %c0_52 = arith.constant 0 : index
      %67 = vector.load %arg7[%c0_51, %c0_52] : memref<16x32xf32, #tpu.memory_space<vmem>>, vector<16x32xf32>
      %c0_53 = arith.constant 0 : index
      %c0_54 = arith.constant 0 : index
      %68 = vector.load %arg5[%c0_53, %c0_54] : memref<1x32xf32, #tpu.memory_space<vmem>>, vector<1x32xf32>
      %69 = vector.broadcast %68 : vector<1x32xf32> to vector<16x32xf32>
      %70 = arith.addf %67, %69 : vector<16x32xf32>
      %71 = arith.truncf %70 : vector<16x32xf32> to vector<16x32xbf16>
      %c0_55 = arith.constant 0 : index
      %c0_56 = arith.constant 0 : index
      %c0_57 = arith.constant 0 : index
      %c0_58 = arith.constant 0 : index
      %72 = vector.load %arg6[%c0_55, %c0_56, %c0_57, %c0_58] : memref<1x1x16x32xbf16, #tpu.memory_space<vmem>>, vector<1x1x16x32xbf16>
      %73 = vector.shape_cast %72 : vector<1x1x16x32xbf16> to vector<16x32xbf16>
      %74 = vector.shape_cast %71 : vector<16x32xbf16> to vector<1x1x16x32xbf16>
      tpu.vector_store %arg6[%c0_55, %c0_56, %c0_57, %c0_58], %74 {strides = array<i32>} : memref<1x1x16x32xbf16, #tpu.memory_space<vmem>>, vector<1x1x16x32xbf16>,
    } else {
    }
    return
  }
  func.func @transform_0(%arg0: i32, %arg1: i32, %arg2: i32) -> (i32, i32, i32) {
    %c5_i32 = arith.constant 5 : i32
    %0 = arith.muli %arg0, %c5_i32 : i32
    %1 = arith.addi %0, %arg1 : i32
    %2 = arith.addi %1, %arg2 : i32
    %c0_i32 = arith.constant 0 : i32
    %c0_i32_0 = arith.constant 0 : i32
    %c0_i32_1 = arith.constant 0 : i32
    return %2, %c0_i32, %c0_i32_0 : i32, i32, i32
  }
  func.func @transform_1(%arg0: i32, %arg1: i32, %arg2: i32) -> (i32, i32, i32, i32) {
    %c0_i32 = arith.constant 0 : i32
    %c0_i32_0 = arith.constant 0 : i32
    %c0_i32_1 = arith.constant 0 : i32
    %c0_i32_2 = arith.constant 0 : i32
    return %arg2, %c0_i32, %c0_i32_0, %c0_i32_1 : i32, i32, i32, i32
  }
  func.func @transform_2(%arg0: i32, %arg1: i32, %arg2: i32) -> (i32, i32) {
    %c0_i32 = arith.constant 0 : i32
    %c0_i32_0 = arith.constant 0 : i32
    %c0_i32_1 = arith.constant 0 : i32
    return %c0_i32, %c0_i32_0 : i32, i32
  }
  func.func @transform_3(%arg0: i32, %arg1: i32, %arg2: i32) -> (i32, i32, i32, i32) {
    %c0_i32 = arith.constant 0 : i32
    %c0_i32_0 = arith.constant 0 : i32
    %c0_i32_1 = arith.constant 0 : i32
    return %arg0, %arg1, %c0_i32, %c0_i32_0 : i32, i32, i32, i32
  }
}

module attributes {stable_mosaic.version = 11 : i64} {
  func.func @_attn_single_kv_kernel(%arg0: i32, %arg1: i32, %arg2: memref<1x256x4xbf16, #tpu.memory_space<vmem>>, %arg3: memref<1x64x4xbf16, #tpu.memory_space<vmem>>, %arg4: memref<1x64x4xbf16, #tpu.memory_space<vmem>>, %arg5: memref<1x256x4xbf16, #tpu.memory_space<vmem>>) attributes {dimension_semantics = [#tpu.dimension_semantics<parallel>, #tpu.dimension_semantics<parallel>], iteration_bounds = array<i64: 2, 2>, scalar_prefetch = 0 : i64, scratch_operands = 0 : i64, tpu.core_type = #tpu.core_type<tc>, window_params = [{transform_indices = @transform_0, window_bounds = array<i64: 1, 256, 4>}, {transform_indices = @transform_1, window_bounds = array<i64: 1, 64, 4>}, {transform_indices = @transform_2, window_bounds = array<i64: 1, 64, 4>}, {transform_indices = @transform_3, window_bounds = array<i64: 1, 256, 4>}]} {
    %c0 = arith.constant 0 : index
    %c0_0 = arith.constant 0 : index
    %c0_1 = arith.constant 0 : index
    %0 = vector.load %arg2[%c0, %c0_0, %c0_1] : memref<1x256x4xbf16, #tpu.memory_space<vmem>>, vector<1x256x4xbf16>
    %1 = vector.shape_cast %0 : vector<1x256x4xbf16> to vector<256x4xbf16>
    %c0_2 = arith.constant 0 : index
    %c0_3 = arith.constant 0 : index
    %c0_4 = arith.constant 0 : index
    %2 = vector.load %arg3[%c0_2, %c0_3, %c0_4] : memref<1x64x4xbf16, #tpu.memory_space<vmem>>, vector<1x64x4xbf16>
    %3 = vector.shape_cast %2 : vector<1x64x4xbf16> to vector<64x4xbf16>
    %cst = arith.constant dense<0.000000e+00> : vector<256x64xf32>
    %4 = tpu.matmul %1, %3, %cst {dimension_numbers = #tpu.dot_dimension_numbers<[1], [1], [0], [0], [0, 0, 1, 0], [], []>} : vector<256x4xbf16>, vector<64x4xbf16>, vector<256x64xf32> -> vector<256x64xf32>
    %cst_5 = arith.constant dense<0xFF800000> : vector<256xf32>
    %5 = vector.multi_reduction <maximumf>, %4, %cst_5 [1] : vector<256x64xf32> to vector<256xf32>
    %6 = vector.shape_cast %5 : vector<256xf32> to vector<256x1xf32>
    %7 = vector.broadcast %6 : vector<256x1xf32> to vector<256x64xf32>
    %8 = arith.subf %4, %7 : vector<256x64xf32>
    %9 = math.exp %8 : vector<256x64xf32>
    %cst_6 = arith.constant dense<0.000000e+00> : vector<256xf32>
    %10 = vector.multi_reduction <add>, %9, %cst_6 [1] : vector<256x64xf32> to vector<256xf32>
    %11 = vector.shape_cast %10 : vector<256xf32> to vector<256x1xf32>
    %12 = arith.truncf %9 : vector<256x64xf32> to vector<256x64xbf16>
    %c0_7 = arith.constant 0 : index
    %c0_8 = arith.constant 0 : index
    %c0_9 = arith.constant 0 : index
    %13 = vector.load %arg4[%c0_7, %c0_8, %c0_9] : memref<1x64x4xbf16, #tpu.memory_space<vmem>>, vector<1x64x4xbf16>
    %14 = vector.shape_cast %13 : vector<1x64x4xbf16> to vector<64x4xbf16>
    %cst_10 = arith.constant dense<0.000000e+00> : vector<256x4xf32>
    %15 = tpu.matmul %12, %14, %cst_10 {dimension_numbers = #tpu.dot_dimension_numbers<[1], [0], [0], [1], [0, 0, 1, 1], [], []>} : vector<256x64xbf16>, vector<64x4xbf16>, vector<256x4xf32> -> vector<256x4xf32>
    %16 = tpu.reciprocal %11 {approx = true} : vector<256x1xf32> -> vector<256x1xf32>
    %17 = vector.broadcast %16 : vector<256x1xf32> to vector<256x4xf32>
    %18 = arith.mulf %15, %17 : vector<256x4xf32>
    %19 = arith.truncf %18 : vector<256x4xf32> to vector<256x4xbf16>
    %c0_11 = arith.constant 0 : index
    %c0_12 = arith.constant 0 : index
    %c0_13 = arith.constant 0 : index
    %20 = vector.load %arg5[%c0_11, %c0_12, %c0_13] : memref<1x256x4xbf16, #tpu.memory_space<vmem>>, vector<1x256x4xbf16>
    %21 = vector.shape_cast %20 : vector<1x256x4xbf16> to vector<256x4xbf16>
    %22 = vector.shape_cast %19 : vector<256x4xbf16> to vector<1x256x4xbf16>
    tpu.vector_store %arg5[%c0_11, %c0_12, %c0_13], %22 {strides = array<i32>} : memref<1x256x4xbf16, #tpu.memory_space<vmem>>, vector<1x256x4xbf16>,
    return
  }
  func.func @transform_0(%arg0: i32, %arg1: i32) -> (i32, i32, i32) {
    %c0_i32 = arith.constant 0 : i32
    %c0_i32_0 = arith.constant 0 : i32
    return %arg0, %arg1, %c0_i32 : i32, i32, i32
  }
  func.func @transform_1(%arg0: i32, %arg1: i32) -> (i32, i32, i32) {
    %c0_i32 = arith.constant 0 : i32
    %c0_i32_0 = arith.constant 0 : i32
    %c0_i32_1 = arith.constant 0 : i32
    return %arg0, %c0_i32, %c0_i32_0 : i32, i32, i32
  }
  func.func @transform_2(%arg0: i32, %arg1: i32) -> (i32, i32, i32) {
    %c0_i32 = arith.constant 0 : i32
    %c0_i32_0 = arith.constant 0 : i32
    %c0_i32_1 = arith.constant 0 : i32
    return %arg0, %c0_i32, %c0_i32_0 : i32, i32, i32
  }
  func.func @transform_3(%arg0: i32, %arg1: i32) -> (i32, i32, i32) {
    %c0_i32 = arith.constant 0 : i32
    %c0_i32_0 = arith.constant 0 : i32
    return %arg0, %arg1, %c0_i32 : i32, i32, i32
  }
}

module attributes {stable_mosaic.version = 11 : i64} {
  func.func @_matmul_kernel(%arg0: i32, %arg1: i32, %arg2: i32, %arg3: memref<256x4xbf16, #tpu.memory_space<vmem>>, %arg4: memref<4x4xbf16, #tpu.memory_space<vmem>>, %arg5: memref<1x4xf32, #tpu.memory_space<vmem>>, %arg6: memref<256x4xf32, #tpu.memory_space<vmem>>, %arg7: memref<256x4xf32, #tpu.memory_space<vmem>>, %arg8: memref<256x4xf32, #tpu.memory_space<vmem>>) attributes {dimension_semantics = [#tpu.dimension_semantics<parallel>, #tpu.dimension_semantics<parallel>, #tpu.dimension_semantics<arbitrary>], iteration_bounds = array<i64: 4, 1, 1>, scalar_prefetch = 0 : i64, scratch_operands = 1 : i64, tpu.core_type = #tpu.core_type<tc>, window_params = [{transform_indices = @transform_0, window_bounds = array<i64: 256, 4>}, {transform_indices = @transform_1, window_bounds = array<i64: 4, 4>}, {transform_indices = @transform_2, window_bounds = array<i64: 1, 4>}, {transform_indices = @transform_3, window_bounds = array<i64: 256, 4>}, {transform_indices = @transform_4, window_bounds = array<i64: 256, 4>}]} {
    %c0_i32 = arith.constant 0 : i32
    %0 = arith.cmpi eq, %arg2, %c0_i32 : i32
    %1 = arith.extui %0 : i1 to i32
    %c0_i32_0 = arith.constant 0 : i32
    %2 = arith.cmpi ne, %1, %c0_i32_0 : i32
    scf.if %2 {
      %cst_10 = arith.constant 0.000000e+00 : f32
      %12 = vector.broadcast %cst_10 : f32 to vector<256x4xf32>
      %c0_11 = arith.constant 0 : index
      %c0_12 = arith.constant 0 : index
      %13 = vector.load %arg8[%c0_11, %c0_12] : memref<256x4xf32, #tpu.memory_space<vmem>>, vector<256x4xf32>
      tpu.vector_store %arg8[%c0_11, %c0_12], %12 {strides = array<i32>} : memref<256x4xf32, #tpu.memory_space<vmem>>, vector<256x4xf32>,
    } else {
    }
    %c0 = arith.constant 0 : index
    %c0_1 = arith.constant 0 : index
    %3 = vector.load %arg8[%c0, %c0_1] : memref<256x4xf32, #tpu.memory_space<vmem>>, vector<256x4xf32>
    %c0_2 = arith.constant 0 : index
    %c0_3 = arith.constant 0 : index
    %4 = vector.load %arg3[%c0_2, %c0_3] : memref<256x4xbf16, #tpu.memory_space<vmem>>, vector<256x4xbf16>
    %c0_4 = arith.constant 0 : index
    %c0_5 = arith.constant 0 : index
    %5 = vector.load %arg4[%c0_4, %c0_5] : memref<4x4xbf16, #tpu.memory_space<vmem>>, vector<4x4xbf16>
    %cst = arith.constant dense<0.000000e+00> : vector<256x4xf32>
    %6 = tpu.matmul %4, %5, %cst {dimension_numbers = #tpu.dot_dimension_numbers<[1], [0], [0], [1], [0, 0, 1, 1], [], []>} : vector<256x4xbf16>, vector<4x4xbf16>, vector<256x4xf32> -> vector<256x4xf32>
    %7 = arith.addf %3, %6 : vector<256x4xf32>
    %c0_6 = arith.constant 0 : index
    %c0_7 = arith.constant 0 : index
    %8 = vector.load %arg8[%c0_6, %c0_7] : memref<256x4xf32, #tpu.memory_space<vmem>>, vector<256x4xf32>
    tpu.vector_store %arg8[%c0_6, %c0_7], %7 {strides = array<i32>} : memref<256x4xf32, #tpu.memory_space<vmem>>, vector<256x4xf32>,
    %c0_i32_8 = arith.constant 0 : i32
    %9 = arith.cmpi eq, %arg2, %c0_i32_8 : i32
    %10 = arith.extui %9 : i1 to i32
    %c0_i32_9 = arith.constant 0 : i32
    %11 = arith.cmpi ne, %10, %c0_i32_9 : i32
    scf.if %11 {
      %c0_10 = arith.constant 0 : index
      %c0_11 = arith.constant 0 : index
      %12 = vector.load %arg8[%c0_10, %c0_11] : memref<256x4xf32, #tpu.memory_space<vmem>>, vector<256x4xf32>
      %c0_12 = arith.constant 0 : index
      %c0_13 = arith.constant 0 : index
      %13 = vector.load %arg5[%c0_12, %c0_13] : memref<1x4xf32, #tpu.memory_space<vmem>>, vector<1x4xf32>
      %14 = vector.broadcast %13 : vector<1x4xf32> to vector<256x4xf32>
      %15 = arith.addf %12, %14 : vector<256x4xf32>
      %c0_14 = arith.constant 0 : index
      %c0_15 = arith.constant 0 : index
      %16 = vector.load %arg6[%c0_14, %c0_15] : memref<256x4xf32, #tpu.memory_space<vmem>>, vector<256x4xf32>
      %17 = arith.addf %15, %16 : vector<256x4xf32>
      %c0_16 = arith.constant 0 : index
      %c0_17 = arith.constant 0 : index
      %18 = vector.load %arg7[%c0_16, %c0_17] : memref<256x4xf32, #tpu.memory_space<vmem>>, vector<256x4xf32>
      tpu.vector_store %arg7[%c0_16, %c0_17], %17 {strides = array<i32>} : memref<256x4xf32, #tpu.memory_space<vmem>>, vector<256x4xf32>,
    } else {
    }
    return
  }
  func.func @transform_0(%arg0: i32, %arg1: i32, %arg2: i32) -> (i32, i32) {
    %c0_i32 = arith.constant 0 : i32
    return %arg0, %arg2 : i32, i32
  }
  func.func @transform_1(%arg0: i32, %arg1: i32, %arg2: i32) -> (i32, i32) {
    %c0_i32 = arith.constant 0 : i32
    return %arg2, %arg1 : i32, i32
  }
  func.func @transform_2(%arg0: i32, %arg1: i32, %arg2: i32) -> (i32, i32) {
    %c0_i32 = arith.constant 0 : i32
    %c0_i32_0 = arith.constant 0 : i32
    return %c0_i32, %arg1 : i32, i32
  }
  func.func @transform_3(%arg0: i32, %arg1: i32, %arg2: i32) -> (i32, i32) {
    %c0_i32 = arith.constant 0 : i32
    return %arg0, %arg1 : i32, i32
  }
  func.func @transform_4(%arg0: i32, %arg1: i32, %arg2: i32) -> (i32, i32) {
    %c0_i32 = arith.constant 0 : i32
    return %arg0, %arg1 : i32, i32
  }
}

module attributes {stable_mosaic.version = 11 : i64} {
  func.func @_scale_shift_relu6_kernel(%arg0: i32, %arg1: memref<128x32xf32, #tpu.memory_space<vmem>>, %arg2: memref<1x32xf32, #tpu.memory_space<vmem>>, %arg3: memref<1x32xf32, #tpu.memory_space<vmem>>, %arg4: memref<128x32xbf16, #tpu.memory_space<vmem>>) attributes {dimension_semantics = [#tpu.dimension_semantics<parallel>], iteration_bounds = array<i64: 1>, scalar_prefetch = 0 : i64, scratch_operands = 0 : i64, tpu.core_type = #tpu.core_type<tc>, window_params = [{transform_indices = @transform_0, window_bounds = array<i64: 128, 32>}, {pipeline_mode = #tpu.pipeline_mode<synchronous>, transform_indices = @transform_1, window_bounds = array<i64: 1, 32>}, {pipeline_mode = #tpu.pipeline_mode<synchronous>, transform_indices = @transform_2, window_bounds = array<i64: 1, 32>}, {transform_indices = @transform_3, window_bounds = array<i64: 128, 32>}]} {
    %c0 = arith.constant 0 : index
    %c0_0 = arith.constant 0 : index
    %0 = vector.load %arg1[%c0, %c0_0] : memref<128x32xf32, #tpu.memory_space<vmem>>, vector<128x32xf32>
    %c0_1 = arith.constant 0 : index
    %c0_2 = arith.constant 0 : index
    %1 = vector.load %arg2[%c0_1, %c0_2] : memref<1x32xf32, #tpu.memory_space<vmem>>, vector<1x32xf32>
    %2 = vector.broadcast %1 : vector<1x32xf32> to vector<128x32xf32>
    %3 = arith.mulf %0, %2 : vector<128x32xf32>
    %c0_3 = arith.constant 0 : index
    %c0_4 = arith.constant 0 : index
    %4 = vector.load %arg3[%c0_3, %c0_4] : memref<1x32xf32, #tpu.memory_space<vmem>>, vector<1x32xf32>
    %5 = vector.broadcast %4 : vector<1x32xf32> to vector<128x32xf32>
    %6 = arith.addf %3, %5 : vector<128x32xf32>
    %cst = arith.constant 0.000000e+00 : f32
    %cst_5 = arith.constant 6.000000e+00 : f32
    %7 = vector.broadcast %cst : f32 to vector<128x32xf32>
    %8 = arith.maximumf %7, %6 : vector<128x32xf32>
    %9 = vector.broadcast %cst_5 : f32 to vector<128x32xf32>
    %10 = arith.minimumf %9, %8 : vector<128x32xf32>
    %11 = arith.truncf %10 : vector<128x32xf32> to vector<128x32xbf16>
    %c0_6 = arith.constant 0 : index
    %c0_7 = arith.constant 0 : index
    %12 = vector.load %arg4[%c0_6, %c0_7] : memref<128x32xbf16, #tpu.memory_space<vmem>>, vector<128x32xbf16>
    tpu.vector_store %arg4[%c0_6, %c0_7], %11 {strides = array<i32>} : memref<128x32xbf16, #tpu.memory_space<vmem>>, vector<128x32xbf16>,
    return
  }
  func.func @transform_0(%arg0: i32) -> (i32, i32) {
    %c0_i32 = arith.constant 0 : i32
    %c0_i32_0 = arith.constant 0 : i32
    return %arg0, %c0_i32 : i32, i32
  }
  func.func @transform_1(%arg0: i32) -> (i32, i32) {
    %c0_i32 = arith.constant 0 : i32
    %c0_i32_0 = arith.constant 0 : i32
    %c0_i32_1 = arith.constant 0 : i32
    return %c0_i32, %c0_i32_0 : i32, i32
  }
  func.func @transform_2(%arg0: i32) -> (i32, i32) {
    %c0_i32 = arith.constant 0 : i32
    %c0_i32_0 = arith.constant 0 : i32
    %c0_i32_1 = arith.constant 0 : i32
    return %c0_i32, %c0_i32_0 : i32, i32
  }
  func.func @transform_3(%arg0: i32) -> (i32, i32) {
    %c0_i32 = arith.constant 0 : i32
    %c0_i32_0 = arith.constant 0 : i32
    return %arg0, %c0_i32 : i32, i32
  }
}

module attributes {stable_mosaic.version = 11 : i64} {
  func.func @_plane_conv_kernel(%arg0: i32, %arg1: i32, %arg2: i32, %arg3: memref<1x82x4xbf16, #tpu.memory_space<vmem>>, %arg4: memref<1x9x4x4xbf16, #tpu.memory_space<vmem>>, %arg5: memref<1x4xf32, #tpu.memory_space<vmem>>, %arg6: memref<1x1x64x4xbf16, #tpu.memory_space<vmem>>, %arg7: memref<64x4xf32, #tpu.memory_space<vmem>>) attributes {dimension_semantics = [#tpu.dimension_semantics<parallel>, #tpu.dimension_semantics<parallel>, #tpu.dimension_semantics<arbitrary>], iteration_bounds = array<i64: 2, 8, 3>, scalar_prefetch = 0 : i64, scratch_operands = 1 : i64, tpu.core_type = #tpu.core_type<tc>, window_params = [{transform_indices = @transform_0, window_bounds = array<i64: 1, 82, 4>}, {transform_indices = @transform_1, window_bounds = array<i64: 1, 9, 4, 4>}, {pipeline_mode = #tpu.pipeline_mode<synchronous>, transform_indices = @transform_2, window_bounds = array<i64: 1, 4>}, {transform_indices = @transform_3, window_bounds = array<i64: 1, 1, 64, 4>}]} {
    %c0_i32 = arith.constant 0 : i32
    %0 = arith.cmpi eq, %arg2, %c0_i32 : i32
    %1 = arith.extui %0 : i1 to i32
    %c0_i32_0 = arith.constant 0 : i32
    %2 = arith.cmpi ne, %1, %c0_i32_0 : i32
    scf.if %2 {
      %cst_110 = arith.constant 0.000000e+00 : f32
      %131 = vector.broadcast %cst_110 : f32 to vector<64x4xf32>
      %c0_111 = arith.constant 0 : index
      %c0_112 = arith.constant 0 : index
      %132 = vector.load %arg7[%c0_111, %c0_112] : memref<64x4xf32, #tpu.memory_space<vmem>>, vector<64x4xf32>
      tpu.vector_store %arg7[%c0_111, %c0_112], %131 {strides = array<i32>} : memref<64x4xf32, #tpu.memory_space<vmem>>, vector<64x4xf32>,
    } else {
    }
    %3 = tpu.iota {dimensions = array<i32: 0>} : vector<64x1xi32>
    %c8_i32 = arith.constant 8 : i32
    %c0_i32_1 = arith.constant 0 : i32
    %4 = arith.cmpi eq, %c8_i32, %c0_i32_1 : i32
    %c1_i32 = arith.constant 1 : i32
    %5 = arith.select %4, %c1_i32, %c8_i32 : i32
    %6 = vector.broadcast %5 : i32 to vector<64x1xi32>
    %7 = arith.remsi %3, %6 : vector<64x1xi32>
    %c0_i32_2 = arith.constant 0 : i32
    %8 = vector.broadcast %c0_i32_2 : i32 to vector<64x1xi32>
    %9 = arith.cmpi ne, %7, %8 : vector<64x1xi32>
    %c0_i32_3 = arith.constant 0 : i32
    %10 = vector.broadcast %c0_i32_3 : i32 to vector<64x1xi32>
    %11 = arith.cmpi slt, %7, %10 : vector<64x1xi32>
    %c0_i32_4 = arith.constant 0 : i32
    %12 = arith.cmpi slt, %5, %c0_i32_4 : i32
    %13 = vector.broadcast %12 : i1 to vector<64x1xi1>
    %14 = vector.broadcast %13 : vector<64x1xi1> to vector<64x1xi1>
    %15 = arith.xori %11, %14 : vector<64x1xi1>
    %16 = arith.andi %15, %9 : vector<64x1xi1>
    %17 = vector.broadcast %5 : i32 to vector<64x1xi32>
    %18 = arith.addi %7, %17 : vector<64x1xi32>
    %19 = arith.select %16, %18, %7 : vector<64x1xi1>, vector<64x1xi32>
    %c0 = arith.constant 0 : index
    %c0_5 = arith.constant 0 : index
    %c0_6 = arith.constant 0 : index
    %20 = vector.load %arg3[%c0, %c0_5, %c0_6] : memref<1x82x4xbf16, #tpu.memory_space<vmem>>, vector<1x64x4xbf16>
    %21 = vector.shape_cast %20 : vector<1x64x4xbf16> to vector<64x4xbf16>
    %c1_i32_7 = arith.constant 1 : i32
    %22 = vector.broadcast %c1_i32_7 : i32 to vector<64x1xi32>
    %23 = arith.cmpi sge, %19, %22 : vector<64x1xi32>
    %cst = arith.constant 0.000000e+00 : bf16
    %24 = vector.broadcast %cst : bf16 to vector<64x4xbf16>
    %25 = vector.shape_cast %23 : vector<64x1xi1> to vector<64x1xi1>
    %26 = vector.broadcast %25 : vector<64x1xi1> to vector<64x4xi1>
    %27 = arith.select %26, %21, %24 : vector<64x4xi1>, vector<64x4xbf16>
    %c0_8 = arith.constant 0 : index
    %c0_9 = arith.constant 0 : index
    %28 = vector.load %arg7[%c0_8, %c0_9] : memref<64x4xf32, #tpu.memory_space<vmem>>, vector<64x4xf32>
    %c0_10 = arith.constant 0 : index
    %c0_11 = arith.constant 0 : index
    %c0_12 = arith.constant 0 : index
    %c0_13 = arith.constant 0 : index
    %29 = vector.load %arg4[%c0_10, %c0_11, %c0_12, %c0_13] : memref<1x9x4x4xbf16, #tpu.memory_space<vmem>>, vector<1x1x4x4xbf16>
    %30 = vector.shape_cast %29 : vector<1x1x4x4xbf16> to vector<4x4xbf16>
    %cst_14 = arith.constant dense<0.000000e+00> : vector<64x4xf32>
    %31 = tpu.matmul %27, %30, %cst_14 {dimension_numbers = #tpu.dot_dimension_numbers<[1], [0], [0], [1], [0, 0, 1, 1], [], []>} : vector<64x4xbf16>, vector<4x4xbf16>, vector<64x4xf32> -> vector<64x4xf32>
    %32 = arith.addf %28, %31 : vector<64x4xf32>
    %c0_15 = arith.constant 0 : index
    %c0_16 = arith.constant 0 : index
    %33 = vector.load %arg7[%c0_15, %c0_16] : memref<64x4xf32, #tpu.memory_space<vmem>>, vector<64x4xf32>
    tpu.vector_store %arg7[%c0_15, %c0_16], %32 {strides = array<i32>} : memref<64x4xf32, #tpu.memory_space<vmem>>, vector<64x4xf32>,
    %c0_17 = arith.constant 0 : index
    %c1 = arith.constant 1 : index
    %c0_18 = arith.constant 0 : index
    %34 = vector.load %arg3[%c0_17, %c1, %c0_18] : memref<1x82x4xbf16, #tpu.memory_space<vmem>>, vector<1x64x4xbf16>
    %35 = vector.shape_cast %34 : vector<1x64x4xbf16> to vector<64x4xbf16>
    %c0_19 = arith.constant 0 : index
    %c0_20 = arith.constant 0 : index
    %36 = vector.load %arg7[%c0_19, %c0_20] : memref<64x4xf32, #tpu.memory_space<vmem>>, vector<64x4xf32>
    %c0_21 = arith.constant 0 : index
    %c1_22 = arith.constant 1 : index
    %c0_23 = arith.constant 0 : index
    %c0_24 = arith.constant 0 : index
    %37 = vector.load %arg4[%c0_21, %c1_22, %c0_23, %c0_24] : memref<1x9x4x4xbf16, #tpu.memory_space<vmem>>, vector<1x1x4x4xbf16>
    %38 = vector.shape_cast %37 : vector<1x1x4x4xbf16> to vector<4x4xbf16>
    %cst_25 = arith.constant dense<0.000000e+00> : vector<64x4xf32>
    %39 = tpu.matmul %35, %38, %cst_25 {dimension_numbers = #tpu.dot_dimension_numbers<[1], [0], [0], [1], [0, 0, 1, 1], [], []>} : vector<64x4xbf16>, vector<4x4xbf16>, vector<64x4xf32> -> vector<64x4xf32>
    %40 = arith.addf %36, %39 : vector<64x4xf32>
    %c0_26 = arith.constant 0 : index
    %c0_27 = arith.constant 0 : index
    %41 = vector.load %arg7[%c0_26, %c0_27] : memref<64x4xf32, #tpu.memory_space<vmem>>, vector<64x4xf32>
    tpu.vector_store %arg7[%c0_26, %c0_27], %40 {strides = array<i32>} : memref<64x4xf32, #tpu.memory_space<vmem>>, vector<64x4xf32>,
    %c0_28 = arith.constant 0 : index
    %c2 = arith.constant 2 : index
    %c0_29 = arith.constant 0 : index
    %42 = vector.load %arg3[%c0_28, %c2, %c0_29] : memref<1x82x4xbf16, #tpu.memory_space<vmem>>, vector<1x64x4xbf16>
    %43 = vector.shape_cast %42 : vector<1x64x4xbf16> to vector<64x4xbf16>
    %c7_i32 = arith.constant 7 : i32
    %44 = vector.broadcast %c7_i32 : i32 to vector<64x1xi32>
    %45 = arith.cmpi slt, %19, %44 : vector<64x1xi32>
    %cst_30 = arith.constant 0.000000e+00 : bf16
    %46 = vector.broadcast %cst_30 : bf16 to vector<64x4xbf16>
    %47 = vector.shape_cast %45 : vector<64x1xi1> to vector<64x1xi1>
    %48 = vector.broadcast %47 : vector<64x1xi1> to vector<64x4xi1>
    %49 = arith.select %48, %43, %46 : vector<64x4xi1>, vector<64x4xbf16>
    %c0_31 = arith.constant 0 : index
    %c0_32 = arith.constant 0 : index
    %50 = vector.load %arg7[%c0_31, %c0_32] : memref<64x4xf32, #tpu.memory_space<vmem>>, vector<64x4xf32>
    %c0_33 = arith.constant 0 : index
    %c2_34 = arith.constant 2 : index
    %c0_35 = arith.constant 0 : index
    %c0_36 = arith.constant 0 : index
    %51 = vector.load %arg4[%c0_33, %c2_34, %c0_35, %c0_36] : memref<1x9x4x4xbf16, #tpu.memory_space<vmem>>, vector<1x1x4x4xbf16>
    %52 = vector.shape_cast %51 : vector<1x1x4x4xbf16> to vector<4x4xbf16>
    %cst_37 = arith.constant dense<0.000000e+00> : vector<64x4xf32>
    %53 = tpu.matmul %49, %52, %cst_37 {dimension_numbers = #tpu.dot_dimension_numbers<[1], [0], [0], [1], [0, 0, 1, 1], [], []>} : vector<64x4xbf16>, vector<4x4xbf16>, vector<64x4xf32> -> vector<64x4xf32>
    %54 = arith.addf %50, %53 : vector<64x4xf32>
    %c0_38 = arith.constant 0 : index
    %c0_39 = arith.constant 0 : index
    %55 = vector.load %arg7[%c0_38, %c0_39] : memref<64x4xf32, #tpu.memory_space<vmem>>, vector<64x4xf32>
    tpu.vector_store %arg7[%c0_38, %c0_39], %54 {strides = array<i32>} : memref<64x4xf32, #tpu.memory_space<vmem>>, vector<64x4xf32>,
    %c0_40 = arith.constant 0 : index
    %c8 = arith.constant 8 : index
    %c0_41 = arith.constant 0 : index
    %56 = vector.load %arg3[%c0_40, %c8, %c0_41] : memref<1x82x4xbf16, #tpu.memory_space<vmem>>, vector<1x64x4xbf16>
    %57 = vector.shape_cast %56 : vector<1x64x4xbf16> to vector<64x4xbf16>
    %c1_i32_42 = arith.constant 1 : i32
    %58 = vector.broadcast %c1_i32_42 : i32 to vector<64x1xi32>
    %59 = arith.cmpi sge, %19, %58 : vector<64x1xi32>
    %cst_43 = arith.constant 0.000000e+00 : bf16
    %60 = vector.broadcast %cst_43 : bf16 to vector<64x4xbf16>
    %61 = vector.shape_cast %59 : vector<64x1xi1> to vector<64x1xi1>
    %62 = vector.broadcast %61 : vector<64x1xi1> to vector<64x4xi1>
    %63 = arith.select %62, %57, %60 : vector<64x4xi1>, vector<64x4xbf16>
    %c0_44 = arith.constant 0 : index
    %c0_45 = arith.constant 0 : index
    %64 = vector.load %arg7[%c0_44, %c0_45] : memref<64x4xf32, #tpu.memory_space<vmem>>, vector<64x4xf32>
    %c0_46 = arith.constant 0 : index
    %c3 = arith.constant 3 : index
    %c0_47 = arith.constant 0 : index
    %c0_48 = arith.constant 0 : index
    %65 = vector.load %arg4[%c0_46, %c3, %c0_47, %c0_48] : memref<1x9x4x4xbf16, #tpu.memory_space<vmem>>, vector<1x1x4x4xbf16>
    %66 = vector.shape_cast %65 : vector<1x1x4x4xbf16> to vector<4x4xbf16>
    %cst_49 = arith.constant dense<0.000000e+00> : vector<64x4xf32>
    %67 = tpu.matmul %63, %66, %cst_49 {dimension_numbers = #tpu.dot_dimension_numbers<[1], [0], [0], [1], [0, 0, 1, 1], [], []>} : vector<64x4xbf16>, vector<4x4xbf16>, vector<64x4xf32> -> vector<64x4xf32>
    %68 = arith.addf %64, %67 : vector<64x4xf32>
    %c0_50 = arith.constant 0 : index
    %c0_51 = arith.constant 0 : index
    %69 = vector.load %arg7[%c0_50, %c0_51] : memref<64x4xf32, #tpu.memory_space<vmem>>, vector<64x4xf32>
    tpu.vector_store %arg7[%c0_50, %c0_51], %68 {strides = array<i32>} : memref<64x4xf32, #tpu.memory_space<vmem>>, vector<64x4xf32>,
    %c0_52 = arith.constant 0 : index
    %c9 = arith.constant 9 : index
    %c0_53 = arith.constant 0 : index
    %70 = vector.load %arg3[%c0_52, %c9, %c0_53] : memref<1x82x4xbf16, #tpu.memory_space<vmem>>, vector<1x64x4xbf16>
    %71 = vector.shape_cast %70 : vector<1x64x4xbf16> to vector<64x4xbf16>
    %c0_54 = arith.constant 0 : index
    %c0_55 = arith.constant 0 : index
    %72 = vector.load %arg7[%c0_54, %c0_55] : memref<64x4xf32, #tpu.memory_space<vmem>>, vector<64x4xf32>
    %c0_56 = arith.constant 0 : index
    %c4 = arith.constant 4 : index
    %c0_57 = arith.constant 0 : index
    %c0_58 = arith.constant 0 : index
    %73 = vector.load %arg4[%c0_56, %c4, %c0_57, %c0_58] : memref<1x9x4x4xbf16, #tpu.memory_space<vmem>>, vector<1x1x4x4xbf16>
    %74 = vector.shape_cast %73 : vector<1x1x4x4xbf16> to vector<4x4xbf16>
    %cst_59 = arith.constant dense<0.000000e+00> : vector<64x4xf32>
    %75 = tpu.matmul %71, %74, %cst_59 {dimension_numbers = #tpu.dot_dimension_numbers<[1], [0], [0], [1], [0, 0, 1, 1], [], []>} : vector<64x4xbf16>, vector<4x4xbf16>, vector<64x4xf32> -> vector<64x4xf32>
    %76 = arith.addf %72, %75 : vector<64x4xf32>
    %c0_60 = arith.constant 0 : index
    %c0_61 = arith.constant 0 : index
    %77 = vector.load %arg7[%c0_60, %c0_61] : memref<64x4xf32, #tpu.memory_space<vmem>>, vector<64x4xf32>
    tpu.vector_store %arg7[%c0_60, %c0_61], %76 {strides = array<i32>} : memref<64x4xf32, #tpu.memory_space<vmem>>, vector<64x4xf32>,
    %c0_62 = arith.constant 0 : index
    %c10 = arith.constant 10 : index
    %c0_63 = arith.constant 0 : index
    %78 = vector.load %arg3[%c0_62, %c10, %c0_63] : memref<1x82x4xbf16, #tpu.memory_space<vmem>>, vector<1x64x4xbf16>
    %79 = vector.shape_cast %78 : vector<1x64x4xbf16> to vector<64x4xbf16>
    %c7_i32_64 = arith.constant 7 : i32
    %80 = vector.broadcast %c7_i32_64 : i32 to vector<64x1xi32>
    %81 = arith.cmpi slt, %19, %80 : vector<64x1xi32>
    %cst_65 = arith.constant 0.000000e+00 : bf16
    %82 = vector.broadcast %cst_65 : bf16 to vector<64x4xbf16>
    %83 = vector.shape_cast %81 : vector<64x1xi1> to vector<64x1xi1>
    %84 = vector.broadcast %83 : vector<64x1xi1> to vector<64x4xi1>
    %85 = arith.select %84, %79, %82 : vector<64x4xi1>, vector<64x4xbf16>
    %c0_66 = arith.constant 0 : index
    %c0_67 = arith.constant 0 : index
    %86 = vector.load %arg7[%c0_66, %c0_67] : memref<64x4xf32, #tpu.memory_space<vmem>>, vector<64x4xf32>
    %c0_68 = arith.constant 0 : index
    %c5 = arith.constant 5 : index
    %c0_69 = arith.constant 0 : index
    %c0_70 = arith.constant 0 : index
    %87 = vector.load %arg4[%c0_68, %c5, %c0_69, %c0_70] : memref<1x9x4x4xbf16, #tpu.memory_space<vmem>>, vector<1x1x4x4xbf16>
    %88 = vector.shape_cast %87 : vector<1x1x4x4xbf16> to vector<4x4xbf16>
    %cst_71 = arith.constant dense<0.000000e+00> : vector<64x4xf32>
    %89 = tpu.matmul %85, %88, %cst_71 {dimension_numbers = #tpu.dot_dimension_numbers<[1], [0], [0], [1], [0, 0, 1, 1], [], []>} : vector<64x4xbf16>, vector<4x4xbf16>, vector<64x4xf32> -> vector<64x4xf32>
    %90 = arith.addf %86, %89 : vector<64x4xf32>
    %c0_72 = arith.constant 0 : index
    %c0_73 = arith.constant 0 : index
    %91 = vector.load %arg7[%c0_72, %c0_73] : memref<64x4xf32, #tpu.memory_space<vmem>>, vector<64x4xf32>
    tpu.vector_store %arg7[%c0_72, %c0_73], %90 {strides = array<i32>} : memref<64x4xf32, #tpu.memory_space<vmem>>, vector<64x4xf32>,
    %c0_74 = arith.constant 0 : index
    %c16 = arith.constant 16 : index
    %c0_75 = arith.constant 0 : index
    %92 = vector.load %arg3[%c0_74, %c16, %c0_75] : memref<1x82x4xbf16, #tpu.memory_space<vmem>>, vector<1x64x4xbf16>
    %93 = vector.shape_cast %92 : vector<1x64x4xbf16> to vector<64x4xbf16>
    %c1_i32_76 = arith.constant 1 : i32
    %94 = vector.broadcast %c1_i32_76 : i32 to vector<64x1xi32>
    %95 = arith.cmpi sge, %19, %94 : vector<64x1xi32>
    %cst_77 = arith.constant 0.000000e+00 : bf16
    %96 = vector.broadcast %cst_77 : bf16 to vector<64x4xbf16>
    %97 = vector.shape_cast %95 : vector<64x1xi1> to vector<64x1xi1>
    %98 = vector.broadcast %97 : vector<64x1xi1> to vector<64x4xi1>
    %99 = arith.select %98, %93, %96 : vector<64x4xi1>, vector<64x4xbf16>
    %c0_78 = arith.constant 0 : index
    %c0_79 = arith.constant 0 : index
    %100 = vector.load %arg7[%c0_78, %c0_79] : memref<64x4xf32, #tpu.memory_space<vmem>>, vector<64x4xf32>
    %c0_80 = arith.constant 0 : index
    %c6 = arith.constant 6 : index
    %c0_81 = arith.constant 0 : index
    %c0_82 = arith.constant 0 : index
    %101 = vector.load %arg4[%c0_80, %c6, %c0_81, %c0_82] : memref<1x9x4x4xbf16, #tpu.memory_space<vmem>>, vector<1x1x4x4xbf16>
    %102 = vector.shape_cast %101 : vector<1x1x4x4xbf16> to vector<4x4xbf16>
    %cst_83 = arith.constant dense<0.000000e+00> : vector<64x4xf32>
    %103 = tpu.matmul %99, %102, %cst_83 {dimension_numbers = #tpu.dot_dimension_numbers<[1], [0], [0], [1], [0, 0, 1, 1], [], []>} : vector<64x4xbf16>, vector<4x4xbf16>, vector<64x4xf32> -> vector<64x4xf32>
    %104 = arith.addf %100, %103 : vector<64x4xf32>
    %c0_84 = arith.constant 0 : index
    %c0_85 = arith.constant 0 : index
    %105 = vector.load %arg7[%c0_84, %c0_85] : memref<64x4xf32, #tpu.memory_space<vmem>>, vector<64x4xf32>
    tpu.vector_store %arg7[%c0_84, %c0_85], %104 {strides = array<i32>} : memref<64x4xf32, #tpu.memory_space<vmem>>, vector<64x4xf32>,
    %c0_86 = arith.constant 0 : index
    %c17 = arith.constant 17 : index
    %c0_87 = arith.constant 0 : index
    %106 = vector.load %arg3[%c0_86, %c17, %c0_87] : memref<1x82x4xbf16, #tpu.memory_space<vmem>>, vector<1x64x4xbf16>
    %107 = vector.shape_cast %106 : vector<1x64x4xbf16> to vector<64x4xbf16>
    %c0_88 = arith.constant 0 : index
    %c0_89 = arith.constant 0 : index
    %108 = vector.load %arg7[%c0_88, %c0_89] : memref<64x4xf32, #tpu.memory_space<vmem>>, vector<64x4xf32>
    %c0_90 = arith.constant 0 : index
    %c7 = arith.constant 7 : index
    %c0_91 = arith.constant 0 : index
    %c0_92 = arith.constant 0 : index
    %109 = vector.load %arg4[%c0_90, %c7, %c0_91, %c0_92] : memref<1x9x4x4xbf16, #tpu.memory_space<vmem>>, vector<1x1x4x4xbf16>
    %110 = vector.shape_cast %109 : vector<1x1x4x4xbf16> to vector<4x4xbf16>
    %cst_93 = arith.constant dense<0.000000e+00> : vector<64x4xf32>
    %111 = tpu.matmul %107, %110, %cst_93 {dimension_numbers = #tpu.dot_dimension_numbers<[1], [0], [0], [1], [0, 0, 1, 1], [], []>} : vector<64x4xbf16>, vector<4x4xbf16>, vector<64x4xf32> -> vector<64x4xf32>
    %112 = arith.addf %108, %111 : vector<64x4xf32>
    %c0_94 = arith.constant 0 : index
    %c0_95 = arith.constant 0 : index
    %113 = vector.load %arg7[%c0_94, %c0_95] : memref<64x4xf32, #tpu.memory_space<vmem>>, vector<64x4xf32>
    tpu.vector_store %arg7[%c0_94, %c0_95], %112 {strides = array<i32>} : memref<64x4xf32, #tpu.memory_space<vmem>>, vector<64x4xf32>,
    %c0_96 = arith.constant 0 : index
    %c18 = arith.constant 18 : index
    %c0_97 = arith.constant 0 : index
    %114 = vector.load %arg3[%c0_96, %c18, %c0_97] : memref<1x82x4xbf16, #tpu.memory_space<vmem>>, vector<1x64x4xbf16>
    %115 = vector.shape_cast %114 : vector<1x64x4xbf16> to vector<64x4xbf16>
    %c7_i32_98 = arith.constant 7 : i32
    %116 = vector.broadcast %c7_i32_98 : i32 to vector<64x1xi32>
    %117 = arith.cmpi slt, %19, %116 : vector<64x1xi32>
    %cst_99 = arith.constant 0.000000e+00 : bf16
    %118 = vector.broadcast %cst_99 : bf16 to vector<64x4xbf16>
    %119 = vector.shape_cast %117 : vector<64x1xi1> to vector<64x1xi1>
    %120 = vector.broadcast %119 : vector<64x1xi1> to vector<64x4xi1>
    %121 = arith.select %120, %115, %118 : vector<64x4xi1>, vector<64x4xbf16>
    %c0_100 = arith.constant 0 : index
    %c0_101 = arith.constant 0 : index
    %122 = vector.load %arg7[%c0_100, %c0_101] : memref<64x4xf32, #tpu.memory_space<vmem>>, vector<64x4xf32>
    %c0_102 = arith.constant 0 : index
    %c8_103 = arith.constant 8 : index
    %c0_104 = arith.constant 0 : index
    %c0_105 = arith.constant 0 : index
    %123 = vector.load %arg4[%c0_102, %c8_103, %c0_104, %c0_105] : memref<1x9x4x4xbf16, #tpu.memory_space<vmem>>, vector<1x1x4x4xbf16>
    %124 = vector.shape_cast %123 : vector<1x1x4x4xbf16> to vector<4x4xbf16>
    %cst_106 = arith.constant dense<0.000000e+00> : vector<64x4xf32>
    %125 = tpu.matmul %121, %124, %cst_106 {dimension_numbers = #tpu.dot_dimension_numbers<[1], [0], [0], [1], [0, 0, 1, 1], [], []>} : vector<64x4xbf16>, vector<4x4xbf16>, vector<64x4xf32> -> vector<64x4xf32>
    %126 = arith.addf %122, %125 : vector<64x4xf32>
    %c0_107 = arith.constant 0 : index
    %c0_108 = arith.constant 0 : index
    %127 = vector.load %arg7[%c0_107, %c0_108] : memref<64x4xf32, #tpu.memory_space<vmem>>, vector<64x4xf32>
    tpu.vector_store %arg7[%c0_107, %c0_108], %126 {strides = array<i32>} : memref<64x4xf32, #tpu.memory_space<vmem>>, vector<64x4xf32>,
    %c2_i32 = arith.constant 2 : i32
    %128 = arith.cmpi eq, %arg2, %c2_i32 : i32
    %129 = arith.extui %128 : i1 to i32
    %c0_i32_109 = arith.constant 0 : i32
    %130 = arith.cmpi ne, %129, %c0_i32_109 : i32
    scf.if %130 {
      %c0_110 = arith.constant 0 : index
      %c0_111 = arith.constant 0 : index
      %131 = vector.load %arg7[%c0_110, %c0_111] : memref<64x4xf32, #tpu.memory_space<vmem>>, vector<64x4xf32>
      %c0_112 = arith.constant 0 : index
      %c0_113 = arith.constant 0 : index
      %132 = vector.load %arg5[%c0_112, %c0_113] : memref<1x4xf32, #tpu.memory_space<vmem>>, vector<1x4xf32>
      %133 = vector.broadcast %132 : vector<1x4xf32> to vector<64x4xf32>
      %134 = arith.addf %131, %133 : vector<64x4xf32>
      %135 = arith.truncf %134 : vector<64x4xf32> to vector<64x4xbf16>
      %c0_114 = arith.constant 0 : index
      %c0_115 = arith.constant 0 : index
      %c0_116 = arith.constant 0 : index
      %c0_117 = arith.constant 0 : index
      %136 = vector.load %arg6[%c0_114, %c0_115, %c0_116, %c0_117] : memref<1x1x64x4xbf16, #tpu.memory_space<vmem>>, vector<1x1x64x4xbf16>
      %137 = vector.shape_cast %136 : vector<1x1x64x4xbf16> to vector<64x4xbf16>
      %138 = vector.shape_cast %135 : vector<64x4xbf16> to vector<1x1x64x4xbf16>
      tpu.vector_store %arg6[%c0_114, %c0_115, %c0_116, %c0_117], %138 {strides = array<i32>} : memref<1x1x64x4xbf16, #tpu.memory_space<vmem>>, vector<1x1x64x4xbf16>,
    } else {
    }
    return
  }
  func.func @transform_0(%arg0: i32, %arg1: i32, %arg2: i32) -> (i32, i32, i32) {
    %c10_i32 = arith.constant 10 : i32
    %0 = arith.muli %arg0, %c10_i32 : i32
    %1 = arith.addi %0, %arg1 : i32
    %2 = arith.addi %1, %arg2 : i32
    %c0_i32 = arith.constant 0 : i32
    %c0_i32_0 = arith.constant 0 : i32
    %c0_i32_1 = arith.constant 0 : i32
    return %2, %c0_i32, %c0_i32_0 : i32, i32, i32
  }
  func.func @transform_1(%arg0: i32, %arg1: i32, %arg2: i32) -> (i32, i32, i32, i32) {
    %c0_i32 = arith.constant 0 : i32
    %c0_i32_0 = arith.constant 0 : i32
    %c0_i32_1 = arith.constant 0 : i32
    %c0_i32_2 = arith.constant 0 : i32
    return %arg2, %c0_i32, %c0_i32_0, %c0_i32_1 : i32, i32, i32, i32
  }
  func.func @transform_2(%arg0: i32, %arg1: i32, %arg2: i32) -> (i32, i32) {
    %c0_i32 = arith.constant 0 : i32
    %c0_i32_0 = arith.constant 0 : i32
    %c0_i32_1 = arith.constant 0 : i32
    return %c0_i32, %c0_i32_0 : i32, i32
  }
  func.func @transform_3(%arg0: i32, %arg1: i32, %arg2: i32) -> (i32, i32, i32, i32) {
    %c0_i32 = arith.constant 0 : i32
    %c0_i32_0 = arith.constant 0 : i32
    %c0_i32_1 = arith.constant 0 : i32
    return %arg0, %arg1, %c0_i32, %c0_i32_0 : i32, i32, i32, i32
  }
}

module attributes {stable_mosaic.version = 11 : i64} {
  func.func @_scale_shift_relu6_kernel(%arg0: i32, %arg1: memref<128x32xbf16, #tpu.memory_space<vmem>>, %arg2: memref<1x32xf32, #tpu.memory_space<vmem>>, %arg3: memref<1x32xf32, #tpu.memory_space<vmem>>, %arg4: memref<128x32xbf16, #tpu.memory_space<vmem>>) attributes {dimension_semantics = [#tpu.dimension_semantics<parallel>], iteration_bounds = array<i64: 1>, scalar_prefetch = 0 : i64, scratch_operands = 0 : i64, tpu.core_type = #tpu.core_type<tc>, window_params = [{transform_indices = @transform_0, window_bounds = array<i64: 128, 32>}, {pipeline_mode = #tpu.pipeline_mode<synchronous>, transform_indices = @transform_1, window_bounds = array<i64: 1, 32>}, {pipeline_mode = #tpu.pipeline_mode<synchronous>, transform_indices = @transform_2, window_bounds = array<i64: 1, 32>}, {transform_indices = @transform_3, window_bounds = array<i64: 128, 32>}]} {
    %c0 = arith.constant 0 : index
    %c0_0 = arith.constant 0 : index
    %0 = vector.load %arg1[%c0, %c0_0] : memref<128x32xbf16, #tpu.memory_space<vmem>>, vector<128x32xbf16>
    %1 = arith.extf %0 : vector<128x32xbf16> to vector<128x32xf32>
    %c0_1 = arith.constant 0 : index
    %c0_2 = arith.constant 0 : index
    %2 = vector.load %arg2[%c0_1, %c0_2] : memref<1x32xf32, #tpu.memory_space<vmem>>, vector<1x32xf32>
    %3 = vector.broadcast %2 : vector<1x32xf32> to vector<128x32xf32>
    %4 = arith.mulf %1, %3 : vector<128x32xf32>
    %c0_3 = arith.constant 0 : index
    %c0_4 = arith.constant 0 : index
    %5 = vector.load %arg3[%c0_3, %c0_4] : memref<1x32xf32, #tpu.memory_space<vmem>>, vector<1x32xf32>
    %6 = vector.broadcast %5 : vector<1x32xf32> to vector<128x32xf32>
    %7 = arith.addf %4, %6 : vector<128x32xf32>
    %cst = arith.constant 0.000000e+00 : f32
    %cst_5 = arith.constant 6.000000e+00 : f32
    %8 = vector.broadcast %cst : f32 to vector<128x32xf32>
    %9 = arith.maximumf %8, %7 : vector<128x32xf32>
    %10 = vector.broadcast %cst_5 : f32 to vector<128x32xf32>
    %11 = arith.minimumf %10, %9 : vector<128x32xf32>
    %12 = arith.truncf %11 : vector<128x32xf32> to vector<128x32xbf16>
    %c0_6 = arith.constant 0 : index
    %c0_7 = arith.constant 0 : index
    %13 = vector.load %arg4[%c0_6, %c0_7] : memref<128x32xbf16, #tpu.memory_space<vmem>>, vector<128x32xbf16>
    tpu.vector_store %arg4[%c0_6, %c0_7], %12 {strides = array<i32>} : memref<128x32xbf16, #tpu.memory_space<vmem>>, vector<128x32xbf16>,
    return
  }
  func.func @transform_0(%arg0: i32) -> (i32, i32) {
    %c0_i32 = arith.constant 0 : i32
    %c0_i32_0 = arith.constant 0 : i32
    return %arg0, %c0_i32 : i32, i32
  }
  func.func @transform_1(%arg0: i32) -> (i32, i32) {
    %c0_i32 = arith.constant 0 : i32
    %c0_i32_0 = arith.constant 0 : i32
    %c0_i32_1 = arith.constant 0 : i32
    return %c0_i32, %c0_i32_0 : i32, i32
  }
  func.func @transform_2(%arg0: i32) -> (i32, i32) {
    %c0_i32 = arith.constant 0 : i32
    %c0_i32_0 = arith.constant 0 : i32
    %c0_i32_1 = arith.constant 0 : i32
    return %c0_i32, %c0_i32_0 : i32, i32
  }
  func.func @transform_3(%arg0: i32) -> (i32, i32) {
    %c0_i32 = arith.constant 0 : i32
    %c0_i32_0 = arith.constant 0 : i32
    return %arg0, %c0_i32 : i32, i32
  }
}

module attributes {stable_mosaic.version = 11 : i64} {
  func.func @_plane_conv_kernel(%arg0: i32, %arg1: i32, %arg2: i32, %arg3: memref<1x82x4xbf16, #tpu.memory_space<vmem>>, %arg4: memref<1x9x4x4xbf16, #tpu.memory_space<vmem>>, %arg5: memref<1x4xf32, #tpu.memory_space<vmem>>, %arg6: memref<1x1x64x4xf32, #tpu.memory_space<vmem>>, %arg7: memref<1x1x64x4xf32, #tpu.memory_space<vmem>>, %arg8: memref<64x4xf32, #tpu.memory_space<vmem>>) attributes {dimension_semantics = [#tpu.dimension_semantics<parallel>, #tpu.dimension_semantics<parallel>, #tpu.dimension_semantics<arbitrary>], iteration_bounds = array<i64: 2, 8, 3>, scalar_prefetch = 0 : i64, scratch_operands = 1 : i64, tpu.core_type = #tpu.core_type<tc>, window_params = [{transform_indices = @transform_0, window_bounds = array<i64: 1, 82, 4>}, {transform_indices = @transform_1, window_bounds = array<i64: 1, 9, 4, 4>}, {pipeline_mode = #tpu.pipeline_mode<synchronous>, transform_indices = @transform_2, window_bounds = array<i64: 1, 4>}, {transform_indices = @transform_3, window_bounds = array<i64: 1, 1, 64, 4>}, {transform_indices = @transform_4, window_bounds = array<i64: 1, 1, 64, 4>}]} {
    %c0_i32 = arith.constant 0 : i32
    %0 = arith.cmpi eq, %arg2, %c0_i32 : i32
    %1 = arith.extui %0 : i1 to i32
    %c0_i32_0 = arith.constant 0 : i32
    %2 = arith.cmpi ne, %1, %c0_i32_0 : i32
    scf.if %2 {
      %cst_110 = arith.constant 0.000000e+00 : f32
      %131 = vector.broadcast %cst_110 : f32 to vector<64x4xf32>
      %c0_111 = arith.constant 0 : index
      %c0_112 = arith.constant 0 : index
      %132 = vector.load %arg8[%c0_111, %c0_112] : memref<64x4xf32, #tpu.memory_space<vmem>>, vector<64x4xf32>
      tpu.vector_store %arg8[%c0_111, %c0_112], %131 {strides = array<i32>} : memref<64x4xf32, #tpu.memory_space<vmem>>, vector<64x4xf32>,
    } else {
    }
    %3 = tpu.iota {dimensions = array<i32: 0>} : vector<64x1xi32>
    %c8_i32 = arith.constant 8 : i32
    %c0_i32_1 = arith.constant 0 : i32
    %4 = arith.cmpi eq, %c8_i32, %c0_i32_1 : i32
    %c1_i32 = arith.constant 1 : i32
    %5 = arith.select %4, %c1_i32, %c8_i32 : i32
    %6 = vector.broadcast %5 : i32 to vector<64x1xi32>
    %7 = arith.remsi %3, %6 : vector<64x1xi32>
    %c0_i32_2 = arith.constant 0 : i32
    %8 = vector.broadcast %c0_i32_2 : i32 to vector<64x1xi32>
    %9 = arith.cmpi ne, %7, %8 : vector<64x1xi32>
    %c0_i32_3 = arith.constant 0 : i32
    %10 = vector.broadcast %c0_i32_3 : i32 to vector<64x1xi32>
    %11 = arith.cmpi slt, %7, %10 : vector<64x1xi32>
    %c0_i32_4 = arith.constant 0 : i32
    %12 = arith.cmpi slt, %5, %c0_i32_4 : i32
    %13 = vector.broadcast %12 : i1 to vector<64x1xi1>
    %14 = vector.broadcast %13 : vector<64x1xi1> to vector<64x1xi1>
    %15 = arith.xori %11, %14 : vector<64x1xi1>
    %16 = arith.andi %15, %9 : vector<64x1xi1>
    %17 = vector.broadcast %5 : i32 to vector<64x1xi32>
    %18 = arith.addi %7, %17 : vector<64x1xi32>
    %19 = arith.select %16, %18, %7 : vector<64x1xi1>, vector<64x1xi32>
    %c0 = arith.constant 0 : index
    %c0_5 = arith.constant 0 : index
    %c0_6 = arith.constant 0 : index
    %20 = vector.load %arg3[%c0, %c0_5, %c0_6] : memref<1x82x4xbf16, #tpu.memory_space<vmem>>, vector<1x64x4xbf16>
    %21 = vector.shape_cast %20 : vector<1x64x4xbf16> to vector<64x4xbf16>
    %c1_i32_7 = arith.constant 1 : i32
    %22 = vector.broadcast %c1_i32_7 : i32 to vector<64x1xi32>
    %23 = arith.cmpi sge, %19, %22 : vector<64x1xi32>
    %cst = arith.constant 0.000000e+00 : bf16
    %24 = vector.broadcast %cst : bf16 to vector<64x4xbf16>
    %25 = vector.shape_cast %23 : vector<64x1xi1> to vector<64x1xi1>
    %26 = vector.broadcast %25 : vector<64x1xi1> to vector<64x4xi1>
    %27 = arith.select %26, %21, %24 : vector<64x4xi1>, vector<64x4xbf16>
    %c0_8 = arith.constant 0 : index
    %c0_9 = arith.constant 0 : index
    %28 = vector.load %arg8[%c0_8, %c0_9] : memref<64x4xf32, #tpu.memory_space<vmem>>, vector<64x4xf32>
    %c0_10 = arith.constant 0 : index
    %c0_11 = arith.constant 0 : index
    %c0_12 = arith.constant 0 : index
    %c0_13 = arith.constant 0 : index
    %29 = vector.load %arg4[%c0_10, %c0_11, %c0_12, %c0_13] : memref<1x9x4x4xbf16, #tpu.memory_space<vmem>>, vector<1x1x4x4xbf16>
    %30 = vector.shape_cast %29 : vector<1x1x4x4xbf16> to vector<4x4xbf16>
    %cst_14 = arith.constant dense<0.000000e+00> : vector<64x4xf32>
    %31 = tpu.matmul %27, %30, %cst_14 {dimension_numbers = #tpu.dot_dimension_numbers<[1], [0], [0], [1], [0, 0, 1, 1], [], []>} : vector<64x4xbf16>, vector<4x4xbf16>, vector<64x4xf32> -> vector<64x4xf32>
    %32 = arith.addf %28, %31 : vector<64x4xf32>
    %c0_15 = arith.constant 0 : index
    %c0_16 = arith.constant 0 : index
    %33 = vector.load %arg8[%c0_15, %c0_16] : memref<64x4xf32, #tpu.memory_space<vmem>>, vector<64x4xf32>
    tpu.vector_store %arg8[%c0_15, %c0_16], %32 {strides = array<i32>} : memref<64x4xf32, #tpu.memory_space<vmem>>, vector<64x4xf32>,
    %c0_17 = arith.constant 0 : index
    %c1 = arith.constant 1 : index
    %c0_18 = arith.constant 0 : index
    %34 = vector.load %arg3[%c0_17, %c1, %c0_18] : memref<1x82x4xbf16, #tpu.memory_space<vmem>>, vector<1x64x4xbf16>
    %35 = vector.shape_cast %34 : vector<1x64x4xbf16> to vector<64x4xbf16>
    %c0_19 = arith.constant 0 : index
    %c0_20 = arith.constant 0 : index
    %36 = vector.load %arg8[%c0_19, %c0_20] : memref<64x4xf32, #tpu.memory_space<vmem>>, vector<64x4xf32>
    %c0_21 = arith.constant 0 : index
    %c1_22 = arith.constant 1 : index
    %c0_23 = arith.constant 0 : index
    %c0_24 = arith.constant 0 : index
    %37 = vector.load %arg4[%c0_21, %c1_22, %c0_23, %c0_24] : memref<1x9x4x4xbf16, #tpu.memory_space<vmem>>, vector<1x1x4x4xbf16>
    %38 = vector.shape_cast %37 : vector<1x1x4x4xbf16> to vector<4x4xbf16>
    %cst_25 = arith.constant dense<0.000000e+00> : vector<64x4xf32>
    %39 = tpu.matmul %35, %38, %cst_25 {dimension_numbers = #tpu.dot_dimension_numbers<[1], [0], [0], [1], [0, 0, 1, 1], [], []>} : vector<64x4xbf16>, vector<4x4xbf16>, vector<64x4xf32> -> vector<64x4xf32>
    %40 = arith.addf %36, %39 : vector<64x4xf32>
    %c0_26 = arith.constant 0 : index
    %c0_27 = arith.constant 0 : index
    %41 = vector.load %arg8[%c0_26, %c0_27] : memref<64x4xf32, #tpu.memory_space<vmem>>, vector<64x4xf32>
    tpu.vector_store %arg8[%c0_26, %c0_27], %40 {strides = array<i32>} : memref<64x4xf32, #tpu.memory_space<vmem>>, vector<64x4xf32>,
    %c0_28 = arith.constant 0 : index
    %c2 = arith.constant 2 : index
    %c0_29 = arith.constant 0 : index
    %42 = vector.load %arg3[%c0_28, %c2, %c0_29] : memref<1x82x4xbf16, #tpu.memory_space<vmem>>, vector<1x64x4xbf16>
    %43 = vector.shape_cast %42 : vector<1x64x4xbf16> to vector<64x4xbf16>
    %c7_i32 = arith.constant 7 : i32
    %44 = vector.broadcast %c7_i32 : i32 to vector<64x1xi32>
    %45 = arith.cmpi slt, %19, %44 : vector<64x1xi32>
    %cst_30 = arith.constant 0.000000e+00 : bf16
    %46 = vector.broadcast %cst_30 : bf16 to vector<64x4xbf16>
    %47 = vector.shape_cast %45 : vector<64x1xi1> to vector<64x1xi1>
    %48 = vector.broadcast %47 : vector<64x1xi1> to vector<64x4xi1>
    %49 = arith.select %48, %43, %46 : vector<64x4xi1>, vector<64x4xbf16>
    %c0_31 = arith.constant 0 : index
    %c0_32 = arith.constant 0 : index
    %50 = vector.load %arg8[%c0_31, %c0_32] : memref<64x4xf32, #tpu.memory_space<vmem>>, vector<64x4xf32>
    %c0_33 = arith.constant 0 : index
    %c2_34 = arith.constant 2 : index
    %c0_35 = arith.constant 0 : index
    %c0_36 = arith.constant 0 : index
    %51 = vector.load %arg4[%c0_33, %c2_34, %c0_35, %c0_36] : memref<1x9x4x4xbf16, #tpu.memory_space<vmem>>, vector<1x1x4x4xbf16>
    %52 = vector.shape_cast %51 : vector<1x1x4x4xbf16> to vector<4x4xbf16>
    %cst_37 = arith.constant dense<0.000000e+00> : vector<64x4xf32>
    %53 = tpu.matmul %49, %52, %cst_37 {dimension_numbers = #tpu.dot_dimension_numbers<[1], [0], [0], [1], [0, 0, 1, 1], [], []>} : vector<64x4xbf16>, vector<4x4xbf16>, vector<64x4xf32> -> vector<64x4xf32>
    %54 = arith.addf %50, %53 : vector<64x4xf32>
    %c0_38 = arith.constant 0 : index
    %c0_39 = arith.constant 0 : index
    %55 = vector.load %arg8[%c0_38, %c0_39] : memref<64x4xf32, #tpu.memory_space<vmem>>, vector<64x4xf32>
    tpu.vector_store %arg8[%c0_38, %c0_39], %54 {strides = array<i32>} : memref<64x4xf32, #tpu.memory_space<vmem>>, vector<64x4xf32>,
    %c0_40 = arith.constant 0 : index
    %c8 = arith.constant 8 : index
    %c0_41 = arith.constant 0 : index
    %56 = vector.load %arg3[%c0_40, %c8, %c0_41] : memref<1x82x4xbf16, #tpu.memory_space<vmem>>, vector<1x64x4xbf16>
    %57 = vector.shape_cast %56 : vector<1x64x4xbf16> to vector<64x4xbf16>
    %c1_i32_42 = arith.constant 1 : i32
    %58 = vector.broadcast %c1_i32_42 : i32 to vector<64x1xi32>
    %59 = arith.cmpi sge, %19, %58 : vector<64x1xi32>
    %cst_43 = arith.constant 0.000000e+00 : bf16
    %60 = vector.broadcast %cst_43 : bf16 to vector<64x4xbf16>
    %61 = vector.shape_cast %59 : vector<64x1xi1> to vector<64x1xi1>
    %62 = vector.broadcast %61 : vector<64x1xi1> to vector<64x4xi1>
    %63 = arith.select %62, %57, %60 : vector<64x4xi1>, vector<64x4xbf16>
    %c0_44 = arith.constant 0 : index
    %c0_45 = arith.constant 0 : index
    %64 = vector.load %arg8[%c0_44, %c0_45] : memref<64x4xf32, #tpu.memory_space<vmem>>, vector<64x4xf32>
    %c0_46 = arith.constant 0 : index
    %c3 = arith.constant 3 : index
    %c0_47 = arith.constant 0 : index
    %c0_48 = arith.constant 0 : index
    %65 = vector.load %arg4[%c0_46, %c3, %c0_47, %c0_48] : memref<1x9x4x4xbf16, #tpu.memory_space<vmem>>, vector<1x1x4x4xbf16>
    %66 = vector.shape_cast %65 : vector<1x1x4x4xbf16> to vector<4x4xbf16>
    %cst_49 = arith.constant dense<0.000000e+00> : vector<64x4xf32>
    %67 = tpu.matmul %63, %66, %cst_49 {dimension_numbers = #tpu.dot_dimension_numbers<[1], [0], [0], [1], [0, 0, 1, 1], [], []>} : vector<64x4xbf16>, vector<4x4xbf16>, vector<64x4xf32> -> vector<64x4xf32>
    %68 = arith.addf %64, %67 : vector<64x4xf32>
    %c0_50 = arith.constant 0 : index
    %c0_51 = arith.constant 0 : index
    %69 = vector.load %arg8[%c0_50, %c0_51] : memref<64x4xf32, #tpu.memory_space<vmem>>, vector<64x4xf32>
    tpu.vector_store %arg8[%c0_50, %c0_51], %68 {strides = array<i32>} : memref<64x4xf32, #tpu.memory_space<vmem>>, vector<64x4xf32>,
    %c0_52 = arith.constant 0 : index
    %c9 = arith.constant 9 : index
    %c0_53 = arith.constant 0 : index
    %70 = vector.load %arg3[%c0_52, %c9, %c0_53] : memref<1x82x4xbf16, #tpu.memory_space<vmem>>, vector<1x64x4xbf16>
    %71 = vector.shape_cast %70 : vector<1x64x4xbf16> to vector<64x4xbf16>
    %c0_54 = arith.constant 0 : index
    %c0_55 = arith.constant 0 : index
    %72 = vector.load %arg8[%c0_54, %c0_55] : memref<64x4xf32, #tpu.memory_space<vmem>>, vector<64x4xf32>
    %c0_56 = arith.constant 0 : index
    %c4 = arith.constant 4 : index
    %c0_57 = arith.constant 0 : index
    %c0_58 = arith.constant 0 : index
    %73 = vector.load %arg4[%c0_56, %c4, %c0_57, %c0_58] : memref<1x9x4x4xbf16, #tpu.memory_space<vmem>>, vector<1x1x4x4xbf16>
    %74 = vector.shape_cast %73 : vector<1x1x4x4xbf16> to vector<4x4xbf16>
    %cst_59 = arith.constant dense<0.000000e+00> : vector<64x4xf32>
    %75 = tpu.matmul %71, %74, %cst_59 {dimension_numbers = #tpu.dot_dimension_numbers<[1], [0], [0], [1], [0, 0, 1, 1], [], []>} : vector<64x4xbf16>, vector<4x4xbf16>, vector<64x4xf32> -> vector<64x4xf32>
    %76 = arith.addf %72, %75 : vector<64x4xf32>
    %c0_60 = arith.constant 0 : index
    %c0_61 = arith.constant 0 : index
    %77 = vector.load %arg8[%c0_60, %c0_61] : memref<64x4xf32, #tpu.memory_space<vmem>>, vector<64x4xf32>
    tpu.vector_store %arg8[%c0_60, %c0_61], %76 {strides = array<i32>} : memref<64x4xf32, #tpu.memory_space<vmem>>, vector<64x4xf32>,
    %c0_62 = arith.constant 0 : index
    %c10 = arith.constant 10 : index
    %c0_63 = arith.constant 0 : index
    %78 = vector.load %arg3[%c0_62, %c10, %c0_63] : memref<1x82x4xbf16, #tpu.memory_space<vmem>>, vector<1x64x4xbf16>
    %79 = vector.shape_cast %78 : vector<1x64x4xbf16> to vector<64x4xbf16>
    %c7_i32_64 = arith.constant 7 : i32
    %80 = vector.broadcast %c7_i32_64 : i32 to vector<64x1xi32>
    %81 = arith.cmpi slt, %19, %80 : vector<64x1xi32>
    %cst_65 = arith.constant 0.000000e+00 : bf16
    %82 = vector.broadcast %cst_65 : bf16 to vector<64x4xbf16>
    %83 = vector.shape_cast %81 : vector<64x1xi1> to vector<64x1xi1>
    %84 = vector.broadcast %83 : vector<64x1xi1> to vector<64x4xi1>
    %85 = arith.select %84, %79, %82 : vector<64x4xi1>, vector<64x4xbf16>
    %c0_66 = arith.constant 0 : index
    %c0_67 = arith.constant 0 : index
    %86 = vector.load %arg8[%c0_66, %c0_67] : memref<64x4xf32, #tpu.memory_space<vmem>>, vector<64x4xf32>
    %c0_68 = arith.constant 0 : index
    %c5 = arith.constant 5 : index
    %c0_69 = arith.constant 0 : index
    %c0_70 = arith.constant 0 : index
    %87 = vector.load %arg4[%c0_68, %c5, %c0_69, %c0_70] : memref<1x9x4x4xbf16, #tpu.memory_space<vmem>>, vector<1x1x4x4xbf16>
    %88 = vector.shape_cast %87 : vector<1x1x4x4xbf16> to vector<4x4xbf16>
    %cst_71 = arith.constant dense<0.000000e+00> : vector<64x4xf32>
    %89 = tpu.matmul %85, %88, %cst_71 {dimension_numbers = #tpu.dot_dimension_numbers<[1], [0], [0], [1], [0, 0, 1, 1], [], []>} : vector<64x4xbf16>, vector<4x4xbf16>, vector<64x4xf32> -> vector<64x4xf32>
    %90 = arith.addf %86, %89 : vector<64x4xf32>
    %c0_72 = arith.constant 0 : index
    %c0_73 = arith.constant 0 : index
    %91 = vector.load %arg8[%c0_72, %c0_73] : memref<64x4xf32, #tpu.memory_space<vmem>>, vector<64x4xf32>
    tpu.vector_store %arg8[%c0_72, %c0_73], %90 {strides = array<i32>} : memref<64x4xf32, #tpu.memory_space<vmem>>, vector<64x4xf32>,
    %c0_74 = arith.constant 0 : index
    %c16 = arith.constant 16 : index
    %c0_75 = arith.constant 0 : index
    %92 = vector.load %arg3[%c0_74, %c16, %c0_75] : memref<1x82x4xbf16, #tpu.memory_space<vmem>>, vector<1x64x4xbf16>
    %93 = vector.shape_cast %92 : vector<1x64x4xbf16> to vector<64x4xbf16>
    %c1_i32_76 = arith.constant 1 : i32
    %94 = vector.broadcast %c1_i32_76 : i32 to vector<64x1xi32>
    %95 = arith.cmpi sge, %19, %94 : vector<64x1xi32>
    %cst_77 = arith.constant 0.000000e+00 : bf16
    %96 = vector.broadcast %cst_77 : bf16 to vector<64x4xbf16>
    %97 = vector.shape_cast %95 : vector<64x1xi1> to vector<64x1xi1>
    %98 = vector.broadcast %97 : vector<64x1xi1> to vector<64x4xi1>
    %99 = arith.select %98, %93, %96 : vector<64x4xi1>, vector<64x4xbf16>
    %c0_78 = arith.constant 0 : index
    %c0_79 = arith.constant 0 : index
    %100 = vector.load %arg8[%c0_78, %c0_79] : memref<64x4xf32, #tpu.memory_space<vmem>>, vector<64x4xf32>
    %c0_80 = arith.constant 0 : index
    %c6 = arith.constant 6 : index
    %c0_81 = arith.constant 0 : index
    %c0_82 = arith.constant 0 : index
    %101 = vector.load %arg4[%c0_80, %c6, %c0_81, %c0_82] : memref<1x9x4x4xbf16, #tpu.memory_space<vmem>>, vector<1x1x4x4xbf16>
    %102 = vector.shape_cast %101 : vector<1x1x4x4xbf16> to vector<4x4xbf16>
    %cst_83 = arith.constant dense<0.000000e+00> : vector<64x4xf32>
    %103 = tpu.matmul %99, %102, %cst_83 {dimension_numbers = #tpu.dot_dimension_numbers<[1], [0], [0], [1], [0, 0, 1, 1], [], []>} : vector<64x4xbf16>, vector<4x4xbf16>, vector<64x4xf32> -> vector<64x4xf32>
    %104 = arith.addf %100, %103 : vector<64x4xf32>
    %c0_84 = arith.constant 0 : index
    %c0_85 = arith.constant 0 : index
    %105 = vector.load %arg8[%c0_84, %c0_85] : memref<64x4xf32, #tpu.memory_space<vmem>>, vector<64x4xf32>
    tpu.vector_store %arg8[%c0_84, %c0_85], %104 {strides = array<i32>} : memref<64x4xf32, #tpu.memory_space<vmem>>, vector<64x4xf32>,
    %c0_86 = arith.constant 0 : index
    %c17 = arith.constant 17 : index
    %c0_87 = arith.constant 0 : index
    %106 = vector.load %arg3[%c0_86, %c17, %c0_87] : memref<1x82x4xbf16, #tpu.memory_space<vmem>>, vector<1x64x4xbf16>
    %107 = vector.shape_cast %106 : vector<1x64x4xbf16> to vector<64x4xbf16>
    %c0_88 = arith.constant 0 : index
    %c0_89 = arith.constant 0 : index
    %108 = vector.load %arg8[%c0_88, %c0_89] : memref<64x4xf32, #tpu.memory_space<vmem>>, vector<64x4xf32>
    %c0_90 = arith.constant 0 : index
    %c7 = arith.constant 7 : index
    %c0_91 = arith.constant 0 : index
    %c0_92 = arith.constant 0 : index
    %109 = vector.load %arg4[%c0_90, %c7, %c0_91, %c0_92] : memref<1x9x4x4xbf16, #tpu.memory_space<vmem>>, vector<1x1x4x4xbf16>
    %110 = vector.shape_cast %109 : vector<1x1x4x4xbf16> to vector<4x4xbf16>
    %cst_93 = arith.constant dense<0.000000e+00> : vector<64x4xf32>
    %111 = tpu.matmul %107, %110, %cst_93 {dimension_numbers = #tpu.dot_dimension_numbers<[1], [0], [0], [1], [0, 0, 1, 1], [], []>} : vector<64x4xbf16>, vector<4x4xbf16>, vector<64x4xf32> -> vector<64x4xf32>
    %112 = arith.addf %108, %111 : vector<64x4xf32>
    %c0_94 = arith.constant 0 : index
    %c0_95 = arith.constant 0 : index
    %113 = vector.load %arg8[%c0_94, %c0_95] : memref<64x4xf32, #tpu.memory_space<vmem>>, vector<64x4xf32>
    tpu.vector_store %arg8[%c0_94, %c0_95], %112 {strides = array<i32>} : memref<64x4xf32, #tpu.memory_space<vmem>>, vector<64x4xf32>,
    %c0_96 = arith.constant 0 : index
    %c18 = arith.constant 18 : index
    %c0_97 = arith.constant 0 : index
    %114 = vector.load %arg3[%c0_96, %c18, %c0_97] : memref<1x82x4xbf16, #tpu.memory_space<vmem>>, vector<1x64x4xbf16>
    %115 = vector.shape_cast %114 : vector<1x64x4xbf16> to vector<64x4xbf16>
    %c7_i32_98 = arith.constant 7 : i32
    %116 = vector.broadcast %c7_i32_98 : i32 to vector<64x1xi32>
    %117 = arith.cmpi slt, %19, %116 : vector<64x1xi32>
    %cst_99 = arith.constant 0.000000e+00 : bf16
    %118 = vector.broadcast %cst_99 : bf16 to vector<64x4xbf16>
    %119 = vector.shape_cast %117 : vector<64x1xi1> to vector<64x1xi1>
    %120 = vector.broadcast %119 : vector<64x1xi1> to vector<64x4xi1>
    %121 = arith.select %120, %115, %118 : vector<64x4xi1>, vector<64x4xbf16>
    %c0_100 = arith.constant 0 : index
    %c0_101 = arith.constant 0 : index
    %122 = vector.load %arg8[%c0_100, %c0_101] : memref<64x4xf32, #tpu.memory_space<vmem>>, vector<64x4xf32>
    %c0_102 = arith.constant 0 : index
    %c8_103 = arith.constant 8 : index
    %c0_104 = arith.constant 0 : index
    %c0_105 = arith.constant 0 : index
    %123 = vector.load %arg4[%c0_102, %c8_103, %c0_104, %c0_105] : memref<1x9x4x4xbf16, #tpu.memory_space<vmem>>, vector<1x1x4x4xbf16>
    %124 = vector.shape_cast %123 : vector<1x1x4x4xbf16> to vector<4x4xbf16>
    %cst_106 = arith.constant dense<0.000000e+00> : vector<64x4xf32>
    %125 = tpu.matmul %121, %124, %cst_106 {dimension_numbers = #tpu.dot_dimension_numbers<[1], [0], [0], [1], [0, 0, 1, 1], [], []>} : vector<64x4xbf16>, vector<4x4xbf16>, vector<64x4xf32> -> vector<64x4xf32>
    %126 = arith.addf %122, %125 : vector<64x4xf32>
    %c0_107 = arith.constant 0 : index
    %c0_108 = arith.constant 0 : index
    %127 = vector.load %arg8[%c0_107, %c0_108] : memref<64x4xf32, #tpu.memory_space<vmem>>, vector<64x4xf32>
    tpu.vector_store %arg8[%c0_107, %c0_108], %126 {strides = array<i32>} : memref<64x4xf32, #tpu.memory_space<vmem>>, vector<64x4xf32>,
    %c2_i32 = arith.constant 2 : i32
    %128 = arith.cmpi eq, %arg2, %c2_i32 : i32
    %129 = arith.extui %128 : i1 to i32
    %c0_i32_109 = arith.constant 0 : i32
    %130 = arith.cmpi ne, %129, %c0_i32_109 : i32
    scf.if %130 {
      %c0_110 = arith.constant 0 : index
      %c0_111 = arith.constant 0 : index
      %131 = vector.load %arg8[%c0_110, %c0_111] : memref<64x4xf32, #tpu.memory_space<vmem>>, vector<64x4xf32>
      %c0_112 = arith.constant 0 : index
      %c0_113 = arith.constant 0 : index
      %132 = vector.load %arg5[%c0_112, %c0_113] : memref<1x4xf32, #tpu.memory_space<vmem>>, vector<1x4xf32>
      %133 = vector.broadcast %132 : vector<1x4xf32> to vector<64x4xf32>
      %134 = arith.addf %131, %133 : vector<64x4xf32>
      %c0_114 = arith.constant 0 : index
      %c0_115 = arith.constant 0 : index
      %c0_116 = arith.constant 0 : index
      %c0_117 = arith.constant 0 : index
      %135 = vector.load %arg6[%c0_114, %c0_115, %c0_116, %c0_117] : memref<1x1x64x4xf32, #tpu.memory_space<vmem>>, vector<1x1x64x4xf32>
      %136 = vector.shape_cast %135 : vector<1x1x64x4xf32> to vector<64x4xf32>
      %137 = arith.addf %134, %136 : vector<64x4xf32>
      %c0_118 = arith.constant 0 : index
      %c0_119 = arith.constant 0 : index
      %c0_120 = arith.constant 0 : index
      %c0_121 = arith.constant 0 : index
      %138 = vector.load %arg7[%c0_118, %c0_119, %c0_120, %c0_121] : memref<1x1x64x4xf32, #tpu.memory_space<vmem>>, vector<1x1x64x4xf32>
      %139 = vector.shape_cast %138 : vector<1x1x64x4xf32> to vector<64x4xf32>
      %140 = vector.shape_cast %137 : vector<64x4xf32> to vector<1x1x64x4xf32>
      tpu.vector_store %arg7[%c0_118, %c0_119, %c0_120, %c0_121], %140 {strides = array<i32>} : memref<1x1x64x4xf32, #tpu.memory_space<vmem>>, vector<1x1x64x4xf32>,
    } else {
    }
    return
  }
  func.func @transform_0(%arg0: i32, %arg1: i32, %arg2: i32) -> (i32, i32, i32) {
    %c10_i32 = arith.constant 10 : i32
    %0 = arith.muli %arg0, %c10_i32 : i32
    %1 = arith.addi %0, %arg1 : i32
    %2 = arith.addi %1, %arg2 : i32
    %c0_i32 = arith.constant 0 : i32
    %c0_i32_0 = arith.constant 0 : i32
    %c0_i32_1 = arith.constant 0 : i32
    return %2, %c0_i32, %c0_i32_0 : i32, i32, i32
  }
  func.func @transform_1(%arg0: i32, %arg1: i32, %arg2: i32) -> (i32, i32, i32, i32) {
    %c0_i32 = arith.constant 0 : i32
    %c0_i32_0 = arith.constant 0 : i32
    %c0_i32_1 = arith.constant 0 : i32
    %c0_i32_2 = arith.constant 0 : i32
    return %arg2, %c0_i32, %c0_i32_0, %c0_i32_1 : i32, i32, i32, i32
  }
  func.func @transform_2(%arg0: i32, %arg1: i32, %arg2: i32) -> (i32, i32) {
    %c0_i32 = arith.constant 0 : i32
    %c0_i32_0 = arith.constant 0 : i32
    %c0_i32_1 = arith.constant 0 : i32
    return %c0_i32, %c0_i32_0 : i32, i32
  }
  func.func @transform_3(%arg0: i32, %arg1: i32, %arg2: i32) -> (i32, i32, i32, i32) {
    %c0_i32 = arith.constant 0 : i32
    %c0_i32_0 = arith.constant 0 : i32
    %c0_i32_1 = arith.constant 0 : i32
    return %arg0, %arg1, %c0_i32, %c0_i32_0 : i32, i32, i32, i32
  }
  func.func @transform_4(%arg0: i32, %arg1: i32, %arg2: i32) -> (i32, i32, i32, i32) {
    %c0_i32 = arith.constant 0 : i32
    %c0_i32_0 = arith.constant 0 : i32
    %c0_i32_1 = arith.constant 0 : i32
    return %arg0, %arg1, %c0_i32, %c0_i32_0 : i32, i32, i32, i32
  }
}

</mosaic_0001>

<llo_original>
// kernel: tile.58
$region0: #{tile.58}
  #allocation0 [shape = 's32[1]{0}', space=sflag, size = 0x4, scoped, tag = 'scoped memory for tile.58']
  %s0 = inlined_call_operand.vmem [shape: f32[4], index: 0, kind: input, shape index: {}]
  %s1 = inlined_call_operand.vmem [shape: f32[8,4], index: 1, kind: output, shape index: {}]
  // Predicated region
  $region2: #{tile.58} parent=0 // pred_check
    _
  $region3: #{tile.58} parent=0 // pred_check_branch
    %3 = sbr.rel (0) target = $region5
  $region4: #{tile.58} parent=0 // pred_region
    _
  $region5: #{tile.58} parent=0 // pred_fallthru
    _
  %v4 = vld [vmem:[%s0] ss:$0 sm:$0xff]
  %5 = vst [vmem:[%s1] sm:$0xff] %v4

// kernel: tile.59
$region0: #{tile.59}
  %s0 = inlined_call_operand.vmem [shape: f32[8,4], index: 0, kind: input, shape index: {}]
  %s1 = inlined_call_operand.vmem [shape: f32[1,32], index: 1, kind: output, shape index: {}]
  $region1: #{tile.59} parent=0
    #allocation0 [shape = 'u8[4096]{0}', space=vmem, size = 0x1000, scoped, tag = 'scoped mem for output reshape']
    %v2 = vld [vmem:[%s0] sm:$0x1]
    %vm3 = vcmask 31744
    %4 = vst.msk [vmem:[#allocation0] sm:$0x1] %vm3, %v2
    %s5 = scalar_lea.vmem %s0, 7
    %v6 = vld [vmem:[%s5] sm:$0x1]
    %7 = vrot.lane.b32.xlu0 %v6, 28
    %v8 = vpop.permute.xlu0 %7
    %vm9 = vcmask 261344
    %10 = vst.msk [vmem:[#allocation0] sm:$0x1] %vm9, %v8
    %s11 = scalar_lea.vmem %s0, 6
    %v12 = vld [vmem:[%s11] sm:$0x1]
    %13 = vrot.lane.b32.xlu0 %v12, 24
    %v14 = vpop.permute.xlu0 %13
    %vm15 = vcmask 228544
    %16 = vst.msk [vmem:[#allocation0] sm:$0x1] %vm15, %v14
    %s17 = scalar_lea.vmem %s0, 5
    %v18 = vld [vmem:[%s17] sm:$0x1]
    %19 = vrot.lane.b32.xlu0 %v18, 20
    %v20 = vpop.permute.xlu0 %19
    %vm21 = vcmask 195744
    %22 = vst.msk [vmem:[#allocation0] sm:$0x1] %vm21, %v20
    %s23 = scalar_lea.vmem %s0, 4
    %v24 = vld [vmem:[%s23] sm:$0x1]
    %25 = vrot.lane.b32.xlu0 %v24, 16
    %v26 = vpop.permute.xlu0 %25
    %vm27 = vcmask 162944
    %28 = vst.msk [vmem:[#allocation0] sm:$0x1] %vm27, %v26
    %s29 = scalar_lea.vmem %s0, 3
    %v30 = vld [vmem:[%s29] sm:$0x1]
    %31 = vrot.lane.b32.xlu0 %v30, 12
    %v32 = vpop.permute.xlu0 %31
    %vm33 = vcmask 130144
    %34 = vst.msk [vmem:[#allocation0] sm:$0x1] %vm33, %v32
    %s35 = scalar_lea.vmem %s0, 2
    %v36 = vld [vmem:[%s35] sm:$0x1]
    %37 = vrot.lane.b32.xlu0 %v36, 8
    %v38 = vpop.permute.xlu0 %37
    %vm39 = vcmask 97344
    %40 = vst.msk [vmem:[#allocation0] sm:$0x1] %vm39, %v38
    %s41 = scalar_lea.vmem %s0, 1
    %v42 = vld [vmem:[%s41] sm:$0x1]
    %43 = vrot.lane.b32.xlu0 %v42, 4
    %v44 = vpop.permute.xlu0 %43
    %vm45 = vcmask 64544
    %46 = vst.msk [vmem:[#allocation0] sm:$0x1] %vm45, %v44
    %s48 = sshllo.u32 0, 1
    %v50 = vld [vmem:[#allocation0] sm:%s48]
    %s51 = sshllo.u32 0, 1
    %52 = vst [vmem:[%s1] sm:%s51] %v50

// kernel: tile.53
$region0: #{tile.53}
  #allocation0 [shape = 's32[1]{0}', space=sflag, size = 0x4, scoped, tag = 'scoped memory for tile.53']
  %s0 = inlined_call_operand.vmem [shape: f32[4], index: 0, kind: input, shape index: {}]
  %s1 = inlined_call_operand.vmem [shape: f32[4,4], index: 1, kind: output, shape index: {}]
  // Predicated region
  $region2: #{tile.53} parent=0 // pred_check
    _
  $region3: #{tile.53} parent=0 // pred_check_branch
    %3 = sbr.rel (0) target = $region5
  $region4: #{tile.53} parent=0 // pred_region
    _
  $region5: #{tile.53} parent=0 // pred_fallthru
    _
  %v4 = vld [vmem:[%s0] ss:$0 sm:$0xff]
  %5 = vst [vmem:[%s1] sm:$0xf] %v4

// kernel: tile.54
$region0: #{tile.54}
  %s0 = inlined_call_operand.vmem [shape: f32[4,4], index: 0, kind: input, shape index: {}]
  %s1 = inlined_call_operand.vmem [shape: f32[1,16], index: 1, kind: output, shape index: {}]
  $region1: #{tile.54} parent=0
    #allocation0 [shape = 'u8[4096]{0}', space=vmem, size = 0x1000, scoped, tag = 'scoped mem for output reshape']
    #allocation1 [shape = 'u8[4096]{0}', space=vmem, size = 0x1000, scoped, tag = 'scoped mem for input reshape']
    %s3 = sshllo.u32 0, 4
    %v4 = vld [vmem:[%s0] sm:%s3]
    %5 = vst [vmem:[#allocation1] sm:%s3] %v4
    %v6 = vld [vmem:[#allocation1] sm:$0x1]
    %vm7 = vcmask 31744
    %8 = vst.msk [vmem:[#allocation0] sm:$0x1] %vm7, %v6
    %s9 = scalar_lea.vmem [#allocation1], 3
    %v10 = vld [vmem:[%s9] sm:$0x1]
    %11 = vrot.lane.b32.xlu0 %v10, 12
    %v12 = vpop.permute.xlu0 %11
    %vm13 = vcmask 130144
    %14 = vst.msk [vmem:[#allocation0] sm:$0x1] %vm13, %v12
    %s15 = scalar_lea.vmem [#allocation1], 2
    %v16 = vld [vmem:[%s15] sm:$0x1]
    %17 = vrot.lane.b32.xlu0 %v16, 8
    %v18 = vpop.permute.xlu0 %17
    %vm19 = vcmask 97344
    %20 = vst.msk [vmem:[#allocation0] sm:$0x1] %vm19, %v18
    %s21 = scalar_lea.vmem [#allocation1], 1
    %v22 = vld [vmem:[%s21] sm:$0x1]
    %23 = vrot.lane.b32.xlu0 %v22, 4
    %v24 = vpop.permute.xlu0 %23
    %vm25 = vcmask 64544
    %26 = vst.msk [vmem:[#allocation0] sm:$0x1] %vm25, %v24
    %s28 = sshllo.u32 0, 1
    %v30 = vld [vmem:[#allocation0] sm:%s28]
    %s31 = sshllo.u32 0, 1
    %32 = vst [vmem:[%s1] sm:%s31] %v30

// kernel: att_decoding_block_layer.11
$region0: #{att_decoding_block_layer.11}
  #allocation0 [shape = 'u32[]', space=smem, size = 0x4, offset = 0x4, fixed_abs, tag = 'smem constant byte address 0x4 - core index']
  #allocation1 [shape = 'u32[144,128]{1,0:T(1,128)}', space=vmem, size = 0x12000, scoped, tag = 'internal scratch']
  %s0 = inlined_call_operand.vmem [shape: f32[32,16], index: 0, kind: input, shape index: {}]
  %s1 = inlined_call_operand.vmem [shape: f32[1,16], index: 1, kind: input, shape index: {}]
  %s2 = inlined_call_operand.vmem [shape: f32[1,16], index: 2, kind: input, shape index: {}]
  %s3 = inlined_call_operand.vmem [shape: bf16[32,16], index: 3, kind: output, shape index: {}]
  %s4 = sld [smem:[#allocation0]]
  $region22: #{att_decoding_block_layer.11} parent=0
    _
  %s6 = ssub.s32 1, %s4
  %s7 = scalar_select 0, %s6, %s4
  // Predicated region
  $region2: #{att_decoding_block_layer.11} parent=0 // pred_check
    _
  $region3: #{att_decoding_block_layer.11} parent=0 // pred_check_branch
    %9 = sbr.rel (0) target = $region5
  $region4: #{att_decoding_block_layer.11} parent=0 // pred_region
    _
  $region5: #{att_decoding_block_layer.11} parent=0 // pred_fallthru
    _
  // Predicated region
  $region6: #{att_decoding_block_layer.11} parent=0 // pred_check
    _
  $region7: #{att_decoding_block_layer.11} parent=0 // pred_check_branch
    %11 = sbr.rel (0) target = $region9
  $region8: #{att_decoding_block_layer.11} parent=0 // pred_region
    _
  $region9: #{att_decoding_block_layer.11} parent=0 // pred_fallthru
    _
  // Predicated region
  $region10: #{att_decoding_block_layer.11} parent=0 // pred_check
    _
  $region11: #{att_decoding_block_layer.11} parent=0 // pred_check_branch
    %13 = sbr.rel (0) target = $region13
  $region12: #{att_decoding_block_layer.11} parent=0 // pred_region
    _
  $region13: #{att_decoding_block_layer.11} parent=0 // pred_fallthru
    _
  %v14 = vld [vmem:[%s0] sm:$0xff]
  %v15 = vld [vmem:[%s0 + $0x8] sm:$0xff]
  %v16 = vld [vmem:[%s0 + $0x10] sm:$0xff]
  %v17 = vld [vmem:[%s0 + $0x18] sm:$0xff]
  %v18 = vld [vmem:[%s1] sm:$0x1]
  %v20 = vlaneseq
  %v21 = vshrl.u32 %v20, 7
  %v22 = vsub.s32 0, %v21
  %v23 = vrot.slane %v18, %v22
  %v25 = vmul.f32 %v14, %v23
  %v26 = vmul.f32 %v15, %v23
  %v27 = vmul.f32 %v16, %v23
  %v28 = vmul.f32 %v17, %v23
  %v29 = vld [vmem:[%s2] sm:$0x1]
  %v31 = vlaneseq
  %v32 = vshrl.u32 %v31, 7
  %v33 = vsub.s32 0, %v32
  %v34 = vrot.slane %v29, %v33
  %v36 = vadd.f32 %v25, %v34
  %v37 = vadd.f32 %v26, %v34
  %v38 = vadd.f32 %v27, %v34
  %v39 = vadd.f32 %v28, %v34
  %v40 = vmax.f32 %v36, 0.0
  %v41 = vmax.f32 %v37, 0.0
  %v42 = vmax.f32 %v38, 0.0
  %v43 = vmax.f32 %v39, 0.0
  %v44 = vmin.f32 %v40, 6.0
  %v45 = vmin.f32 %v41, 6.0
  %v46 = vmin.f32 %v42, 6.0
  %v47 = vmin.f32 %v43, 6.0
  %v48 = vpack.c.bf16 %v45, %v44
  %v49 = vpack.c.bf16 %v47, %v46
  %v52 = vunpack.c.l.b16 %v48
  %v53 = vunpack.c.h.b16 %v48
  %v54 = vunpack.c.l.b16 %v49
  %v55 = vunpack.c.h.b16 %v49
  %v56 = vpack.c.b16 %v52, %v52
  %v57 = vpack.c.b16 %v53, %v53
  %v58 = vpack.c.b16 %v54, %v54
  %v59 = vpack.c.b16 %v55, %v55
  %vm64 = vcmask 125952
  %65 = vst.msk [vmem:[%s3] sm:$0xf] %vm64, %v56
  %66 = vst.msk [vmem:[%s3 + $0x4] sm:$0xf] %vm64, %v57
  %67 = vst.msk [vmem:[%s3 + $0x8] sm:$0xf] %vm64, %v58
  %68 = vst.msk [vmem:[%s3 + $0xc] sm:$0xf] %vm64, %v59
  // Predicated region
  $region14: #{att_decoding_block_layer.11} parent=0 // pred_check
    _
  $region15: #{att_decoding_block_layer.11} parent=0 // pred_check_branch
    %70 = sbr.rel (0) target = $region17
  $region16: #{att_decoding_block_layer.11} parent=0 // pred_region
    _
  $region17: #{att_decoding_block_layer.11} parent=0 // pred_fallthru
    _
  // Predicated region
  $region18: #{att_decoding_block_layer.11} parent=0 // pred_check
    _
  $region19: #{att_decoding_block_layer.11} parent=0 // pred_check_branch
    %72 = sbr.rel (0) target = $region21
  $region20: #{att_decoding_block_layer.11} parent=0 // pred_region
    _
  $region21: #{att_decoding_block_layer.11} parent=0 // pred_fallthru
    _

// kernel: att_decoding_block_layer.13
$region0: #{att_decoding_block_layer.13}
  #allocation0 [shape = 'u32[]', space=smem, size = 0x4, offset = 0x4, fixed_abs, tag = 'smem constant byte address 0x4 - core index']
  #allocation1 [shape = 'u32[144,128]{1,0:T(1,128)}', space=vmem, size = 0x12000, scoped, tag = 'internal scratch']
  #allocation2 [shape = 'f32[64,8]{1,0:T(8,128)}', space=vmem, size = 0x8000, scoped, tag = 'scratch operand']
  %s0 = inlined_call_operand.vmem [shape: bf16[128,4], index: 0, kind: input, shape index: {}]
  %s1 = inlined_call_operand.vmem [shape: bf16[4,8], index: 1, kind: input, shape index: {}]
  %s2 = inlined_call_operand.vmem [shape: f32[1,8], index: 2, kind: input, shape index: {}]
  %s3 = inlined_call_operand.vmem [shape: bf16[128,8], index: 3, kind: output, shape index: {}]
  %s4 = sld [smem:[#allocation0]]
  $region53: #{att_decoding_block_layer.13} parent=0
    _
  %s6 = ssub.s32 1, %s4
  %s7 = scalar_select 0, %s6, %s4
  loop: start=0, step=1, limit=4
  $region2: #{att_decoding_block_layer.13} parent=0 // loop_pre_header
    _
  $region3: #{att_decoding_block_layer.13} parent=0 // loop_header
    %s9 = sphi 0, %s13
    %p10 = scmp.ge.s32.totalorder %s9, 4
    %s16 = sphi 0, %s35
    %s17 = sphi 0, %s31
    %s18 = sphi 0, %s27
    %s19 = sphi 0, %s16
    %s20 = sphi 0, %s17
    %s21 = sphi 0, %s18
    %s22 = sphi 0, %s19
    %s23 = sphi 0, %s20
    %s24 = sphi 0, %s21
    %s40 = sphi 0, %s42
    %s43 = sphi 0, %s40
    %s44 = sphi 0, %s43
    %s60 = sphi 0, %s44
    %s68 = sphi 0, %s70
    %s71 = sphi 0, %s68
    %s72 = sphi 0, %s71
    %s88 = sphi 0, %s72
    %s94 = sphi 0, %s96
    %s97 = sphi 0, %s94
    %s98 = sphi 0, %s97
    %s114 = sphi 0, %s98
    %s122 = sphi 0, %s124
    %s125 = sphi 0, %s122
    %s126 = sphi 0, %s125
    %s142 = sphi 0, %s126
  $region4: #{att_decoding_block_layer.13} parent=0 // loop_header_branch
    %12 = sbr.rel (%p10) target = $region8
  $region5: #{att_decoding_block_layer.13} parent=0 // loop_body
    %s14 = ssub.s32 %s9, 1
    %s15 = ssub.s32 %s9, 2
    %s25 = sadd.s32 1, %s18
    %p26 = scmp.ge.s32.totalorder %s25, 1
    %s27 = scalar_select %p26, 0, %s25
    %s28 = sadd.s32 1, %s17
    %s29 = scalar_select %p26, %s28, %s17
    %p30 = scmp.ge.s32.totalorder %s29, 1
    %s31 = scalar_select %p30, 0, %s29
    %s32 = sadd.s32 1, %s16
    %s33 = scalar_select %p30, %s32, %s16
    %p34 = scmp.ge.s32.totalorder %s33, 2
    %s35 = scalar_select %p34, 0, %s33
    %s36 = ssub.s32 %s16, %s35
    %s37 = ssub.s32 %s18, %s27
    %s38 = sor.u32 %s36, %s37
    %p39 = scmp.eq.s32.totalorder %s38, 0
    %s41 = sadd.s32 %s40, 1
    %s42 = scalar_select %p39, %s40, %s41
    %p45 = pneg %p39
    %p46 = scmp.eq.s32.totalorder %s9, 1
    %p47 = por %p45, %p46
    %p48 = scmp.ne.s32.totalorder %s40, %s43
    %p49 = scmp.eq.s32.totalorder %s9, 0
    %p50 = por %p48, %p49
    %p51 = scmp.ne.s32.totalorder %s40, %s43
    %p52 = scmp.eq.s32.totalorder %s14, 1
    %p53 = por %p51, %p52
    %p54 = scmp.ne.s32.totalorder %s43, %s44
    %p55 = scmp.eq.s32.totalorder %s14, 0
    %p56 = por %p54, %p55
    %p57 = scmp.ne.s32.totalorder %s43, %s44
    %p58 = scmp.eq.s32.totalorder %s15, 1
    %p59 = por %p57, %p58
    %p61 = scmp.ne.s32.totalorder %s44, %s60
    %p62 = scmp.eq.s32.totalorder %s15, 0
    %p63 = por %p61, %p62
    %s64 = ssub.s32 %s18, %s27
    %s65 = ssub.s32 %s17, %s31
    %s66 = sor.u32 %s64, %s65
    %p67 = scmp.eq.s32.totalorder %s66, 0
    %s69 = sadd.s32 %s68, 1
    %s70 = scalar_select %p67, %s68, %s69
    %p73 = pneg %p67
    %p74 = scmp.eq.s32.totalorder %s9, 1
    %p75 = por %p73, %p74
    %p76 = scmp.ne.s32.totalorder %s68, %s71
    %p77 = scmp.eq.s32.totalorder %s9, 0
    %p78 = por %p76, %p77
    %p79 = scmp.ne.s32.totalorder %s68, %s71
    %p80 = scmp.eq.s32.totalorder %s14, 1
    %p81 = por %p79, %p80
    %p82 = scmp.ne.s32.totalorder %s71, %s72
    %p83 = scmp.eq.s32.totalorder %s14, 0
    %p84 = por %p82, %p83
    %p85 = scmp.ne.s32.totalorder %s71, %s72
    %p86 = scmp.eq.s32.totalorder %s15, 1
    %p87 = por %p85, %p86
    %p89 = scmp.ne.s32.totalorder %s72, %s88
    %p90 = scmp.eq.s32.totalorder %s15, 0
    %p91 = por %p89, %p90
    %s92 = ssub.s32 %s17, %s31
    %p93 = scmp.eq.s32.totalorder %s92, 0
    %s95 = sadd.s32 %s94, 1
    %s96 = scalar_select %p93, %s94, %s95
    %p99 = pneg %p93
    %p100 = scmp.eq.s32.totalorder %s9, 1
    %p101 = por %p99, %p100
    %p102 = scmp.ne.s32.totalorder %s94, %s97
    %p103 = scmp.eq.s32.totalorder %s9, 0
    %p104 = por %p102, %p103
    %p105 = scmp.ne.s32.totalorder %s94, %s97
    %p106 = scmp.eq.s32.totalorder %s14, 1
    %p107 = por %p105, %p106
    %p108 = scmp.ne.s32.totalorder %s97, %s98
    %p109 = scmp.eq.s32.totalorder %s14, 0
    %p110 = por %p108, %p109
    %p111 = scmp.ne.s32.totalorder %s97, %s98
    %p112 = scmp.eq.s32.totalorder %s15, 1
    %p113 = por %p111, %p112
    %p115 = scmp.ne.s32.totalorder %s98, %s114
    %p116 = scmp.eq.s32.totalorder %s15, 0
    %p117 = por %p115, %p116
    %s118 = ssub.s32 %s16, %s35
    %s119 = ssub.s32 %s17, %s31
    %s120 = sor.u32 %s118, %s119
    %p121 = scmp.eq.s32.totalorder %s120, 0
    %s123 = sadd.s32 %s122, 1
    %s124 = scalar_select %p121, %s122, %s123
    %p127 = pneg %p121
    %p128 = scmp.eq.s32.totalorder %s9, 1
    %p129 = por %p127, %p128
    %p130 = scmp.ne.s32.totalorder %s122, %s125
    %p131 = scmp.eq.s32.totalorder %s9, 0
    %p132 = por %p130, %p131
    %p133 = scmp.ne.s32.totalorder %s122, %s125
    %p134 = scmp.eq.s32.totalorder %s14, 1
    %p135 = por %p133, %p134
    %p136 = scmp.ne.s32.totalorder %s125, %s126
    %p137 = scmp.eq.s32.totalorder %s14, 0
    %p138 = por %p136, %p137
    %p139 = scmp.ne.s32.totalorder %s125, %s126
    %p140 = scmp.eq.s32.totalorder %s15, 1
    %p141 = por %p139, %p140
    %p143 = scmp.ne.s32.totalorder %s126, %s142
    %p144 = scmp.eq.s32.totalorder %s15, 0
    %p145 = por %p143, %p144
    %p146 = scmp.le.s32.totalorder 1, %s9
    %p147 = scmp.lt.s32.totalorder %s9, 3
    %p148 = pnand %p146, %p147
    %p149 = pneg %p148
    // Predicated region
    $region9: #{att_decoding_block_layer.13} parent=5 // pred_check
      _
    $region10: #{att_decoding_block_layer.13} parent=5 // pred_check_branch
      %151 = sbr.rel (%p148) target = $region12
    $region11: #{att_decoding_block_layer.13} parent=5 // pred_region
      %s152 = ssub.s32 %s9, 1
      // Predicated region
      $region13: #{att_decoding_block_layer.13} parent=11 // pred_check
        %p153 = pneg %p84
      $region14: #{att_decoding_block_layer.13} parent=11 // pred_check_branch
        %155 = sbr.rel (%p153) target = $region16
      $region15: #{att_decoding_block_layer.13} parent=11 // pred_region
        %p156 = scmp.lt.s32.totalorder %s21, 0
        %s157 = scalar_select %p156, %s21, 0
        %p158 = scmp.lt.s32.totalorder %s20, 0
        %s159 = scalar_select %p158, %s20, 0
        %s160 = sadd.s32 %s159, %s157
        %s161 = smul.addr %s160, 2
        %s162 = scalar_lea.vmem %s1, %s161
      $region16: #{att_decoding_block_layer.13} parent=11 // pred_fallthru
        _
      // Predicated region
      $region17: #{att_decoding_block_layer.13} parent=11 // pred_check
        %p163 = pneg %p110
      $region18: #{att_decoding_block_layer.13} parent=11 // pred_check_branch
        %165 = sbr.rel (%p163) target = $region20
      $region19: #{att_decoding_block_layer.13} parent=11 // pred_region
        %p166 = scmp.lt.s32.totalorder %s20, 0
        %s167 = scalar_select %p166, %s20, 0
        %s168 = scalar_lea.vmem %s2, %s167
      $region20: #{att_decoding_block_layer.13} parent=11 // pred_fallthru
        _
    $region12: #{att_decoding_block_layer.13} parent=5 // pred_fallthru
      _
    %p169 = scmp.lt.s32.totalorder %s9, 2
    // Predicated region
    $region21: #{att_decoding_block_layer.13} parent=5 // pred_check
      %p170 = pneg %p169
    $region22: #{att_decoding_block_layer.13} parent=5 // pred_check_branch
      %172 = sbr.rel (%p170) target = $region24
    $region23: #{att_decoding_block_layer.13} parent=5 // pred_region
      // Predicated region
      $region25: #{att_decoding_block_layer.13} parent=23 // pred_check
        %p173 = pneg %p50
      $region26: #{att_decoding_block_layer.13} parent=23 // pred_check_branch
        %175 = sbr.rel (%p173) target = $region28
      $region27: #{att_decoding_block_layer.13} parent=23 // pred_region
        %s176 = smul.u32 8, %s16
        %p177 = scmp.lt.s32.totalorder %s176, 15
        %s178 = scalar_select %p177, %s176, 15
        %p179 = scmp.lt.s32.totalorder %s18, 0
        %s180 = scalar_select %p179, %s18, 0
        %s181 = sadd.s32 %s180, %s178
        %s182 = smul.addr %s181, 4
        %s183 = scalar_lea.vmem %s0, %s182
        %s184 = smul.u32 8, %s16
      $region28: #{att_decoding_block_layer.13} parent=23 // pred_fallthru
        _
    $region24: #{att_decoding_block_layer.13} parent=5 // pred_fallthru
      _
    %p185 = scmp.le.s32.totalorder 1, %s9
    %p186 = scmp.lt.s32.totalorder %s9, 3
    %p187 = pnand %p185, %p186
    %p188 = pneg %p187
    // Predicated region
    $region29: #{att_decoding_block_layer.13} parent=5 // pred_check
      _
    $region30: #{att_decoding_block_layer.13} parent=5 // pred_check_branch
      %190 = sbr.rel (%p187) target = $region32
    $region31: #{att_decoding_block_layer.13} parent=5 // pred_region
      %s191 = ssub.s32 %s9, 1
      %s192 = smul.u32 8, %s19
      %p193 = scmp.lt.s32.totalorder %s192, 15
      %s194 = scalar_select %p193, %s192, 15
      %p195 = scmp.lt.s32.totalorder %s21, 0
      %s196 = scalar_select %p195, %s21, 0
      %s197 = sadd.s32 %s196, %s194
      %s198 = smul.addr %s197, 4
      %s199 = scalar_lea.vmem %s0, %s198
      %p200 = pneg %p56
      %p201 = pneg %p53
      %p202 = scmp.lt.s32.totalorder %s21, 0
      %s203 = scalar_select %p202, %s21, 0
      %p204 = scmp.lt.s32.totalorder %s20, 0
      %s205 = scalar_select %p204, %s20, 0
      %s206 = sadd.s32 %s205, %s203
      %s207 = smul.addr %s206, 2
      %s208 = scalar_lea.vmem %s1, %s207
      %p209 = pneg %p84
      %p210 = pneg %p81
      %p211 = scmp.lt.s32.totalorder %s20, 0
      %s212 = scalar_select %p211, %s20, 0
      %s213 = scalar_lea.vmem %s2, %s212
      %p214 = pneg %p110
      %p215 = pneg %p107
      %p216 = pneg %p138
      %p217 = pneg %p135
      %s218 = smul.u32 8, %s19
      %p219 = scmp.lt.s32.totalorder %s218, 15
      %s220 = scalar_select %p219, %s218, 15
      %p221 = scmp.lt.s32.totalorder %s20, 0
      %s222 = scalar_select %p221, %s20, 0
      %s223 = sadd.s32 %s222, %s220
      %s224 = smul.addr %s223, 4
      %s225 = scalar_lea.vmem %s3, %s224
      %s226 = smul.u32 8, %s19
      %p227 = scmp.lt.s32.totalorder %s226, 15
      %s228 = scalar_select %p227, %s226, 15
      %p229 = scmp.lt.s32.totalorder %s21, 0
      %s230 = scalar_select %p229, %s21, 0
      %s231 = sadd.s32 %s230, %s228
      %s232 = smul.addr %s231, 4
      %s233 = scalar_lea.vmem %s0, %s232
      %s234 = smul.u32 8, %s19
      %p235 = scmp.lt.s32.totalorder %s21, 0
      %s236 = scalar_select %p235, %s21, 0
      %p237 = scmp.lt.s32.totalorder %s20, 0
      %s238 = scalar_select %p237, %s20, 0
      %s239 = sadd.s32 %s238, %s236
      %s240 = smul.addr %s239, 2
      %s241 = scalar_lea.vmem %s1, %s240
      %p242 = scmp.lt.s32.totalorder %s20, 0
      %s243 = scalar_select %p242, %s20, 0
      %s244 = scalar_lea.vmem %s2, %s243
      %s245 = smul.u32 8, %s19
      %p246 = scmp.lt.s32.totalorder %s245, 15
      %s247 = scalar_select %p246, %s245, 15
      %p248 = scmp.lt.s32.totalorder %s20, 0
      %s249 = scalar_select %p248, %s20, 0
      %s250 = sadd.s32 %s249, %s247
      %s251 = smul.addr %s250, 4
      %s252 = scalar_lea.vmem %s3, %s251
      %s253 = smul.u32 8, %s19
      %p255 = scmp.eq.s32.totalorder %s21, 0
      // Predicated region
      $region33: #{att_decoding_block_layer.13} parent=31 // pred_check
        %p256 = pneg %p255
      $region34: #{att_decoding_block_layer.13} parent=31 // pred_check_branch
        %258 = sbr.rel (%p256) target = $region36
      $region35: #{att_decoding_block_layer.13} parent=31 // pred_region
        %vm259 = vcmask 64512
        %260 = vst.msk [vmem:[#allocation2] sm:$0xff] %vm259, 0.0
        %261 = vst.msk [vmem:[#allocation2 + $0x8] sm:$0xff] %vm259, 0.0
        %262 = vst.msk [vmem:[#allocation2 + $0x10] sm:$0xff] %vm259, 0.0
        %263 = vst.msk [vmem:[#allocation2 + $0x18] sm:$0xff] %vm259, 0.0
        %264 = vst.msk [vmem:[#allocation2 + $0x20] sm:$0xff] %vm259, 0.0
        %265 = vst.msk [vmem:[#allocation2 + $0x28] sm:$0xff] %vm259, 0.0
        %266 = vst.msk [vmem:[#allocation2 + $0x30] sm:$0xff] %vm259, 0.0
        %267 = vst.msk [vmem:[#allocation2 + $0x38] sm:$0xff] %vm259, 0.0
      $region36: #{att_decoding_block_layer.13} parent=31 // pred_fallthru
        _
      %v268 = vld [vmem:[#allocation2] sm:$0xff]
      %v269 = vld [vmem:[#allocation2 + $0x8] sm:$0xff]
      %v270 = vld [vmem:[#allocation2 + $0x10] sm:$0xff]
      %v271 = vld [vmem:[#allocation2 + $0x18] sm:$0xff]
      %v272 = vld [vmem:[#allocation2 + $0x20] sm:$0xff]
      %v273 = vld [vmem:[#allocation2 + $0x28] sm:$0xff]
      %v274 = vld [vmem:[#allocation2 + $0x30] sm:$0xff]
      %v275 = vld [vmem:[#allocation2 + $0x38] sm:$0xff]
      %v276 = vld [vmem:[%s233] sm:$0xf]
      %v277 = vld [vmem:[%s233 + $0x4] sm:$0xf]
      %v278 = vld [vmem:[%s233 + $0x8] sm:$0xf]
      %v279 = vld [vmem:[%s233 + $0xc] sm:$0xf]
      %v280 = vld [vmem:[%s233 + $0x10] sm:$0xf]
      %v281 = vld [vmem:[%s233 + $0x14] sm:$0xf]
      %v282 = vld [vmem:[%s233 + $0x18] sm:$0xf]
      %v283 = vld [vmem:[%s233 + $0x1c] sm:$0xf]
      %v284 = vld [vmem:[%s241] sm:$0x3]
      %v293 = vunpack.c.l.b16 %v276
      %v294 = vunpack.c.l.b16 %v277
      %v295 = vunpack.c.l.b16 %v278
      %v296 = vunpack.c.l.b16 %v279
      %v297 = vunpack.c.l.b16 %v280
      %v298 = vunpack.c.l.b16 %v281
      %v299 = vunpack.c.l.b16 %v282
      %v300 = vunpack.c.l.b16 %v283
      %v301 = vpack.c.b16 %v294, %v293
      %v302 = vpack.c.b16 %v296, %v295
      %v303 = vpack.c.b16 %v298, %v297
      %v304 = vpack.c.b16 %v300, %v299
      %vm305 = vcmask 31744
      %v307 = vsel %vm305, %v301, 0
      %v310 = vsel %vm305, %v302, 0
      %v313 = vsel %vm305, %v303, 0
      %v316 = vsel %vm305, %v304, 0
      %vm318 = vcmask 1041408
      %v320 = vsel %vm318, %v284, 0
      %322 = vmatprep.subr.bf16.mxu0 0
      %323 = vmatpush1.bf16.msra.mxu0 %v320
      %324 = vmatprep.subr.bf16.mxu0 0
      %325 = vmatpush1.bf16.msra.mxu0 0
      %326 = vmatprep.subr.bf16.mxu0 0
      %327 = vmatpush1.bf16.msra.mxu0 0
      %328 = vmatprep.subr.bf16.mxu0 0
      %329 = vmatpush1.bf16.msra.mxu0 0
      %330 = vmatprep.subr.bf16.mxu0 0
      %331 = vmatpush1.bf16.msra.mxu0 0
      %332 = vmatprep.subr.bf16.mxu0 0
      %333 = vmatpush1.bf16.msra.mxu0 0
      %334 = vmatprep.subr.bf16.mxu0 0
      %335 = vmatpush1.bf16.msra.mxu0 0
      %336 = vmatprep.subr.bf16.mxu0 0
      %337 = vmatpush1.bf16.msra.mxu0 0
      %338 = vmatprep.subr.bf16.mxu0 0
      %339 = vmatpush1.bf16.msra.mxu0 0
      %340 = vmatprep.subr.bf16.mxu0 0
      %341 = vmatpush1.bf16.msra.mxu0 0
      %342 = vmatprep.subr.bf16.mxu0 0
      %343 = vmatpush1.bf16.msra.mxu0 0
      %344 = vmatprep.subr.bf16.mxu0 0
      %345 = vmatpush1.bf16.msra.mxu0 0
      %346 = vmatprep.subr.bf16.mxu0 0
      %347 = vmatpush1.bf16.msra.mxu0 0
      %348 = vmatprep.subr.bf16.mxu0 0
      %349 = vmatpush1.bf16.msra.mxu0 0
      %350 = vmatprep.subr.bf16.mxu0 0
      %351 = vmatpush1.bf16.msra.mxu0 0
      %352 = vmatprep.subr.bf16.mxu0 0
      %353 = vmatpush1.bf16.msra.mxu0 0
      %354 = vmatprep.mubr.bf16.mxu0 0
      %355 = vmatmul.mubr.bf16.gmra.mrb[0].mxu0 %v307
      %v356 = vpop.f32.mrb[0].mxu0
      %v357 = vadd.f32 0.0, %v356
      %v358 = vpop.f32.mrb[0].mxu0
      %v359 = vpop.f32.mrb[0].mxu0
      %v360 = vadd.f32 0.0, %v359
      %v361 = vpop.f32.mrb[0].mxu0
      %362 = vmatprep.mubr.bf16.mxu0 0
      %363 = vmatmul.mubr.bf16.gmra.mrb[0].mxu0 %v310
      %v364 = vpop.f32.mrb[0].mxu0
      %v365 = vadd.f32 0.0, %v364
      %v366 = vpop.f32.mrb[0].mxu0
      %v367 = vpop.f32.mrb[0].mxu0
      %v368 = vadd.f32 0.0, %v367
      %v369 = vpop.f32.mrb[0].mxu0
      %370 = vmatprep.mubr.bf16.mxu0 0
      %371 = vmatmul.mubr.bf16.gmra.mrb[0].mxu0 %v313
      %v372 = vpop.f32.mrb[0].mxu0
      %v373 = vadd.f32 0.0, %v372
      %v374 = vpop.f32.mrb[0].mxu0
      %v375 = vpop.f32.mrb[0].mxu0
      %v376 = vadd.f32 0.0, %v375
      %v377 = vpop.f32.mrb[0].mxu0
      %378 = vmatprep.mubr.bf16.mxu0 0
      %379 = vmatmul.mubr.bf16.gmra.mrb[0].mxu0 %v316
      %v380 = vpop.f32.mrb[0].mxu0
      %v381 = vadd.f32 0.0, %v380
      %v382 = vpop.f32.mrb[0].mxu0
      %v383 = vpop.f32.mrb[0].mxu0
      %v384 = vadd.f32 0.0, %v383
      %v385 = vpop.f32.mrb[0].mxu0
      %386 = vdwg.mxu0
      %v387 = vadd.f32 %v268, %v357
      %v388 = vadd.f32 %v269, %v360
      %v389 = vadd.f32 %v270, %v365
      %v390 = vadd.f32 %v271, %v368
      %v391 = vadd.f32 %v272, %v373
      %v392 = vadd.f32 %v273, %v376
      %v393 = vadd.f32 %v274, %v381
      %v394 = vadd.f32 %v275, %v384
      %vm395 = vcmask 64512
      %396 = vst.msk [vmem:[#allocation2] sm:$0xff] %vm395, %v387
      %397 = vst.msk [vmem:[#allocation2 + $0x8] sm:$0xff] %vm395, %v388
      %398 = vst.msk [vmem:[#allocation2 + $0x10] sm:$0xff] %vm395, %v389
      %399 = vst.msk [vmem:[#allocation2 + $0x18] sm:$0xff] %vm395, %v390
      %400 = vst.msk [vmem:[#allocation2 + $0x20] sm:$0xff] %vm395, %v391
      %401 = vst.msk [vmem:[#allocation2 + $0x28] sm:$0xff] %vm395, %v392
      %402 = vst.msk [vmem:[#allocation2 + $0x30] sm:$0xff] %vm395, %v393
      %403 = vst.msk [vmem:[#allocation2 + $0x38] sm:$0xff] %vm395, %v394
      // Predicated region
      $region37: #{att_decoding_block_layer.13} parent=31 // pred_check
        %p404 = pneg %p255
      $region38: #{att_decoding_block_layer.13} parent=31 // pred_check_branch
        %406 = sbr.rel (%p404) target = $region40
      $region39: #{att_decoding_block_layer.13} parent=31 // pred_region
        %v407 = vld [vmem:[#allocation2] sm:$0xff]
        %v408 = vld [vmem:[#allocation2 + $0x8] sm:$0xff]
        %v409 = vld [vmem:[#allocation2 + $0x10] sm:$0xff]
        %v410 = vld [vmem:[#allocation2 + $0x18] sm:$0xff]
        %v411 = vld [vmem:[#allocation2 + $0x20] sm:$0xff]
        %v412 = vld [vmem:[#allocation2 + $0x28] sm:$0xff]
        %v413 = vld [vmem:[#allocation2 + $0x30] sm:$0xff]
        %v414 = vld [vmem:[#allocation2 + $0x38] sm:$0xff]
        %v415 = vld [vmem:[%s244] sm:$0x1]
        %v417 = vlaneseq
        %v418 = vshrl.u32 %v417, 7
        %v419 = vsub.s32 0, %v418
        %v420 = vrot.slane %v415, %v419
        %v422 = vadd.f32 %v407, %v420
        %v423 = vadd.f32 %v408, %v420
        %v424 = vadd.f32 %v409, %v420
        %v425 = vadd.f32 %v410, %v420
        %v426 = vadd.f32 %v411, %v420
        %v427 = vadd.f32 %v412, %v420
        %v428 = vadd.f32 %v413, %v420
        %v429 = vadd.f32 %v414, %v420
        %v430 = vpack.c.bf16 %v423, %v422
        %v431 = vpack.c.bf16 %v425, %v424
        %v432 = vpack.c.bf16 %v427, %v426
        %v433 = vpack.c.bf16 %v429, %v428
        %v438 = vunpack.c.l.b16 %v430
        %v439 = vunpack.c.h.b16 %v430
        %v440 = vunpack.c.l.b16 %v431
        %v441 = vunpack.c.h.b16 %v431
        %v442 = vunpack.c.l.b16 %v432
        %v443 = vunpack.c.h.b16 %v432
        %v444 = vunpack.c.l.b16 %v433
        %v445 = vunpack.c.h.b16 %v433
        %v446 = vpack.c.b16 %v438, %v438
        %v447 = vpack.c.b16 %v439, %v439
        %v448 = vpack.c.b16 %v440, %v440
        %v449 = vpack.c.b16 %v441, %v441
        %v450 = vpack.c.b16 %v442, %v442
        %v451 = vpack.c.b16 %v443, %v443
        %v452 = vpack.c.b16 %v444, %v444
        %v453 = vpack.c.b16 %v445, %v445
        %vm462 = vcmask 60416
        %463 = vst.msk [vmem:[%s252] sm:$0xf] %vm462, %v446
        %464 = vst.msk [vmem:[%s252 + $0x4] sm:$0xf] %vm462, %v447
        %465 = vst.msk [vmem:[%s252 + $0x8] sm:$0xf] %vm462, %v448
        %466 = vst.msk [vmem:[%s252 + $0xc] sm:$0xf] %vm462, %v449
        %467 = vst.msk [vmem:[%s252 + $0x10] sm:$0xf] %vm462, %v450
        %468 = vst.msk [vmem:[%s252 + $0x14] sm:$0xf] %vm462, %v451
        %469 = vst.msk [vmem:[%s252 + $0x18] sm:$0xf] %vm462, %v452
        %470 = vst.msk [vmem:[%s252 + $0x1c] sm:$0xf] %vm462, %v453
      $region40: #{att_decoding_block_layer.13} parent=31 // pred_fallthru
        _
      %s471 = smul.u32 8, %s19
      %p472 = scmp.lt.s32.totalorder %s471, 15
      %s473 = scalar_select %p472, %s471, 15
      %p474 = scmp.lt.s32.totalorder %s20, 0
      %s475 = scalar_select %p474, %s20, 0
      %s476 = sadd.s32 %s475, %s473
      %s477 = smul.addr %s476, 4
      %s478 = scalar_lea.vmem %s3, %s477
      // Predicated region
      $region41: #{att_decoding_block_layer.13} parent=31 // pred_check
        %p479 = pneg %p135
      $region42: #{att_decoding_block_layer.13} parent=31 // pred_check_branch
        %481 = sbr.rel (%p479) target = $region44
      $region43: #{att_decoding_block_layer.13} parent=31 // pred_region
        %s482 = smul.u32 8, %s19
      $region44: #{att_decoding_block_layer.13} parent=31 // pred_fallthru
        _
    $region32: #{att_decoding_block_layer.13} parent=5 // pred_fallthru
      _
    %p483 = scmp.le.s32.totalorder 2, %s9
    // Predicated region
    $region45: #{att_decoding_block_layer.13} parent=5 // pred_check
      %p484 = pneg %p483
    $region46: #{att_decoding_block_layer.13} parent=5 // pred_check_branch
      %486 = sbr.rel (%p484) target = $region48
    $region47: #{att_decoding_block_layer.13} parent=5 // pred_region
      %s487 = ssub.s32 %s9, 2
      // Predicated region
      $region49: #{att_decoding_block_layer.13} parent=47 // pred_check
        %p488 = pneg %p141
      $region50: #{att_decoding_block_layer.13} parent=47 // pred_check_branch
        %490 = sbr.rel (%p488) target = $region52
      $region51: #{att_decoding_block_layer.13} parent=47 // pred_region
        %s491 = smul.u32 8, %s22
        %p492 = scmp.lt.s32.totalorder %s491, 15
        %s493 = scalar_select %p492, %s491, 15
        %p494 = scmp.lt.s32.totalorder %s23, 0
        %s495 = scalar_select %p494, %s23, 0
        %s496 = sadd.s32 %s495, %s493
        %s497 = smul.addr %s496, 4
        %s498 = scalar_lea.vmem %s3, %s497
      $region52: #{att_decoding_block_layer.13} parent=47 // pred_fallthru
        _
    $region48: #{att_decoding_block_layer.13} parent=5 // pred_fallthru
      _
  $region6: #{att_decoding_block_layer.13} parent=0 // loop_footer
    %s13 = sadd.s32 1, %s9
  $region7: #{att_decoding_block_layer.13} parent=0 // loop_footer_branch
    %8 = sbr.rel target = $region3
  $region8: #{att_decoding_block_layer.13} parent=0 // loop_exit
    _

// kernel: att_decoding_block_layer.10
$region0: #{att_decoding_block_layer.10}
  #allocation0 [shape = 'u32[]', space=smem, size = 0x4, offset = 0x4, fixed_abs, tag = 'smem constant byte address 0x4 - core index']
  #allocation1 [shape = 'u32[144,128]{1,0:T(1,128)}', space=vmem, size = 0x12000, scoped, tag = 'internal scratch']
  #allocation2 [shape = 'f32[16,32]{1,0:T(8,128)}', space=vmem, size = 0x2000, scoped, tag = 'scratch operand']
  %s0 = inlined_call_operand.vmem [shape: bf16[10,21,8], index: 0, kind: input, shape index: {}]
  %s1 = inlined_call_operand.vmem [shape: bf16[2,4,8,32], index: 1, kind: input, shape index: {}]
  %s2 = inlined_call_operand.vmem [shape: f32[1,32], index: 2, kind: input, shape index: {}]
  %s3 = inlined_call_operand.vmem [shape: f32[2,4,16,32], index: 3, kind: output, shape index: {}]
  %s4 = sld [smem:[#allocation0]]
  $region53: #{att_decoding_block_layer.10} parent=0
    _
  %s6 = ssub.s32 1, %s4
  %s7 = scalar_select 0, %s6, %s4
  loop: start=0, step=1, limit=18
  $region2: #{att_decoding_block_layer.10} parent=0 // loop_pre_header
    _
  $region3: #{att_decoding_block_layer.10} parent=0 // loop_header
    %s9 = sphi 0, %s13
    %p10 = scmp.ge.s32.totalorder %s9, 18
    %s16 = sphi 0, %s35
    %s17 = sphi 0, %s31
    %s18 = sphi 0, %s27
    %s19 = sphi 0, %s16
    %s20 = sphi 0, %s17
    %s21 = sphi 0, %s18
    %s22 = sphi 0, %s19
    %s23 = sphi 0, %s20
    %s24 = sphi 0, %s21
    %s44 = sphi 0, %s46
    %s47 = sphi 0, %s44
    %s48 = sphi 0, %s47
    %s64 = sphi 0, %s48
    %s70 = sphi 0, %s72
    %s73 = sphi 0, %s70
    %s74 = sphi 0, %s73
    %s90 = sphi 0, %s74
    %s94 = sphi 0, %s94
    %s96 = sphi 0, %s94
    %s97 = sphi 0, %s96
    %s111 = sphi 0, %s97
    %s119 = sphi 0, %s121
    %s122 = sphi 0, %s119
    %s123 = sphi 0, %s122
    %s139 = sphi 0, %s123
  $region4: #{att_decoding_block_layer.10} parent=0 // loop_header_branch
    %12 = sbr.rel (%p10) target = $region8
  $region5: #{att_decoding_block_layer.10} parent=0 // loop_body
    %s14 = ssub.s32 %s9, 1
    %s15 = ssub.s32 %s9, 2
    %s25 = sadd.s32 1, %s18
    %p26 = scmp.ge.s32.totalorder %s25, 2
    %s27 = scalar_select %p26, 0, %s25
    %s28 = sadd.s32 1, %s17
    %s29 = scalar_select %p26, %s28, %s17
    %p30 = scmp.ge.s32.totalorder %s29, 4
    %s31 = scalar_select %p30, 0, %s29
    %s32 = sadd.s32 1, %s16
    %s33 = scalar_select %p30, %s32, %s16
    %p34 = scmp.ge.s32.totalorder %s33, 2
    %s35 = scalar_select %p34, 0, %s33
    %s36 = smul.u32 %s16, 5
    %s37 = sadd.s32 %s36, %s17
    %s38 = sadd.s32 %s37, %s18
    %s39 = smul.u32 %s35, 5
    %s40 = sadd.s32 %s39, %s31
    %s41 = sadd.s32 %s40, %s27
    %s42 = ssub.s32 %s38, %s41
    %p43 = scmp.eq.s32.totalorder %s42, 0
    %s45 = sadd.s32 %s44, 1
    %s46 = scalar_select %p43, %s44, %s45
    %p49 = pneg %p43
    %p50 = scmp.eq.s32.totalorder %s9, 15
    %p51 = por %p49, %p50
    %p52 = scmp.ne.s32.totalorder %s44, %s47
    %p53 = scmp.eq.s32.totalorder %s9, 0
    %p54 = por %p52, %p53
    %p55 = scmp.ne.s32.totalorder %s44, %s47
    %p56 = scmp.eq.s32.totalorder %s14, 15
    %p57 = por %p55, %p56
    %p58 = scmp.ne.s32.totalorder %s47, %s48
    %p59 = scmp.eq.s32.totalorder %s14, 0
    %p60 = por %p58, %p59
    %p61 = scmp.ne.s32.totalorder %s47, %s48
    %p62 = scmp.eq.s32.totalorder %s15, 15
    %p63 = por %p61, %p62
    %p65 = scmp.ne.s32.totalorder %s48, %s64
    %p66 = scmp.eq.s32.totalorder %s15, 0
    %p67 = por %p65, %p66
    %s68 = ssub.s32 %s18, %s27
    %p69 = scmp.eq.s32.totalorder %s68, 0
    %s71 = sadd.s32 %s70, 1
    %s72 = scalar_select %p69, %s70, %s71
    %p75 = pneg %p69
    %p76 = scmp.eq.s32.totalorder %s9, 15
    %p77 = por %p75, %p76
    %p78 = scmp.ne.s32.totalorder %s70, %s73
    %p79 = scmp.eq.s32.totalorder %s9, 0
    %p80 = por %p78, %p79
    %p81 = scmp.ne.s32.totalorder %s70, %s73
    %p82 = scmp.eq.s32.totalorder %s14, 15
    %p83 = por %p81, %p82
    %p84 = scmp.ne.s32.totalorder %s73, %s74
    %p85 = scmp.eq.s32.totalorder %s14, 0
    %p86 = por %p84, %p85
    %p87 = scmp.ne.s32.totalorder %s73, %s74
    %p88 = scmp.eq.s32.totalorder %s15, 15
    %p89 = por %p87, %p88
    %p91 = scmp.ne.s32.totalorder %s74, %s90
    %p92 = scmp.eq.s32.totalorder %s15, 0
    %p93 = por %p91, %p92
    %s95 = sadd.s32 %s94, 1
    %p98 = scmp.eq.s32.totalorder %s9, 15
    %p99 = scmp.ne.s32.totalorder %s94, %s96
    %p100 = scmp.eq.s32.totalorder %s9, 0
    %p101 = por %p99, %p100
    %p102 = scmp.ne.s32.totalorder %s94, %s96
    %p103 = scmp.eq.s32.totalorder %s14, 15
    %p104 = por %p102, %p103
    %p105 = scmp.ne.s32.totalorder %s96, %s97
    %p106 = scmp.eq.s32.totalorder %s14, 0
    %p107 = por %p105, %p106
    %p108 = scmp.ne.s32.totalorder %s96, %s97
    %p109 = scmp.eq.s32.totalorder %s15, 15
    %p110 = por %p108, %p109
    %p112 = scmp.ne.s32.totalorder %s97, %s111
    %p113 = scmp.eq.s32.totalorder %s15, 0
    %p114 = por %p112, %p113
    %s115 = ssub.s32 %s16, %s35
    %s116 = ssub.s32 %s17, %s31
    %s117 = sor.u32 %s115, %s116
    %p118 = scmp.eq.s32.totalorder %s117, 0
    %s120 = sadd.s32 %s119, 1
    %s121 = scalar_select %p118, %s119, %s120
    %p124 = pneg %p118
    %p125 = scmp.eq.s32.totalorder %s9, 15
    %p126 = por %p124, %p125
    %p127 = scmp.ne.s32.totalorder %s119, %s122
    %p128 = scmp.eq.s32.totalorder %s9, 0
    %p129 = por %p127, %p128
    %p130 = scmp.ne.s32.totalorder %s119, %s122
    %p131 = scmp.eq.s32.totalorder %s14, 15
    %p132 = por %p130, %p131
    %p133 = scmp.ne.s32.totalorder %s122, %s123
    %p134 = scmp.eq.s32.totalorder %s14, 0
    %p135 = por %p133, %p134
    %p136 = scmp.ne.s32.totalorder %s122, %s123
    %p137 = scmp.eq.s32.totalorder %s15, 15
    %p138 = por %p136, %p137
    %p140 = scmp.ne.s32.totalorder %s123, %s139
    %p141 = scmp.eq.s32.totalorder %s15, 0
    %p142 = por %p140, %p141
    %p143 = scmp.le.s32.totalorder 1, %s9
    %p144 = scmp.lt.s32.totalorder %s9, 17
    %p145 = pnand %p143, %p144
    %p146 = pneg %p145
    // Predicated region
    $region9: #{att_decoding_block_layer.10} parent=5 // pred_check
      _
    $region10: #{att_decoding_block_layer.10} parent=5 // pred_check_branch
      %148 = sbr.rel (%p145) target = $region12
    $region11: #{att_decoding_block_layer.10} parent=5 // pred_region
      %s149 = ssub.s32 %s9, 1
      // Predicated region
      $region13: #{att_decoding_block_layer.10} parent=11 // pred_check
        %p150 = pneg %p107
      $region14: #{att_decoding_block_layer.10} parent=11 // pred_check_branch
        %152 = sbr.rel (%p150) target = $region16
      $region15: #{att_decoding_block_layer.10} parent=11 // pred_region
        _
      $region16: #{att_decoding_block_layer.10} parent=11 // pred_fallthru
        _
    $region12: #{att_decoding_block_layer.10} parent=5 // pred_fallthru
      _
    %p153 = scmp.lt.s32.totalorder %s9, 16
    // Predicated region
    $region17: #{att_decoding_block_layer.10} parent=5 // pred_check
      %p154 = pneg %p153
    $region18: #{att_decoding_block_layer.10} parent=5 // pred_check_branch
      %156 = sbr.rel (%p154) target = $region20
    $region19: #{att_decoding_block_layer.10} parent=5 // pred_region
      // Predicated region
      $region21: #{att_decoding_block_layer.10} parent=19 // pred_check
        %p157 = pneg %p54
      $region22: #{att_decoding_block_layer.10} parent=19 // pred_check_branch
        %159 = sbr.rel (%p157) target = $region24
      $region23: #{att_decoding_block_layer.10} parent=19 // pred_region
        %s160 = smul.u32 %s16, 5
        %s161 = sadd.s32 %s160, %s17
        %s162 = sadd.s32 %s161, %s18
        %p163 = scmp.lt.s32.totalorder %s162, 9
        %s164 = scalar_select %p163, %s162, 9
        %s165 = smul.addr %s164, 3
        %s166 = smul.addr %s165, 4
        %s167 = scalar_lea.vmem %s0, %s166
        %s168 = smul.u32 %s16, 5
        %s169 = sadd.s32 %s168, %s17
        %s170 = sadd.s32 %s169, %s18
      $region24: #{att_decoding_block_layer.10} parent=19 // pred_fallthru
        _
      // Predicated region
      $region25: #{att_decoding_block_layer.10} parent=19 // pred_check
        %p171 = pneg %p80
      $region26: #{att_decoding_block_layer.10} parent=19 // pred_check_branch
        %173 = sbr.rel (%p171) target = $region28
      $region27: #{att_decoding_block_layer.10} parent=19 // pred_region
        %p174 = scmp.lt.s32.totalorder %s18, 1
        %s175 = scalar_select %p174, %s18, 1
        %s176 = smul.addr %s175, 4
        %s177 = smul.addr %s176, 4
        %s178 = scalar_lea.vmem %s1, %s177
      $region28: #{att_decoding_block_layer.10} parent=19 // pred_fallthru
        _
    $region20: #{att_decoding_block_layer.10} parent=5 // pred_fallthru
      _
    %p179 = scmp.le.s32.totalorder 1, %s9
    %p180 = scmp.lt.s32.totalorder %s9, 17
    %p181 = pnand %p179, %p180
    %p182 = pneg %p181
    // Predicated region
    $region29: #{att_decoding_block_layer.10} parent=5 // pred_check
      _
    $region30: #{att_decoding_block_layer.10} parent=5 // pred_check_branch
      %184 = sbr.rel (%p181) target = $region32
    $region31: #{att_decoding_block_layer.10} parent=5 // pred_region
      %s185 = ssub.s32 %s9, 1
      %s186 = smul.u32 %s19, 5
      %s187 = sadd.s32 %s186, %s20
      %s188 = sadd.s32 %s187, %s21
      %p189 = scmp.lt.s32.totalorder %s188, 9
      %s190 = scalar_select %p189, %s188, 9
      %s191 = smul.addr %s190, 3
      %s192 = smul.addr %s191, 4
      %s193 = scalar_lea.vmem %s0, %s192
      %p194 = pneg %p60
      %p195 = pneg %p57
      %p196 = scmp.lt.s32.totalorder %s21, 1
      %s197 = scalar_select %p196, %s21, 1
      %s198 = smul.addr %s197, 4
      %s199 = smul.addr %s198, 4
      %s200 = scalar_lea.vmem %s1, %s199
      %p201 = pneg %p86
      %p202 = pneg %p83
      %p203 = pneg %p107
      %p204 = pneg %p104
      %p205 = pneg %p135
      %p206 = pneg %p132
      %p207 = scmp.lt.s32.totalorder %s19, 1
      %s208 = scalar_select %p207, %s19, 1
      %p209 = scmp.lt.s32.totalorder %s20, 3
      %s210 = scalar_select %p209, %s20, 3
      %s211 = smul.addr %s210, 2
      %s212 = smul.addr %s208, 8
      %s213 = sadd.s32 %s211, %s212
      %s214 = smul.addr %s213, 8
      %s215 = scalar_lea.vmem %s3, %s214
      %s216 = smul.u32 %s19, 5
      %s217 = sadd.s32 %s216, %s20
      %s218 = sadd.s32 %s217, %s21
      %p219 = scmp.lt.s32.totalorder %s218, 9
      %s220 = scalar_select %p219, %s218, 9
      %s221 = smul.addr %s220, 3
      %s222 = smul.addr %s221, 4
      %s223 = scalar_lea.vmem %s0, %s222
      %s224 = smul.u32 %s19, 5
      %s225 = sadd.s32 %s224, %s20
      %s226 = sadd.s32 %s225, %s21
      %p227 = scmp.lt.s32.totalorder %s21, 1
      %s228 = scalar_select %p227, %s21, 1
      %s229 = smul.addr %s228, 4
      %s230 = smul.addr %s229, 4
      %s231 = scalar_lea.vmem %s1, %s230
      %p232 = scmp.lt.s32.totalorder %s19, 1
      %s233 = scalar_select %p232, %s19, 1
      %p234 = scmp.lt.s32.totalorder %s20, 3
      %s235 = scalar_select %p234, %s20, 3
      %s236 = smul.addr %s235, 2
      %s237 = smul.addr %s233, 8
      %s238 = sadd.s32 %s236, %s237
      %s239 = smul.addr %s238, 8
      %s240 = scalar_lea.vmem %s3, %s239
      %p244 = scmp.eq.s32.totalorder %s21, 0
      // Predicated region
      $region33: #{att_decoding_block_layer.10} parent=31 // pred_check
        %p245 = pneg %p244
      $region34: #{att_decoding_block_layer.10} parent=31 // pred_check_branch
        %247 = sbr.rel (%p245) target = $region36
      $region35: #{att_decoding_block_layer.10} parent=31 // pred_region
        %vm248 = vcmask 261120
        %249 = vst.msk [vmem:[#allocation2] sm:$0xff] %vm248, 0.0
        %250 = vst.msk [vmem:[#allocation2 + $0x8] sm:$0xff] %vm248, 0.0
      $region36: #{att_decoding_block_layer.10} parent=31 // pred_fallthru
        _
      %v251 = vlaneseq
      %v252 = vshrl.u32 %v251, 7
      %v253 = vadd.s32 %v252, 8
      %vm254 = vcmp.lt.s32.totalorder %v252, 0
      %v255 = vsub.s32 0, %v252
      %v256 = vsel %vm254, %v255, %v252
      %v257 = vshrl.u32 %v256, 2
      %v258 = vand.u32 %v256, 3
      %v259 = vsub.s32 0, %v258
      %v260 = vsel %vm254, %v259, %v258
      %vm261 = vcmp.lt.s32.totalorder %v253, 0
      %v262 = vsub.s32 0, %v253
      %v263 = vsel %vm261, %v262, %v253
      %v264 = vshrl.u32 %v263, 2
      %v265 = vand.u32 %v263, 3
      %v266 = vsub.s32 0, %v265
      %v267 = vsel %vm261, %v266, %v265
      %vm268 = vcmp.ne.s32.totalorder %v260, 0
      %vm269 = vcmp.ne.s32.totalorder %v267, 0
      %vm270 = vcmp.lt.s32.totalorder %v260, 0
      %vm271 = vcmp.lt.s32.totalorder %v267, 0
      %vm272 = vmand %vm270, %vm268
      %vm273 = vmand %vm271, %vm269
      %v274 = vadd.s32 %v260, 4
      %v275 = vadd.s32 %v267, 4
      %v276 = vsel %vm272, %v274, %v260
      %v277 = vsel %vm273, %v275, %v267
      %v278 = vld [vmem:[%s223] sm:$0xf]
      %v279 = vld [vmem:[%s223 + $0x4] sm:$0xf]
      %v280 = vld [vmem:[#allocation2] sm:$0xff]
      %v281 = vld [vmem:[#allocation2 + $0x8] sm:$0xff]
      %v282 = vld [vmem:[%s231] sm:$0xf]
      %v285 = vunpack.c.l.b16 %v278
      %v286 = vunpack.c.l.b16 %v279
      %v287 = vpack.c.b16 %v286, %v285
      %vm288 = vcmask 64512
      %v290 = vsel %vm288, %v287, 0
      %vm292 = vcmask 1043456
      %v294 = vsel %vm292, %v282, 0
      %296 = vmatprep.subr.bf16.mxu0 0
      %297 = vmatpush1.bf16.msra.mxu0 %v294
      %298 = vmatprep.subr.bf16.mxu0 0
      %299 = vmatpush1.bf16.msra.mxu0 0
      %300 = vmatprep.subr.bf16.mxu0 0
      %301 = vmatpush1.bf16.msra.mxu0 0
      %302 = vmatprep.subr.bf16.mxu0 0
      %303 = vmatpush1.bf16.msra.mxu0 0
      %304 = vmatprep.subr.bf16.mxu0 0
      %305 = vmatpush1.bf16.msra.mxu0 0
      %306 = vmatprep.subr.bf16.mxu0 0
      %307 = vmatpush1.bf16.msra.mxu0 0
      %308 = vmatprep.subr.bf16.mxu0 0
      %309 = vmatpush1.bf16.msra.mxu0 0
      %310 = vmatprep.subr.bf16.mxu0 0
      %311 = vmatpush1.bf16.msra.mxu0 0
      %312 = vmatprep.subr.bf16.mxu0 0
      %313 = vmatpush1.bf16.msra.mxu0 0
      %314 = vmatprep.subr.bf16.mxu0 0
      %315 = vmatpush1.bf16.msra.mxu0 0
      %316 = vmatprep.subr.bf16.mxu0 0
      %317 = vmatpush1.bf16.msra.mxu0 0
      %318 = vmatprep.subr.bf16.mxu0 0
      %319 = vmatpush1.bf16.msra.mxu0 0
      %320 = vmatprep.subr.bf16.mxu0 0
      %321 = vmatpush1.bf16.msra.mxu0 0
      %322 = vmatprep.subr.bf16.mxu0 0
      %323 = vmatpush1.bf16.msra.mxu0 0
      %324 = vmatprep.subr.bf16.mxu0 0
      %325 = vmatpush1.bf16.msra.mxu0 0
      %326 = vmatprep.subr.bf16.mxu0 0
      %327 = vmatpush1.bf16.msra.mxu0 0
      %328 = vmatprep.mubr.bf16.mxu0 0
      %329 = vmatmul.mubr.bf16.gmra.mrb[0].mxu0 %v290
      %v330 = vpop.f32.mrb[0].mxu0
      %v331 = vadd.f32 0.0, %v330
      %v332 = vpop.f32.mrb[0].mxu0
      %v333 = vpop.f32.mrb[0].mxu0
      %v334 = vadd.f32 0.0, %v333
      %v335 = vpop.f32.mrb[0].mxu0
      %336 = vdwg.mxu0
      %v337 = vadd.f32 %v280, %v331
      %v338 = vadd.f32 %v281, %v334
      %vm339 = vcmask 261120
      %340 = vst.msk [vmem:[#allocation2] sm:$0xff] %vm339, %v337
      %341 = vst.msk [vmem:[#allocation2 + $0x8] sm:$0xff] %vm339, %v338
      %v342 = vld [vmem:[%s223] sm:$0xf]
      %v343 = vld [vmem:[%s223 + $0x4] sm:$0xf]
      %v344 = vld [vmem:[%s223 + $0x8] sm:$0x1]
      %vm345 = vcmp.lt.s32.totalorder %v276, 3
      %vm346 = vcmp.lt.s32.totalorder %v277, 3
      %v347 = vsel %vm345, 1, 0
      %v348 = vsel %vm346, 1, 0
      %vm349 = vcmp.eq.s32.totalorder %v347, 1
      %vm350 = vcmp.eq.s32.totalorder %v348, 1
      %vm351 = vmpackc.low %vm349, %vm349
      %vm352 = vmpackc.low %vm350, %vm350
      %v353 = vsel %vm351, 65537, 0
      %v354 = vsel %vm352, 65537, 0
      %vm355 = vsmask.f32 256
      %vm356 = vsmask.f32 4368
      %vm357 = vmor %vm355, %vm356
      %v359 = vshrl.u32 %v353, 16
      %v361 = vrot.slane %v359, 7
      %v362 = vshll.u32 %v353, 16
      %v364 = vor.u32 %v361, %v362
      %v365 = vrot.slane %v361, 4
      %v367 = vshrl.u32 %v354, 16
      %v369 = vrot.slane %v367, 7
      %v370 = vshll.u32 %v354, 16
      %v372 = vor.u32 %v369, %v370
      %v373 = vsel %vm357, %v365, %v372
      %v374 = vrot.slane %v369, 4
      %vm375 = vcmp.ne.s16.totalorder %v364, 0
      %vm376 = vcmp.ne.s16.totalorder %v373, 0
      %vm377 = vcmp.ne.s16.totalorder %v374, 0
      %v378 = vsel %vm375, %v342, 0
      %v379 = vsel %vm376, %v343, 0
      %v380 = vsel %vm377, %v344, 0
      %v381 = vld [vmem:[#allocation2] sm:$0xff]
      %v382 = vld [vmem:[#allocation2 + $0x8] sm:$0xff]
      %s383 = scalar_lea.vmem %s231, 4
      %v384 = vld [vmem:[%s383] sm:$0xf]
      %v388 = vunpack.c.l.b16 %v378
      %v389 = vunpack.c.l.b16 %v379
      %v390 = vunpack.c.l.b16 %v380
      %v391 = vpack.c.b16 %v389, %v388
      %v392 = vpack.c.b16 %v390, %v390
      %vm393 = vsmask.f32 7424
      %v395 = vshrl.u32 %v391, 16
      %v397 = vshll.u32 %v391, 16
      %v399 = vrot.slane %v397, 1
      %v400 = vor.u32 %v395, %v399
      %v402 = vshll.u32 %v392, 16
      %v404 = vrot.slane %v402, 1
      %v405 = vsel %vm393, %v400, %v404
      %v407 = vsel %vm288, %v405, 0
      %v410 = vsel %vm292, %v384, 0
      %412 = vmatprep.subr.bf16.mxu0 0
      %413 = vmatpush1.bf16.msra.mxu0 %v410
      %414 = vmatprep.subr.bf16.mxu0 0
      %415 = vmatpush1.bf16.msra.mxu0 0
      %416 = vmatprep.subr.bf16.mxu0 0
      %417 = vmatpush1.bf16.msra.mxu0 0
      %418 = vmatprep.subr.bf16.mxu0 0
      %419 = vmatpush1.bf16.msra.mxu0 0
      %420 = vmatprep.subr.bf16.mxu0 0
      %421 = vmatpush1.bf16.msra.mxu0 0
      %422 = vmatprep.subr.bf16.mxu0 0
      %423 = vmatpush1.bf16.msra.mxu0 0
      %424 = vmatprep.subr.bf16.mxu0 0
      %425 = vmatpush1.bf16.msra.mxu0 0
      %426 = vmatprep.subr.bf16.mxu0 0
      %427 = vmatpush1.bf16.msra.mxu0 0
      %428 = vmatprep.subr.bf16.mxu0 0
      %429 = vmatpush1.bf16.msra.mxu0 0
      %430 = vmatprep.subr.bf16.mxu0 0
      %431 = vmatpush1.bf16.msra.mxu0 0
      %432 = vmatprep.subr.bf16.mxu0 0
      %433 = vmatpush1.bf16.msra.mxu0 0
      %434 = vmatprep.subr.bf16.mxu0 0
      %435 = vmatpush1.bf16.msra.mxu0 0
      %436 = vmatprep.subr.bf16.mxu0 0
      %437 = vmatpush1.bf16.msra.mxu0 0
      %438 = vmatprep.subr.bf16.mxu0 0
      %439 = vmatpush1.bf16.msra.mxu0 0
      %440 = vmatprep.subr.bf16.mxu0 0
      %441 = vmatpush1.bf16.msra.mxu0 0
      %442 = vmatprep.subr.bf16.mxu0 0
      %443 = vmatpush1.bf16.msra.mxu0 0
      %444 = vmatprep.mubr.bf16.mxu0 0
      %445 = vmatmul.mubr.bf16.gmra.mrb[0].mxu0 %v407
      %v446 = vpop.f32.mrb[0].mxu0
      %v447 = vadd.f32 0.0, %v446
      %v448 = vpop.f32.mrb[0].mxu0
      %v449 = vpop.f32.mrb[0].mxu0
      %v450 = vadd.f32 0.0, %v449
      %v451 = vpop.f32.mrb[0].mxu0
      %452 = vdwg.mxu0
      %v453 = vadd.f32 %v381, %v447
      %v454 = vadd.f32 %v382, %v450
      %455 = vst.msk [vmem:[#allocation2] sm:$0xff] %vm339, %v453
      %456 = vst.msk [vmem:[#allocation2 + $0x8] sm:$0xff] %vm339, %v454
      %v457 = vld [vmem:[%s223] sm:$0xc]
      %v458 = vld [vmem:[%s223 + $0x4] sm:$0xf]
      %v459 = vld [vmem:[%s223 + $0x8] sm:$0x3]
      %v460 = vld [vmem:[#allocation2] sm:$0xff]
      %v461 = vld [vmem:[#allocation2 + $0x8] sm:$0xff]
      %s462 = scalar_lea.vmem %s231, 8
      %v463 = vld [vmem:[%s462] sm:$0xf]
      %v467 = vunpack.c.l.b16 %v457
      %v468 = vunpack.c.l.b16 %v458
      %v469 = vunpack.c.l.b16 %v459
      %v470 = vpack.c.b16 %v468, %v467
      %v471 = vpack.c.b16 %v469, %v469
      %vm472 = vcmask 1045504
      %v473 = vrot.slane %v470, 2
      %v474 = vrot.slane %v471, 2
      %v475 = vsel %vm472, %v473, %v474
      %v477 = vsel %vm288, %v475, 0
      %v480 = vsel %vm292, %v463, 0
      %482 = vmatprep.subr.bf16.mxu0 0
      %483 = vmatpush1.bf16.msra.mxu0 %v480
      %484 = vmatprep.subr.bf16.mxu0 0
      %485 = vmatpush1.bf16.msra.mxu0 0
      %486 = vmatprep.subr.bf16.mxu0 0
      %487 = vmatpush1.bf16.msra.mxu0 0
      %488 = vmatprep.subr.bf16.mxu0 0
      %489 = vmatpush1.bf16.msra.mxu0 0
      %490 = vmatprep.subr.bf16.mxu0 0
      %491 = vmatpush1.bf16.msra.mxu0 0
      %492 = vmatprep.subr.bf16.mxu0 0
      %493 = vmatpush1.bf16.msra.mxu0 0
      %494 = vmatprep.subr.bf16.mxu0 0
      %495 = vmatpush1.bf16.msra.mxu0 0
      %496 = vmatprep.subr.bf16.mxu0 0
      %497 = vmatpush1.bf16.msra.mxu0 0
      %498 = vmatprep.subr.bf16.mxu0 0
      %499 = vmatpush1.bf16.msra.mxu0 0
      %500 = vmatprep.subr.bf16.mxu0 0
      %501 = vmatpush1.bf16.msra.mxu0 0
      %502 = vmatprep.subr.bf16.mxu0 0
      %503 = vmatpush1.bf16.msra.mxu0 0
      %504 = vmatprep.subr.bf16.mxu0 0
      %505 = vmatpush1.bf16.msra.mxu0 0
      %506 = vmatprep.subr.bf16.mxu0 0
      %507 = vmatpush1.bf16.msra.mxu0 0
      %508 = vmatprep.subr.bf16.mxu0 0
      %509 = vmatpush1.bf16.msra.mxu0 0
      %510 = vmatprep.subr.bf16.mxu0 0
      %511 = vmatpush1.bf16.msra.mxu0 0
      %512 = vmatprep.subr.bf16.mxu0 0
      %513 = vmatpush1.bf16.msra.mxu0 0
      %514 = vmatprep.mubr.bf16.mxu0 0
      %515 = vmatmul.mubr.bf16.gmra.mrb[0].mxu0 %v477
      %v516 = vpop.f32.mrb[0].mxu0
      %v517 = vadd.f32 0.0, %v516
      %v518 = vpop.f32.mrb[0].mxu0
      %v519 = vpop.f32.mrb[0].mxu0
      %v520 = vadd.f32 0.0, %v519
      %v521 = vpop.f32.mrb[0].mxu0
      %522 = vdwg.mxu0
      %v523 = vadd.f32 %v460, %v517
      %v524 = vadd.f32 %v461, %v520
      %525 = vst.msk [vmem:[#allocation2] sm:$0xff] %vm339, %v523
      %526 = vst.msk [vmem:[#allocation2 + $0x8] sm:$0xff] %vm339, %v524
      %v527 = vld [vmem:[%s223] sm:$0xc]
      %v528 = vld [vmem:[%s223 + $0x4] sm:$0xf]
      %v529 = vld [vmem:[%s223 + $0x8] sm:$0x7]
      %vm530 = vsmask.f32 2304
      %vm531 = vsmask.f32 6416
      %vm532 = vmor %vm530, %vm531
      %v533 = vrot.slane %v359, 5
      %v534 = vrot.slane %v362, 6
      %v535 = vor.u32 %v533, %v534
      %v536 = vrot.slane %v535, 4
      %v537 = vrot.slane %v367, 5
      %v538 = vrot.slane %v370, 6
      %v539 = vor.u32 %v537, %v538
      %v540 = vsel %vm532, %v536, %v539
      %v541 = vrot.slane %v539, 4
      %vm542 = vcmp.ne.s16.totalorder %v535, 0
      %vm543 = vcmp.ne.s16.totalorder %v540, 0
      %vm544 = vcmp.ne.s16.totalorder %v541, 0
      %v545 = vsel %vm542, %v527, 0
      %v546 = vsel %vm543, %v528, 0
      %v547 = vsel %vm544, %v529, 0
      %v548 = vld [vmem:[#allocation2] sm:$0xff]
      %v549 = vld [vmem:[#allocation2 + $0x8] sm:$0xff]
      %s550 = scalar_lea.vmem %s231, 12
      %v551 = vld [vmem:[%s550] sm:$0xf]
      %v555 = vunpack.c.l.b16 %v545
      %v556 = vunpack.c.l.b16 %v546
      %v557 = vunpack.c.l.b16 %v547
      %v558 = vpack.c.b16 %v556, %v555
      %v559 = vpack.c.b16 %v557, %v557
      %vm560 = vsmask.f32 5376
      %v562 = vshrl.u32 %v558, 16
      %v564 = vrot.slane %v562, 2
      %v565 = vshll.u32 %v558, 16
      %v567 = vrot.slane %v565, 3
      %v568 = vor.u32 %v564, %v567
      %v570 = vshrl.u32 %v559, 16
      %v572 = vrot.slane %v570, 2
      %v573 = vshll.u32 %v559, 16
      %v575 = vrot.slane %v573, 3
      %v576 = vor.u32 %v572, %v575
      %v577 = vsel %vm560, %v568, %v576
      %v579 = vsel %vm288, %v577, 0
      %v582 = vsel %vm292, %v551, 0
      %584 = vmatprep.subr.bf16.mxu0 0
      %585 = vmatpush1.bf16.msra.mxu0 %v582
      %586 = vmatprep.subr.bf16.mxu0 0
      %587 = vmatpush1.bf16.msra.mxu0 0
      %588 = vmatprep.subr.bf16.mxu0 0
      %589 = vmatpush1.bf16.msra.mxu0 0
      %590 = vmatprep.subr.bf16.mxu0 0
      %591 = vmatpush1.bf16.msra.mxu0 0
      %592 = vmatprep.subr.bf16.mxu0 0
      %593 = vmatpush1.bf16.msra.mxu0 0
      %594 = vmatprep.subr.bf16.mxu0 0
      %595 = vmatpush1.bf16.msra.mxu0 0
      %596 = vmatprep.subr.bf16.mxu0 0
      %597 = vmatpush1.bf16.msra.mxu0 0
      %598 = vmatprep.subr.bf16.mxu0 0
      %599 = vmatpush1.bf16.msra.mxu0 0
      %600 = vmatprep.subr.bf16.mxu0 0
      %601 = vmatpush1.bf16.msra.mxu0 0
      %602 = vmatprep.subr.bf16.mxu0 0
      %603 = vmatpush1.bf16.msra.mxu0 0
      %604 = vmatprep.subr.bf16.mxu0 0
      %605 = vmatpush1.bf16.msra.mxu0 0
      %606 = vmatprep.subr.bf16.mxu0 0
      %607 = vmatpush1.bf16.msra.mxu0 0
      %608 = vmatprep.subr.bf16.mxu0 0
      %609 = vmatpush1.bf16.msra.mxu0 0
      %610 = vmatprep.subr.bf16.mxu0 0
      %611 = vmatpush1.bf16.msra.mxu0 0
      %612 = vmatprep.subr.bf16.mxu0 0
      %613 = vmatpush1.bf16.msra.mxu0 0
      %614 = vmatprep.subr.bf16.mxu0 0
      %615 = vmatpush1.bf16.msra.mxu0 0
      %616 = vmatprep.mubr.bf16.mxu0 0
      %617 = vmatmul.mubr.bf16.gmra.mrb[0].mxu0 %v579
      %v618 = vpop.f32.mrb[0].mxu0
      %v619 = vadd.f32 0.0, %v618
      %v620 = vpop.f32.mrb[0].mxu0
      %v621 = vpop.f32.mrb[0].mxu0
      %v622 = vadd.f32 0.0, %v621
      %v623 = vpop.f32.mrb[0].mxu0
      %624 = vdwg.mxu0
      %v625 = vadd.f32 %v548, %v619
      %v626 = vadd.f32 %v549, %v622
      %627 = vst.msk [vmem:[#allocation2] sm:$0xff] %vm339, %v625
      %628 = vst.msk [vmem:[#allocation2 + $0x8] sm:$0xff] %vm339, %v626
      %p629 = scmp.eq.s32.totalorder %s21, 1
      // Predicated region
      $region37: #{att_decoding_block_layer.10} parent=31 // pred_check
        %p630 = pneg %p629
      $region38: #{att_decoding_block_layer.10} parent=31 // pred_check_branch
        %632 = sbr.rel (%p630) target = $region40
      $region39: #{att_decoding_block_layer.10} parent=31 // pred_region
        %v633 = vld [vmem:[#allocation2] sm:$0xff]
        %v634 = vld [vmem:[#allocation2 + $0x8] sm:$0xff]
        %v635 = vld [vmem:[%s2] sm:$0x1]
        %v637 = vlaneseq
        %v638 = vshrl.u32 %v637, 7
        %v639 = vsub.s32 0, %v638
        %v640 = vrot.slane %v635, %v639
        %v642 = vadd.f32 %v633, %v640
        %v643 = vadd.f32 %v634, %v640
        %644 = vst.msk [vmem:[%s240] sm:$0xff] %vm339, %v642
        %645 = vst.msk [vmem:[%s240 + $0x8] sm:$0xff] %vm339, %v643
      $region40: #{att_decoding_block_layer.10} parent=31 // pred_fallthru
        _
      %p646 = scmp.lt.s32.totalorder %s19, 1
      %s647 = scalar_select %p646, %s19, 1
      %p648 = scmp.lt.s32.totalorder %s20, 3
      %s649 = scalar_select %p648, %s20, 3
      %s650 = smul.addr %s649, 2
      %s651 = smul.addr %s647, 8
      %s652 = sadd.s32 %s650, %s651
      %s653 = smul.addr %s652, 8
      %s654 = scalar_lea.vmem %s3, %s653
      // Predicated region
      $region41: #{att_decoding_block_layer.10} parent=31 // pred_check
        %p655 = pneg %p132
      $region42: #{att_decoding_block_layer.10} parent=31 // pred_check_branch
        %657 = sbr.rel (%p655) target = $region44
      $region43: #{att_decoding_block_layer.10} parent=31 // pred_region
        _
      $region44: #{att_decoding_block_layer.10} parent=31 // pred_fallthru
        _
    $region32: #{att_decoding_block_layer.10} parent=5 // pred_fallthru
      _
    %p658 = scmp.le.s32.totalorder 2, %s9
    // Predicated region
    $region45: #{att_decoding_block_layer.10} parent=5 // pred_check
      %p659 = pneg %p658
    $region46: #{att_decoding_block_layer.10} parent=5 // pred_check_branch
      %661 = sbr.rel (%p659) target = $region48
    $region47: #{att_decoding_block_layer.10} parent=5 // pred_region
      %s662 = ssub.s32 %s9, 2
      // Predicated region
      $region49: #{att_decoding_block_layer.10} parent=47 // pred_check
        %p663 = pneg %p138
      $region50: #{att_decoding_block_layer.10} parent=47 // pred_check_branch
        %665 = sbr.rel (%p663) target = $region52
      $region51: #{att_decoding_block_layer.10} parent=47 // pred_region
        %p666 = scmp.lt.s32.totalorder %s22, 1
        %s667 = scalar_select %p666, %s22, 1
        %p668 = scmp.lt.s32.totalorder %s23, 3
        %s669 = scalar_select %p668, %s23, 3
        %s670 = smul.addr %s669, 2
        %s671 = smul.addr %s667, 8
        %s672 = sadd.s32 %s670, %s671
        %s673 = smul.addr %s672, 8
        %s674 = scalar_lea.vmem %s3, %s673
      $region52: #{att_decoding_block_layer.10} parent=47 // pred_fallthru
        _
    $region48: #{att_decoding_block_layer.10} parent=5 // pred_fallthru
      _
  $region6: #{att_decoding_block_layer.10} parent=0 // loop_footer
    %s13 = sadd.s32 1, %s9
  $region7: #{att_decoding_block_layer.10} parent=0 // loop_footer_branch
    %8 = sbr.rel target = $region3
  $region8: #{att_decoding_block_layer.10} parent=0 // loop_exit
    _

// kernel: att_decoding_block_layer.12
$region0: #{att_decoding_block_layer.12}
  #allocation0 [shape = 'u32[]', space=smem, size = 0x4, offset = 0x4, fixed_abs, tag = 'smem constant byte address 0x4 - core index']
  #allocation1 [shape = 'u32[144,128]{1,0:T(1,128)}', space=vmem, size = 0x12000, scoped, tag = 'internal scratch']
  #allocation2 [shape = 'f32[16,32]{1,0:T(8,128)}', space=vmem, size = 0x2000, scoped, tag = 'scratch operand']
  %s0 = inlined_call_operand.vmem [shape: bf16[10,21,4], index: 0, kind: input, shape index: {}]
  %s1 = inlined_call_operand.vmem [shape: bf16[2,4,4,32], index: 1, kind: input, shape index: {}]
  %s2 = inlined_call_operand.vmem [shape: f32[1,32], index: 2, kind: input, shape index: {}]
  %s3 = inlined_call_operand.vmem [shape: bf16[2,4,16,32], index: 3, kind: output, shape index: {}]
  %s4 = sld [smem:[#allocation0]]
  $region53: #{att_decoding_block_layer.12} parent=0
    _
  %s6 = ssub.s32 1, %s4
  %s7 = scalar_select 0, %s6, %s4
  loop: start=0, step=1, limit=18
  $region2: #{att_decoding_block_layer.12} parent=0 // loop_pre_header
    _
  $region3: #{att_decoding_block_layer.12} parent=0 // loop_header
    %s9 = sphi 0, %s13
    %p10 = scmp.ge.s32.totalorder %s9, 18
    %s16 = sphi 0, %s35
    %s17 = sphi 0, %s31
    %s18 = sphi 0, %s27
    %s19 = sphi 0, %s16
    %s20 = sphi 0, %s17
    %s21 = sphi 0, %s18
    %s22 = sphi 0, %s19
    %s23 = sphi 0, %s20
    %s24 = sphi 0, %s21
    %s44 = sphi 0, %s46
    %s47 = sphi 0, %s44
    %s48 = sphi 0, %s47
    %s64 = sphi 0, %s48
    %s70 = sphi 0, %s72
    %s73 = sphi 0, %s70
    %s74 = sphi 0, %s73
    %s90 = sphi 0, %s74
    %s94 = sphi 0, %s94
    %s96 = sphi 0, %s94
    %s97 = sphi 0, %s96
    %s111 = sphi 0, %s97
    %s119 = sphi 0, %s121
    %s122 = sphi 0, %s119
    %s123 = sphi 0, %s122
    %s139 = sphi 0, %s123
  $region4: #{att_decoding_block_layer.12} parent=0 // loop_header_branch
    %12 = sbr.rel (%p10) target = $region8
  $region5: #{att_decoding_block_layer.12} parent=0 // loop_body
    %s14 = ssub.s32 %s9, 1
    %s15 = ssub.s32 %s9, 2
    %s25 = sadd.s32 1, %s18
    %p26 = scmp.ge.s32.totalorder %s25, 2
    %s27 = scalar_select %p26, 0, %s25
    %s28 = sadd.s32 1, %s17
    %s29 = scalar_select %p26, %s28, %s17
    %p30 = scmp.ge.s32.totalorder %s29, 4
    %s31 = scalar_select %p30, 0, %s29
    %s32 = sadd.s32 1, %s16
    %s33 = scalar_select %p30, %s32, %s16
    %p34 = scmp.ge.s32.totalorder %s33, 2
    %s35 = scalar_select %p34, 0, %s33
    %s36 = smul.u32 %s16, 5
    %s37 = sadd.s32 %s36, %s17
    %s38 = sadd.s32 %s37, %s18
    %s39 = smul.u32 %s35, 5
    %s40 = sadd.s32 %s39, %s31
    %s41 = sadd.s32 %s40, %s27
    %s42 = ssub.s32 %s38, %s41
    %p43 = scmp.eq.s32.totalorder %s42, 0
    %s45 = sadd.s32 %s44, 1
    %s46 = scalar_select %p43, %s44, %s45
    %p49 = pneg %p43
    %p50 = scmp.eq.s32.totalorder %s9, 15
    %p51 = por %p49, %p50
    %p52 = scmp.ne.s32.totalorder %s44, %s47
    %p53 = scmp.eq.s32.totalorder %s9, 0
    %p54 = por %p52, %p53
    %p55 = scmp.ne.s32.totalorder %s44, %s47
    %p56 = scmp.eq.s32.totalorder %s14, 15
    %p57 = por %p55, %p56
    %p58 = scmp.ne.s32.totalorder %s47, %s48
    %p59 = scmp.eq.s32.totalorder %s14, 0
    %p60 = por %p58, %p59
    %p61 = scmp.ne.s32.totalorder %s47, %s48
    %p62 = scmp.eq.s32.totalorder %s15, 15
    %p63 = por %p61, %p62
    %p65 = scmp.ne.s32.totalorder %s48, %s64
    %p66 = scmp.eq.s32.totalorder %s15, 0
    %p67 = por %p65, %p66
    %s68 = ssub.s32 %s18, %s27
    %p69 = scmp.eq.s32.totalorder %s68, 0
    %s71 = sadd.s32 %s70, 1
    %s72 = scalar_select %p69, %s70, %s71
    %p75 = pneg %p69
    %p76 = scmp.eq.s32.totalorder %s9, 15
    %p77 = por %p75, %p76
    %p78 = scmp.ne.s32.totalorder %s70, %s73
    %p79 = scmp.eq.s32.totalorder %s9, 0
    %p80 = por %p78, %p79
    %p81 = scmp.ne.s32.totalorder %s70, %s73
    %p82 = scmp.eq.s32.totalorder %s14, 15
    %p83 = por %p81, %p82
    %p84 = scmp.ne.s32.totalorder %s73, %s74
    %p85 = scmp.eq.s32.totalorder %s14, 0
    %p86 = por %p84, %p85
    %p87 = scmp.ne.s32.totalorder %s73, %s74
    %p88 = scmp.eq.s32.totalorder %s15, 15
    %p89 = por %p87, %p88
    %p91 = scmp.ne.s32.totalorder %s74, %s90
    %p92 = scmp.eq.s32.totalorder %s15, 0
    %p93 = por %p91, %p92
    %s95 = sadd.s32 %s94, 1
    %p98 = scmp.eq.s32.totalorder %s9, 15
    %p99 = scmp.ne.s32.totalorder %s94, %s96
    %p100 = scmp.eq.s32.totalorder %s9, 0
    %p101 = por %p99, %p100
    %p102 = scmp.ne.s32.totalorder %s94, %s96
    %p103 = scmp.eq.s32.totalorder %s14, 15
    %p104 = por %p102, %p103
    %p105 = scmp.ne.s32.totalorder %s96, %s97
    %p106 = scmp.eq.s32.totalorder %s14, 0
    %p107 = por %p105, %p106
    %p108 = scmp.ne.s32.totalorder %s96, %s97
    %p109 = scmp.eq.s32.totalorder %s15, 15
    %p110 = por %p108, %p109
    %p112 = scmp.ne.s32.totalorder %s97, %s111
    %p113 = scmp.eq.s32.totalorder %s15, 0
    %p114 = por %p112, %p113
    %s115 = ssub.s32 %s16, %s35
    %s116 = ssub.s32 %s17, %s31
    %s117 = sor.u32 %s115, %s116
    %p118 = scmp.eq.s32.totalorder %s117, 0
    %s120 = sadd.s32 %s119, 1
    %s121 = scalar_select %p118, %s119, %s120
    %p124 = pneg %p118
    %p125 = scmp.eq.s32.totalorder %s9, 15
    %p126 = por %p124, %p125
    %p127 = scmp.ne.s32.totalorder %s119, %s122
    %p128 = scmp.eq.s32.totalorder %s9, 0
    %p129 = por %p127, %p128
    %p130 = scmp.ne.s32.totalorder %s119, %s122
    %p131 = scmp.eq.s32.totalorder %s14, 15
    %p132 = por %p130, %p131
    %p133 = scmp.ne.s32.totalorder %s122, %s123
    %p134 = scmp.eq.s32.totalorder %s14, 0
    %p135 = por %p133, %p134
    %p136 = scmp.ne.s32.totalorder %s122, %s123
    %p137 = scmp.eq.s32.totalorder %s15, 15
    %p138 = por %p136, %p137
    %p140 = scmp.ne.s32.totalorder %s123, %s139
    %p141 = scmp.eq.s32.totalorder %s15, 0
    %p142 = por %p140, %p141
    %p143 = scmp.le.s32.totalorder 1, %s9
    %p144 = scmp.lt.s32.totalorder %s9, 17
    %p145 = pnand %p143, %p144
    %p146 = pneg %p145
    // Predicated region
    $region9: #{att_decoding_block_layer.12} parent=5 // pred_check
      _
    $region10: #{att_decoding_block_layer.12} parent=5 // pred_check_branch
      %148 = sbr.rel (%p145) target = $region12
    $region11: #{att_decoding_block_layer.12} parent=5 // pred_region
      %s149 = ssub.s32 %s9, 1
      // Predicated region
      $region13: #{att_decoding_block_layer.12} parent=11 // pred_check
        %p150 = pneg %p107
      $region14: #{att_decoding_block_layer.12} parent=11 // pred_check_branch
        %152 = sbr.rel (%p150) target = $region16
      $region15: #{att_decoding_block_layer.12} parent=11 // pred_region
        _
      $region16: #{att_decoding_block_layer.12} parent=11 // pred_fallthru
        _
    $region12: #{att_decoding_block_layer.12} parent=5 // pred_fallthru
      _
    %p153 = scmp.lt.s32.totalorder %s9, 16
    // Predicated region
    $region17: #{att_decoding_block_layer.12} parent=5 // pred_check
      %p154 = pneg %p153
    $region18: #{att_decoding_block_layer.12} parent=5 // pred_check_branch
      %156 = sbr.rel (%p154) target = $region20
    $region19: #{att_decoding_block_layer.12} parent=5 // pred_region
      // Predicated region
      $region21: #{att_decoding_block_layer.12} parent=19 // pred_check
        %p157 = pneg %p54
      $region22: #{att_decoding_block_layer.12} parent=19 // pred_check_branch
        %159 = sbr.rel (%p157) target = $region24
      $region23: #{att_decoding_block_layer.12} parent=19 // pred_region
        %s160 = smul.u32 %s16, 5
        %s161 = sadd.s32 %s160, %s17
        %s162 = sadd.s32 %s161, %s18
        %p163 = scmp.lt.s32.totalorder %s162, 9
        %s164 = scalar_select %p163, %s162, 9
        %s165 = smul.addr %s164, 3
        %s166 = smul.addr %s165, 4
        %s167 = scalar_lea.vmem %s0, %s166
        %s168 = smul.u32 %s16, 5
        %s169 = sadd.s32 %s168, %s17
        %s170 = sadd.s32 %s169, %s18
      $region24: #{att_decoding_block_layer.12} parent=19 // pred_fallthru
        _
      // Predicated region
      $region25: #{att_decoding_block_layer.12} parent=19 // pred_check
        %p171 = pneg %p80
      $region26: #{att_decoding_block_layer.12} parent=19 // pred_check_branch
        %173 = sbr.rel (%p171) target = $region28
      $region27: #{att_decoding_block_layer.12} parent=19 // pred_region
        %p174 = scmp.lt.s32.totalorder %s18, 1
        %s175 = scalar_select %p174, %s18, 1
        %s176 = smul.addr %s175, 4
        %s177 = smul.addr %s176, 2
        %s178 = scalar_lea.vmem %s1, %s177
      $region28: #{att_decoding_block_layer.12} parent=19 // pred_fallthru
        _
    $region20: #{att_decoding_block_layer.12} parent=5 // pred_fallthru
      _
    %p179 = scmp.le.s32.totalorder 1, %s9
    %p180 = scmp.lt.s32.totalorder %s9, 17
    %p181 = pnand %p179, %p180
    %p182 = pneg %p181
    // Predicated region
    $region29: #{att_decoding_block_layer.12} parent=5 // pred_check
      _
    $region30: #{att_decoding_block_layer.12} parent=5 // pred_check_branch
      %184 = sbr.rel (%p181) target = $region32
    $region31: #{att_decoding_block_layer.12} parent=5 // pred_region
      %s185 = ssub.s32 %s9, 1
      %s186 = smul.u32 %s19, 5
      %s187 = sadd.s32 %s186, %s20
      %s188 = sadd.s32 %s187, %s21
      %p189 = scmp.lt.s32.totalorder %s188, 9
      %s190 = scalar_select %p189, %s188, 9
      %s191 = smul.addr %s190, 3
      %s192 = smul.addr %s191, 4
      %s193 = scalar_lea.vmem %s0, %s192
      %p194 = pneg %p60
      %p195 = pneg %p57
      %p196 = scmp.lt.s32.totalorder %s21, 1
      %s197 = scalar_select %p196, %s21, 1
      %s198 = smul.addr %s197, 4
      %s199 = smul.addr %s198, 2
      %s200 = scalar_lea.vmem %s1, %s199
      %p201 = pneg %p86
      %p202 = pneg %p83
      %p203 = pneg %p107
      %p204 = pneg %p104
      %p205 = pneg %p135
      %p206 = pneg %p132
      %p207 = scmp.lt.s32.totalorder %s19, 1
      %s208 = scalar_select %p207, %s19, 1
      %p209 = scmp.lt.s32.totalorder %s20, 3
      %s210 = scalar_select %p209, %s20, 3
      %s211 = smul.addr %s210, 2
      %s212 = smul.addr %s208, 8
      %s213 = sadd.s32 %s211, %s212
      %s214 = smul.addr %s213, 4
      %s215 = scalar_lea.vmem %s3, %s214
      %s216 = smul.u32 %s19, 5
      %s217 = sadd.s32 %s216, %s20
      %s218 = sadd.s32 %s217, %s21
      %p219 = scmp.lt.s32.totalorder %s218, 9
      %s220 = scalar_select %p219, %s218, 9
      %s221 = smul.addr %s220, 3
      %s222 = smul.addr %s221, 4
      %s223 = scalar_lea.vmem %s0, %s222
      %s224 = smul.u32 %s19, 5
      %s225 = sadd.s32 %s224, %s20
      %s226 = sadd.s32 %s225, %s21
      %p227 = scmp.lt.s32.totalorder %s21, 1
      %s228 = scalar_select %p227, %s21, 1
      %s229 = smul.addr %s228, 4
      %s230 = smul.addr %s229, 2
      %s231 = scalar_lea.vmem %s1, %s230
      %p232 = scmp.lt.s32.totalorder %s19, 1
      %s233 = scalar_select %p232, %s19, 1
      %p234 = scmp.lt.s32.totalorder %s20, 3
      %s235 = scalar_select %p234, %s20, 3
      %s236 = smul.addr %s235, 2
      %s237 = smul.addr %s233, 8
      %s238 = sadd.s32 %s236, %s237
      %s239 = smul.addr %s238, 4
      %s240 = scalar_lea.vmem %s3, %s239
      %p244 = scmp.eq.s32.totalorder %s21, 0
      // Predicated region
      $region33: #{att_decoding_block_layer.12} parent=31 // pred_check
        %p245 = pneg %p244
      $region34: #{att_decoding_block_layer.12} parent=31 // pred_check_branch
        %247 = sbr.rel (%p245) target = $region36
      $region35: #{att_decoding_block_layer.12} parent=31 // pred_region
        %vm248 = vcmask 261120
        %249 = vst.msk [vmem:[#allocation2] sm:$0xff] %vm248, 0.0
        %250 = vst.msk [vmem:[#allocation2 + $0x8] sm:$0xff] %vm248, 0.0
      $region36: #{att_decoding_block_layer.12} parent=31 // pred_fallthru
        _
      %v251 = vlaneseq
      %v252 = vshrl.u32 %v251, 7
      %v253 = vadd.s32 %v252, 8
      %vm254 = vcmp.lt.s32.totalorder %v252, 0
      %v255 = vsub.s32 0, %v252
      %v256 = vsel %vm254, %v255, %v252
      %v257 = vshrl.u32 %v256, 2
      %v258 = vand.u32 %v256, 3
      %v259 = vsub.s32 0, %v258
      %v260 = vsel %vm254, %v259, %v258
      %vm261 = vcmp.lt.s32.totalorder %v253, 0
      %v262 = vsub.s32 0, %v253
      %v263 = vsel %vm261, %v262, %v253
      %v264 = vshrl.u32 %v263, 2
      %v265 = vand.u32 %v263, 3
      %v266 = vsub.s32 0, %v265
      %v267 = vsel %vm261, %v266, %v265
      %vm268 = vcmp.ne.s32.totalorder %v260, 0
      %vm269 = vcmp.ne.s32.totalorder %v267, 0
      %vm270 = vcmp.lt.s32.totalorder %v260, 0
      %vm271 = vcmp.lt.s32.totalorder %v267, 0
      %vm272 = vmand %vm270, %vm268
      %vm273 = vmand %vm271, %vm269
      %v274 = vadd.s32 %v260, 4
      %v275 = vadd.s32 %v267, 4
      %v276 = vsel %vm272, %v274, %v260
      %v277 = vsel %vm273, %v275, %v267
      %v278 = vld [vmem:[%s223] sm:$0xf]
      %v279 = vld [vmem:[%s223 + $0x4] sm:$0xf]
      %v280 = vld [vmem:[#allocation2] sm:$0xff]
      %v281 = vld [vmem:[#allocation2 + $0x8] sm:$0xff]
      %v282 = vld [vmem:[%s231] sm:$0x3]
      %v285 = vunpack.c.l.b16 %v278
      %v286 = vunpack.c.l.b16 %v279
      %v287 = vpack.c.b16 %v286, %v285
      %vm288 = vcmask 31744
      %v290 = vsel %vm288, %v287, 0
      %vm292 = vcmask 1041408
      %v294 = vsel %vm292, %v282, 0
      %296 = vmatprep.subr.bf16.mxu0 0
      %297 = vmatpush1.bf16.msra.mxu0 %v294
      %298 = vmatprep.subr.bf16.mxu0 0
      %299 = vmatpush1.bf16.msra.mxu0 0
      %300 = vmatprep.subr.bf16.mxu0 0
      %301 = vmatpush1.bf16.msra.mxu0 0
      %302 = vmatprep.subr.bf16.mxu0 0
      %303 = vmatpush1.bf16.msra.mxu0 0
      %304 = vmatprep.subr.bf16.mxu0 0
      %305 = vmatpush1.bf16.msra.mxu0 0
      %306 = vmatprep.subr.bf16.mxu0 0
      %307 = vmatpush1.bf16.msra.mxu0 0
      %308 = vmatprep.subr.bf16.mxu0 0
      %309 = vmatpush1.bf16.msra.mxu0 0
      %310 = vmatprep.subr.bf16.mxu0 0
      %311 = vmatpush1.bf16.msra.mxu0 0
      %312 = vmatprep.subr.bf16.mxu0 0
      %313 = vmatpush1.bf16.msra.mxu0 0
      %314 = vmatprep.subr.bf16.mxu0 0
      %315 = vmatpush1.bf16.msra.mxu0 0
      %316 = vmatprep.subr.bf16.mxu0 0
      %317 = vmatpush1.bf16.msra.mxu0 0
      %318 = vmatprep.subr.bf16.mxu0 0
      %319 = vmatpush1.bf16.msra.mxu0 0
      %320 = vmatprep.subr.bf16.mxu0 0
      %321 = vmatpush1.bf16.msra.mxu0 0
      %322 = vmatprep.subr.bf16.mxu0 0
      %323 = vmatpush1.bf16.msra.mxu0 0
      %324 = vmatprep.subr.bf16.mxu0 0
      %325 = vmatpush1.bf16.msra.mxu0 0
      %326 = vmatprep.subr.bf16.mxu0 0
      %327 = vmatpush1.bf16.msra.mxu0 0
      %328 = vmatprep.mubr.bf16.mxu0 0
      %329 = vmatmul.mubr.bf16.gmra.mrb[0].mxu0 %v290
      %v330 = vpop.f32.mrb[0].mxu0
      %v331 = vadd.f32 0.0, %v330
      %v332 = vpop.f32.mrb[0].mxu0
      %v333 = vpop.f32.mrb[0].mxu0
      %v334 = vadd.f32 0.0, %v333
      %v335 = vpop.f32.mrb[0].mxu0
      %336 = vdwg.mxu0
      %v337 = vadd.f32 %v280, %v331
      %v338 = vadd.f32 %v281, %v334
      %vm339 = vcmask 261120
      %340 = vst.msk [vmem:[#allocation2] sm:$0xff] %vm339, %v337
      %341 = vst.msk [vmem:[#allocation2 + $0x8] sm:$0xff] %vm339, %v338
      %v342 = vld [vmem:[%s223] sm:$0xf]
      %v343 = vld [vmem:[%s223 + $0x4] sm:$0xf]
      %v344 = vld [vmem:[%s223 + $0x8] sm:$0x1]
      %vm345 = vcmp.lt.s32.totalorder %v276, 3
      %vm346 = vcmp.lt.s32.totalorder %v277, 3
      %v347 = vsel %vm345, 1, 0
      %v348 = vsel %vm346, 1, 0
      %vm349 = vcmp.eq.s32.totalorder %v347, 1
      %vm350 = vcmp.eq.s32.totalorder %v348, 1
      %vm351 = vmpackc.low %vm349, %vm349
      %vm352 = vmpackc.low %vm350, %vm350
      %v353 = vsel %vm351, 65537, 0
      %v354 = vsel %vm352, 65537, 0
      %vm355 = vsmask.f32 256
      %vm356 = vsmask.f32 4368
      %vm357 = vmor %vm355, %vm356
      %v359 = vshrl.u32 %v353, 16
      %v361 = vrot.slane %v359, 7
      %v362 = vshll.u32 %v353, 16
      %v364 = vor.u32 %v361, %v362
      %v365 = vrot.slane %v361, 4
      %v367 = vshrl.u32 %v354, 16
      %v369 = vrot.slane %v367, 7
      %v370 = vshll.u32 %v354, 16
      %v372 = vor.u32 %v369, %v370
      %v373 = vsel %vm357, %v365, %v372
      %v374 = vrot.slane %v369, 4
      %vm375 = vcmp.ne.s16.totalorder %v364, 0
      %vm376 = vcmp.ne.s16.totalorder %v373, 0
      %vm377 = vcmp.ne.s16.totalorder %v374, 0
      %v378 = vsel %vm375, %v342, 0
      %v379 = vsel %vm376, %v343, 0
      %v380 = vsel %vm377, %v344, 0
      %v381 = vld [vmem:[#allocation2] sm:$0xff]
      %v382 = vld [vmem:[#allocation2 + $0x8] sm:$0xff]
      %s383 = scalar_lea.vmem %s231, 2
      %v384 = vld [vmem:[%s383] sm:$0x3]
      %v388 = vunpack.c.l.b16 %v378
      %v389 = vunpack.c.l.b16 %v379
      %v390 = vunpack.c.l.b16 %v380
      %v391 = vpack.c.b16 %v389, %v388
      %v392 = vpack.c.b16 %v390, %v390
      %vm393 = vsmask.f32 7424
      %v395 = vshrl.u32 %v391, 16
      %v397 = vshll.u32 %v391, 16
      %v399 = vrot.slane %v397, 1
      %v400 = vor.u32 %v395, %v399
      %v402 = vshll.u32 %v392, 16
      %v404 = vrot.slane %v402, 1
      %v405 = vsel %vm393, %v400, %v404
      %v407 = vsel %vm288, %v405, 0
      %v410 = vsel %vm292, %v384, 0
      %412 = vmatprep.subr.bf16.mxu0 0
      %413 = vmatpush1.bf16.msra.mxu0 %v410
      %414 = vmatprep.subr.bf16.mxu0 0
      %415 = vmatpush1.bf16.msra.mxu0 0
      %416 = vmatprep.subr.bf16.mxu0 0
      %417 = vmatpush1.bf16.msra.mxu0 0
      %418 = vmatprep.subr.bf16.mxu0 0
      %419 = vmatpush1.bf16.msra.mxu0 0
      %420 = vmatprep.subr.bf16.mxu0 0
      %421 = vmatpush1.bf16.msra.mxu0 0
      %422 = vmatprep.subr.bf16.mxu0 0
      %423 = vmatpush1.bf16.msra.mxu0 0
      %424 = vmatprep.subr.bf16.mxu0 0
      %425 = vmatpush1.bf16.msra.mxu0 0
      %426 = vmatprep.subr.bf16.mxu0 0
      %427 = vmatpush1.bf16.msra.mxu0 0
      %428 = vmatprep.subr.bf16.mxu0 0
      %429 = vmatpush1.bf16.msra.mxu0 0
      %430 = vmatprep.subr.bf16.mxu0 0
      %431 = vmatpush1.bf16.msra.mxu0 0
      %432 = vmatprep.subr.bf16.mxu0 0
      %433 = vmatpush1.bf16.msra.mxu0 0
      %434 = vmatprep.subr.bf16.mxu0 0
      %435 = vmatpush1.bf16.msra.mxu0 0
      %436 = vmatprep.subr.bf16.mxu0 0
      %437 = vmatpush1.bf16.msra.mxu0 0
      %438 = vmatprep.subr.bf16.mxu0 0
      %439 = vmatpush1.bf16.msra.mxu0 0
      %440 = vmatprep.subr.bf16.mxu0 0
      %441 = vmatpush1.bf16.msra.mxu0 0
      %442 = vmatprep.subr.bf16.mxu0 0
      %443 = vmatpush1.bf16.msra.mxu0 0
      %444 = vmatprep.mubr.bf16.mxu0 0
      %445 = vmatmul.mubr.bf16.gmra.mrb[0].mxu0 %v407
      %v446 = vpop.f32.mrb[0].mxu0
      %v447 = vadd.f32 0.0, %v446
      %v448 = vpop.f32.mrb[0].mxu0
      %v449 = vpop.f32.mrb[0].mxu0
      %v450 = vadd.f32 0.0, %v449
      %v451 = vpop.f32.mrb[0].mxu0
      %452 = vdwg.mxu0
      %v453 = vadd.f32 %v381, %v447
      %v454 = vadd.f32 %v382, %v450
      %455 = vst.msk [vmem:[#allocation2] sm:$0xff] %vm339, %v453
      %456 = vst.msk [vmem:[#allocation2 + $0x8] sm:$0xff] %vm339, %v454
      %v457 = vld [vmem:[%s223] sm:$0xc]
      %v458 = vld [vmem:[%s223 + $0x4] sm:$0xf]
      %v459 = vld [vmem:[%s223 + $0x8] sm:$0x3]
      %v460 = vld [vmem:[#allocation2] sm:$0xff]
      %v461 = vld [vmem:[#allocation2 + $0x8] sm:$0xff]
      %s462 = scalar_lea.vmem %s231, 4
      %v463 = vld [vmem:[%s462] sm:$0x3]
      %v467 = vunpack.c.l.b16 %v457
      %v468 = vunpack.c.l.b16 %v458
      %v469 = vunpack.c.l.b16 %v459
      %v470 = vpack.c.b16 %v468, %v467
      %v471 = vpack.c.b16 %v469, %v469
      %vm472 = vcmask 1045504
      %v473 = vrot.slane %v470, 2
      %v474 = vrot.slane %v471, 2
      %v475 = vsel %vm472, %v473, %v474
      %v477 = vsel %vm288, %v475, 0
      %v480 = vsel %vm292, %v463, 0
      %482 = vmatprep.subr.bf16.mxu0 0
      %483 = vmatpush1.bf16.msra.mxu0 %v480
      %484 = vmatprep.subr.bf16.mxu0 0
      %485 = vmatpush1.bf16.msra.mxu0 0
      %486 = vmatprep.subr.bf16.mxu0 0
      %487 = vmatpush1.bf16.msra.mxu0 0
      %488 = vmatprep.subr.bf16.mxu0 0
      %489 = vmatpush1.bf16.msra.mxu0 0
      %490 = vmatprep.subr.bf16.mxu0 0
      %491 = vmatpush1.bf16.msra.mxu0 0
      %492 = vmatprep.subr.bf16.mxu0 0
      %493 = vmatpush1.bf16.msra.mxu0 0
      %494 = vmatprep.subr.bf16.mxu0 0
      %495 = vmatpush1.bf16.msra.mxu0 0
      %496 = vmatprep.subr.bf16.mxu0 0
      %497 = vmatpush1.bf16.msra.mxu0 0
      %498 = vmatprep.subr.bf16.mxu0 0
      %499 = vmatpush1.bf16.msra.mxu0 0
      %500 = vmatprep.subr.bf16.mxu0 0
      %501 = vmatpush1.bf16.msra.mxu0 0
      %502 = vmatprep.subr.bf16.mxu0 0
      %503 = vmatpush1.bf16.msra.mxu0 0
      %504 = vmatprep.subr.bf16.mxu0 0
      %505 = vmatpush1.bf16.msra.mxu0 0
      %506 = vmatprep.subr.bf16.mxu0 0
      %507 = vmatpush1.bf16.msra.mxu0 0
      %508 = vmatprep.subr.bf16.mxu0 0
      %509 = vmatpush1.bf16.msra.mxu0 0
      %510 = vmatprep.subr.bf16.mxu0 0
      %511 = vmatpush1.bf16.msra.mxu0 0
      %512 = vmatprep.subr.bf16.mxu0 0
      %513 = vmatpush1.bf16.msra.mxu0 0
      %514 = vmatprep.mubr.bf16.mxu0 0
      %515 = vmatmul.mubr.bf16.gmra.mrb[0].mxu0 %v477
      %v516 = vpop.f32.mrb[0].mxu0
      %v517 = vadd.f32 0.0, %v516
      %v518 = vpop.f32.mrb[0].mxu0
      %v519 = vpop.f32.mrb[0].mxu0
      %v520 = vadd.f32 0.0, %v519
      %v521 = vpop.f32.mrb[0].mxu0
      %522 = vdwg.mxu0
      %v523 = vadd.f32 %v460, %v517
      %v524 = vadd.f32 %v461, %v520
      %525 = vst.msk [vmem:[#allocation2] sm:$0xff] %vm339, %v523
      %526 = vst.msk [vmem:[#allocation2 + $0x8] sm:$0xff] %vm339, %v524
      %v527 = vld [vmem:[%s223] sm:$0xc]
      %v528 = vld [vmem:[%s223 + $0x4] sm:$0xf]
      %v529 = vld [vmem:[%s223 + $0x8] sm:$0x7]
      %vm530 = vsmask.f32 2304
      %vm531 = vsmask.f32 6416
      %vm532 = vmor %vm530, %vm531
      %v533 = vrot.slane %v359, 5
      %v534 = vrot.slane %v362, 6
      %v535 = vor.u32 %v533, %v534
      %v536 = vrot.slane %v535, 4
      %v537 = vrot.slane %v367, 5
      %v538 = vrot.slane %v370, 6
      %v539 = vor.u32 %v537, %v538
      %v540 = vsel %vm532, %v536, %v539
      %v541 = vrot.slane %v539, 4
      %vm542 = vcmp.ne.s16.totalorder %v535, 0
      %vm543 = vcmp.ne.s16.totalorder %v540, 0
      %vm544 = vcmp.ne.s16.totalorder %v541, 0
      %v545 = vsel %vm542, %v527, 0
      %v546 = vsel %vm543, %v528, 0
      %v547 = vsel %vm544, %v529, 0
      %v548 = vld [vmem:[#allocation2] sm:$0xff]
      %v549 = vld [vmem:[#allocation2 + $0x8] sm:$0xff]
      %s550 = scalar_lea.vmem %s231, 6
      %v551 = vld [vmem:[%s550] sm:$0x3]
      %v555 = vunpack.c.l.b16 %v545
      %v556 = vunpack.c.l.b16 %v546
      %v557 = vunpack.c.l.b16 %v547
      %v558 = vpack.c.b16 %v556, %v555
      %v559 = vpack.c.b16 %v557, %v557
      %vm560 = vsmask.f32 5376
      %v562 = vshrl.u32 %v558, 16
      %v564 = vrot.slane %v562, 2
      %v565 = vshll.u32 %v558, 16
      %v567 = vrot.slane %v565, 3
      %v568 = vor.u32 %v564, %v567
      %v570 = vshrl.u32 %v559, 16
      %v572 = vrot.slane %v570, 2
      %v573 = vshll.u32 %v559, 16
      %v575 = vrot.slane %v573, 3
      %v576 = vor.u32 %v572, %v575
      %v577 = vsel %vm560, %v568, %v576
      %v579 = vsel %vm288, %v577, 0
      %v582 = vsel %vm292, %v551, 0
      %584 = vmatprep.subr.bf16.mxu0 0
      %585 = vmatpush1.bf16.msra.mxu0 %v582
      %586 = vmatprep.subr.bf16.mxu0 0
      %587 = vmatpush1.bf16.msra.mxu0 0
      %588 = vmatprep.subr.bf16.mxu0 0
      %589 = vmatpush1.bf16.msra.mxu0 0
      %590 = vmatprep.subr.bf16.mxu0 0
      %591 = vmatpush1.bf16.msra.mxu0 0
      %592 = vmatprep.subr.bf16.mxu0 0
      %593 = vmatpush1.bf16.msra.mxu0 0
      %594 = vmatprep.subr.bf16.mxu0 0
      %595 = vmatpush1.bf16.msra.mxu0 0
      %596 = vmatprep.subr.bf16.mxu0 0
      %597 = vmatpush1.bf16.msra.mxu0 0
      %598 = vmatprep.subr.bf16.mxu0 0
      %599 = vmatpush1.bf16.msra.mxu0 0
      %600 = vmatprep.subr.bf16.mxu0 0
      %601 = vmatpush1.bf16.msra.mxu0 0
      %602 = vmatprep.subr.bf16.mxu0 0
      %603 = vmatpush1.bf16.msra.mxu0 0
      %604 = vmatprep.subr.bf16.mxu0 0
      %605 = vmatpush1.bf16.msra.mxu0 0
      %606 = vmatprep.subr.bf16.mxu0 0
      %607 = vmatpush1.bf16.msra.mxu0 0
      %608 = vmatprep.subr.bf16.mxu0 0
      %609 = vmatpush1.bf16.msra.mxu0 0
      %610 = vmatprep.subr.bf16.mxu0 0
      %611 = vmatpush1.bf16.msra.mxu0 0
      %612 = vmatprep.subr.bf16.mxu0 0
      %613 = vmatpush1.bf16.msra.mxu0 0
      %614 = vmatprep.subr.bf16.mxu0 0
      %615 = vmatpush1.bf16.msra.mxu0 0
      %616 = vmatprep.mubr.bf16.mxu0 0
      %617 = vmatmul.mubr.bf16.gmra.mrb[0].mxu0 %v579
      %v618 = vpop.f32.mrb[0].mxu0
      %v619 = vadd.f32 0.0, %v618
      %v620 = vpop.f32.mrb[0].mxu0
      %v621 = vpop.f32.mrb[0].mxu0
      %v622 = vadd.f32 0.0, %v621
      %v623 = vpop.f32.mrb[0].mxu0
      %624 = vdwg.mxu0
      %v625 = vadd.f32 %v548, %v619
      %v626 = vadd.f32 %v549, %v622
      %627 = vst.msk [vmem:[#allocation2] sm:$0xff] %vm339, %v625
      %628 = vst.msk [vmem:[#allocation2 + $0x8] sm:$0xff] %vm339, %v626
      %p629 = scmp.eq.s32.totalorder %s21, 1
      // Predicated region
      $region37: #{att_decoding_block_layer.12} parent=31 // pred_check
        %p630 = pneg %p629
      $region38: #{att_decoding_block_layer.12} parent=31 // pred_check_branch
        %632 = sbr.rel (%p630) target = $region40
      $region39: #{att_decoding_block_layer.12} parent=31 // pred_region
        %v633 = vld [vmem:[#allocation2] sm:$0xff]
        %v634 = vld [vmem:[#allocation2 + $0x8] sm:$0xff]
        %v635 = vld [vmem:[%s2] sm:$0x1]
        %v637 = vlaneseq
        %v638 = vshrl.u32 %v637, 7
        %v639 = vsub.s32 0, %v638
        %v640 = vrot.slane %v635, %v639
        %v642 = vadd.f32 %v633, %v640
        %v643 = vadd.f32 %v634, %v640
        %v644 = vpack.c.bf16 %v643, %v642
        %v646 = vunpack.c.l.b16 %v644
        %v647 = vunpack.c.h.b16 %v644
        %v648 = vpack.c.b16 %v646, %v646
        %v649 = vpack.c.b16 %v647, %v647
        %vm652 = vcmask 257024
        %653 = vst.msk [vmem:[%s240] sm:$0xf] %vm652, %v648
        %654 = vst.msk [vmem:[%s240 + $0x4] sm:$0xf] %vm652, %v649
      $region40: #{att_decoding_block_layer.12} parent=31 // pred_fallthru
        _
      %p655 = scmp.lt.s32.totalorder %s19, 1
      %s656 = scalar_select %p655, %s19, 1
      %p657 = scmp.lt.s32.totalorder %s20, 3
      %s658 = scalar_select %p657, %s20, 3
      %s659 = smul.addr %s658, 2
      %s660 = smul.addr %s656, 8
      %s661 = sadd.s32 %s659, %s660
      %s662 = smul.addr %s661, 4
      %s663 = scalar_lea.vmem %s3, %s662
      // Predicated region
      $region41: #{att_decoding_block_layer.12} parent=31 // pred_check
        %p664 = pneg %p132
      $region42: #{att_decoding_block_layer.12} parent=31 // pred_check_branch
        %666 = sbr.rel (%p664) target = $region44
      $region43: #{att_decoding_block_layer.12} parent=31 // pred_region
        _
      $region44: #{att_decoding_block_layer.12} parent=31 // pred_fallthru
        _
    $region32: #{att_decoding_block_layer.12} parent=5 // pred_fallthru
      _
    %p667 = scmp.le.s32.totalorder 2, %s9
    // Predicated region
    $region45: #{att_decoding_block_layer.12} parent=5 // pred_check
      %p668 = pneg %p667
    $region46: #{att_decoding_block_layer.12} parent=5 // pred_check_branch
      %670 = sbr.rel (%p668) target = $region48
    $region47: #{att_decoding_block_layer.12} parent=5 // pred_region
      %s671 = ssub.s32 %s9, 2
      // Predicated region
      $region49: #{att_decoding_block_layer.12} parent=47 // pred_check
        %p672 = pneg %p138
      $region50: #{att_decoding_block_layer.12} parent=47 // pred_check_branch
        %674 = sbr.rel (%p672) target = $region52
      $region51: #{att_decoding_block_layer.12} parent=47 // pred_region
        %p675 = scmp.lt.s32.totalorder %s22, 1
        %s676 = scalar_select %p675, %s22, 1
        %p677 = scmp.lt.s32.totalorder %s23, 3
        %s678 = scalar_select %p677, %s23, 3
        %s679 = smul.addr %s678, 2
        %s680 = smul.addr %s676, 8
        %s681 = sadd.s32 %s679, %s680
        %s682 = smul.addr %s681, 4
        %s683 = scalar_lea.vmem %s3, %s682
      $region52: #{att_decoding_block_layer.12} parent=47 // pred_fallthru
        _
    $region48: #{att_decoding_block_layer.12} parent=5 // pred_fallthru
      _
  $region6: #{att_decoding_block_layer.12} parent=0 // loop_footer
    %s13 = sadd.s32 1, %s9
  $region7: #{att_decoding_block_layer.12} parent=0 // loop_footer_branch
    %8 = sbr.rel target = $region3
  $region8: #{att_decoding_block_layer.12} parent=0 // loop_exit
    _

// kernel: att_decoding_block_layer.14
$region0: #{att_decoding_block_layer.14}
  #allocation0 [shape = 'u32[]', space=smem, size = 0x4, offset = 0x4, fixed_abs, tag = 'smem constant byte address 0x4 - core index']
  #allocation1 [shape = 'u32[144,128]{1,0:T(1,128)}', space=vmem, size = 0x12000, scoped, tag = 'internal scratch']
  %s0 = inlined_call_operand.vmem [shape: bf16[2,512,4], index: 0, kind: input, shape index: {}]
  %s1 = inlined_call_operand.vmem [shape: bf16[2,64,4], index: 1, kind: input, shape index: {}]
  %s2 = inlined_call_operand.vmem [shape: bf16[2,64,4], index: 2, kind: input, shape index: {}]
  %s3 = inlined_call_operand.vmem [shape: bf16[2,512,4], index: 3, kind: output, shape index: {}]
  %s4 = sld [smem:[#allocation0]]
  $region45: #{att_decoding_block_layer.14} parent=0
    _
  %s6 = ssub.s32 1, %s4
  %s7 = scalar_select 0, %s6, %s4
  loop: start=0, step=1, limit=6
  $region2: #{att_decoding_block_layer.14} parent=0 // loop_pre_header
    _
  $region3: #{att_decoding_block_layer.14} parent=0 // loop_header
    %s9 = sphi 0, %s13
    %p10 = scmp.ge.s32.totalorder %s9, 6
    %s16 = sphi 0, %s28
    %s17 = sphi 0, %s24
    %s18 = sphi 0, %s16
    %s19 = sphi 0, %s17
    %s20 = sphi 0, %s18
    %s21 = sphi 0, %s19
    %s33 = sphi 0, %s35
    %s36 = sphi 0, %s33
    %s37 = sphi 0, %s36
    %s53 = sphi 0, %s37
    %s59 = sphi 0, %s61
    %s62 = sphi 0, %s59
    %s63 = sphi 0, %s62
    %s79 = sphi 0, %s63
    %s85 = sphi 0, %s87
    %s88 = sphi 0, %s85
    %s89 = sphi 0, %s88
    %s105 = sphi 0, %s89
    %s113 = sphi 0, %s115
    %s116 = sphi 0, %s113
    %s117 = sphi 0, %s116
    %s133 = sphi 0, %s117
  $region4: #{att_decoding_block_layer.14} parent=0 // loop_header_branch
    %12 = sbr.rel (%p10) target = $region8
  $region5: #{att_decoding_block_layer.14} parent=0 // loop_body
    %s14 = ssub.s32 %s9, 1
    %s15 = ssub.s32 %s9, 2
    %s22 = sadd.s32 1, %s17
    %p23 = scmp.ge.s32.totalorder %s22, 2
    %s24 = scalar_select %p23, 0, %s22
    %s25 = sadd.s32 1, %s16
    %s26 = scalar_select %p23, %s25, %s16
    %p27 = scmp.ge.s32.totalorder %s26, 2
    %s28 = scalar_select %p27, 0, %s26
    %s29 = ssub.s32 %s16, %s28
    %s30 = ssub.s32 %s17, %s24
    %s31 = sor.u32 %s29, %s30
    %p32 = scmp.eq.s32.totalorder %s31, 0
    %s34 = sadd.s32 %s33, 1
    %s35 = scalar_select %p32, %s33, %s34
    %p38 = pneg %p32
    %p39 = scmp.eq.s32.totalorder %s9, 3
    %p40 = por %p38, %p39
    %p41 = scmp.ne.s32.totalorder %s33, %s36
    %p42 = scmp.eq.s32.totalorder %s9, 0
    %p43 = por %p41, %p42
    %p44 = scmp.ne.s32.totalorder %s33, %s36
    %p45 = scmp.eq.s32.totalorder %s14, 3
    %p46 = por %p44, %p45
    %p47 = scmp.ne.s32.totalorder %s36, %s37
    %p48 = scmp.eq.s32.totalorder %s14, 0
    %p49 = por %p47, %p48
    %p50 = scmp.ne.s32.totalorder %s36, %s37
    %p51 = scmp.eq.s32.totalorder %s15, 3
    %p52 = por %p50, %p51
    %p54 = scmp.ne.s32.totalorder %s37, %s53
    %p55 = scmp.eq.s32.totalorder %s15, 0
    %p56 = por %p54, %p55
    %s57 = ssub.s32 %s16, %s28
    %p58 = scmp.eq.s32.totalorder %s57, 0
    %s60 = sadd.s32 %s59, 1
    %s61 = scalar_select %p58, %s59, %s60
    %p64 = pneg %p58
    %p65 = scmp.eq.s32.totalorder %s9, 3
    %p66 = por %p64, %p65
    %p67 = scmp.ne.s32.totalorder %s59, %s62
    %p68 = scmp.eq.s32.totalorder %s9, 0
    %p69 = por %p67, %p68
    %p70 = scmp.ne.s32.totalorder %s59, %s62
    %p71 = scmp.eq.s32.totalorder %s14, 3
    %p72 = por %p70, %p71
    %p73 = scmp.ne.s32.totalorder %s62, %s63
    %p74 = scmp.eq.s32.totalorder %s14, 0
    %p75 = por %p73, %p74
    %p76 = scmp.ne.s32.totalorder %s62, %s63
    %p77 = scmp.eq.s32.totalorder %s15, 3
    %p78 = por %p76, %p77
    %p80 = scmp.ne.s32.totalorder %s63, %s79
    %p81 = scmp.eq.s32.totalorder %s15, 0
    %p82 = por %p80, %p81
    %s83 = ssub.s32 %s16, %s28
    %p84 = scmp.eq.s32.totalorder %s83, 0
    %s86 = sadd.s32 %s85, 1
    %s87 = scalar_select %p84, %s85, %s86
    %p90 = pneg %p84
    %p91 = scmp.eq.s32.totalorder %s9, 3
    %p92 = por %p90, %p91
    %p93 = scmp.ne.s32.totalorder %s85, %s88
    %p94 = scmp.eq.s32.totalorder %s9, 0
    %p95 = por %p93, %p94
    %p96 = scmp.ne.s32.totalorder %s85, %s88
    %p97 = scmp.eq.s32.totalorder %s14, 3
    %p98 = por %p96, %p97
    %p99 = scmp.ne.s32.totalorder %s88, %s89
    %p100 = scmp.eq.s32.totalorder %s14, 0
    %p101 = por %p99, %p100
    %p102 = scmp.ne.s32.totalorder %s88, %s89
    %p103 = scmp.eq.s32.totalorder %s15, 3
    %p104 = por %p102, %p103
    %p106 = scmp.ne.s32.totalorder %s89, %s105
    %p107 = scmp.eq.s32.totalorder %s15, 0
    %p108 = por %p106, %p107
    %s109 = ssub.s32 %s16, %s28
    %s110 = ssub.s32 %s17, %s24
    %s111 = sor.u32 %s109, %s110
    %p112 = scmp.eq.s32.totalorder %s111, 0
    %s114 = sadd.s32 %s113, 1
    %s115 = scalar_select %p112, %s113, %s114
    %p118 = pneg %p112
    %p119 = scmp.eq.s32.totalorder %s9, 3
    %p120 = por %p118, %p119
    %p121 = scmp.ne.s32.totalorder %s113, %s116
    %p122 = scmp.eq.s32.totalorder %s9, 0
    %p123 = por %p121, %p122
    %p124 = scmp.ne.s32.totalorder %s113, %s116
    %p125 = scmp.eq.s32.totalorder %s14, 3
    %p126 = por %p124, %p125
    %p127 = scmp.ne.s32.totalorder %s116, %s117
    %p128 = scmp.eq.s32.totalorder %s14, 0
    %p129 = por %p127, %p128
    %p130 = scmp.ne.s32.totalorder %s116, %s117
    %p131 = scmp.eq.s32.totalorder %s15, 3
    %p132 = por %p130, %p131
    %p134 = scmp.ne.s32.totalorder %s117, %s133
    %p135 = scmp.eq.s32.totalorder %s15, 0
    %p136 = por %p134, %p135
    %p137 = scmp.le.s32.totalorder 1, %s9
    %p138 = scmp.lt.s32.totalorder %s9, 5
    %p139 = pnand %p137, %p138
    %p140 = pneg %p139
    // Predicated region
    $region9: #{att_decoding_block_layer.14} parent=5 // pred_check
      _
    $region10: #{att_decoding_block_layer.14} parent=5 // pred_check_branch
      %142 = sbr.rel (%p139) target = $region12
    $region11: #{att_decoding_block_layer.14} parent=5 // pred_region
      %s143 = ssub.s32 %s9, 1
    $region12: #{att_decoding_block_layer.14} parent=5 // pred_fallthru
      _
    %p144 = scmp.lt.s32.totalorder %s9, 4
    // Predicated region
    $region13: #{att_decoding_block_layer.14} parent=5 // pred_check
      %p145 = pneg %p144
    $region14: #{att_decoding_block_layer.14} parent=5 // pred_check_branch
      %147 = sbr.rel (%p145) target = $region16
    $region15: #{att_decoding_block_layer.14} parent=5 // pred_region
      // Predicated region
      $region17: #{att_decoding_block_layer.14} parent=15 // pred_check
        %p148 = pneg %p43
      $region18: #{att_decoding_block_layer.14} parent=15 // pred_check_branch
        %150 = sbr.rel (%p148) target = $region20
      $region19: #{att_decoding_block_layer.14} parent=15 // pred_region
        %s151 = smul.u32 32, %s17
        %p152 = scmp.lt.s32.totalorder %s16, 1
        %s153 = scalar_select %p152, %s16, 1
        %p154 = scmp.lt.s32.totalorder %s151, 63
        %s155 = scalar_select %p154, %s151, 63
        %s156 = smul.addr %s153, 64
        %s157 = sadd.s32 %s155, %s156
        %s158 = smul.addr %s157, 4
        %s159 = scalar_lea.vmem %s0, %s158
        %s160 = smul.u32 32, %s17
      $region20: #{att_decoding_block_layer.14} parent=15 // pred_fallthru
        _
      // Predicated region
      $region21: #{att_decoding_block_layer.14} parent=15 // pred_check
        %p161 = pneg %p69
      $region22: #{att_decoding_block_layer.14} parent=15 // pred_check_branch
        %163 = sbr.rel (%p161) target = $region24
      $region23: #{att_decoding_block_layer.14} parent=15 // pred_region
        %p164 = scmp.lt.s32.totalorder %s16, 1
        %s165 = scalar_select %p164, %s16, 1
        %s166 = smul.addr %s165, 8
        %s167 = smul.addr %s166, 4
        %s168 = scalar_lea.vmem %s1, %s167
      $region24: #{att_decoding_block_layer.14} parent=15 // pred_fallthru
        _
      // Predicated region
      $region25: #{att_decoding_block_layer.14} parent=15 // pred_check
        %p169 = pneg %p95
      $region26: #{att_decoding_block_layer.14} parent=15 // pred_check_branch
        %171 = sbr.rel (%p169) target = $region28
      $region27: #{att_decoding_block_layer.14} parent=15 // pred_region
        %p172 = scmp.lt.s32.totalorder %s16, 1
        %s173 = scalar_select %p172, %s16, 1
        %s174 = smul.addr %s173, 8
        %s175 = smul.addr %s174, 4
        %s176 = scalar_lea.vmem %s2, %s175
      $region28: #{att_decoding_block_layer.14} parent=15 // pred_fallthru
        _
    $region16: #{att_decoding_block_layer.14} parent=5 // pred_fallthru
      _
    %p177 = scmp.le.s32.totalorder 1, %s9
    %p178 = scmp.lt.s32.totalorder %s9, 5
    %p179 = pnand %p177, %p178
    %p180 = pneg %p179
    // Predicated region
    $region29: #{att_decoding_block_layer.14} parent=5 // pred_check
      _
    $region30: #{att_decoding_block_layer.14} parent=5 // pred_check_branch
      %182 = sbr.rel (%p179) target = $region32
    $region31: #{att_decoding_block_layer.14} parent=5 // pred_region
      %s183 = ssub.s32 %s9, 1
      %s184 = smul.u32 32, %s19
      %p185 = scmp.lt.s32.totalorder %s18, 1
      %s186 = scalar_select %p185, %s18, 1
      %p187 = scmp.lt.s32.totalorder %s184, 63
      %s188 = scalar_select %p187, %s184, 63
      %s189 = smul.addr %s186, 64
      %s190 = sadd.s32 %s188, %s189
      %s191 = smul.addr %s190, 4
      %s192 = scalar_lea.vmem %s0, %s191
      %p193 = pneg %p49
      %p194 = pneg %p46
      %p195 = scmp.lt.s32.totalorder %s18, 1
      %s196 = scalar_select %p195, %s18, 1
      %s197 = smul.addr %s196, 8
      %s198 = smul.addr %s197, 4
      %s199 = scalar_lea.vmem %s1, %s198
      %p200 = pneg %p75
      %p201 = pneg %p72
      %p202 = scmp.lt.s32.totalorder %s18, 1
      %s203 = scalar_select %p202, %s18, 1
      %s204 = smul.addr %s203, 8
      %s205 = smul.addr %s204, 4
      %s206 = scalar_lea.vmem %s2, %s205
      %p207 = pneg %p101
      %p208 = pneg %p98
      %p209 = pneg %p129
      %p210 = pneg %p126
      %s211 = smul.u32 32, %s19
      %p212 = scmp.lt.s32.totalorder %s18, 1
      %s213 = scalar_select %p212, %s18, 1
      %p214 = scmp.lt.s32.totalorder %s211, 63
      %s215 = scalar_select %p214, %s211, 63
      %s216 = smul.addr %s213, 64
      %s217 = sadd.s32 %s215, %s216
      %s218 = smul.addr %s217, 4
      %s219 = scalar_lea.vmem %s3, %s218
      %s220 = smul.u32 32, %s19
      %p221 = scmp.lt.s32.totalorder %s18, 1
      %s222 = scalar_select %p221, %s18, 1
      %p223 = scmp.lt.s32.totalorder %s220, 63
      %s224 = scalar_select %p223, %s220, 63
      %s225 = smul.addr %s222, 64
      %s226 = sadd.s32 %s224, %s225
      %s227 = smul.addr %s226, 4
      %s228 = scalar_lea.vmem %s0, %s227
      %s229 = smul.u32 32, %s19
      %p230 = scmp.lt.s32.totalorder %s18, 1
      %s231 = scalar_select %p230, %s18, 1
      %s232 = smul.addr %s231, 8
      %s233 = smul.addr %s232, 4
      %s234 = scalar_lea.vmem %s1, %s233
      %p235 = scmp.lt.s32.totalorder %s18, 1
      %s236 = scalar_select %p235, %s18, 1
      %s237 = smul.addr %s236, 8
      %s238 = smul.addr %s237, 4
      %s239 = scalar_lea.vmem %s2, %s238
      %s240 = smul.u32 32, %s19
      %p241 = scmp.lt.s32.totalorder %s18, 1
      %s242 = scalar_select %p241, %s18, 1
      %p243 = scmp.lt.s32.totalorder %s240, 63
      %s244 = scalar_select %p243, %s240, 63
      %s245 = smul.addr %s242, 64
      %s246 = sadd.s32 %s244, %s245
      %s247 = smul.addr %s246, 4
      %s248 = scalar_lea.vmem %s3, %s247
      %s249 = smul.u32 32, %s19
      %v251 = vld [vmem:[%s228] sm:$0xf]
      %v252 = vld [vmem:[%s228 + $0x4] sm:$0xf]
      %v253 = vld [vmem:[%s228 + $0x8] sm:$0xf]
      %v254 = vld [vmem:[%s228 + $0xc] sm:$0xf]
      %v255 = vld [vmem:[%s228 + $0x10] sm:$0xf]
      %v256 = vld [vmem:[%s228 + $0x14] sm:$0xf]
      %v257 = vld [vmem:[%s228 + $0x18] sm:$0xf]
      %v258 = vld [vmem:[%s228 + $0x1c] sm:$0xf]
      %v259 = vld [vmem:[%s228 + $0x20] sm:$0xf]
      %v260 = vld [vmem:[%s228 + $0x24] sm:$0xf]
      %v261 = vld [vmem:[%s228 + $0x28] sm:$0xf]
      %v262 = vld [vmem:[%s228 + $0x2c] sm:$0xf]
      %v263 = vld [vmem:[%s228 + $0x30] sm:$0xf]
      %v264 = vld [vmem:[%s228 + $0x34] sm:$0xf]
      %v265 = vld [vmem:[%s228 + $0x38] sm:$0xf]
      %v266 = vld [vmem:[%s228 + $0x3c] sm:$0xf]
      %v267 = vld [vmem:[%s228 + $0x40] sm:$0xf]
      %v268 = vld [vmem:[%s228 + $0x44] sm:$0xf]
      %v269 = vld [vmem:[%s228 + $0x48] sm:$0xf]
      %v270 = vld [vmem:[%s228 + $0x4c] sm:$0xf]
      %v271 = vld [vmem:[%s228 + $0x50] sm:$0xf]
      %v272 = vld [vmem:[%s228 + $0x54] sm:$0xf]
      %v273 = vld [vmem:[%s228 + $0x58] sm:$0xf]
      %v274 = vld [vmem:[%s228 + $0x5c] sm:$0xf]
      %v275 = vld [vmem:[%s228 + $0x60] sm:$0xf]
      %v276 = vld [vmem:[%s228 + $0x64] sm:$0xf]
      %v277 = vld [vmem:[%s228 + $0x68] sm:$0xf]
      %v278 = vld [vmem:[%s228 + $0x6c] sm:$0xf]
      %v279 = vld [vmem:[%s228 + $0x70] sm:$0xf]
      %v280 = vld [vmem:[%s228 + $0x74] sm:$0xf]
      %v281 = vld [vmem:[%s228 + $0x78] sm:$0xf]
      %v282 = vld [vmem:[%s228 + $0x7c] sm:$0xf]
      %v283 = vld [vmem:[%s234] sm:$0xf]
      %v284 = vld [vmem:[%s234 + $0x4] sm:$0xf]
      %v285 = vld [vmem:[%s234 + $0x8] sm:$0xf]
      %v286 = vld [vmem:[%s234 + $0xc] sm:$0xf]
      %v287 = vld [vmem:[%s234 + $0x10] sm:$0xf]
      %v288 = vld [vmem:[%s234 + $0x14] sm:$0xf]
      %v289 = vld [vmem:[%s234 + $0x18] sm:$0xf]
      %v290 = vld [vmem:[%s234 + $0x1c] sm:$0xf]
      %v323 = vunpack.c.l.b16 %v251
      %v324 = vunpack.c.l.b16 %v252
      %v325 = vunpack.c.l.b16 %v253
      %v326 = vunpack.c.l.b16 %v254
      %v327 = vunpack.c.l.b16 %v255
      %v328 = vunpack.c.l.b16 %v256
      %v329 = vunpack.c.l.b16 %v257
      %v330 = vunpack.c.l.b16 %v258
      %v331 = vunpack.c.l.b16 %v259
      %v332 = vunpack.c.l.b16 %v260
      %v333 = vunpack.c.l.b16 %v261
      %v334 = vunpack.c.l.b16 %v262
      %v335 = vunpack.c.l.b16 %v263
      %v336 = vunpack.c.l.b16 %v264
      %v337 = vunpack.c.l.b16 %v265
      %v338 = vunpack.c.l.b16 %v266
      %v339 = vunpack.c.l.b16 %v267
      %v340 = vunpack.c.l.b16 %v268
      %v341 = vunpack.c.l.b16 %v269
      %v342 = vunpack.c.l.b16 %v270
      %v343 = vunpack.c.l.b16 %v271
      %v344 = vunpack.c.l.b16 %v272
      %v345 = vunpack.c.l.b16 %v273
      %v346 = vunpack.c.l.b16 %v274
      %v347 = vunpack.c.l.b16 %v275
      %v348 = vunpack.c.l.b16 %v276
      %v349 = vunpack.c.l.b16 %v277
      %v350 = vunpack.c.l.b16 %v278
      %v351 = vunpack.c.l.b16 %v279
      %v352 = vunpack.c.l.b16 %v280
      %v353 = vunpack.c.l.b16 %v281
      %v354 = vunpack.c.l.b16 %v282
      %v355 = vpack.c.b16 %v324, %v323
      %v356 = vpack.c.b16 %v326, %v325
      %v357 = vpack.c.b16 %v328, %v327
      %v358 = vpack.c.b16 %v330, %v329
      %v359 = vpack.c.b16 %v332, %v331
      %v360 = vpack.c.b16 %v334, %v333
      %v361 = vpack.c.b16 %v336, %v335
      %v362 = vpack.c.b16 %v338, %v337
      %v363 = vpack.c.b16 %v340, %v339
      %v364 = vpack.c.b16 %v342, %v341
      %v365 = vpack.c.b16 %v344, %v343
      %v366 = vpack.c.b16 %v346, %v345
      %v367 = vpack.c.b16 %v348, %v347
      %v368 = vpack.c.b16 %v350, %v349
      %v369 = vpack.c.b16 %v352, %v351
      %v370 = vpack.c.b16 %v354, %v353
      %v379 = vunpack.c.l.b16 %v283
      %v380 = vunpack.c.l.b16 %v284
      %v381 = vunpack.c.l.b16 %v285
      %v382 = vunpack.c.l.b16 %v286
      %v383 = vunpack.c.l.b16 %v287
      %v384 = vunpack.c.l.b16 %v288
      %v385 = vunpack.c.l.b16 %v289
      %v386 = vunpack.c.l.b16 %v290
      %v387 = vpack.c.b16 %v380, %v379
      %v388 = vpack.c.b16 %v382, %v381
      %v389 = vpack.c.b16 %v384, %v383
      %v390 = vpack.c.b16 %v386, %v385
      %vm391 = vcmask 31744
      %v393 = vsel %vm391, %v355, 0
      %v396 = vsel %vm391, %v356, 0
      %v399 = vsel %vm391, %v357, 0
      %v402 = vsel %vm391, %v358, 0
      %v405 = vsel %vm391, %v359, 0
      %v408 = vsel %vm391, %v360, 0
      %v411 = vsel %vm391, %v361, 0
      %v414 = vsel %vm391, %v362, 0
      %v417 = vsel %vm391, %v363, 0
      %v420 = vsel %vm391, %v364, 0
      %v423 = vsel %vm391, %v365, 0
      %v426 = vsel %vm391, %v366, 0
      %v429 = vsel %vm391, %v367, 0
      %v432 = vsel %vm391, %v368, 0
      %v435 = vsel %vm391, %v369, 0
      %v438 = vsel %vm391, %v370, 0
      %v441 = vsel %vm391, %v387, 0
      %v444 = vsel %vm391, %v388, 0
      %v447 = vsel %vm391, %v389, 0
      %v450 = vsel %vm391, %v390, 0
      %452 = vmatprep.subr.bf16.mxu0 0
      %453 = vmatpush1.bf16.xpose.msra.mxu0 %v441
      %454 = vmatprep.subr.bf16.mxu0 0
      %455 = vmatpush1.bf16.xpose.msra.mxu0 %v444
      %456 = vmatprep.subr.bf16.mxu0 0
      %457 = vmatpush1.bf16.xpose.msra.mxu0 %v447
      %458 = vmatprep.subr.bf16.mxu0 0
      %459 = vmatpush1.bf16.xpose.msra.mxu0 %v450
      %460 = vmatprep.subr.bf16.mxu0 0
      %461 = vmatpush1.bf16.xpose.msra.mxu0 0
      %462 = vmatprep.subr.bf16.mxu0 0
      %463 = vmatpush1.bf16.xpose.msra.mxu0 0
      %464 = vmatprep.subr.bf16.mxu0 0
      %465 = vmatpush1.bf16.xpose.msra.mxu0 0
      %466 = vmatprep.subr.bf16.mxu0 0
      %467 = vmatpush1.bf16.xpose.msra.mxu0 0
      %468 = vmatprep.subr.bf16.mxu0 0
      %469 = vmatpush1.bf16.xpose.msra.mxu0 0
      %470 = vmatprep.subr.bf16.mxu0 0
      %471 = vmatpush1.bf16.xpose.msra.mxu0 0
      %472 = vmatprep.subr.bf16.mxu0 0
      %473 = vmatpush1.bf16.xpose.msra.mxu0 0
      %474 = vmatprep.subr.bf16.mxu0 0
      %475 = vmatpush1.bf16.xpose.msra.mxu0 0
      %476 = vmatprep.subr.bf16.mxu0 0
      %477 = vmatpush1.bf16.xpose.msra.mxu0 0
      %478 = vmatprep.subr.bf16.mxu0 0
      %479 = vmatpush1.bf16.xpose.msra.mxu0 0
      %480 = vmatprep.subr.bf16.mxu0 0
      %481 = vmatpush1.bf16.xpose.msra.mxu0 0
      %482 = vmatprep.subr.bf16.mxu0 0
      %483 = vmatpush1.bf16.xpose.msra.mxu0 0
      %484 = vmatprep.mubr.bf16.mxu0 0
      %485 = vmatmul.mubr.bf16.gmra.mrb[0].mxu0 %v393
      %v486 = vpop.f32.mrb[0].mxu0
      %v487 = vadd.f32 0.0, %v486
      %v488 = vpop.f32.mrb[0].mxu0
      %v489 = vpop.f32.mrb[0].mxu0
      %v490 = vadd.f32 0.0, %v489
      %v491 = vpop.f32.mrb[0].mxu0
      %492 = vmatprep.mubr.bf16.mxu0 0
      %493 = vmatmul.mubr.bf16.gmra.mrb[0].mxu0 %v396
      %v494 = vpop.f32.mrb[0].mxu0
      %v495 = vadd.f32 0.0, %v494
      %v496 = vpop.f32.mrb[0].mxu0
      %v497 = vpop.f32.mrb[0].mxu0
      %v498 = vadd.f32 0.0, %v497
      %v499 = vpop.f32.mrb[0].mxu0
      %500 = vmatprep.mubr.bf16.mxu0 0
      %501 = vmatmul.mubr.bf16.gmra.mrb[0].mxu0 %v399
      %v502 = vpop.f32.mrb[0].mxu0
      %v503 = vadd.f32 0.0, %v502
      %v504 = vpop.f32.mrb[0].mxu0
      %v505 = vpop.f32.mrb[0].mxu0
      %v506 = vadd.f32 0.0, %v505
      %v507 = vpop.f32.mrb[0].mxu0
      %508 = vmatprep.mubr.bf16.mxu0 0
      %509 = vmatmul.mubr.bf16.gmra.mrb[0].mxu0 %v402
      %v510 = vpop.f32.mrb[0].mxu0
      %v511 = vadd.f32 0.0, %v510
      %v512 = vpop.f32.mrb[0].mxu0
      %v513 = vpop.f32.mrb[0].mxu0
      %v514 = vadd.f32 0.0, %v513
      %v515 = vpop.f32.mrb[0].mxu0
      %516 = vmatprep.mubr.bf16.mxu0 0
      %517 = vmatmul.mubr.bf16.gmra.mrb[0].mxu0 %v405
      %v518 = vpop.f32.mrb[0].mxu0
      %v519 = vadd.f32 0.0, %v518
      %v520 = vpop.f32.mrb[0].mxu0
      %v521 = vpop.f32.mrb[0].mxu0
      %v522 = vadd.f32 0.0, %v521
      %v523 = vpop.f32.mrb[0].mxu0
      %524 = vmatprep.mubr.bf16.mxu0 0
      %525 = vmatmul.mubr.bf16.gmra.mrb[0].mxu0 %v408
      %v526 = vpop.f32.mrb[0].mxu0
      %v527 = vadd.f32 0.0, %v526
      %v528 = vpop.f32.mrb[0].mxu0
      %v529 = vpop.f32.mrb[0].mxu0
      %v530 = vadd.f32 0.0, %v529
      %v531 = vpop.f32.mrb[0].mxu0
      %532 = vmatprep.mubr.bf16.mxu0 0
      %533 = vmatmul.mubr.bf16.gmra.mrb[0].mxu0 %v411
      %v534 = vpop.f32.mrb[0].mxu0
      %v535 = vadd.f32 0.0, %v534
      %v536 = vpop.f32.mrb[0].mxu0
      %v537 = vpop.f32.mrb[0].mxu0
      %v538 = vadd.f32 0.0, %v537
      %v539 = vpop.f32.mrb[0].mxu0
      %540 = vmatprep.mubr.bf16.mxu0 0
      %541 = vmatmul.mubr.bf16.gmra.mrb[0].mxu0 %v414
      %v542 = vpop.f32.mrb[0].mxu0
      %v543 = vadd.f32 0.0, %v542
      %v544 = vpop.f32.mrb[0].mxu0
      %v545 = vpop.f32.mrb[0].mxu0
      %v546 = vadd.f32 0.0, %v545
      %v547 = vpop.f32.mrb[0].mxu0
      %548 = vmatprep.mubr.bf16.mxu0 0
      %549 = vmatmul.mubr.bf16.gmra.mrb[0].mxu0 %v417
      %v550 = vpop.f32.mrb[0].mxu0
      %v551 = vadd.f32 0.0, %v550
      %v552 = vpop.f32.mrb[0].mxu0
      %v553 = vpop.f32.mrb[0].mxu0
      %v554 = vadd.f32 0.0, %v553
      %v555 = vpop.f32.mrb[0].mxu0
      %556 = vmatprep.mubr.bf16.mxu0 0
      %557 = vmatmul.mubr.bf16.gmra.mrb[0].mxu0 %v420
      %v558 = vpop.f32.mrb[0].mxu0
      %v559 = vadd.f32 0.0, %v558
      %v560 = vpop.f32.mrb[0].mxu0
      %v561 = vpop.f32.mrb[0].mxu0
      %v562 = vadd.f32 0.0, %v561
      %v563 = vpop.f32.mrb[0].mxu0
      %564 = vmatprep.mubr.bf16.mxu0 0
      %565 = vmatmul.mubr.bf16.gmra.mrb[0].mxu0 %v423
      %v566 = vpop.f32.mrb[0].mxu0
      %v567 = vadd.f32 0.0, %v566
      %v568 = vpop.f32.mrb[0].mxu0
      %v569 = vpop.f32.mrb[0].mxu0
      %v570 = vadd.f32 0.0, %v569
      %v571 = vpop.f32.mrb[0].mxu0
      %572 = vmatprep.mubr.bf16.mxu0 0
      %573 = vmatmul.mubr.bf16.gmra.mrb[0].mxu0 %v426
      %v574 = vpop.f32.mrb[0].mxu0
      %v575 = vadd.f32 0.0, %v574
      %v576 = vpop.f32.mrb[0].mxu0
      %v577 = vpop.f32.mrb[0].mxu0
      %v578 = vadd.f32 0.0, %v577
      %v579 = vpop.f32.mrb[0].mxu0
      %580 = vmatprep.mubr.bf16.mxu0 0
      %581 = vmatmul.mubr.bf16.gmra.mrb[0].mxu0 %v429
      %v582 = vpop.f32.mrb[0].mxu0
      %v583 = vadd.f32 0.0, %v582
      %v584 = vpop.f32.mrb[0].mxu0
      %v585 = vpop.f32.mrb[0].mxu0
      %v586 = vadd.f32 0.0, %v585
      %v587 = vpop.f32.mrb[0].mxu0
      %588 = vmatprep.mubr.bf16.mxu0 0
      %589 = vmatmul.mubr.bf16.gmra.mrb[0].mxu0 %v432
      %v590 = vpop.f32.mrb[0].mxu0
      %v591 = vadd.f32 0.0, %v590
      %v592 = vpop.f32.mrb[0].mxu0
      %v593 = vpop.f32.mrb[0].mxu0
      %v594 = vadd.f32 0.0, %v593
      %v595 = vpop.f32.mrb[0].mxu0
      %596 = vmatprep.mubr.bf16.mxu0 0
      %597 = vmatmul.mubr.bf16.gmra.mrb[0].mxu0 %v435
      %v598 = vpop.f32.mrb[0].mxu0
      %v599 = vadd.f32 0.0, %v598
      %v600 = vpop.f32.mrb[0].mxu0
      %v601 = vpop.f32.mrb[0].mxu0
      %v602 = vadd.f32 0.0, %v601
      %v603 = vpop.f32.mrb[0].mxu0
      %604 = vmatprep.mubr.bf16.mxu0 0
      %605 = vmatmul.mubr.bf16.gmra.mrb[0].mxu0 %v438
      %v606 = vpop.f32.mrb[0].mxu0
      %v607 = vadd.f32 0.0, %v606
      %v608 = vpop.f32.mrb[0].mxu0
      %v609 = vpop.f32.mrb[0].mxu0
      %v610 = vadd.f32 0.0, %v609
      %v611 = vpop.f32.mrb[0].mxu0
      %612 = vdwg.mxu0
      %vm613 = vcmask 523264
      %v614 = vsel %vm613, %v487, -inf
      %615 = vmax.xlane.f32.xlu0 %v614
      %v616 = vpop.xlane.xlu0 %615
      %v617 = vsel %vm613, %v490, -inf
      %618 = vmax.xlane.f32.xlu0 %v617
      %v619 = vpop.xlane.xlu0 %618
      %v620 = vsel %vm613, %v495, -inf
      %621 = vmax.xlane.f32.xlu0 %v620
      %v622 = vpop.xlane.xlu0 %621
      %v623 = vsel %vm613, %v498, -inf
      %624 = vmax.xlane.f32.xlu0 %v623
      %v625 = vpop.xlane.xlu0 %624
      %v626 = vsel %vm613, %v503, -inf
      %627 = vmax.xlane.f32.xlu0 %v626
      %v628 = vpop.xlane.xlu0 %627
      %v629 = vsel %vm613, %v506, -inf
      %630 = vmax.xlane.f32.xlu0 %v629
      %v631 = vpop.xlane.xlu0 %630
      %v632 = vsel %vm613, %v511, -inf
      %633 = vmax.xlane.f32.xlu0 %v632
      %v634 = vpop.xlane.xlu0 %633
      %v635 = vsel %vm613, %v514, -inf
      %636 = vmax.xlane.f32.xlu0 %v635
      %v637 = vpop.xlane.xlu0 %636
      %v638 = vsel %vm613, %v519, -inf
      %639 = vmax.xlane.f32.xlu0 %v638
      %v640 = vpop.xlane.xlu0 %639
      %v641 = vsel %vm613, %v522, -inf
      %642 = vmax.xlane.f32.xlu0 %v641
      %v643 = vpop.xlane.xlu0 %642
      %v644 = vsel %vm613, %v527, -inf
      %645 = vmax.xlane.f32.xlu0 %v644
      %v646 = vpop.xlane.xlu0 %645
      %v647 = vsel %vm613, %v530, -inf
      %648 = vmax.xlane.f32.xlu0 %v647
      %v649 = vpop.xlane.xlu0 %648
      %v650 = vsel %vm613, %v535, -inf
      %651 = vmax.xlane.f32.xlu0 %v650
      %v652 = vpop.xlane.xlu0 %651
      %v653 = vsel %vm613, %v538, -inf
      %654 = vmax.xlane.f32.xlu0 %v653
      %v655 = vpop.xlane.xlu0 %654
      %v656 = vsel %vm613, %v543, -inf
      %657 = vmax.xlane.f32.xlu0 %v656
      %v658 = vpop.xlane.xlu0 %657
      %v659 = vsel %vm613, %v546, -inf
      %660 = vmax.xlane.f32.xlu0 %v659
      %v661 = vpop.xlane.xlu0 %660
      %v662 = vsel %vm613, %v551, -inf
      %663 = vmax.xlane.f32.xlu0 %v662
      %v664 = vpop.xlane.xlu0 %663
      %v665 = vsel %vm613, %v554, -inf
      %666 = vmax.xlane.f32.xlu0 %v665
      %v667 = vpop.xlane.xlu0 %666
      %v668 = vsel %vm613, %v559, -inf
      %669 = vmax.xlane.f32.xlu0 %v668
      %v670 = vpop.xlane.xlu0 %669
      %v671 = vsel %vm613, %v562, -inf
      %672 = vmax.xlane.f32.xlu0 %v671
      %v673 = vpop.xlane.xlu0 %672
      %v674 = vsel %vm613, %v567, -inf
      %675 = vmax.xlane.f32.xlu0 %v674
      %v676 = vpop.xlane.xlu0 %675
      %v677 = vsel %vm613, %v570, -inf
      %678 = vmax.xlane.f32.xlu0 %v677
      %v679 = vpop.xlane.xlu0 %678
      %v680 = vsel %vm613, %v575, -inf
      %681 = vmax.xlane.f32.xlu0 %v680
      %v682 = vpop.xlane.xlu0 %681
      %v683 = vsel %vm613, %v578, -inf
      %684 = vmax.xlane.f32.xlu0 %v683
      %v685 = vpop.xlane.xlu0 %684
      %v686 = vsel %vm613, %v583, -inf
      %687 = vmax.xlane.f32.xlu0 %v686
      %v688 = vpop.xlane.xlu0 %687
      %v689 = vsel %vm613, %v586, -inf
      %690 = vmax.xlane.f32.xlu0 %v689
      %v691 = vpop.xlane.xlu0 %690
      %v692 = vsel %vm613, %v591, -inf
      %693 = vmax.xlane.f32.xlu0 %v692
      %v694 = vpop.xlane.xlu0 %693
      %v695 = vsel %vm613, %v594, -inf
      %696 = vmax.xlane.f32.xlu0 %v695
      %v697 = vpop.xlane.xlu0 %696
      %v698 = vsel %vm613, %v599, -inf
      %699 = vmax.xlane.f32.xlu0 %v698
      %v700 = vpop.xlane.xlu0 %699
      %v701 = vsel %vm613, %v602, -inf
      %702 = vmax.xlane.f32.xlu0 %v701
      %v703 = vpop.xlane.xlu0 %702
      %v704 = vsel %vm613, %v607, -inf
      %705 = vmax.xlane.f32.xlu0 %v704
      %v706 = vpop.xlane.xlu0 %705
      %v707 = vsel %vm613, %v610, -inf
      %708 = vmax.xlane.f32.xlu0 %v707
      %v709 = vpop.xlane.xlu0 %708
      %v710 = vsub.f32 %v487, %v616
      %v711 = vsub.f32 %v490, %v619
      %v712 = vsub.f32 %v495, %v622
      %v713 = vsub.f32 %v498, %v625
      %v714 = vsub.f32 %v503, %v628
      %v715 = vsub.f32 %v506, %v631
      %v716 = vsub.f32 %v511, %v634
      %v717 = vsub.f32 %v514, %v637
      %v718 = vsub.f32 %v519, %v640
      %v719 = vsub.f32 %v522, %v643
      %v720 = vsub.f32 %v527, %v646
      %v721 = vsub.f32 %v530, %v649
      %v722 = vsub.f32 %v535, %v652
      %v723 = vsub.f32 %v538, %v655
      %v724 = vsub.f32 %v543, %v658
      %v725 = vsub.f32 %v546, %v661
      %v726 = vsub.f32 %v551, %v664
      %v727 = vsub.f32 %v554, %v667
      %v728 = vsub.f32 %v559, %v670
      %v729 = vsub.f32 %v562, %v673
      %v730 = vsub.f32 %v567, %v676
      %v731 = vsub.f32 %v570, %v679
      %v732 = vsub.f32 %v575, %v682
      %v733 = vsub.f32 %v578, %v685
      %v734 = vsub.f32 %v583, %v688
      %v735 = vsub.f32 %v586, %v691
      %v736 = vsub.f32 %v591, %v694
      %v737 = vsub.f32 %v594, %v697
      %v738 = vsub.f32 %v599, %v700
      %v739 = vsub.f32 %v602, %v703
      %v740 = vsub.f32 %v607, %v706
      %v741 = vsub.f32 %v610, %v709
      %v742 = vmul.f32 %v710, 1.442695
      %v743 = vpow.pop %v742
      %v744 = vmul.f32 %v711, 1.442695
      %v745 = vpow.pop %v744
      %v746 = vmul.f32 %v712, 1.442695
      %v747 = vpow.pop %v746
      %v748 = vmul.f32 %v713, 1.442695
      %v749 = vpow.pop %v748
      %v750 = vmul.f32 %v714, 1.442695
      %v751 = vpow.pop %v750
      %v752 = vmul.f32 %v715, 1.442695
      %v753 = vpow.pop %v752
      %v754 = vmul.f32 %v716, 1.442695
      %v755 = vpow.pop %v754
      %v756 = vmul.f32 %v717, 1.442695
      %v757 = vpow.pop %v756
      %v758 = vmul.f32 %v718, 1.442695
      %v759 = vpow.pop %v758
      %v760 = vmul.f32 %v719, 1.442695
      %v761 = vpow.pop %v760
      %v762 = vmul.f32 %v720, 1.442695
      %v763 = vpow.pop %v762
      %v764 = vmul.f32 %v721, 1.442695
      %v765 = vpow.pop %v764
      %v766 = vmul.f32 %v722, 1.442695
      %v767 = vpow.pop %v766
      %v768 = vmul.f32 %v723, 1.442695
      %v769 = vpow.pop %v768
      %v770 = vmul.f32 %v724, 1.442695
      %v771 = vpow.pop %v770
      %v772 = vmul.f32 %v725, 1.442695
      %v773 = vpow.pop %v772
      %v774 = vmul.f32 %v726, 1.442695
      %v775 = vpow.pop %v774
      %v776 = vmul.f32 %v727, 1.442695
      %v777 = vpow.pop %v776
      %v778 = vmul.f32 %v728, 1.442695
      %v779 = vpow.pop %v778
      %v780 = vmul.f32 %v729, 1.442695
      %v781 = vpow.pop %v780
      %v782 = vmul.f32 %v730, 1.442695
      %v783 = vpow.pop %v782
      %v784 = vmul.f32 %v731, 1.442695
      %v785 = vpow.pop %v784
      %v786 = vmul.f32 %v732, 1.442695
      %v787 = vpow.pop %v786
      %v788 = vmul.f32 %v733, 1.442695
      %v789 = vpow.pop %v788
      %v790 = vmul.f32 %v734, 1.442695
      %v791 = vpow.pop %v790
      %v792 = vmul.f32 %v735, 1.442695
      %v793 = vpow.pop %v792
      %v794 = vmul.f32 %v736, 1.442695
      %v795 = vpow.pop %v794
      %v796 = vmul.f32 %v737, 1.442695
      %v797 = vpow.pop %v796
      %v798 = vmul.f32 %v738, 1.442695
      %v799 = vpow.pop %v798
      %v800 = vmul.f32 %v739, 1.442695
      %v801 = vpow.pop %v800
      %v802 = vmul.f32 %v740, 1.442695
      %v803 = vpow.pop %v802
      %v804 = vmul.f32 %v741, 1.442695
      %v805 = vpow.pop %v804
      %v806 = vsel %vm613, %v743, 0.0
      %807 = vadd.xlane.f32.xlu0 %v806
      %v808 = vpop.xlane.xlu0 %807
      %v809 = vsel %vm613, %v745, 0.0
      %810 = vadd.xlane.f32.xlu0 %v809
      %v811 = vpop.xlane.xlu0 %810
      %v812 = vsel %vm613, %v747, 0.0
      %813 = vadd.xlane.f32.xlu0 %v812
      %v814 = vpop.xlane.xlu0 %813
      %v815 = vsel %vm613, %v749, 0.0
      %816 = vadd.xlane.f32.xlu0 %v815
      %v817 = vpop.xlane.xlu0 %816
      %v818 = vsel %vm613, %v751, 0.0
      %819 = vadd.xlane.f32.xlu0 %v818
      %v820 = vpop.xlane.xlu0 %819
      %v821 = vsel %vm613, %v753, 0.0
      %822 = vadd.xlane.f32.xlu0 %v821
      %v823 = vpop.xlane.xlu0 %822
      %v824 = vsel %vm613, %v755, 0.0
      %825 = vadd.xlane.f32.xlu0 %v824
      %v826 = vpop.xlane.xlu0 %825
      %v827 = vsel %vm613, %v757, 0.0
      %828 = vadd.xlane.f32.xlu0 %v827
      %v829 = vpop.xlane.xlu0 %828
      %v830 = vsel %vm613, %v759, 0.0
      %831 = vadd.xlane.f32.xlu0 %v830
      %v832 = vpop.xlane.xlu0 %831
      %v833 = vsel %vm613, %v761, 0.0
      %834 = vadd.xlane.f32.xlu0 %v833
      %v835 = vpop.xlane.xlu0 %834
      %v836 = vsel %vm613, %v763, 0.0
      %837 = vadd.xlane.f32.xlu0 %v836
      %v838 = vpop.xlane.xlu0 %837
      %v839 = vsel %vm613, %v765, 0.0
      %840 = vadd.xlane.f32.xlu0 %v839
      %v841 = vpop.xlane.xlu0 %840
      %v842 = vsel %vm613, %v767, 0.0
      %843 = vadd.xlane.f32.xlu0 %v842
      %v844 = vpop.xlane.xlu0 %843
      %v845 = vsel %vm613, %v769, 0.0
      %846 = vadd.xlane.f32.xlu0 %v845
      %v847 = vpop.xlane.xlu0 %846
      %v848 = vsel %vm613, %v771, 0.0
      %849 = vadd.xlane.f32.xlu0 %v848
      %v850 = vpop.xlane.xlu0 %849
      %v851 = vsel %vm613, %v773, 0.0
      %852 = vadd.xlane.f32.xlu0 %v851
      %v853 = vpop.xlane.xlu0 %852
      %v854 = vsel %vm613, %v775, 0.0
      %855 = vadd.xlane.f32.xlu0 %v854
      %v856 = vpop.xlane.xlu0 %855
      %v857 = vsel %vm613, %v777, 0.0
      %858 = vadd.xlane.f32.xlu0 %v857
      %v859 = vpop.xlane.xlu0 %858
      %v860 = vsel %vm613, %v779, 0.0
      %861 = vadd.xlane.f32.xlu0 %v860
      %v862 = vpop.xlane.xlu0 %861
      %v863 = vsel %vm613, %v781, 0.0
      %864 = vadd.xlane.f32.xlu0 %v863
      %v865 = vpop.xlane.xlu0 %864
      %v866 = vsel %vm613, %v783, 0.0
      %867 = vadd.xlane.f32.xlu0 %v866
      %v868 = vpop.xlane.xlu0 %867
      %v869 = vsel %vm613, %v785, 0.0
      %870 = vadd.xlane.f32.xlu0 %v869
      %v871 = vpop.xlane.xlu0 %870
      %v872 = vsel %vm613, %v787, 0.0
      %873 = vadd.xlane.f32.xlu0 %v872
      %v874 = vpop.xlane.xlu0 %873
      %v875 = vsel %vm613, %v789, 0.0
      %876 = vadd.xlane.f32.xlu0 %v875
      %v877 = vpop.xlane.xlu0 %876
      %v878 = vsel %vm613, %v791, 0.0
      %879 = vadd.xlane.f32.xlu0 %v878
      %v880 = vpop.xlane.xlu0 %879
      %v881 = vsel %vm613, %v793, 0.0
      %882 = vadd.xlane.f32.xlu0 %v881
      %v883 = vpop.xlane.xlu0 %882
      %v884 = vsel %vm613, %v795, 0.0
      %885 = vadd.xlane.f32.xlu0 %v884
      %v886 = vpop.xlane.xlu0 %885
      %v887 = vsel %vm613, %v797, 0.0
      %888 = vadd.xlane.f32.xlu0 %v887
      %v889 = vpop.xlane.xlu0 %888
      %v890 = vsel %vm613, %v799, 0.0
      %891 = vadd.xlane.f32.xlu0 %v890
      %v892 = vpop.xlane.xlu0 %891
      %v893 = vsel %vm613, %v801, 0.0
      %894 = vadd.xlane.f32.xlu0 %v893
      %v895 = vpop.xlane.xlu0 %894
      %v896 = vsel %vm613, %v803, 0.0
      %897 = vadd.xlane.f32.xlu0 %v896
      %v898 = vpop.xlane.xlu0 %897
      %v899 = vsel %vm613, %v805, 0.0
      %900 = vadd.xlane.f32.xlu0 %v899
      %v901 = vpop.xlane.xlu0 %900
      %v902 = vpack.c.bf16 %v745, %v743
      %v903 = vpack.c.bf16 %v749, %v747
      %v904 = vpack.c.bf16 %v753, %v751
      %v905 = vpack.c.bf16 %v757, %v755
      %v906 = vpack.c.bf16 %v761, %v759
      %v907 = vpack.c.bf16 %v765, %v763
      %v908 = vpack.c.bf16 %v769, %v767
      %v909 = vpack.c.bf16 %v773, %v771
      %v910 = vpack.c.bf16 %v777, %v775
      %v911 = vpack.c.bf16 %v781, %v779
      %v912 = vpack.c.bf16 %v785, %v783
      %v913 = vpack.c.bf16 %v789, %v787
      %v914 = vpack.c.bf16 %v793, %v791
      %v915 = vpack.c.bf16 %v797, %v795
      %v916 = vpack.c.bf16 %v801, %v799
      %v917 = vpack.c.bf16 %v805, %v803
      %v918 = vld [vmem:[%s239] sm:$0xf]
      %v919 = vld [vmem:[%s239 + $0x4] sm:$0xf]
      %v920 = vld [vmem:[%s239 + $0x8] sm:$0xf]
      %v921 = vld [vmem:[%s239 + $0xc] sm:$0xf]
      %v922 = vld [vmem:[%s239 + $0x10] sm:$0xf]
      %v923 = vld [vmem:[%s239 + $0x14] sm:$0xf]
      %v924 = vld [vmem:[%s239 + $0x18] sm:$0xf]
      %v925 = vld [vmem:[%s239 + $0x1c] sm:$0xf]
      %v934 = vunpack.c.l.b16 %v918
      %v935 = vunpack.c.l.b16 %v919
      %v936 = vunpack.c.l.b16 %v920
      %v937 = vunpack.c.l.b16 %v921
      %v938 = vunpack.c.l.b16 %v922
      %v939 = vunpack.c.l.b16 %v923
      %v940 = vunpack.c.l.b16 %v924
      %v941 = vunpack.c.l.b16 %v925
      %v942 = vpack.c.b16 %v935, %v934
      %v943 = vpack.c.b16 %v937, %v936
      %v944 = vpack.c.b16 %v939, %v938
      %v945 = vpack.c.b16 %v941, %v940
      %v951 = vsel %vm613, %v902, 0
      %v954 = vsel %vm613, %v903, 0
      %v957 = vsel %vm613, %v904, 0
      %v960 = vsel %vm613, %v905, 0
      %v963 = vsel %vm613, %v906, 0
      %v966 = vsel %vm613, %v907, 0
      %v969 = vsel %vm613, %v908, 0
      %v972 = vsel %vm613, %v909, 0
      %v975 = vsel %vm613, %v910, 0
      %v978 = vsel %vm613, %v911, 0
      %v981 = vsel %vm613, %v912, 0
      %v984 = vsel %vm613, %v913, 0
      %v987 = vsel %vm613, %v914, 0
      %v990 = vsel %vm613, %v915, 0
      %v993 = vsel %vm613, %v916, 0
      %v996 = vsel %vm613, %v917, 0
      %998 = vmatprep.subr.bf16.mxu0 0
      %999 = vmatpush1.bf16.msra.mxu0 %v942
      %1000 = vmatprep.subr.bf16.mxu0 0
      %1001 = vmatpush1.bf16.msra.mxu0 %v943
      %1002 = vmatprep.subr.bf16.mxu0 0
      %1003 = vmatpush1.bf16.msra.mxu0 %v944
      %1004 = vmatprep.subr.bf16.mxu0 0
      %1005 = vmatpush1.bf16.msra.mxu0 %v945
      %1006 = vmatprep.subr.bf16.mxu0 0
      %1007 = vmatpush1.bf16.msra.mxu0 0
      %1008 = vmatprep.subr.bf16.mxu0 0
      %1009 = vmatpush1.bf16.msra.mxu0 0
      %1010 = vmatprep.subr.bf16.mxu0 0
      %1011 = vmatpush1.bf16.msra.mxu0 0
      %1012 = vmatprep.subr.bf16.mxu0 0
      %1013 = vmatpush1.bf16.msra.mxu0 0
      %1014 = vmatprep.subr.bf16.mxu0 0
      %1015 = vmatpush1.bf16.msra.mxu0 0
      %1016 = vmatprep.subr.bf16.mxu0 0
      %1017 = vmatpush1.bf16.msra.mxu0 0
      %1018 = vmatprep.subr.bf16.mxu0 0
      %1019 = vmatpush1.bf16.msra.mxu0 0
      %1020 = vmatprep.subr.bf16.mxu0 0
      %1021 = vmatpush1.bf16.msra.mxu0 0
      %1022 = vmatprep.subr.bf16.mxu0 0
      %1023 = vmatpush1.bf16.msra.mxu0 0
      %1024 = vmatprep.subr.bf16.mxu0 0
      %1025 = vmatpush1.bf16.msra.mxu0 0
      %1026 = vmatprep.subr.bf16.mxu0 0
      %1027 = vmatpush1.bf16.msra.mxu0 0
      %1028 = vmatprep.subr.bf16.mxu0 0
      %1029 = vmatpush1.bf16.msra.mxu0 0
      %1030 = vmatprep.mubr.bf16.mxu0 0
      %1031 = vmatmul.mubr.bf16.gmra.mrb[0].mxu0 %v951
      %v1032 = vpop.f32.mrb[0].mxu0
      %v1033 = vadd.f32 0.0, %v1032
      %v1034 = vpop.f32.mrb[0].mxu0
      %v1035 = vpop.f32.mrb[0].mxu0
      %v1036 = vadd.f32 0.0, %v1035
      %v1037 = vpop.f32.mrb[0].mxu0
      %1038 = vmatprep.mubr.bf16.mxu0 0
      %1039 = vmatmul.mubr.bf16.gmra.mrb[0].mxu0 %v954
      %v1040 = vpop.f32.mrb[0].mxu0
      %v1041 = vadd.f32 0.0, %v1040
      %v1042 = vpop.f32.mrb[0].mxu0
      %v1043 = vpop.f32.mrb[0].mxu0
      %v1044 = vadd.f32 0.0, %v1043
      %v1045 = vpop.f32.mrb[0].mxu0
      %1046 = vmatprep.mubr.bf16.mxu0 0
      %1047 = vmatmul.mubr.bf16.gmra.mrb[0].mxu0 %v957
      %v1048 = vpop.f32.mrb[0].mxu0
      %v1049 = vadd.f32 0.0, %v1048
      %v1050 = vpop.f32.mrb[0].mxu0
      %v1051 = vpop.f32.mrb[0].mxu0
      %v1052 = vadd.f32 0.0, %v1051
      %v1053 = vpop.f32.mrb[0].mxu0
      %1054 = vmatprep.mubr.bf16.mxu0 0
      %1055 = vmatmul.mubr.bf16.gmra.mrb[0].mxu0 %v960
      %v1056 = vpop.f32.mrb[0].mxu0
      %v1057 = vadd.f32 0.0, %v1056
      %v1058 = vpop.f32.mrb[0].mxu0
      %v1059 = vpop.f32.mrb[0].mxu0
      %v1060 = vadd.f32 0.0, %v1059
      %v1061 = vpop.f32.mrb[0].mxu0
      %1062 = vmatprep.mubr.bf16.mxu0 0
      %1063 = vmatmul.mubr.bf16.gmra.mrb[0].mxu0 %v963
      %v1064 = vpop.f32.mrb[0].mxu0
      %v1065 = vadd.f32 0.0, %v1064
      %v1066 = vpop.f32.mrb[0].mxu0
      %v1067 = vpop.f32.mrb[0].mxu0
      %v1068 = vadd.f32 0.0, %v1067
      %v1069 = vpop.f32.mrb[0].mxu0
      %1070 = vmatprep.mubr.bf16.mxu0 0
      %1071 = vmatmul.mubr.bf16.gmra.mrb[0].mxu0 %v966
      %v1072 = vpop.f32.mrb[0].mxu0
      %v1073 = vadd.f32 0.0, %v1072
      %v1074 = vpop.f32.mrb[0].mxu0
      %v1075 = vpop.f32.mrb[0].mxu0
      %v1076 = vadd.f32 0.0, %v1075
      %v1077 = vpop.f32.mrb[0].mxu0
      %1078 = vmatprep.mubr.bf16.mxu0 0
      %1079 = vmatmul.mubr.bf16.gmra.mrb[0].mxu0 %v969
      %v1080 = vpop.f32.mrb[0].mxu0
      %v1081 = vadd.f32 0.0, %v1080
      %v1082 = vpop.f32.mrb[0].mxu0
      %v1083 = vpop.f32.mrb[0].mxu0
      %v1084 = vadd.f32 0.0, %v1083
      %v1085 = vpop.f32.mrb[0].mxu0
      %1086 = vmatprep.mubr.bf16.mxu0 0
      %1087 = vmatmul.mubr.bf16.gmra.mrb[0].mxu0 %v972
      %v1088 = vpop.f32.mrb[0].mxu0
      %v1089 = vadd.f32 0.0, %v1088
      %v1090 = vpop.f32.mrb[0].mxu0
      %v1091 = vpop.f32.mrb[0].mxu0
      %v1092 = vadd.f32 0.0, %v1091
      %v1093 = vpop.f32.mrb[0].mxu0
      %1094 = vmatprep.mubr.bf16.mxu0 0
      %1095 = vmatmul.mubr.bf16.gmra.mrb[0].mxu0 %v975
      %v1096 = vpop.f32.mrb[0].mxu0
      %v1097 = vadd.f32 0.0, %v1096
      %v1098 = vpop.f32.mrb[0].mxu0
      %v1099 = vpop.f32.mrb[0].mxu0
      %v1100 = vadd.f32 0.0, %v1099
      %v1101 = vpop.f32.mrb[0].mxu0
      %1102 = vmatprep.mubr.bf16.mxu0 0
      %1103 = vmatmul.mubr.bf16.gmra.mrb[0].mxu0 %v978
      %v1104 = vpop.f32.mrb[0].mxu0
      %v1105 = vadd.f32 0.0, %v1104
      %v1106 = vpop.f32.mrb[0].mxu0
      %v1107 = vpop.f32.mrb[0].mxu0
      %v1108 = vadd.f32 0.0, %v1107
      %v1109 = vpop.f32.mrb[0].mxu0
      %1110 = vmatprep.mubr.bf16.mxu0 0
      %1111 = vmatmul.mubr.bf16.gmra.mrb[0].mxu0 %v981
      %v1112 = vpop.f32.mrb[0].mxu0
      %v1113 = vadd.f32 0.0, %v1112
      %v1114 = vpop.f32.mrb[0].mxu0
      %v1115 = vpop.f32.mrb[0].mxu0
      %v1116 = vadd.f32 0.0, %v1115
      %v1117 = vpop.f32.mrb[0].mxu0
      %1118 = vmatprep.mubr.bf16.mxu0 0
      %1119 = vmatmul.mubr.bf16.gmra.mrb[0].mxu0 %v984
      %v1120 = vpop.f32.mrb[0].mxu0
      %v1121 = vadd.f32 0.0, %v1120
      %v1122 = vpop.f32.mrb[0].mxu0
      %v1123 = vpop.f32.mrb[0].mxu0
      %v1124 = vadd.f32 0.0, %v1123
      %v1125 = vpop.f32.mrb[0].mxu0
      %1126 = vmatprep.mubr.bf16.mxu0 0
      %1127 = vmatmul.mubr.bf16.gmra.mrb[0].mxu0 %v987
      %v1128 = vpop.f32.mrb[0].mxu0
      %v1129 = vadd.f32 0.0, %v1128
      %v1130 = vpop.f32.mrb[0].mxu0
      %v1131 = vpop.f32.mrb[0].mxu0
      %v1132 = vadd.f32 0.0, %v1131
      %v1133 = vpop.f32.mrb[0].mxu0
      %1134 = vmatprep.mubr.bf16.mxu0 0
      %1135 = vmatmul.mubr.bf16.gmra.mrb[0].mxu0 %v990
      %v1136 = vpop.f32.mrb[0].mxu0
      %v1137 = vadd.f32 0.0, %v1136
      %v1138 = vpop.f32.mrb[0].mxu0
      %v1139 = vpop.f32.mrb[0].mxu0
      %v1140 = vadd.f32 0.0, %v1139
      %v1141 = vpop.f32.mrb[0].mxu0
      %1142 = vmatprep.mubr.bf16.mxu0 0
      %1143 = vmatmul.mubr.bf16.gmra.mrb[0].mxu0 %v993
      %v1144 = vpop.f32.mrb[0].mxu0
      %v1145 = vadd.f32 0.0, %v1144
      %v1146 = vpop.f32.mrb[0].mxu0
      %v1147 = vpop.f32.mrb[0].mxu0
      %v1148 = vadd.f32 0.0, %v1147
      %v1149 = vpop.f32.mrb[0].mxu0
      %1150 = vmatprep.mubr.bf16.mxu0 0
      %1151 = vmatmul.mubr.bf16.gmra.mrb[0].mxu0 %v996
      %v1152 = vpop.f32.mrb[0].mxu0
      %v1153 = vadd.f32 0.0, %v1152
      %v1154 = vpop.f32.mrb[0].mxu0
      %v1155 = vpop.f32.mrb[0].mxu0
      %v1156 = vadd.f32 0.0, %v1155
      %v1157 = vpop.f32.mrb[0].mxu0
      %1158 = vdwg.mxu0
      %v1159 = vrcp.pop %v808
      %v1160 = vrcp.pop %v811
      %v1161 = vrcp.pop %v814
      %v1162 = vrcp.pop %v817
      %v1163 = vrcp.pop %v820
      %v1164 = vrcp.pop %v823
      %v1165 = vrcp.pop %v826
      %v1166 = vrcp.pop %v829
      %v1167 = vrcp.pop %v832
      %v1168 = vrcp.pop %v835
      %v1169 = vrcp.pop %v838
      %v1170 = vrcp.pop %v841
      %v1171 = vrcp.pop %v844
      %v1172 = vrcp.pop %v847
      %v1173 = vrcp.pop %v850
      %v1174 = vrcp.pop %v853
      %v1175 = vrcp.pop %v856
      %v1176 = vrcp.pop %v859
      %v1177 = vrcp.pop %v862
      %v1178 = vrcp.pop %v865
      %v1179 = vrcp.pop %v868
      %v1180 = vrcp.pop %v871
      %v1181 = vrcp.pop %v874
      %v1182 = vrcp.pop %v877
      %v1183 = vrcp.pop %v880
      %v1184 = vrcp.pop %v883
      %v1185 = vrcp.pop %v886
      %v1186 = vrcp.pop %v889
      %v1187 = vrcp.pop %v892
      %v1188 = vrcp.pop %v895
      %v1189 = vrcp.pop %v898
      %v1190 = vrcp.pop %v901
      %v1191 = vmul.f32 %v1033, %v1159
      %v1192 = vmul.f32 %v1036, %v1160
      %v1193 = vmul.f32 %v1041, %v1161
      %v1194 = vmul.f32 %v1044, %v1162
      %v1195 = vmul.f32 %v1049, %v1163
      %v1196 = vmul.f32 %v1052, %v1164
      %v1197 = vmul.f32 %v1057, %v1165
      %v1198 = vmul.f32 %v1060, %v1166
      %v1199 = vmul.f32 %v1065, %v1167
      %v1200 = vmul.f32 %v1068, %v1168
      %v1201 = vmul.f32 %v1073, %v1169
      %v1202 = vmul.f32 %v1076, %v1170
      %v1203 = vmul.f32 %v1081, %v1171
      %v1204 = vmul.f32 %v1084, %v1172
      %v1205 = vmul.f32 %v1089, %v1173
      %v1206 = vmul.f32 %v1092, %v1174
      %v1207 = vmul.f32 %v1097, %v1175
      %v1208 = vmul.f32 %v1100, %v1176
      %v1209 = vmul.f32 %v1105, %v1177
      %v1210 = vmul.f32 %v1108, %v1178
      %v1211 = vmul.f32 %v1113, %v1179
      %v1212 = vmul.f32 %v1116, %v1180
      %v1213 = vmul.f32 %v1121, %v1181
      %v1214 = vmul.f32 %v1124, %v1182
      %v1215 = vmul.f32 %v1129, %v1183
      %v1216 = vmul.f32 %v1132, %v1184
      %v1217 = vmul.f32 %v1137, %v1185
      %v1218 = vmul.f32 %v1140, %v1186
      %v1219 = vmul.f32 %v1145, %v1187
      %v1220 = vmul.f32 %v1148, %v1188
      %v1221 = vmul.f32 %v1153, %v1189
      %v1222 = vmul.f32 %v1156, %v1190
      %v1223 = vpack.c.bf16 %v1192, %v1191
      %v1224 = vpack.c.bf16 %v1194, %v1193
      %v1225 = vpack.c.bf16 %v1196, %v1195
      %v1226 = vpack.c.bf16 %v1198, %v1197
      %v1227 = vpack.c.bf16 %v1200, %v1199
      %v1228 = vpack.c.bf16 %v1202, %v1201
      %v1229 = vpack.c.bf16 %v1204, %v1203
      %v1230 = vpack.c.bf16 %v1206, %v1205
      %v1231 = vpack.c.bf16 %v1208, %v1207
      %v1232 = vpack.c.bf16 %v1210, %v1209
      %v1233 = vpack.c.bf16 %v1212, %v1211
      %v1234 = vpack.c.bf16 %v1214, %v1213
      %v1235 = vpack.c.bf16 %v1216, %v1215
      %v1236 = vpack.c.bf16 %v1218, %v1217
      %v1237 = vpack.c.bf16 %v1220, %v1219
      %v1238 = vpack.c.bf16 %v1222, %v1221
      %v1255 = vunpack.c.l.b16 %v1223
      %v1256 = vunpack.c.h.b16 %v1223
      %v1257 = vunpack.c.l.b16 %v1224
      %v1258 = vunpack.c.h.b16 %v1224
      %v1259 = vunpack.c.l.b16 %v1225
      %v1260 = vunpack.c.h.b16 %v1225
      %v1261 = vunpack.c.l.b16 %v1226
      %v1262 = vunpack.c.h.b16 %v1226
      %v1263 = vunpack.c.l.b16 %v1227
      %v1264 = vunpack.c.h.b16 %v1227
      %v1265 = vunpack.c.l.b16 %v1228
      %v1266 = vunpack.c.h.b16 %v1228
      %v1267 = vunpack.c.l.b16 %v1229
      %v1268 = vunpack.c.h.b16 %v1229
      %v1269 = vunpack.c.l.b16 %v1230
      %v1270 = vunpack.c.h.b16 %v1230
      %v1271 = vunpack.c.l.b16 %v1231
      %v1272 = vunpack.c.h.b16 %v1231
      %v1273 = vunpack.c.l.b16 %v1232
      %v1274 = vunpack.c.h.b16 %v1232
      %v1275 = vunpack.c.l.b16 %v1233
      %v1276 = vunpack.c.h.b16 %v1233
      %v1277 = vunpack.c.l.b16 %v1234
      %v1278 = vunpack.c.h.b16 %v1234
      %v1279 = vunpack.c.l.b16 %v1235
      %v1280 = vunpack.c.h.b16 %v1235
      %v1281 = vunpack.c.l.b16 %v1236
      %v1282 = vunpack.c.h.b16 %v1236
      %v1283 = vunpack.c.l.b16 %v1237
      %v1284 = vunpack.c.h.b16 %v1237
      %v1285 = vunpack.c.l.b16 %v1238
      %v1286 = vunpack.c.h.b16 %v1238
      %v1287 = vpack.c.b16 %v1255, %v1255
      %v1288 = vpack.c.b16 %v1256, %v1256
      %v1289 = vpack.c.b16 %v1257, %v1257
      %v1290 = vpack.c.b16 %v1258, %v1258
      %v1291 = vpack.c.b16 %v1259, %v1259
      %v1292 = vpack.c.b16 %v1260, %v1260
      %v1293 = vpack.c.b16 %v1261, %v1261
      %v1294 = vpack.c.b16 %v1262, %v1262
      %v1295 = vpack.c.b16 %v1263, %v1263
      %v1296 = vpack.c.b16 %v1264, %v1264
      %v1297 = vpack.c.b16 %v1265, %v1265
      %v1298 = vpack.c.b16 %v1266, %v1266
      %v1299 = vpack.c.b16 %v1267, %v1267
      %v1300 = vpack.c.b16 %v1268, %v1268
      %v1301 = vpack.c.b16 %v1269, %v1269
      %v1302 = vpack.c.b16 %v1270, %v1270
      %v1303 = vpack.c.b16 %v1271, %v1271
      %v1304 = vpack.c.b16 %v1272, %v1272
      %v1305 = vpack.c.b16 %v1273, %v1273
      %v1306 = vpack.c.b16 %v1274, %v1274
      %v1307 = vpack.c.b16 %v1275, %v1275
      %v1308 = vpack.c.b16 %v1276, %v1276
      %v1309 = vpack.c.b16 %v1277, %v1277
      %v1310 = vpack.c.b16 %v1278, %v1278
      %v1311 = vpack.c.b16 %v1279, %v1279
      %v1312 = vpack.c.b16 %v1280, %v1280
      %v1313 = vpack.c.b16 %v1281, %v1281
      %v1314 = vpack.c.b16 %v1282, %v1282
      %v1315 = vpack.c.b16 %v1283, %v1283
      %v1316 = vpack.c.b16 %v1284, %v1284
      %v1317 = vpack.c.b16 %v1285, %v1285
      %v1318 = vpack.c.b16 %v1286, %v1286
      %vm1351 = vcmask 27648
      %1352 = vst.msk [vmem:[%s248] sm:$0xf] %vm1351, %v1287
      %1353 = vst.msk [vmem:[%s248 + $0x4] sm:$0xf] %vm1351, %v1288
      %1354 = vst.msk [vmem:[%s248 + $0x8] sm:$0xf] %vm1351, %v1289
      %1355 = vst.msk [vmem:[%s248 + $0xc] sm:$0xf] %vm1351, %v1290
      %1356 = vst.msk [vmem:[%s248 + $0x10] sm:$0xf] %vm1351, %v1291
      %1357 = vst.msk [vmem:[%s248 + $0x14] sm:$0xf] %vm1351, %v1292
      %1358 = vst.msk [vmem:[%s248 + $0x18] sm:$0xf] %vm1351, %v1293
      %1359 = vst.msk [vmem:[%s248 + $0x1c] sm:$0xf] %vm1351, %v1294
      %1360 = vst.msk [vmem:[%s248 + $0x20] sm:$0xf] %vm1351, %v1295
      %1361 = vst.msk [vmem:[%s248 + $0x24] sm:$0xf] %vm1351, %v1296
      %1362 = vst.msk [vmem:[%s248 + $0x28] sm:$0xf] %vm1351, %v1297
      %1363 = vst.msk [vmem:[%s248 + $0x2c] sm:$0xf] %vm1351, %v1298
      %1364 = vst.msk [vmem:[%s248 + $0x30] sm:$0xf] %vm1351, %v1299
      %1365 = vst.msk [vmem:[%s248 + $0x34] sm:$0xf] %vm1351, %v1300
      %1366 = vst.msk [vmem:[%s248 + $0x38] sm:$0xf] %vm1351, %v1301
      %1367 = vst.msk [vmem:[%s248 + $0x3c] sm:$0xf] %vm1351, %v1302
      %1368 = vst.msk [vmem:[%s248 + $0x40] sm:$0xf] %vm1351, %v1303
      %1369 = vst.msk [vmem:[%s248 + $0x44] sm:$0xf] %vm1351, %v1304
      %1370 = vst.msk [vmem:[%s248 + $0x48] sm:$0xf] %vm1351, %v1305
      %1371 = vst.msk [vmem:[%s248 + $0x4c] sm:$0xf] %vm1351, %v1306
      %1372 = vst.msk [vmem:[%s248 + $0x50] sm:$0xf] %vm1351, %v1307
      %1373 = vst.msk [vmem:[%s248 + $0x54] sm:$0xf] %vm1351, %v1308
      %1374 = vst.msk [vmem:[%s248 + $0x58] sm:$0xf] %vm1351, %v1309
      %1375 = vst.msk [vmem:[%s248 + $0x5c] sm:$0xf] %vm1351, %v1310
      %1376 = vst.msk [vmem:[%s248 + $0x60] sm:$0xf] %vm1351, %v1311
      %1377 = vst.msk [vmem:[%s248 + $0x64] sm:$0xf] %vm1351, %v1312
      %1378 = vst.msk [vmem:[%s248 + $0x68] sm:$0xf] %vm1351, %v1313
      %1379 = vst.msk [vmem:[%s248 + $0x6c] sm:$0xf] %vm1351, %v1314
      %1380 = vst.msk [vmem:[%s248 + $0x70] sm:$0xf] %vm1351, %v1315
      %1381 = vst.msk [vmem:[%s248 + $0x74] sm:$0xf] %vm1351, %v1316
      %1382 = vst.msk [vmem:[%s248 + $0x78] sm:$0xf] %vm1351, %v1317
      %1383 = vst.msk [vmem:[%s248 + $0x7c] sm:$0xf] %vm1351, %v1318
      %s1384 = smul.u32 32, %s19
      %p1385 = scmp.lt.s32.totalorder %s18, 1
      %s1386 = scalar_select %p1385, %s18, 1
      %p1387 = scmp.lt.s32.totalorder %s1384, 63
      %s1388 = scalar_select %p1387, %s1384, 63
      %s1389 = smul.addr %s1386, 64
      %s1390 = sadd.s32 %s1388, %s1389
      %s1391 = smul.addr %s1390, 4
      %s1392 = scalar_lea.vmem %s3, %s1391
      // Predicated region
      $region33: #{att_decoding_block_layer.14} parent=31 // pred_check
        %p1393 = pneg %p126
      $region34: #{att_decoding_block_layer.14} parent=31 // pred_check_branch
        %1395 = sbr.rel (%p1393) target = $region36
      $region35: #{att_decoding_block_layer.14} parent=31 // pred_region
        %s1396 = smul.u32 32, %s19
      $region36: #{att_decoding_block_layer.14} parent=31 // pred_fallthru
        _
    $region32: #{att_decoding_block_layer.14} parent=5 // pred_fallthru
      _
    %p1397 = scmp.le.s32.totalorder 2, %s9
    // Predicated region
    $region37: #{att_decoding_block_layer.14} parent=5 // pred_check
      %p1398 = pneg %p1397
    $region38: #{att_decoding_block_layer.14} parent=5 // pred_check_branch
      %1400 = sbr.rel (%p1398) target = $region40
    $region39: #{att_decoding_block_layer.14} parent=5 // pred_region
      %s1401 = ssub.s32 %s9, 2
      // Predicated region
      $region41: #{att_decoding_block_layer.14} parent=39 // pred_check
        %p1402 = pneg %p132
      $region42: #{att_decoding_block_layer.14} parent=39 // pred_check_branch
        %1404 = sbr.rel (%p1402) target = $region44
      $region43: #{att_decoding_block_layer.14} parent=39 // pred_region
        %s1405 = smul.u32 32, %s21
        %p1406 = scmp.lt.s32.totalorder %s20, 1
        %s1407 = scalar_select %p1406, %s20, 1
        %p1408 = scmp.lt.s32.totalorder %s1405, 63
        %s1409 = scalar_select %p1408, %s1405, 63
        %s1410 = smul.addr %s1407, 64
        %s1411 = sadd.s32 %s1409, %s1410
        %s1412 = smul.addr %s1411, 4
        %s1413 = scalar_lea.vmem %s3, %s1412
      $region44: #{att_decoding_block_layer.14} parent=39 // pred_fallthru
        _
    $region40: #{att_decoding_block_layer.14} parent=5 // pred_fallthru
      _
  $region6: #{att_decoding_block_layer.14} parent=0 // loop_footer
    %s13 = sadd.s32 1, %s9
  $region7: #{att_decoding_block_layer.14} parent=0 // loop_footer_branch
    %8 = sbr.rel target = $region3
  $region8: #{att_decoding_block_layer.14} parent=0 // loop_exit
    _

// kernel: att_decoding_block_layer.15
$region0: #{att_decoding_block_layer.15}
  #allocation0 [shape = 'u32[]', space=smem, size = 0x4, offset = 0x4, fixed_abs, tag = 'smem constant byte address 0x4 - core index']
  #allocation1 [shape = 'u32[144,128]{1,0:T(1,128)}', space=vmem, size = 0x12000, scoped, tag = 'internal scratch']
  #allocation2 [shape = 'f32[256,4]{1,0:T(8,128)}', space=vmem, size = 0x20000, scoped, tag = 'scratch operand']
  %s0 = inlined_call_operand.vmem [shape: bf16[1024,4], index: 0, kind: input, shape index: {}]
  %s1 = inlined_call_operand.vmem [shape: bf16[4,4], index: 1, kind: input, shape index: {}]
  %s2 = inlined_call_operand.vmem [shape: f32[1,4], index: 2, kind: input, shape index: {}]
  %s3 = inlined_call_operand.vmem [shape: f32[1024,4], index: 3, kind: input, shape index: {}]
  %s4 = inlined_call_operand.vmem [shape: f32[1024,4], index: 4, kind: output, shape index: {}]
  %s5 = sld [smem:[#allocation0]]
  $region57: #{att_decoding_block_layer.15} parent=0
    _
  %s7 = ssub.s32 1, %s5
  %s8 = scalar_select 0, %s7, %s5
  loop: start=0, step=1, limit=6
  $region2: #{att_decoding_block_layer.15} parent=0 // loop_pre_header
    _
  $region3: #{att_decoding_block_layer.15} parent=0 // loop_header
    %s10 = sphi 0, %s14
    %p11 = scmp.ge.s32.totalorder %s10, 6
    %s17 = sphi 0, %s36
    %s18 = sphi 0, %s32
    %s19 = sphi 0, %s28
    %s20 = sphi 0, %s17
    %s21 = sphi 0, %s18
    %s22 = sphi 0, %s19
    %s23 = sphi 0, %s20
    %s24 = sphi 0, %s21
    %s25 = sphi 0, %s22
    %s41 = sphi 0, %s43
    %s44 = sphi 0, %s41
    %s45 = sphi 0, %s44
    %s61 = sphi 0, %s45
    %s69 = sphi 0, %s71
    %s72 = sphi 0, %s69
    %s73 = sphi 0, %s72
    %s89 = sphi 0, %s73
    %s95 = sphi 0, %s97
    %s98 = sphi 0, %s95
    %s99 = sphi 0, %s98
    %s115 = sphi 0, %s99
    %s123 = sphi 0, %s125
    %s126 = sphi 0, %s123
    %s127 = sphi 0, %s126
    %s143 = sphi 0, %s127
    %s151 = sphi 0, %s153
    %s154 = sphi 0, %s151
    %s155 = sphi 0, %s154
    %s171 = sphi 0, %s155
  $region4: #{att_decoding_block_layer.15} parent=0 // loop_header_branch
    %13 = sbr.rel (%p11) target = $region8
  $region5: #{att_decoding_block_layer.15} parent=0 // loop_body
    %s15 = ssub.s32 %s10, 1
    %s16 = ssub.s32 %s10, 2
    %s26 = sadd.s32 1, %s19
    %p27 = scmp.ge.s32.totalorder %s26, 1
    %s28 = scalar_select %p27, 0, %s26
    %s29 = sadd.s32 1, %s18
    %s30 = scalar_select %p27, %s29, %s18
    %p31 = scmp.ge.s32.totalorder %s30, 1
    %s32 = scalar_select %p31, 0, %s30
    %s33 = sadd.s32 1, %s17
    %s34 = scalar_select %p31, %s33, %s17
    %p35 = scmp.ge.s32.totalorder %s34, 4
    %s36 = scalar_select %p35, 0, %s34
    %s37 = ssub.s32 %s17, %s36
    %s38 = ssub.s32 %s19, %s28
    %s39 = sor.u32 %s37, %s38
    %p40 = scmp.eq.s32.totalorder %s39, 0
    %s42 = sadd.s32 %s41, 1
    %s43 = scalar_select %p40, %s41, %s42
    %p46 = pneg %p40
    %p47 = scmp.eq.s32.totalorder %s10, 3
    %p48 = por %p46, %p47
    %p49 = scmp.ne.s32.totalorder %s41, %s44
    %p50 = scmp.eq.s32.totalorder %s10, 0
    %p51 = por %p49, %p50
    %p52 = scmp.ne.s32.totalorder %s41, %s44
    %p53 = scmp.eq.s32.totalorder %s15, 3
    %p54 = por %p52, %p53
    %p55 = scmp.ne.s32.totalorder %s44, %s45
    %p56 = scmp.eq.s32.totalorder %s15, 0
    %p57 = por %p55, %p56
    %p58 = scmp.ne.s32.totalorder %s44, %s45
    %p59 = scmp.eq.s32.totalorder %s16, 3
    %p60 = por %p58, %p59
    %p62 = scmp.ne.s32.totalorder %s45, %s61
    %p63 = scmp.eq.s32.totalorder %s16, 0
    %p64 = por %p62, %p63
    %s65 = ssub.s32 %s19, %s28
    %s66 = ssub.s32 %s18, %s32
    %s67 = sor.u32 %s65, %s66
    %p68 = scmp.eq.s32.totalorder %s67, 0
    %s70 = sadd.s32 %s69, 1
    %s71 = scalar_select %p68, %s69, %s70
    %p74 = pneg %p68
    %p75 = scmp.eq.s32.totalorder %s10, 3
    %p76 = por %p74, %p75
    %p77 = scmp.ne.s32.totalorder %s69, %s72
    %p78 = scmp.eq.s32.totalorder %s10, 0
    %p79 = por %p77, %p78
    %p80 = scmp.ne.s32.totalorder %s69, %s72
    %p81 = scmp.eq.s32.totalorder %s15, 3
    %p82 = por %p80, %p81
    %p83 = scmp.ne.s32.totalorder %s72, %s73
    %p84 = scmp.eq.s32.totalorder %s15, 0
    %p85 = por %p83, %p84
    %p86 = scmp.ne.s32.totalorder %s72, %s73
    %p87 = scmp.eq.s32.totalorder %s16, 3
    %p88 = por %p86, %p87
    %p90 = scmp.ne.s32.totalorder %s73, %s89
    %p91 = scmp.eq.s32.totalorder %s16, 0
    %p92 = por %p90, %p91
    %s93 = ssub.s32 %s18, %s32
    %p94 = scmp.eq.s32.totalorder %s93, 0
    %s96 = sadd.s32 %s95, 1
    %s97 = scalar_select %p94, %s95, %s96
    %p100 = pneg %p94
    %p101 = scmp.eq.s32.totalorder %s10, 3
    %p102 = por %p100, %p101
    %p103 = scmp.ne.s32.totalorder %s95, %s98
    %p104 = scmp.eq.s32.totalorder %s10, 0
    %p105 = por %p103, %p104
    %p106 = scmp.ne.s32.totalorder %s95, %s98
    %p107 = scmp.eq.s32.totalorder %s15, 3
    %p108 = por %p106, %p107
    %p109 = scmp.ne.s32.totalorder %s98, %s99
    %p110 = scmp.eq.s32.totalorder %s15, 0
    %p111 = por %p109, %p110
    %p112 = scmp.ne.s32.totalorder %s98, %s99
    %p113 = scmp.eq.s32.totalorder %s16, 3
    %p114 = por %p112, %p113
    %p116 = scmp.ne.s32.totalorder %s99, %s115
    %p117 = scmp.eq.s32.totalorder %s16, 0
    %p118 = por %p116, %p117
    %s119 = ssub.s32 %s17, %s36
    %s120 = ssub.s32 %s18, %s32
    %s121 = sor.u32 %s119, %s120
    %p122 = scmp.eq.s32.totalorder %s121, 0
    %s124 = sadd.s32 %s123, 1
    %s125 = scalar_select %p122, %s123, %s124
    %p128 = pneg %p122
    %p129 = scmp.eq.s32.totalorder %s10, 3
    %p130 = por %p128, %p129
    %p131 = scmp.ne.s32.totalorder %s123, %s126
    %p132 = scmp.eq.s32.totalorder %s10, 0
    %p133 = por %p131, %p132
    %p134 = scmp.ne.s32.totalorder %s123, %s126
    %p135 = scmp.eq.s32.totalorder %s15, 3
    %p136 = por %p134, %p135
    %p137 = scmp.ne.s32.totalorder %s126, %s127
    %p138 = scmp.eq.s32.totalorder %s15, 0
    %p139 = por %p137, %p138
    %p140 = scmp.ne.s32.totalorder %s126, %s127
    %p141 = scmp.eq.s32.totalorder %s16, 3
    %p142 = por %p140, %p141
    %p144 = scmp.ne.s32.totalorder %s127, %s143
    %p145 = scmp.eq.s32.totalorder %s16, 0
    %p146 = por %p144, %p145
    %s147 = ssub.s32 %s17, %s36
    %s148 = ssub.s32 %s18, %s32
    %s149 = sor.u32 %s147, %s148
    %p150 = scmp.eq.s32.totalorder %s149, 0
    %s152 = sadd.s32 %s151, 1
    %s153 = scalar_select %p150, %s151, %s152
    %p156 = pneg %p150
    %p157 = scmp.eq.s32.totalorder %s10, 3
    %p158 = por %p156, %p157
    %p159 = scmp.ne.s32.totalorder %s151, %s154
    %p160 = scmp.eq.s32.totalorder %s10, 0
    %p161 = por %p159, %p160
    %p162 = scmp.ne.s32.totalorder %s151, %s154
    %p163 = scmp.eq.s32.totalorder %s15, 3
    %p164 = por %p162, %p163
    %p165 = scmp.ne.s32.totalorder %s154, %s155
    %p166 = scmp.eq.s32.totalorder %s15, 0
    %p167 = por %p165, %p166
    %p168 = scmp.ne.s32.totalorder %s154, %s155
    %p169 = scmp.eq.s32.totalorder %s16, 3
    %p170 = por %p168, %p169
    %p172 = scmp.ne.s32.totalorder %s155, %s171
    %p173 = scmp.eq.s32.totalorder %s16, 0
    %p174 = por %p172, %p173
    %p175 = scmp.le.s32.totalorder 1, %s10
    %p176 = scmp.lt.s32.totalorder %s10, 5
    %p177 = pnand %p175, %p176
    %p178 = pneg %p177
    // Predicated region
    $region9: #{att_decoding_block_layer.15} parent=5 // pred_check
      _
    $region10: #{att_decoding_block_layer.15} parent=5 // pred_check_branch
      %180 = sbr.rel (%p177) target = $region12
    $region11: #{att_decoding_block_layer.15} parent=5 // pred_region
      %s181 = ssub.s32 %s10, 1
      // Predicated region
      $region13: #{att_decoding_block_layer.15} parent=11 // pred_check
        %p182 = pneg %p85
      $region14: #{att_decoding_block_layer.15} parent=11 // pred_check_branch
        %184 = sbr.rel (%p182) target = $region16
      $region15: #{att_decoding_block_layer.15} parent=11 // pred_region
        %p185 = scmp.lt.s32.totalorder %s22, 0
        %s186 = scalar_select %p185, %s22, 0
        %p187 = scmp.lt.s32.totalorder %s21, 0
        %s188 = scalar_select %p187, %s21, 0
        %s189 = sadd.s32 %s188, %s186
        %s190 = smul.addr %s189, 2
        %s191 = scalar_lea.vmem %s1, %s190
      $region16: #{att_decoding_block_layer.15} parent=11 // pred_fallthru
        _
      // Predicated region
      $region17: #{att_decoding_block_layer.15} parent=11 // pred_check
        %p192 = pneg %p111
      $region18: #{att_decoding_block_layer.15} parent=11 // pred_check_branch
        %194 = sbr.rel (%p192) target = $region20
      $region19: #{att_decoding_block_layer.15} parent=11 // pred_region
        %p195 = scmp.lt.s32.totalorder %s21, 0
        %s196 = scalar_select %p195, %s21, 0
        %s197 = scalar_lea.vmem %s2, %s196
      $region20: #{att_decoding_block_layer.15} parent=11 // pred_fallthru
        _
    $region12: #{att_decoding_block_layer.15} parent=5 // pred_fallthru
      _
    %p198 = scmp.lt.s32.totalorder %s10, 4
    // Predicated region
    $region21: #{att_decoding_block_layer.15} parent=5 // pred_check
      %p199 = pneg %p198
    $region22: #{att_decoding_block_layer.15} parent=5 // pred_check_branch
      %201 = sbr.rel (%p199) target = $region24
    $region23: #{att_decoding_block_layer.15} parent=5 // pred_region
      // Predicated region
      $region25: #{att_decoding_block_layer.15} parent=23 // pred_check
        %p202 = pneg %p51
      $region26: #{att_decoding_block_layer.15} parent=23 // pred_check_branch
        %204 = sbr.rel (%p202) target = $region28
      $region27: #{att_decoding_block_layer.15} parent=23 // pred_region
        %s205 = smul.u32 32, %s17
        %p206 = scmp.lt.s32.totalorder %s205, 127
        %s207 = scalar_select %p206, %s205, 127
        %p208 = scmp.lt.s32.totalorder %s19, 0
        %s209 = scalar_select %p208, %s19, 0
        %s210 = sadd.s32 %s209, %s207
        %s211 = smul.addr %s210, 4
        %s212 = scalar_lea.vmem %s0, %s211
        %s213 = smul.u32 32, %s17
      $region28: #{att_decoding_block_layer.15} parent=23 // pred_fallthru
        _
      // Predicated region
      $region29: #{att_decoding_block_layer.15} parent=23 // pred_check
        %p214 = pneg %p133
      $region30: #{att_decoding_block_layer.15} parent=23 // pred_check_branch
        %216 = sbr.rel (%p214) target = $region32
      $region31: #{att_decoding_block_layer.15} parent=23 // pred_region
        %s217 = smul.u32 32, %s17
        %p218 = scmp.lt.s32.totalorder %s217, 127
        %s219 = scalar_select %p218, %s217, 127
        %p220 = scmp.lt.s32.totalorder %s18, 0
        %s221 = scalar_select %p220, %s18, 0
        %s222 = sadd.s32 %s221, %s219
        %s223 = smul.addr %s222, 8
        %s224 = scalar_lea.vmem %s3, %s223
        %s225 = smul.u32 32, %s17
      $region32: #{att_decoding_block_layer.15} parent=23 // pred_fallthru
        _
    $region24: #{att_decoding_block_layer.15} parent=5 // pred_fallthru
      _
    %p226 = scmp.le.s32.totalorder 1, %s10
    %p227 = scmp.lt.s32.totalorder %s10, 5
    %p228 = pnand %p226, %p227
    %p229 = pneg %p228
    // Predicated region
    $region33: #{att_decoding_block_layer.15} parent=5 // pred_check
      _
    $region34: #{att_decoding_block_layer.15} parent=5 // pred_check_branch
      %231 = sbr.rel (%p228) target = $region36
    $region35: #{att_decoding_block_layer.15} parent=5 // pred_region
      %s232 = ssub.s32 %s10, 1
      %s233 = smul.u32 32, %s20
      %p234 = scmp.lt.s32.totalorder %s233, 127
      %s235 = scalar_select %p234, %s233, 127
      %p236 = scmp.lt.s32.totalorder %s22, 0
      %s237 = scalar_select %p236, %s22, 0
      %s238 = sadd.s32 %s237, %s235
      %s239 = smul.addr %s238, 4
      %s240 = scalar_lea.vmem %s0, %s239
      %p241 = pneg %p57
      %p242 = pneg %p54
      %p243 = scmp.lt.s32.totalorder %s22, 0
      %s244 = scalar_select %p243, %s22, 0
      %p245 = scmp.lt.s32.totalorder %s21, 0
      %s246 = scalar_select %p245, %s21, 0
      %s247 = sadd.s32 %s246, %s244
      %s248 = smul.addr %s247, 2
      %s249 = scalar_lea.vmem %s1, %s248
      %p250 = pneg %p85
      %p251 = pneg %p82
      %p252 = scmp.lt.s32.totalorder %s21, 0
      %s253 = scalar_select %p252, %s21, 0
      %s254 = scalar_lea.vmem %s2, %s253
      %p255 = pneg %p111
      %p256 = pneg %p108
      %s257 = smul.u32 32, %s20
      %p258 = scmp.lt.s32.totalorder %s257, 127
      %s259 = scalar_select %p258, %s257, 127
      %p260 = scmp.lt.s32.totalorder %s21, 0
      %s261 = scalar_select %p260, %s21, 0
      %s262 = sadd.s32 %s261, %s259
      %s263 = smul.addr %s262, 8
      %s264 = scalar_lea.vmem %s3, %s263
      %p265 = pneg %p139
      %p266 = pneg %p136
      %p267 = pneg %p167
      %p268 = pneg %p164
      %s269 = smul.u32 32, %s20
      %p270 = scmp.lt.s32.totalorder %s269, 127
      %s271 = scalar_select %p270, %s269, 127
      %p272 = scmp.lt.s32.totalorder %s21, 0
      %s273 = scalar_select %p272, %s21, 0
      %s274 = sadd.s32 %s273, %s271
      %s275 = smul.addr %s274, 8
      %s276 = scalar_lea.vmem %s4, %s275
      %s277 = smul.u32 32, %s20
      %p278 = scmp.lt.s32.totalorder %s277, 127
      %s279 = scalar_select %p278, %s277, 127
      %p280 = scmp.lt.s32.totalorder %s22, 0
      %s281 = scalar_select %p280, %s22, 0
      %s282 = sadd.s32 %s281, %s279
      %s283 = smul.addr %s282, 4
      %s284 = scalar_lea.vmem %s0, %s283
      %s285 = smul.u32 32, %s20
      %p286 = scmp.lt.s32.totalorder %s22, 0
      %s287 = scalar_select %p286, %s22, 0
      %p288 = scmp.lt.s32.totalorder %s21, 0
      %s289 = scalar_select %p288, %s21, 0
      %s290 = sadd.s32 %s289, %s287
      %s291 = smul.addr %s290, 2
      %s292 = scalar_lea.vmem %s1, %s291
      %p293 = scmp.lt.s32.totalorder %s21, 0
      %s294 = scalar_select %p293, %s21, 0
      %s295 = scalar_lea.vmem %s2, %s294
      %s296 = smul.u32 32, %s20
      %p297 = scmp.lt.s32.totalorder %s296, 127
      %s298 = scalar_select %p297, %s296, 127
      %p299 = scmp.lt.s32.totalorder %s21, 0
      %s300 = scalar_select %p299, %s21, 0
      %s301 = sadd.s32 %s300, %s298
      %s302 = smul.addr %s301, 8
      %s303 = scalar_lea.vmem %s3, %s302
      %s304 = smul.u32 32, %s20
      %s305 = smul.u32 32, %s20
      %p306 = scmp.lt.s32.totalorder %s305, 127
      %s307 = scalar_select %p306, %s305, 127
      %p308 = scmp.lt.s32.totalorder %s21, 0
      %s309 = scalar_select %p308, %s21, 0
      %s310 = sadd.s32 %s309, %s307
      %s311 = smul.addr %s310, 8
      %s312 = scalar_lea.vmem %s4, %s311
      %s313 = smul.u32 32, %s20
      %p315 = scmp.eq.s32.totalorder %s22, 0
      // Predicated region
      $region37: #{att_decoding_block_layer.15} parent=35 // pred_check
        %p316 = pneg %p315
      $region38: #{att_decoding_block_layer.15} parent=35 // pred_check_branch
        %318 = sbr.rel (%p316) target = $region40
      $region39: #{att_decoding_block_layer.15} parent=35 // pred_region
        %vm319 = vcmask 31744
        %320 = vst.msk [vmem:[#allocation2] sm:$0xff] %vm319, 0.0
        %321 = vst.msk [vmem:[#allocation2 + $0x8] sm:$0xff] %vm319, 0.0
        %322 = vst.msk [vmem:[#allocation2 + $0x10] sm:$0xff] %vm319, 0.0
        %323 = vst.msk [vmem:[#allocation2 + $0x18] sm:$0xff] %vm319, 0.0
        %324 = vst.msk [vmem:[#allocation2 + $0x20] sm:$0xff] %vm319, 0.0
        %325 = vst.msk [vmem:[#allocation2 + $0x28] sm:$0xff] %vm319, 0.0
        %326 = vst.msk [vmem:[#allocation2 + $0x30] sm:$0xff] %vm319, 0.0
        %327 = vst.msk [vmem:[#allocation2 + $0x38] sm:$0xff] %vm319, 0.0
        %328 = vst.msk [vmem:[#allocation2 + $0x40] sm:$0xff] %vm319, 0.0
        %329 = vst.msk [vmem:[#allocation2 + $0x48] sm:$0xff] %vm319, 0.0
        %330 = vst.msk [vmem:[#allocation2 + $0x50] sm:$0xff] %vm319, 0.0
        %331 = vst.msk [vmem:[#allocation2 + $0x58] sm:$0xff] %vm319, 0.0
        %332 = vst.msk [vmem:[#allocation2 + $0x60] sm:$0xff] %vm319, 0.0
        %333 = vst.msk [vmem:[#allocation2 + $0x68] sm:$0xff] %vm319, 0.0
        %334 = vst.msk [vmem:[#allocation2 + $0x70] sm:$0xff] %vm319, 0.0
        %335 = vst.msk [vmem:[#allocation2 + $0x78] sm:$0xff] %vm319, 0.0
        %336 = vst.msk [vmem:[#allocation2 + $0x80] sm:$0xff] %vm319, 0.0
        %337 = vst.msk [vmem:[#allocation2 + $0x88] sm:$0xff] %vm319, 0.0
        %338 = vst.msk [vmem:[#allocation2 + $0x90] sm:$0xff] %vm319, 0.0
        %339 = vst.msk [vmem:[#allocation2 + $0x98] sm:$0xff] %vm319, 0.0
        %340 = vst.msk [vmem:[#allocation2 + $0xa0] sm:$0xff] %vm319, 0.0
        %341 = vst.msk [vmem:[#allocation2 + $0xa8] sm:$0xff] %vm319, 0.0
        %342 = vst.msk [vmem:[#allocation2 + $0xb0] sm:$0xff] %vm319, 0.0
        %343 = vst.msk [vmem:[#allocation2 + $0xb8] sm:$0xff] %vm319, 0.0
        %344 = vst.msk [vmem:[#allocation2 + $0xc0] sm:$0xff] %vm319, 0.0
        %345 = vst.msk [vmem:[#allocation2 + $0xc8] sm:$0xff] %vm319, 0.0
        %346 = vst.msk [vmem:[#allocation2 + $0xd0] sm:$0xff] %vm319, 0.0
        %347 = vst.msk [vmem:[#allocation2 + $0xd8] sm:$0xff] %vm319, 0.0
        %348 = vst.msk [vmem:[#allocation2 + $0xe0] sm:$0xff] %vm319, 0.0
        %349 = vst.msk [vmem:[#allocation2 + $0xe8] sm:$0xff] %vm319, 0.0
        %350 = vst.msk [vmem:[#allocation2 + $0xf0] sm:$0xff] %vm319, 0.0
        %351 = vst.msk [vmem:[#allocation2 + $0xf8] sm:$0xff] %vm319, 0.0
      $region40: #{att_decoding_block_layer.15} parent=35 // pred_fallthru
        _
      %v352 = vld [vmem:[#allocation2] sm:$0xff]
      %v353 = vld [vmem:[#allocation2 + $0x8] sm:$0xff]
      %v354 = vld [vmem:[#allocation2 + $0x10] sm:$0xff]
      %v355 = vld [vmem:[#allocation2 + $0x18] sm:$0xff]
      %v356 = vld [vmem:[#allocation2 + $0x20] sm:$0xff]
      %v357 = vld [vmem:[#allocation2 + $0x28] sm:$0xff]
      %v358 = vld [vmem:[#allocation2 + $0x30] sm:$0xff]
      %v359 = vld [vmem:[#allocation2 + $0x38] sm:$0xff]
      %v360 = vld [vmem:[#allocation2 + $0x40] sm:$0xff]
      %v361 = vld [vmem:[#allocation2 + $0x48] sm:$0xff]
      %v362 = vld [vmem:[#allocation2 + $0x50] sm:$0xff]
      %v363 = vld [vmem:[#allocation2 + $0x58] sm:$0xff]
      %v364 = vld [vmem:[#allocation2 + $0x60] sm:$0xff]
      %v365 = vld [vmem:[#allocation2 + $0x68] sm:$0xff]
      %v366 = vld [vmem:[#allocation2 + $0x70] sm:$0xff]
      %v367 = vld [vmem:[#allocation2 + $0x78] sm:$0xff]
      %v368 = vld [vmem:[#allocation2 + $0x80] sm:$0xff]
      %v369 = vld [vmem:[#allocation2 + $0x88] sm:$0xff]
      %v370 = vld [vmem:[#allocation2 + $0x90] sm:$0xff]
      %v371 = vld [vmem:[#allocation2 + $0x98] sm:$0xff]
      %v372 = vld [vmem:[#allocation2 + $0xa0] sm:$0xff]
      %v373 = vld [vmem:[#allocation2 + $0xa8] sm:$0xff]
      %v374 = vld [vmem:[#allocation2 + $0xb0] sm:$0xff]
      %v375 = vld [vmem:[#allocation2 + $0xb8] sm:$0xff]
      %v376 = vld [vmem:[#allocation2 + $0xc0] sm:$0xff]
      %v377 = vld [vmem:[#allocation2 + $0xc8] sm:$0xff]
      %v378 = vld [vmem:[#allocation2 + $0xd0] sm:$0xff]
      %v379 = vld [vmem:[#allocation2 + $0xd8] sm:$0xff]
      %v380 = vld [vmem:[#allocation2 + $0xe0] sm:$0xff]
      %v381 = vld [vmem:[#allocation2 + $0xe8] sm:$0xff]
      %v382 = vld [vmem:[#allocation2 + $0xf0] sm:$0xff]
      %v383 = vld [vmem:[#allocation2 + $0xf8] sm:$0xff]
      %v384 = vld [vmem:[%s284] sm:$0xf]
      %v385 = vld [vmem:[%s284 + $0x4] sm:$0xf]
      %v386 = vld [vmem:[%s284 + $0x8] sm:$0xf]
      %v387 = vld [vmem:[%s284 + $0xc] sm:$0xf]
      %v388 = vld [vmem:[%s284 + $0x10] sm:$0xf]
      %v389 = vld [vmem:[%s284 + $0x14] sm:$0xf]
      %v390 = vld [vmem:[%s284 + $0x18] sm:$0xf]
      %v391 = vld [vmem:[%s284 + $0x1c] sm:$0xf]
      %v392 = vld [vmem:[%s284 + $0x20] sm:$0xf]
      %v393 = vld [vmem:[%s284 + $0x24] sm:$0xf]
      %v394 = vld [vmem:[%s284 + $0x28] sm:$0xf]
      %v395 = vld [vmem:[%s284 + $0x2c] sm:$0xf]
      %v396 = vld [vmem:[%s284 + $0x30] sm:$0xf]
      %v397 = vld [vmem:[%s284 + $0x34] sm:$0xf]
      %v398 = vld [vmem:[%s284 + $0x38] sm:$0xf]
      %v399 = vld [vmem:[%s284 + $0x3c] sm:$0xf]
      %v400 = vld [vmem:[%s284 + $0x40] sm:$0xf]
      %v401 = vld [vmem:[%s284 + $0x44] sm:$0xf]
      %v402 = vld [vmem:[%s284 + $0x48] sm:$0xf]
      %v403 = vld [vmem:[%s284 + $0x4c] sm:$0xf]
      %v404 = vld [vmem:[%s284 + $0x50] sm:$0xf]
      %v405 = vld [vmem:[%s284 + $0x54] sm:$0xf]
      %v406 = vld [vmem:[%s284 + $0x58] sm:$0xf]
      %v407 = vld [vmem:[%s284 + $0x5c] sm:$0xf]
      %v408 = vld [vmem:[%s284 + $0x60] sm:$0xf]
      %v409 = vld [vmem:[%s284 + $0x64] sm:$0xf]
      %v410 = vld [vmem:[%s284 + $0x68] sm:$0xf]
      %v411 = vld [vmem:[%s284 + $0x6c] sm:$0xf]
      %v412 = vld [vmem:[%s284 + $0x70] sm:$0xf]
      %v413 = vld [vmem:[%s284 + $0x74] sm:$0xf]
      %v414 = vld [vmem:[%s284 + $0x78] sm:$0xf]
      %v415 = vld [vmem:[%s284 + $0x7c] sm:$0xf]
      %v416 = vld [vmem:[%s292] sm:$0x3]
      %v449 = vunpack.c.l.b16 %v384
      %v450 = vunpack.c.l.b16 %v385
      %v451 = vunpack.c.l.b16 %v386
      %v452 = vunpack.c.l.b16 %v387
      %v453 = vunpack.c.l.b16 %v388
      %v454 = vunpack.c.l.b16 %v389
      %v455 = vunpack.c.l.b16 %v390
      %v456 = vunpack.c.l.b16 %v391
      %v457 = vunpack.c.l.b16 %v392
      %v458 = vunpack.c.l.b16 %v393
      %v459 = vunpack.c.l.b16 %v394
      %v460 = vunpack.c.l.b16 %v395
      %v461 = vunpack.c.l.b16 %v396
      %v462 = vunpack.c.l.b16 %v397
      %v463 = vunpack.c.l.b16 %v398
      %v464 = vunpack.c.l.b16 %v399
      %v465 = vunpack.c.l.b16 %v400
      %v466 = vunpack.c.l.b16 %v401
      %v467 = vunpack.c.l.b16 %v402
      %v468 = vunpack.c.l.b16 %v403
      %v469 = vunpack.c.l.b16 %v404
      %v470 = vunpack.c.l.b16 %v405
      %v471 = vunpack.c.l.b16 %v406
      %v472 = vunpack.c.l.b16 %v407
      %v473 = vunpack.c.l.b16 %v408
      %v474 = vunpack.c.l.b16 %v409
      %v475 = vunpack.c.l.b16 %v410
      %v476 = vunpack.c.l.b16 %v411
      %v477 = vunpack.c.l.b16 %v412
      %v478 = vunpack.c.l.b16 %v413
      %v479 = vunpack.c.l.b16 %v414
      %v480 = vunpack.c.l.b16 %v415
      %v481 = vpack.c.b16 %v450, %v449
      %v482 = vpack.c.b16 %v452, %v451
      %v483 = vpack.c.b16 %v454, %v453
      %v484 = vpack.c.b16 %v456, %v455
      %v485 = vpack.c.b16 %v458, %v457
      %v486 = vpack.c.b16 %v460, %v459
      %v487 = vpack.c.b16 %v462, %v461
      %v488 = vpack.c.b16 %v464, %v463
      %v489 = vpack.c.b16 %v466, %v465
      %v490 = vpack.c.b16 %v468, %v467
      %v491 = vpack.c.b16 %v470, %v469
      %v492 = vpack.c.b16 %v472, %v471
      %v493 = vpack.c.b16 %v474, %v473
      %v494 = vpack.c.b16 %v476, %v475
      %v495 = vpack.c.b16 %v478, %v477
      %v496 = vpack.c.b16 %v480, %v479
      %vm497 = vcmask 31744
      %v499 = vsel %vm497, %v481, 0
      %v502 = vsel %vm497, %v482, 0
      %v505 = vsel %vm497, %v483, 0
      %v508 = vsel %vm497, %v484, 0
      %v511 = vsel %vm497, %v485, 0
      %v514 = vsel %vm497, %v486, 0
      %v517 = vsel %vm497, %v487, 0
      %v520 = vsel %vm497, %v488, 0
      %v523 = vsel %vm497, %v489, 0
      %v526 = vsel %vm497, %v490, 0
      %v529 = vsel %vm497, %v491, 0
      %v532 = vsel %vm497, %v492, 0
      %v535 = vsel %vm497, %v493, 0
      %v538 = vsel %vm497, %v494, 0
      %v541 = vsel %vm497, %v495, 0
      %v544 = vsel %vm497, %v496, 0
      %vm546 = vcmask 1041408
      %v548 = vsel %vm546, %v416, 0
      %550 = vmatprep.subr.bf16.mxu0 0
      %551 = vmatpush1.bf16.msra.mxu0 %v548
      %552 = vmatprep.subr.bf16.mxu0 0
      %553 = vmatpush1.bf16.msra.mxu0 0
      %554 = vmatprep.subr.bf16.mxu0 0
      %555 = vmatpush1.bf16.msra.mxu0 0
      %556 = vmatprep.subr.bf16.mxu0 0
      %557 = vmatpush1.bf16.msra.mxu0 0
      %558 = vmatprep.subr.bf16.mxu0 0
      %559 = vmatpush1.bf16.msra.mxu0 0
      %560 = vmatprep.subr.bf16.mxu0 0
      %561 = vmatpush1.bf16.msra.mxu0 0
      %562 = vmatprep.subr.bf16.mxu0 0
      %563 = vmatpush1.bf16.msra.mxu0 0
      %564 = vmatprep.subr.bf16.mxu0 0
      %565 = vmatpush1.bf16.msra.mxu0 0
      %566 = vmatprep.subr.bf16.mxu0 0
      %567 = vmatpush1.bf16.msra.mxu0 0
      %568 = vmatprep.subr.bf16.mxu0 0
      %569 = vmatpush1.bf16.msra.mxu0 0
      %570 = vmatprep.subr.bf16.mxu0 0
      %571 = vmatpush1.bf16.msra.mxu0 0
      %572 = vmatprep.subr.bf16.mxu0 0
      %573 = vmatpush1.bf16.msra.mxu0 0
      %574 = vmatprep.subr.bf16.mxu0 0
      %575 = vmatpush1.bf16.msra.mxu0 0
      %576 = vmatprep.subr.bf16.mxu0 0
      %577 = vmatpush1.bf16.msra.mxu0 0
      %578 = vmatprep.subr.bf16.mxu0 0
      %579 = vmatpush1.bf16.msra.mxu0 0
      %580 = vmatprep.subr.bf16.mxu0 0
      %581 = vmatpush1.bf16.msra.mxu0 0
      %582 = vmatprep.mubr.bf16.mxu0 0
      %583 = vmatmul.mubr.bf16.gmra.mrb[0].mxu0 %v499
      %v584 = vpop.f32.mrb[0].mxu0
      %v585 = vadd.f32 0.0, %v584
      %v586 = vpop.f32.mrb[0].mxu0
      %v587 = vpop.f32.mrb[0].mxu0
      %v588 = vadd.f32 0.0, %v587
      %v589 = vpop.f32.mrb[0].mxu0
      %590 = vmatprep.mubr.bf16.mxu0 0
      %591 = vmatmul.mubr.bf16.gmra.mrb[0].mxu0 %v502
      %v592 = vpop.f32.mrb[0].mxu0
      %v593 = vadd.f32 0.0, %v592
      %v594 = vpop.f32.mrb[0].mxu0
      %v595 = vpop.f32.mrb[0].mxu0
      %v596 = vadd.f32 0.0, %v595
      %v597 = vpop.f32.mrb[0].mxu0
      %598 = vmatprep.mubr.bf16.mxu0 0
      %599 = vmatmul.mubr.bf16.gmra.mrb[0].mxu0 %v505
      %v600 = vpop.f32.mrb[0].mxu0
      %v601 = vadd.f32 0.0, %v600
      %v602 = vpop.f32.mrb[0].mxu0
      %v603 = vpop.f32.mrb[0].mxu0
      %v604 = vadd.f32 0.0, %v603
      %v605 = vpop.f32.mrb[0].mxu0
      %606 = vmatprep.mubr.bf16.mxu0 0
      %607 = vmatmul.mubr.bf16.gmra.mrb[0].mxu0 %v508
      %v608 = vpop.f32.mrb[0].mxu0
      %v609 = vadd.f32 0.0, %v608
      %v610 = vpop.f32.mrb[0].mxu0
      %v611 = vpop.f32.mrb[0].mxu0
      %v612 = vadd.f32 0.0, %v611
      %v613 = vpop.f32.mrb[0].mxu0
      %614 = vmatprep.mubr.bf16.mxu0 0
      %615 = vmatmul.mubr.bf16.gmra.mrb[0].mxu0 %v511
      %v616 = vpop.f32.mrb[0].mxu0
      %v617 = vadd.f32 0.0, %v616
      %v618 = vpop.f32.mrb[0].mxu0
      %v619 = vpop.f32.mrb[0].mxu0
      %v620 = vadd.f32 0.0, %v619
      %v621 = vpop.f32.mrb[0].mxu0
      %622 = vmatprep.mubr.bf16.mxu0 0
      %623 = vmatmul.mubr.bf16.gmra.mrb[0].mxu0 %v514
      %v624 = vpop.f32.mrb[0].mxu0
      %v625 = vadd.f32 0.0, %v624
      %v626 = vpop.f32.mrb[0].mxu0
      %v627 = vpop.f32.mrb[0].mxu0
      %v628 = vadd.f32 0.0, %v627
      %v629 = vpop.f32.mrb[0].mxu0
      %630 = vmatprep.mubr.bf16.mxu0 0
      %631 = vmatmul.mubr.bf16.gmra.mrb[0].mxu0 %v517
      %v632 = vpop.f32.mrb[0].mxu0
      %v633 = vadd.f32 0.0, %v632
      %v634 = vpop.f32.mrb[0].mxu0
      %v635 = vpop.f32.mrb[0].mxu0
      %v636 = vadd.f32 0.0, %v635
      %v637 = vpop.f32.mrb[0].mxu0
      %638 = vmatprep.mubr.bf16.mxu0 0
      %639 = vmatmul.mubr.bf16.gmra.mrb[0].mxu0 %v520
      %v640 = vpop.f32.mrb[0].mxu0
      %v641 = vadd.f32 0.0, %v640
      %v642 = vpop.f32.mrb[0].mxu0
      %v643 = vpop.f32.mrb[0].mxu0
      %v644 = vadd.f32 0.0, %v643
      %v645 = vpop.f32.mrb[0].mxu0
      %646 = vmatprep.mubr.bf16.mxu0 0
      %647 = vmatmul.mubr.bf16.gmra.mrb[0].mxu0 %v523
      %v648 = vpop.f32.mrb[0].mxu0
      %v649 = vadd.f32 0.0, %v648
      %v650 = vpop.f32.mrb[0].mxu0
      %v651 = vpop.f32.mrb[0].mxu0
      %v652 = vadd.f32 0.0, %v651
      %v653 = vpop.f32.mrb[0].mxu0
      %654 = vmatprep.mubr.bf16.mxu0 0
      %655 = vmatmul.mubr.bf16.gmra.mrb[0].mxu0 %v526
      %v656 = vpop.f32.mrb[0].mxu0
      %v657 = vadd.f32 0.0, %v656
      %v658 = vpop.f32.mrb[0].mxu0
      %v659 = vpop.f32.mrb[0].mxu0
      %v660 = vadd.f32 0.0, %v659
      %v661 = vpop.f32.mrb[0].mxu0
      %662 = vmatprep.mubr.bf16.mxu0 0
      %663 = vmatmul.mubr.bf16.gmra.mrb[0].mxu0 %v529
      %v664 = vpop.f32.mrb[0].mxu0
      %v665 = vadd.f32 0.0, %v664
      %v666 = vpop.f32.mrb[0].mxu0
      %v667 = vpop.f32.mrb[0].mxu0
      %v668 = vadd.f32 0.0, %v667
      %v669 = vpop.f32.mrb[0].mxu0
      %670 = vmatprep.mubr.bf16.mxu0 0
      %671 = vmatmul.mubr.bf16.gmra.mrb[0].mxu0 %v532
      %v672 = vpop.f32.mrb[0].mxu0
      %v673 = vadd.f32 0.0, %v672
      %v674 = vpop.f32.mrb[0].mxu0
      %v675 = vpop.f32.mrb[0].mxu0
      %v676 = vadd.f32 0.0, %v675
      %v677 = vpop.f32.mrb[0].mxu0
      %678 = vmatprep.mubr.bf16.mxu0 0
      %679 = vmatmul.mubr.bf16.gmra.mrb[0].mxu0 %v535
      %v680 = vpop.f32.mrb[0].mxu0
      %v681 = vadd.f32 0.0, %v680
      %v682 = vpop.f32.mrb[0].mxu0
      %v683 = vpop.f32.mrb[0].mxu0
      %v684 = vadd.f32 0.0, %v683
      %v685 = vpop.f32.mrb[0].mxu0
      %686 = vmatprep.mubr.bf16.mxu0 0
      %687 = vmatmul.mubr.bf16.gmra.mrb[0].mxu0 %v538
      %v688 = vpop.f32.mrb[0].mxu0
      %v689 = vadd.f32 0.0, %v688
      %v690 = vpop.f32.mrb[0].mxu0
      %v691 = vpop.f32.mrb[0].mxu0
      %v692 = vadd.f32 0.0, %v691
      %v693 = vpop.f32.mrb[0].mxu0
      %694 = vmatprep.mubr.bf16.mxu0 0
      %695 = vmatmul.mubr.bf16.gmra.mrb[0].mxu0 %v541
      %v696 = vpop.f32.mrb[0].mxu0
      %v697 = vadd.f32 0.0, %v696
      %v698 = vpop.f32.mrb[0].mxu0
      %v699 = vpop.f32.mrb[0].mxu0
      %v700 = vadd.f32 0.0, %v699
      %v701 = vpop.f32.mrb[0].mxu0
      %702 = vmatprep.mubr.bf16.mxu0 0
      %703 = vmatmul.mubr.bf16.gmra.mrb[0].mxu0 %v544
      %v704 = vpop.f32.mrb[0].mxu0
      %v705 = vadd.f32 0.0, %v704
      %v706 = vpop.f32.mrb[0].mxu0
      %v707 = vpop.f32.mrb[0].mxu0
      %v708 = vadd.f32 0.0, %v707
      %v709 = vpop.f32.mrb[0].mxu0
      %710 = vdwg.mxu0
      %v711 = vadd.f32 %v352, %v585
      %v712 = vadd.f32 %v353, %v588
      %v713 = vadd.f32 %v354, %v593
      %v714 = vadd.f32 %v355, %v596
      %v715 = vadd.f32 %v356, %v601
      %v716 = vadd.f32 %v357, %v604
      %v717 = vadd.f32 %v358, %v609
      %v718 = vadd.f32 %v359, %v612
      %v719 = vadd.f32 %v360, %v617
      %v720 = vadd.f32 %v361, %v620
      %v721 = vadd.f32 %v362, %v625
      %v722 = vadd.f32 %v363, %v628
      %v723 = vadd.f32 %v364, %v633
      %v724 = vadd.f32 %v365, %v636
      %v725 = vadd.f32 %v366, %v641
      %v726 = vadd.f32 %v367, %v644
      %v727 = vadd.f32 %v368, %v649
      %v728 = vadd.f32 %v369, %v652
      %v729 = vadd.f32 %v370, %v657
      %v730 = vadd.f32 %v371, %v660
      %v731 = vadd.f32 %v372, %v665
      %v732 = vadd.f32 %v373, %v668
      %v733 = vadd.f32 %v374, %v673
      %v734 = vadd.f32 %v375, %v676
      %v735 = vadd.f32 %v376, %v681
      %v736 = vadd.f32 %v377, %v684
      %v737 = vadd.f32 %v378, %v689
      %v738 = vadd.f32 %v379, %v692
      %v739 = vadd.f32 %v380, %v697
      %v740 = vadd.f32 %v381, %v700
      %v741 = vadd.f32 %v382, %v705
      %v742 = vadd.f32 %v383, %v708
      %743 = vst.msk [vmem:[#allocation2] sm:$0xff] %vm497, %v711
      %744 = vst.msk [vmem:[#allocation2 + $0x8] sm:$0xff] %vm497, %v712
      %745 = vst.msk [vmem:[#allocation2 + $0x10] sm:$0xff] %vm497, %v713
      %746 = vst.msk [vmem:[#allocation2 + $0x18] sm:$0xff] %vm497, %v714
      %747 = vst.msk [vmem:[#allocation2 + $0x20] sm:$0xff] %vm497, %v715
      %748 = vst.msk [vmem:[#allocation2 + $0x28] sm:$0xff] %vm497, %v716
      %749 = vst.msk [vmem:[#allocation2 + $0x30] sm:$0xff] %vm497, %v717
      %750 = vst.msk [vmem:[#allocation2 + $0x38] sm:$0xff] %vm497, %v718
      %751 = vst.msk [vmem:[#allocation2 + $0x40] sm:$0xff] %vm497, %v719
      %752 = vst.msk [vmem:[#allocation2 + $0x48] sm:$0xff] %vm497, %v720
      %753 = vst.msk [vmem:[#allocation2 + $0x50] sm:$0xff] %vm497, %v721
      %754 = vst.msk [vmem:[#allocation2 + $0x58] sm:$0xff] %vm497, %v722
      %755 = vst.msk [vmem:[#allocation2 + $0x60] sm:$0xff] %vm497, %v723
      %756 = vst.msk [vmem:[#allocation2 + $0x68] sm:$0xff] %vm497, %v724
      %757 = vst.msk [vmem:[#allocation2 + $0x70] sm:$0xff] %vm497, %v725
      %758 = vst.msk [vmem:[#allocation2 + $0x78] sm:$0xff] %vm497, %v726
      %759 = vst.msk [vmem:[#allocation2 + $0x80] sm:$0xff] %vm497, %v727
      %760 = vst.msk [vmem:[#allocation2 + $0x88] sm:$0xff] %vm497, %v728
      %761 = vst.msk [vmem:[#allocation2 + $0x90] sm:$0xff] %vm497, %v729
      %762 = vst.msk [vmem:[#allocation2 + $0x98] sm:$0xff] %vm497, %v730
      %763 = vst.msk [vmem:[#allocation2 + $0xa0] sm:$0xff] %vm497, %v731
      %764 = vst.msk [vmem:[#allocation2 + $0xa8] sm:$0xff] %vm497, %v732
      %765 = vst.msk [vmem:[#allocation2 + $0xb0] sm:$0xff] %vm497, %v733
      %766 = vst.msk [vmem:[#allocation2 + $0xb8] sm:$0xff] %vm497, %v734
      %767 = vst.msk [vmem:[#allocation2 + $0xc0] sm:$0xff] %vm497, %v735
      %768 = vst.msk [vmem:[#allocation2 + $0xc8] sm:$0xff] %vm497, %v736
      %769 = vst.msk [vmem:[#allocation2 + $0xd0] sm:$0xff] %vm497, %v737
      %770 = vst.msk [vmem:[#allocation2 + $0xd8] sm:$0xff] %vm497, %v738
      %771 = vst.msk [vmem:[#allocation2 + $0xe0] sm:$0xff] %vm497, %v739
      %772 = vst.msk [vmem:[#allocation2 + $0xe8] sm:$0xff] %vm497, %v740
      %773 = vst.msk [vmem:[#allocation2 + $0xf0] sm:$0xff] %vm497, %v741
      %774 = vst.msk [vmem:[#allocation2 + $0xf8] sm:$0xff] %vm497, %v742
      // Predicated region
      $region41: #{att_decoding_block_layer.15} parent=35 // pred_check
        %p775 = pneg %p315
      $region42: #{att_decoding_block_layer.15} parent=35 // pred_check_branch
        %777 = sbr.rel (%p775) target = $region44
      $region43: #{att_decoding_block_layer.15} parent=35 // pred_region
        %v778 = vld [vmem:[#allocation2] sm:$0xff]
        %v779 = vld [vmem:[#allocation2 + $0x8] sm:$0xff]
        %v780 = vld [vmem:[#allocation2 + $0x10] sm:$0xff]
        %v781 = vld [vmem:[#allocation2 + $0x18] sm:$0xff]
        %v782 = vld [vmem:[#allocation2 + $0x20] sm:$0xff]
        %v783 = vld [vmem:[#allocation2 + $0x28] sm:$0xff]
        %v784 = vld [vmem:[#allocation2 + $0x30] sm:$0xff]
        %v785 = vld [vmem:[#allocation2 + $0x38] sm:$0xff]
        %v786 = vld [vmem:[#allocation2 + $0x40] sm:$0xff]
        %v787 = vld [vmem:[#allocation2 + $0x48] sm:$0xff]
        %v788 = vld [vmem:[#allocation2 + $0x50] sm:$0xff]
        %v789 = vld [vmem:[#allocation2 + $0x58] sm:$0xff]
        %v790 = vld [vmem:[#allocation2 + $0x60] sm:$0xff]
        %v791 = vld [vmem:[#allocation2 + $0x68] sm:$0xff]
        %v792 = vld [vmem:[#allocation2 + $0x70] sm:$0xff]
        %v793 = vld [vmem:[#allocation2 + $0x78] sm:$0xff]
        %v794 = vld [vmem:[#allocation2 + $0x80] sm:$0xff]
        %v795 = vld [vmem:[#allocation2 + $0x88] sm:$0xff]
        %v796 = vld [vmem:[#allocation2 + $0x90] sm:$0xff]
        %v797 = vld [vmem:[#allocation2 + $0x98] sm:$0xff]
        %v798 = vld [vmem:[#allocation2 + $0xa0] sm:$0xff]
        %v799 = vld [vmem:[#allocation2 + $0xa8] sm:$0xff]
        %v800 = vld [vmem:[#allocation2 + $0xb0] sm:$0xff]
        %v801 = vld [vmem:[#allocation2 + $0xb8] sm:$0xff]
        %v802 = vld [vmem:[#allocation2 + $0xc0] sm:$0xff]
        %v803 = vld [vmem:[#allocation2 + $0xc8] sm:$0xff]
        %v804 = vld [vmem:[#allocation2 + $0xd0] sm:$0xff]
        %v805 = vld [vmem:[#allocation2 + $0xd8] sm:$0xff]
        %v806 = vld [vmem:[#allocation2 + $0xe0] sm:$0xff]
        %v807 = vld [vmem:[#allocation2 + $0xe8] sm:$0xff]
        %v808 = vld [vmem:[#allocation2 + $0xf0] sm:$0xff]
        %v809 = vld [vmem:[#allocation2 + $0xf8] sm:$0xff]
        %v810 = vld [vmem:[%s295] sm:$0x1]
        %v812 = vlaneseq
        %v813 = vshrl.u32 %v812, 7
        %v814 = vsub.s32 0, %v813
        %v815 = vrot.slane %v810, %v814
        %v817 = vadd.f32 %v778, %v815
        %v818 = vadd.f32 %v779, %v815
        %v819 = vadd.f32 %v780, %v815
        %v820 = vadd.f32 %v781, %v815
        %v821 = vadd.f32 %v782, %v815
        %v822 = vadd.f32 %v783, %v815
        %v823 = vadd.f32 %v784, %v815
        %v824 = vadd.f32 %v785, %v815
        %v825 = vadd.f32 %v786, %v815
        %v826 = vadd.f32 %v787, %v815
        %v827 = vadd.f32 %v788, %v815
        %v828 = vadd.f32 %v789, %v815
        %v829 = vadd.f32 %v790, %v815
        %v830 = vadd.f32 %v791, %v815
        %v831 = vadd.f32 %v792, %v815
        %v832 = vadd.f32 %v793, %v815
        %v833 = vadd.f32 %v794, %v815
        %v834 = vadd.f32 %v795, %v815
        %v835 = vadd.f32 %v796, %v815
        %v836 = vadd.f32 %v797, %v815
        %v837 = vadd.f32 %v798, %v815
        %v838 = vadd.f32 %v799, %v815
        %v839 = vadd.f32 %v800, %v815
        %v840 = vadd.f32 %v801, %v815
        %v841 = vadd.f32 %v802, %v815
        %v842 = vadd.f32 %v803, %v815
        %v843 = vadd.f32 %v804, %v815
        %v844 = vadd.f32 %v805, %v815
        %v845 = vadd.f32 %v806, %v815
        %v846 = vadd.f32 %v807, %v815
        %v847 = vadd.f32 %v808, %v815
        %v848 = vadd.f32 %v809, %v815
        %v849 = vld [vmem:[%s303] sm:$0xff]
        %v850 = vld [vmem:[%s303 + $0x8] sm:$0xff]
        %v851 = vld [vmem:[%s303 + $0x10] sm:$0xff]
        %v852 = vld [vmem:[%s303 + $0x18] sm:$0xff]
        %v853 = vld [vmem:[%s303 + $0x20] sm:$0xff]
        %v854 = vld [vmem:[%s303 + $0x28] sm:$0xff]
        %v855 = vld [vmem:[%s303 + $0x30] sm:$0xff]
        %v856 = vld [vmem:[%s303 + $0x38] sm:$0xff]
        %v857 = vld [vmem:[%s303 + $0x40] sm:$0xff]
        %v858 = vld [vmem:[%s303 + $0x48] sm:$0xff]
        %v859 = vld [vmem:[%s303 + $0x50] sm:$0xff]
        %v860 = vld [vmem:[%s303 + $0x58] sm:$0xff]
        %v861 = vld [vmem:[%s303 + $0x60] sm:$0xff]
        %v862 = vld [vmem:[%s303 + $0x68] sm:$0xff]
        %v863 = vld [vmem:[%s303 + $0x70] sm:$0xff]
        %v864 = vld [vmem:[%s303 + $0x78] sm:$0xff]
        %v865 = vld [vmem:[%s303 + $0x80] sm:$0xff]
        %v866 = vld [vmem:[%s303 + $0x88] sm:$0xff]
        %v867 = vld [vmem:[%s303 + $0x90] sm:$0xff]
        %v868 = vld [vmem:[%s303 + $0x98] sm:$0xff]
        %v869 = vld [vmem:[%s303 + $0xa0] sm:$0xff]
        %v870 = vld [vmem:[%s303 + $0xa8] sm:$0xff]
        %v871 = vld [vmem:[%s303 + $0xb0] sm:$0xff]
        %v872 = vld [vmem:[%s303 + $0xb8] sm:$0xff]
        %v873 = vld [vmem:[%s303 + $0xc0] sm:$0xff]
        %v874 = vld [vmem:[%s303 + $0xc8] sm:$0xff]
        %v875 = vld [vmem:[%s303 + $0xd0] sm:$0xff]
        %v876 = vld [vmem:[%s303 + $0xd8] sm:$0xff]
        %v877 = vld [vmem:[%s303 + $0xe0] sm:$0xff]
        %v878 = vld [vmem:[%s303 + $0xe8] sm:$0xff]
        %v879 = vld [vmem:[%s303 + $0xf0] sm:$0xff]
        %v880 = vld [vmem:[%s303 + $0xf8] sm:$0xff]
        %v881 = vadd.f32 %v817, %v849
        %v882 = vadd.f32 %v818, %v850
        %v883 = vadd.f32 %v819, %v851
        %v884 = vadd.f32 %v820, %v852
        %v885 = vadd.f32 %v821, %v853
        %v886 = vadd.f32 %v822, %v854
        %v887 = vadd.f32 %v823, %v855
        %v888 = vadd.f32 %v824, %v856
        %v889 = vadd.f32 %v825, %v857
        %v890 = vadd.f32 %v826, %v858
        %v891 = vadd.f32 %v827, %v859
        %v892 = vadd.f32 %v828, %v860
        %v893 = vadd.f32 %v829, %v861
        %v894 = vadd.f32 %v830, %v862
        %v895 = vadd.f32 %v831, %v863
        %v896 = vadd.f32 %v832, %v864
        %v897 = vadd.f32 %v833, %v865
        %v898 = vadd.f32 %v834, %v866
        %v899 = vadd.f32 %v835, %v867
        %v900 = vadd.f32 %v836, %v868
        %v901 = vadd.f32 %v837, %v869
        %v902 = vadd.f32 %v838, %v870
        %v903 = vadd.f32 %v839, %v871
        %v904 = vadd.f32 %v840, %v872
        %v905 = vadd.f32 %v841, %v873
        %v906 = vadd.f32 %v842, %v874
        %v907 = vadd.f32 %v843, %v875
        %v908 = vadd.f32 %v844, %v876
        %v909 = vadd.f32 %v845, %v877
        %v910 = vadd.f32 %v846, %v878
        %v911 = vadd.f32 %v847, %v879
        %v912 = vadd.f32 %v848, %v880
        %913 = vst.msk [vmem:[%s312] sm:$0xff] %vm497, %v881
        %914 = vst.msk [vmem:[%s312 + $0x8] sm:$0xff] %vm497, %v882
        %915 = vst.msk [vmem:[%s312 + $0x10] sm:$0xff] %vm497, %v883
        %916 = vst.msk [vmem:[%s312 + $0x18] sm:$0xff] %vm497, %v884
        %917 = vst.msk [vmem:[%s312 + $0x20] sm:$0xff] %vm497, %v885
        %918 = vst.msk [vmem:[%s312 + $0x28] sm:$0xff] %vm497, %v886
        %919 = vst.msk [vmem:[%s312 + $0x30] sm:$0xff] %vm497, %v887
        %920 = vst.msk [vmem:[%s312 + $0x38] sm:$0xff] %vm497, %v888
        %921 = vst.msk [vmem:[%s312 + $0x40] sm:$0xff] %vm497, %v889
        %922 = vst.msk [vmem:[%s312 + $0x48] sm:$0xff] %vm497, %v890
        %923 = vst.msk [vmem:[%s312 + $0x50] sm:$0xff] %vm497, %v891
        %924 = vst.msk [vmem:[%s312 + $0x58] sm:$0xff] %vm497, %v892
        %925 = vst.msk [vmem:[%s312 + $0x60] sm:$0xff] %vm497, %v893
        %926 = vst.msk [vmem:[%s312 + $0x68] sm:$0xff] %vm497, %v894
        %927 = vst.msk [vmem:[%s312 + $0x70] sm:$0xff] %vm497, %v895
        %928 = vst.msk [vmem:[%s312 + $0x78] sm:$0xff] %vm497, %v896
        %929 = vst.msk [vmem:[%s312 + $0x80] sm:$0xff] %vm497, %v897
        %930 = vst.msk [vmem:[%s312 + $0x88] sm:$0xff] %vm497, %v898
        %931 = vst.msk [vmem:[%s312 + $0x90] sm:$0xff] %vm497, %v899
        %932 = vst.msk [vmem:[%s312 + $0x98] sm:$0xff] %vm497, %v900
        %933 = vst.msk [vmem:[%s312 + $0xa0] sm:$0xff] %vm497, %v901
        %934 = vst.msk [vmem:[%s312 + $0xa8] sm:$0xff] %vm497, %v902
        %935 = vst.msk [vmem:[%s312 + $0xb0] sm:$0xff] %vm497, %v903
        %936 = vst.msk [vmem:[%s312 + $0xb8] sm:$0xff] %vm497, %v904
        %937 = vst.msk [vmem:[%s312 + $0xc0] sm:$0xff] %vm497, %v905
        %938 = vst.msk [vmem:[%s312 + $0xc8] sm:$0xff] %vm497, %v906
        %939 = vst.msk [vmem:[%s312 + $0xd0] sm:$0xff] %vm497, %v907
        %940 = vst.msk [vmem:[%s312 + $0xd8] sm:$0xff] %vm497, %v908
        %941 = vst.msk [vmem:[%s312 + $0xe0] sm:$0xff] %vm497, %v909
        %942 = vst.msk [vmem:[%s312 + $0xe8] sm:$0xff] %vm497, %v910
        %943 = vst.msk [vmem:[%s312 + $0xf0] sm:$0xff] %vm497, %v911
        %944 = vst.msk [vmem:[%s312 + $0xf8] sm:$0xff] %vm497, %v912
      $region44: #{att_decoding_block_layer.15} parent=35 // pred_fallthru
        _
      %s945 = smul.u32 32, %s20
      %p946 = scmp.lt.s32.totalorder %s945, 127
      %s947 = scalar_select %p946, %s945, 127
      %p948 = scmp.lt.s32.totalorder %s21, 0
      %s949 = scalar_select %p948, %s21, 0
      %s950 = sadd.s32 %s949, %s947
      %s951 = smul.addr %s950, 8
      %s952 = scalar_lea.vmem %s4, %s951
      // Predicated region
      $region45: #{att_decoding_block_layer.15} parent=35 // pred_check
        %p953 = pneg %p164
      $region46: #{att_decoding_block_layer.15} parent=35 // pred_check_branch
        %955 = sbr.rel (%p953) target = $region48
      $region47: #{att_decoding_block_layer.15} parent=35 // pred_region
        %s956 = smul.u32 32, %s20
      $region48: #{att_decoding_block_layer.15} parent=35 // pred_fallthru
        _
    $region36: #{att_decoding_block_layer.15} parent=5 // pred_fallthru
      _
    %p957 = scmp.le.s32.totalorder 2, %s10
    // Predicated region
    $region49: #{att_decoding_block_layer.15} parent=5 // pred_check
      %p958 = pneg %p957
    $region50: #{att_decoding_block_layer.15} parent=5 // pred_check_branch
      %960 = sbr.rel (%p958) target = $region52
    $region51: #{att_decoding_block_layer.15} parent=5 // pred_region
      %s961 = ssub.s32 %s10, 2
      // Predicated region
      $region53: #{att_decoding_block_layer.15} parent=51 // pred_check
        %p962 = pneg %p170
      $region54: #{att_decoding_block_layer.15} parent=51 // pred_check_branch
        %964 = sbr.rel (%p962) target = $region56
      $region55: #{att_decoding_block_layer.15} parent=51 // pred_region
        %s965 = smul.u32 32, %s23
        %p966 = scmp.lt.s32.totalorder %s965, 127
        %s967 = scalar_select %p966, %s965, 127
        %p968 = scmp.lt.s32.totalorder %s24, 0
        %s969 = scalar_select %p968, %s24, 0
        %s970 = sadd.s32 %s969, %s967
        %s971 = smul.addr %s970, 8
        %s972 = scalar_lea.vmem %s4, %s971
      $region56: #{att_decoding_block_layer.15} parent=51 // pred_fallthru
        _
    $region52: #{att_decoding_block_layer.15} parent=5 // pred_fallthru
      _
  $region6: #{att_decoding_block_layer.15} parent=0 // loop_footer
    %s14 = sadd.s32 1, %s10
  $region7: #{att_decoding_block_layer.15} parent=0 // loop_footer_branch
    %9 = sbr.rel target = $region3
  $region8: #{att_decoding_block_layer.15} parent=0 // loop_exit
    _

// kernel: att_decoding_block_layer.16
$region0: #{att_decoding_block_layer.16}
  #allocation0 [shape = 'u32[]', space=smem, size = 0x4, offset = 0x4, fixed_abs, tag = 'smem constant byte address 0x4 - core index']
  #allocation1 [shape = 'u32[144,128]{1,0:T(1,128)}', space=vmem, size = 0x12000, scoped, tag = 'internal scratch']
  %s0 = inlined_call_operand.vmem [shape: f32[128,32], index: 0, kind: input, shape index: {}]
  %s1 = inlined_call_operand.vmem [shape: f32[1,32], index: 1, kind: input, shape index: {}]
  %s2 = inlined_call_operand.vmem [shape: f32[1,32], index: 2, kind: input, shape index: {}]
  %s3 = inlined_call_operand.vmem [shape: bf16[128,32], index: 3, kind: output, shape index: {}]
  %s4 = sld [smem:[#allocation0]]
  $region22: #{att_decoding_block_layer.16} parent=0
    _
  %s6 = ssub.s32 1, %s4
  %s7 = scalar_select 0, %s6, %s4
  // Predicated region
  $region2: #{att_decoding_block_layer.16} parent=0 // pred_check
    _
  $region3: #{att_decoding_block_layer.16} parent=0 // pred_check_branch
    %9 = sbr.rel (0) target = $region5
  $region4: #{att_decoding_block_layer.16} parent=0 // pred_region
    _
  $region5: #{att_decoding_block_layer.16} parent=0 // pred_fallthru
    _
  // Predicated region
  $region6: #{att_decoding_block_layer.16} parent=0 // pred_check
    _
  $region7: #{att_decoding_block_layer.16} parent=0 // pred_check_branch
    %11 = sbr.rel (0) target = $region9
  $region8: #{att_decoding_block_layer.16} parent=0 // pred_region
    _
  $region9: #{att_decoding_block_layer.16} parent=0 // pred_fallthru
    _
  // Predicated region
  $region10: #{att_decoding_block_layer.16} parent=0 // pred_check
    _
  $region11: #{att_decoding_block_layer.16} parent=0 // pred_check_branch
    %13 = sbr.rel (0) target = $region13
  $region12: #{att_decoding_block_layer.16} parent=0 // pred_region
    _
  $region13: #{att_decoding_block_layer.16} parent=0 // pred_fallthru
    _
  %v14 = vld [vmem:[%s0] sm:$0xff]
  %v15 = vld [vmem:[%s0 + $0x8] sm:$0xff]
  %v16 = vld [vmem:[%s0 + $0x10] sm:$0xff]
  %v17 = vld [vmem:[%s0 + $0x18] sm:$0xff]
  %v18 = vld [vmem:[%s0 + $0x20] sm:$0xff]
  %v19 = vld [vmem:[%s0 + $0x28] sm:$0xff]
  %v20 = vld [vmem:[%s0 + $0x30] sm:$0xff]
  %v21 = vld [vmem:[%s0 + $0x38] sm:$0xff]
  %v22 = vld [vmem:[%s0 + $0x40] sm:$0xff]
  %v23 = vld [vmem:[%s0 + $0x48] sm:$0xff]
  %v24 = vld [vmem:[%s0 + $0x50] sm:$0xff]
  %v25 = vld [vmem:[%s0 + $0x58] sm:$0xff]
  %v26 = vld [vmem:[%s0 + $0x60] sm:$0xff]
  %v27 = vld [vmem:[%s0 + $0x68] sm:$0xff]
  %v28 = vld [vmem:[%s0 + $0x70] sm:$0xff]
  %v29 = vld [vmem:[%s0 + $0x78] sm:$0xff]
  %v30 = vld [vmem:[%s1] sm:$0x1]
  %v32 = vlaneseq
  %v33 = vshrl.u32 %v32, 7
  %v34 = vsub.s32 0, %v33
  %v35 = vrot.slane %v30, %v34
  %v37 = vmul.f32 %v14, %v35
  %v38 = vmul.f32 %v15, %v35
  %v39 = vmul.f32 %v16, %v35
  %v40 = vmul.f32 %v17, %v35
  %v41 = vmul.f32 %v18, %v35
  %v42 = vmul.f32 %v19, %v35
  %v43 = vmul.f32 %v20, %v35
  %v44 = vmul.f32 %v21, %v35
  %v45 = vmul.f32 %v22, %v35
  %v46 = vmul.f32 %v23, %v35
  %v47 = vmul.f32 %v24, %v35
  %v48 = vmul.f32 %v25, %v35
  %v49 = vmul.f32 %v26, %v35
  %v50 = vmul.f32 %v27, %v35
  %v51 = vmul.f32 %v28, %v35
  %v52 = vmul.f32 %v29, %v35
  %v53 = vld [vmem:[%s2] sm:$0x1]
  %v55 = vlaneseq
  %v56 = vshrl.u32 %v55, 7
  %v57 = vsub.s32 0, %v56
  %v58 = vrot.slane %v53, %v57
  %v60 = vadd.f32 %v37, %v58
  %v61 = vadd.f32 %v38, %v58
  %v62 = vadd.f32 %v39, %v58
  %v63 = vadd.f32 %v40, %v58
  %v64 = vadd.f32 %v41, %v58
  %v65 = vadd.f32 %v42, %v58
  %v66 = vadd.f32 %v43, %v58
  %v67 = vadd.f32 %v44, %v58
  %v68 = vadd.f32 %v45, %v58
  %v69 = vadd.f32 %v46, %v58
  %v70 = vadd.f32 %v47, %v58
  %v71 = vadd.f32 %v48, %v58
  %v72 = vadd.f32 %v49, %v58
  %v73 = vadd.f32 %v50, %v58
  %v74 = vadd.f32 %v51, %v58
  %v75 = vadd.f32 %v52, %v58
  %v76 = vmax.f32 %v60, 0.0
  %v77 = vmax.f32 %v61, 0.0
  %v78 = vmax.f32 %v62, 0.0
  %v79 = vmax.f32 %v63, 0.0
  %v80 = vmax.f32 %v64, 0.0
  %v81 = vmax.f32 %v65, 0.0
  %v82 = vmax.f32 %v66, 0.0
  %v83 = vmax.f32 %v67, 0.0
  %v84 = vmax.f32 %v68, 0.0
  %v85 = vmax.f32 %v69, 0.0
  %v86 = vmax.f32 %v70, 0.0
  %v87 = vmax.f32 %v71, 0.0
  %v88 = vmax.f32 %v72, 0.0
  %v89 = vmax.f32 %v73, 0.0
  %v90 = vmax.f32 %v74, 0.0
  %v91 = vmax.f32 %v75, 0.0
  %v92 = vmin.f32 %v76, 6.0
  %v93 = vmin.f32 %v77, 6.0
  %v94 = vmin.f32 %v78, 6.0
  %v95 = vmin.f32 %v79, 6.0
  %v96 = vmin.f32 %v80, 6.0
  %v97 = vmin.f32 %v81, 6.0
  %v98 = vmin.f32 %v82, 6.0
  %v99 = vmin.f32 %v83, 6.0
  %v100 = vmin.f32 %v84, 6.0
  %v101 = vmin.f32 %v85, 6.0
  %v102 = vmin.f32 %v86, 6.0
  %v103 = vmin.f32 %v87, 6.0
  %v104 = vmin.f32 %v88, 6.0
  %v105 = vmin.f32 %v89, 6.0
  %v106 = vmin.f32 %v90, 6.0
  %v107 = vmin.f32 %v91, 6.0
  %v108 = vpack.c.bf16 %v93, %v92
  %v109 = vpack.c.bf16 %v95, %v94
  %v110 = vpack.c.bf16 %v97, %v96
  %v111 = vpack.c.bf16 %v99, %v98
  %v112 = vpack.c.bf16 %v101, %v100
  %v113 = vpack.c.bf16 %v103, %v102
  %v114 = vpack.c.bf16 %v105, %v104
  %v115 = vpack.c.bf16 %v107, %v106
  %v124 = vunpack.c.l.b16 %v108
  %v125 = vunpack.c.h.b16 %v108
  %v126 = vunpack.c.l.b16 %v109
  %v127 = vunpack.c.h.b16 %v109
  %v128 = vunpack.c.l.b16 %v110
  %v129 = vunpack.c.h.b16 %v110
  %v130 = vunpack.c.l.b16 %v111
  %v131 = vunpack.c.h.b16 %v111
  %v132 = vunpack.c.l.b16 %v112
  %v133 = vunpack.c.h.b16 %v112
  %v134 = vunpack.c.l.b16 %v113
  %v135 = vunpack.c.h.b16 %v113
  %v136 = vunpack.c.l.b16 %v114
  %v137 = vunpack.c.h.b16 %v114
  %v138 = vunpack.c.l.b16 %v115
  %v139 = vunpack.c.h.b16 %v115
  %v140 = vpack.c.b16 %v124, %v124
  %v141 = vpack.c.b16 %v125, %v125
  %v142 = vpack.c.b16 %v126, %v126
  %v143 = vpack.c.b16 %v127, %v127
  %v144 = vpack.c.b16 %v128, %v128
  %v145 = vpack.c.b16 %v129, %v129
  %v146 = vpack.c.b16 %v130, %v130
  %v147 = vpack.c.b16 %v131, %v131
  %v148 = vpack.c.b16 %v132, %v132
  %v149 = vpack.c.b16 %v133, %v133
  %v150 = vpack.c.b16 %v134, %v134
  %v151 = vpack.c.b16 %v135, %v135
  %v152 = vpack.c.b16 %v136, %v136
  %v153 = vpack.c.b16 %v137, %v137
  %v154 = vpack.c.b16 %v138, %v138
  %v155 = vpack.c.b16 %v139, %v139
  %vm172 = vcmask 257024
  %173 = vst.msk [vmem:[%s3] sm:$0xf] %vm172, %v140
  %174 = vst.msk [vmem:[%s3 + $0x4] sm:$0xf] %vm172, %v141
  %175 = vst.msk [vmem:[%s3 + $0x8] sm:$0xf] %vm172, %v142
  %176 = vst.msk [vmem:[%s3 + $0xc] sm:$0xf] %vm172, %v143
  %177 = vst.msk [vmem:[%s3 + $0x10] sm:$0xf] %vm172, %v144
  %178 = vst.msk [vmem:[%s3 + $0x14] sm:$0xf] %vm172, %v145
  %179 = vst.msk [vmem:[%s3 + $0x18] sm:$0xf] %vm172, %v146
  %180 = vst.msk [vmem:[%s3 + $0x1c] sm:$0xf] %vm172, %v147
  %181 = vst.msk [vmem:[%s3 + $0x20] sm:$0xf] %vm172, %v148
  %182 = vst.msk [vmem:[%s3 + $0x24] sm:$0xf] %vm172, %v149
  %183 = vst.msk [vmem:[%s3 + $0x28] sm:$0xf] %vm172, %v150
  %184 = vst.msk [vmem:[%s3 + $0x2c] sm:$0xf] %vm172, %v151
  %185 = vst.msk [vmem:[%s3 + $0x30] sm:$0xf] %vm172, %v152
  %186 = vst.msk [vmem:[%s3 + $0x34] sm:$0xf] %vm172, %v153
  %187 = vst.msk [vmem:[%s3 + $0x38] sm:$0xf] %vm172, %v154
  %188 = vst.msk [vmem:[%s3 + $0x3c] sm:$0xf] %vm172, %v155
  // Predicated region
  $region14: #{att_decoding_block_layer.16} parent=0 // pred_check
    _
  $region15: #{att_decoding_block_layer.16} parent=0 // pred_check_branch
    %190 = sbr.rel (0) target = $region17
  $region16: #{att_decoding_block_layer.16} parent=0 // pred_region
    _
  $region17: #{att_decoding_block_layer.16} parent=0 // pred_fallthru
    _
  // Predicated region
  $region18: #{att_decoding_block_layer.16} parent=0 // pred_check
    _
  $region19: #{att_decoding_block_layer.16} parent=0 // pred_check_branch
    %192 = sbr.rel (0) target = $region21
  $region20: #{att_decoding_block_layer.16} parent=0 // pred_region
    _
  $region21: #{att_decoding_block_layer.16} parent=0 // pred_fallthru
    _

// kernel: att_decoding_block_layer.18
$region0: #{att_decoding_block_layer.18}
  #allocation0 [shape = 'u32[]', space=smem, size = 0x4, offset = 0x4, fixed_abs, tag = 'smem constant byte address 0x4 - core index']
  #allocation1 [shape = 'u32[144,128]{1,0:T(1,128)}', space=vmem, size = 0x12000, scoped, tag = 'internal scratch']
  %s0 = inlined_call_operand.vmem [shape: bf16[128,32], index: 0, kind: input, shape index: {}]
  %s1 = inlined_call_operand.vmem [shape: f32[1,32], index: 1, kind: input, shape index: {}]
  %s2 = inlined_call_operand.vmem [shape: f32[1,32], index: 2, kind: input, shape index: {}]
  %s3 = inlined_call_operand.vmem [shape: bf16[128,32], index: 3, kind: output, shape index: {}]
  %s4 = sld [smem:[#allocation0]]
  $region22: #{att_decoding_block_layer.18} parent=0
    _
  %s6 = ssub.s32 1, %s4
  %s7 = scalar_select 0, %s6, %s4
  // Predicated region
  $region2: #{att_decoding_block_layer.18} parent=0 // pred_check
    _
  $region3: #{att_decoding_block_layer.18} parent=0 // pred_check_branch
    %9 = sbr.rel (0) target = $region5
  $region4: #{att_decoding_block_layer.18} parent=0 // pred_region
    _
  $region5: #{att_decoding_block_layer.18} parent=0 // pred_fallthru
    _
  // Predicated region
  $region6: #{att_decoding_block_layer.18} parent=0 // pred_check
    _
  $region7: #{att_decoding_block_layer.18} parent=0 // pred_check_branch
    %11 = sbr.rel (0) target = $region9
  $region8: #{att_decoding_block_layer.18} parent=0 // pred_region
    _
  $region9: #{att_decoding_block_layer.18} parent=0 // pred_fallthru
    _
  // Predicated region
  $region10: #{att_decoding_block_layer.18} parent=0 // pred_check
    _
  $region11: #{att_decoding_block_layer.18} parent=0 // pred_check_branch
    %13 = sbr.rel (0) target = $region13
  $region12: #{att_decoding_block_layer.18} parent=0 // pred_region
    _
  $region13: #{att_decoding_block_layer.18} parent=0 // pred_fallthru
    _
  %v14 = vld [vmem:[%s0] sm:$0xf]
  %v15 = vld [vmem:[%s0 + $0x4] sm:$0xf]
  %v16 = vld [vmem:[%s0 + $0x8] sm:$0xf]
  %v17 = vld [vmem:[%s0 + $0xc] sm:$0xf]
  %v18 = vld [vmem:[%s0 + $0x10] sm:$0xf]
  %v19 = vld [vmem:[%s0 + $0x14] sm:$0xf]
  %v20 = vld [vmem:[%s0 + $0x18] sm:$0xf]
  %v21 = vld [vmem:[%s0 + $0x1c] sm:$0xf]
  %v22 = vld [vmem:[%s0 + $0x20] sm:$0xf]
  %v23 = vld [vmem:[%s0 + $0x24] sm:$0xf]
  %v24 = vld [vmem:[%s0 + $0x28] sm:$0xf]
  %v25 = vld [vmem:[%s0 + $0x2c] sm:$0xf]
  %v26 = vld [vmem:[%s0 + $0x30] sm:$0xf]
  %v27 = vld [vmem:[%s0 + $0x34] sm:$0xf]
  %v28 = vld [vmem:[%s0 + $0x38] sm:$0xf]
  %v29 = vld [vmem:[%s0 + $0x3c] sm:$0xf]
  %v30 = vunpack.c.l.bf16 %v14
  %v31 = vunpack.c.l.bf16 %v15
  %v32 = vunpack.c.l.bf16 %v16
  %v33 = vunpack.c.l.bf16 %v17
  %v34 = vunpack.c.l.bf16 %v18
  %v35 = vunpack.c.l.bf16 %v19
  %v36 = vunpack.c.l.bf16 %v20
  %v37 = vunpack.c.l.bf16 %v21
  %v38 = vunpack.c.l.bf16 %v22
  %v39 = vunpack.c.l.bf16 %v23
  %v40 = vunpack.c.l.bf16 %v24
  %v41 = vunpack.c.l.bf16 %v25
  %v42 = vunpack.c.l.bf16 %v26
  %v43 = vunpack.c.l.bf16 %v27
  %v44 = vunpack.c.l.bf16 %v28
  %v45 = vunpack.c.l.bf16 %v29
  %v46 = vld [vmem:[%s1] sm:$0x1]
  %v48 = vlaneseq
  %v49 = vshrl.u32 %v48, 7
  %v50 = vsub.s32 0, %v49
  %v51 = vrot.slane %v46, %v50
  %v53 = vmul.f32 %v30, %v51
  %v54 = vmul.f32 %v31, %v51
  %v55 = vmul.f32 %v32, %v51
  %v56 = vmul.f32 %v33, %v51
  %v57 = vmul.f32 %v34, %v51
  %v58 = vmul.f32 %v35, %v51
  %v59 = vmul.f32 %v36, %v51
  %v60 = vmul.f32 %v37, %v51
  %v61 = vmul.f32 %v38, %v51
  %v62 = vmul.f32 %v39, %v51
  %v63 = vmul.f32 %v40, %v51
  %v64 = vmul.f32 %v41, %v51
  %v65 = vmul.f32 %v42, %v51
  %v66 = vmul.f32 %v43, %v51
  %v67 = vmul.f32 %v44, %v51
  %v68 = vmul.f32 %v45, %v51
  %v69 = vld [vmem:[%s2] sm:$0x1]
  %v71 = vlaneseq
  %v72 = vshrl.u32 %v71, 7
  %v73 = vsub.s32 0, %v72
  %v74 = vrot.slane %v69, %v73
  %v76 = vadd.f32 %v53, %v74
  %v77 = vadd.f32 %v54, %v74
  %v78 = vadd.f32 %v55, %v74
  %v79 = vadd.f32 %v56, %v74
  %v80 = vadd.f32 %v57, %v74
  %v81 = vadd.f32 %v58, %v74
  %v82 = vadd.f32 %v59, %v74
  %v83 = vadd.f32 %v60, %v74
  %v84 = vadd.f32 %v61, %v74
  %v85 = vadd.f32 %v62, %v74
  %v86 = vadd.f32 %v63, %v74
  %v87 = vadd.f32 %v64, %v74
  %v88 = vadd.f32 %v65, %v74
  %v89 = vadd.f32 %v66, %v74
  %v90 = vadd.f32 %v67, %v74
  %v91 = vadd.f32 %v68, %v74
  %v92 = vmax.f32 %v76, 0.0
  %v93 = vmax.f32 %v77, 0.0
  %v94 = vmax.f32 %v78, 0.0
  %v95 = vmax.f32 %v79, 0.0
  %v96 = vmax.f32 %v80, 0.0
  %v97 = vmax.f32 %v81, 0.0
  %v98 = vmax.f32 %v82, 0.0
  %v99 = vmax.f32 %v83, 0.0
  %v100 = vmax.f32 %v84, 0.0
  %v101 = vmax.f32 %v85, 0.0
  %v102 = vmax.f32 %v86, 0.0
  %v103 = vmax.f32 %v87, 0.0
  %v104 = vmax.f32 %v88, 0.0
  %v105 = vmax.f32 %v89, 0.0
  %v106 = vmax.f32 %v90, 0.0
  %v107 = vmax.f32 %v91, 0.0
  %v108 = vmin.f32 %v92, 6.0
  %v109 = vmin.f32 %v93, 6.0
  %v110 = vmin.f32 %v94, 6.0
  %v111 = vmin.f32 %v95, 6.0
  %v112 = vmin.f32 %v96, 6.0
  %v113 = vmin.f32 %v97, 6.0
  %v114 = vmin.f32 %v98, 6.0
  %v115 = vmin.f32 %v99, 6.0
  %v116 = vmin.f32 %v100, 6.0
  %v117 = vmin.f32 %v101, 6.0
  %v118 = vmin.f32 %v102, 6.0
  %v119 = vmin.f32 %v103, 6.0
  %v120 = vmin.f32 %v104, 6.0
  %v121 = vmin.f32 %v105, 6.0
  %v122 = vmin.f32 %v106, 6.0
  %v123 = vmin.f32 %v107, 6.0
  %v124 = vpack.c.bf16 %v109, %v108
  %v125 = vpack.c.bf16 %v111, %v110
  %v126 = vpack.c.bf16 %v113, %v112
  %v127 = vpack.c.bf16 %v115, %v114
  %v128 = vpack.c.bf16 %v117, %v116
  %v129 = vpack.c.bf16 %v119, %v118
  %v130 = vpack.c.bf16 %v121, %v120
  %v131 = vpack.c.bf16 %v123, %v122
  %v140 = vunpack.c.l.b16 %v124
  %v141 = vunpack.c.h.b16 %v124
  %v142 = vunpack.c.l.b16 %v125
  %v143 = vunpack.c.h.b16 %v125
  %v144 = vunpack.c.l.b16 %v126
  %v145 = vunpack.c.h.b16 %v126
  %v146 = vunpack.c.l.b16 %v127
  %v147 = vunpack.c.h.b16 %v127
  %v148 = vunpack.c.l.b16 %v128
  %v149 = vunpack.c.h.b16 %v128
  %v150 = vunpack.c.l.b16 %v129
  %v151 = vunpack.c.h.b16 %v129
  %v152 = vunpack.c.l.b16 %v130
  %v153 = vunpack.c.h.b16 %v130
  %v154 = vunpack.c.l.b16 %v131
  %v155 = vunpack.c.h.b16 %v131
  %v156 = vpack.c.b16 %v140, %v140
  %v157 = vpack.c.b16 %v141, %v141
  %v158 = vpack.c.b16 %v142, %v142
  %v159 = vpack.c.b16 %v143, %v143
  %v160 = vpack.c.b16 %v144, %v144
  %v161 = vpack.c.b16 %v145, %v145
  %v162 = vpack.c.b16 %v146, %v146
  %v163 = vpack.c.b16 %v147, %v147
  %v164 = vpack.c.b16 %v148, %v148
  %v165 = vpack.c.b16 %v149, %v149
  %v166 = vpack.c.b16 %v150, %v150
  %v167 = vpack.c.b16 %v151, %v151
  %v168 = vpack.c.b16 %v152, %v152
  %v169 = vpack.c.b16 %v153, %v153
  %v170 = vpack.c.b16 %v154, %v154
  %v171 = vpack.c.b16 %v155, %v155
  %vm188 = vcmask 257024
  %189 = vst.msk [vmem:[%s3] sm:$0xf] %vm188, %v156
  %190 = vst.msk [vmem:[%s3 + $0x4] sm:$0xf] %vm188, %v157
  %191 = vst.msk [vmem:[%s3 + $0x8] sm:$0xf] %vm188, %v158
  %192 = vst.msk [vmem:[%s3 + $0xc] sm:$0xf] %vm188, %v159
  %193 = vst.msk [vmem:[%s3 + $0x10] sm:$0xf] %vm188, %v160
  %194 = vst.msk [vmem:[%s3 + $0x14] sm:$0xf] %vm188, %v161
  %195 = vst.msk [vmem:[%s3 + $0x18] sm:$0xf] %vm188, %v162
  %196 = vst.msk [vmem:[%s3 + $0x1c] sm:$0xf] %vm188, %v163
  %197 = vst.msk [vmem:[%s3 + $0x20] sm:$0xf] %vm188, %v164
  %198 = vst.msk [vmem:[%s3 + $0x24] sm:$0xf] %vm188, %v165
  %199 = vst.msk [vmem:[%s3 + $0x28] sm:$0xf] %vm188, %v166
  %200 = vst.msk [vmem:[%s3 + $0x2c] sm:$0xf] %vm188, %v167
  %201 = vst.msk [vmem:[%s3 + $0x30] sm:$0xf] %vm188, %v168
  %202 = vst.msk [vmem:[%s3 + $0x34] sm:$0xf] %vm188, %v169
  %203 = vst.msk [vmem:[%s3 + $0x38] sm:$0xf] %vm188, %v170
  %204 = vst.msk [vmem:[%s3 + $0x3c] sm:$0xf] %vm188, %v171
  // Predicated region
  $region14: #{att_decoding_block_layer.18} parent=0 // pred_check
    _
  $region15: #{att_decoding_block_layer.18} parent=0 // pred_check_branch
    %206 = sbr.rel (0) target = $region17
  $region16: #{att_decoding_block_layer.18} parent=0 // pred_region
    _
  $region17: #{att_decoding_block_layer.18} parent=0 // pred_fallthru
    _
  // Predicated region
  $region18: #{att_decoding_block_layer.18} parent=0 // pred_check
    _
  $region19: #{att_decoding_block_layer.18} parent=0 // pred_check_branch
    %208 = sbr.rel (0) target = $region21
  $region20: #{att_decoding_block_layer.18} parent=0 // pred_region
    _
  $region21: #{att_decoding_block_layer.18} parent=0 // pred_fallthru
    _

// kernel: att_decoding_block_layer.17
$region0: #{att_decoding_block_layer.17}
  #allocation0 [shape = 'u32[]', space=smem, size = 0x4, offset = 0x4, fixed_abs, tag = 'smem constant byte address 0x4 - core index']
  #allocation1 [shape = 'u32[144,128]{1,0:T(1,128)}', space=vmem, size = 0x12000, scoped, tag = 'internal scratch']
  #allocation2 [shape = 'f32[64,4]{1,0:T(8,128)}', space=vmem, size = 0x8000, scoped, tag = 'scratch operand']
  %s0 = inlined_call_operand.vmem [shape: bf16[20,82,4], index: 0, kind: input, shape index: {}]
  %s1 = inlined_call_operand.vmem [shape: bf16[3,9,4,4], index: 1, kind: input, shape index: {}]
  %s2 = inlined_call_operand.vmem [shape: f32[1,4], index: 2, kind: input, shape index: {}]
  %s3 = inlined_call_operand.vmem [shape: bf16[2,8,64,4], index: 3, kind: output, shape index: {}]
  %s4 = sld [smem:[#allocation0]]
  $region53: #{att_decoding_block_layer.17} parent=0
    _
  %s6 = ssub.s32 1, %s4
  %s7 = scalar_select 0, %s6, %s4
  loop: start=0, step=1, limit=50
  $region2: #{att_decoding_block_layer.17} parent=0 // loop_pre_header
    _
  $region3: #{att_decoding_block_layer.17} parent=0 // loop_header
    %s9 = sphi 0, %s13
    %p10 = scmp.ge.s32.totalorder %s9, 50
    %s16 = sphi 0, %s35
    %s17 = sphi 0, %s31
    %s18 = sphi 0, %s27
    %s19 = sphi 0, %s16
    %s20 = sphi 0, %s17
    %s21 = sphi 0, %s18
    %s22 = sphi 0, %s19
    %s23 = sphi 0, %s20
    %s24 = sphi 0, %s21
    %s44 = sphi 0, %s46
    %s47 = sphi 0, %s44
    %s48 = sphi 0, %s47
    %s64 = sphi 0, %s48
    %s70 = sphi 0, %s72
    %s73 = sphi 0, %s70
    %s74 = sphi 0, %s73
    %s90 = sphi 0, %s74
    %s94 = sphi 0, %s94
    %s96 = sphi 0, %s94
    %s97 = sphi 0, %s96
    %s111 = sphi 0, %s97
    %s119 = sphi 0, %s121
    %s122 = sphi 0, %s119
    %s123 = sphi 0, %s122
    %s139 = sphi 0, %s123
  $region4: #{att_decoding_block_layer.17} parent=0 // loop_header_branch
    %12 = sbr.rel (%p10) target = $region8
  $region5: #{att_decoding_block_layer.17} parent=0 // loop_body
    %s14 = ssub.s32 %s9, 1
    %s15 = ssub.s32 %s9, 2
    %s25 = sadd.s32 1, %s18
    %p26 = scmp.ge.s32.totalorder %s25, 3
    %s27 = scalar_select %p26, 0, %s25
    %s28 = sadd.s32 1, %s17
    %s29 = scalar_select %p26, %s28, %s17
    %p30 = scmp.ge.s32.totalorder %s29, 8
    %s31 = scalar_select %p30, 0, %s29
    %s32 = sadd.s32 1, %s16
    %s33 = scalar_select %p30, %s32, %s16
    %p34 = scmp.ge.s32.totalorder %s33, 2
    %s35 = scalar_select %p34, 0, %s33
    %s36 = smul.u32 %s16, 10
    %s37 = sadd.s32 %s36, %s17
    %s38 = sadd.s32 %s37, %s18
    %s39 = smul.u32 %s35, 10
    %s40 = sadd.s32 %s39, %s31
    %s41 = sadd.s32 %s40, %s27
    %s42 = ssub.s32 %s38, %s41
    %p43 = scmp.eq.s32.totalorder %s42, 0
    %s45 = sadd.s32 %s44, 1
    %s46 = scalar_select %p43, %s44, %s45
    %p49 = pneg %p43
    %p50 = scmp.eq.s32.totalorder %s9, 47
    %p51 = por %p49, %p50
    %p52 = scmp.ne.s32.totalorder %s44, %s47
    %p53 = scmp.eq.s32.totalorder %s9, 0
    %p54 = por %p52, %p53
    %p55 = scmp.ne.s32.totalorder %s44, %s47
    %p56 = scmp.eq.s32.totalorder %s14, 47
    %p57 = por %p55, %p56
    %p58 = scmp.ne.s32.totalorder %s47, %s48
    %p59 = scmp.eq.s32.totalorder %s14, 0
    %p60 = por %p58, %p59
    %p61 = scmp.ne.s32.totalorder %s47, %s48
    %p62 = scmp.eq.s32.totalorder %s15, 47
    %p63 = por %p61, %p62
    %p65 = scmp.ne.s32.totalorder %s48, %s64
    %p66 = scmp.eq.s32.totalorder %s15, 0
    %p67 = por %p65, %p66
    %s68 = ssub.s32 %s18, %s27
    %p69 = scmp.eq.s32.totalorder %s68, 0
    %s71 = sadd.s32 %s70, 1
    %s72 = scalar_select %p69, %s70, %s71
    %p75 = pneg %p69
    %p76 = scmp.eq.s32.totalorder %s9, 47
    %p77 = por %p75, %p76
    %p78 = scmp.ne.s32.totalorder %s70, %s73
    %p79 = scmp.eq.s32.totalorder %s9, 0
    %p80 = por %p78, %p79
    %p81 = scmp.ne.s32.totalorder %s70, %s73
    %p82 = scmp.eq.s32.totalorder %s14, 47
    %p83 = por %p81, %p82
    %p84 = scmp.ne.s32.totalorder %s73, %s74
    %p85 = scmp.eq.s32.totalorder %s14, 0
    %p86 = por %p84, %p85
    %p87 = scmp.ne.s32.totalorder %s73, %s74
    %p88 = scmp.eq.s32.totalorder %s15, 47
    %p89 = por %p87, %p88
    %p91 = scmp.ne.s32.totalorder %s74, %s90
    %p92 = scmp.eq.s32.totalorder %s15, 0
    %p93 = por %p91, %p92
    %s95 = sadd.s32 %s94, 1
    %p98 = scmp.eq.s32.totalorder %s9, 47
    %p99 = scmp.ne.s32.totalorder %s94, %s96
    %p100 = scmp.eq.s32.totalorder %s9, 0
    %p101 = por %p99, %p100
    %p102 = scmp.ne.s32.totalorder %s94, %s96
    %p103 = scmp.eq.s32.totalorder %s14, 47
    %p104 = por %p102, %p103
    %p105 = scmp.ne.s32.totalorder %s96, %s97
    %p106 = scmp.eq.s32.totalorder %s14, 0
    %p107 = por %p105, %p106
    %p108 = scmp.ne.s32.totalorder %s96, %s97
    %p109 = scmp.eq.s32.totalorder %s15, 47
    %p110 = por %p108, %p109
    %p112 = scmp.ne.s32.totalorder %s97, %s111
    %p113 = scmp.eq.s32.totalorder %s15, 0
    %p114 = por %p112, %p113
    %s115 = ssub.s32 %s16, %s35
    %s116 = ssub.s32 %s17, %s31
    %s117 = sor.u32 %s115, %s116
    %p118 = scmp.eq.s32.totalorder %s117, 0
    %s120 = sadd.s32 %s119, 1
    %s121 = scalar_select %p118, %s119, %s120
    %p124 = pneg %p118
    %p125 = scmp.eq.s32.totalorder %s9, 47
    %p126 = por %p124, %p125
    %p127 = scmp.ne.s32.totalorder %s119, %s122
    %p128 = scmp.eq.s32.totalorder %s9, 0
    %p129 = por %p127, %p128
    %p130 = scmp.ne.s32.totalorder %s119, %s122
    %p131 = scmp.eq.s32.totalorder %s14, 47
    %p132 = por %p130, %p131
    %p133 = scmp.ne.s32.totalorder %s122, %s123
    %p134 = scmp.eq.s32.totalorder %s14, 0
    %p135 = por %p133, %p134
    %p136 = scmp.ne.s32.totalorder %s122, %s123
    %p137 = scmp.eq.s32.totalorder %s15, 47
    %p138 = por %p136, %p137
    %p140 = scmp.ne.s32.totalorder %s123, %s139
    %p141 = scmp.eq.s32.totalorder %s15, 0
    %p142 = por %p140, %p141
    %p143 = scmp.le.s32.totalorder 1, %s9
    %p144 = scmp.lt.s32.totalorder %s9, 49
    %p145 = pnand %p143, %p144
    %p146 = pneg %p145
    // Predicated region
    $region9: #{att_decoding_block_layer.17} parent=5 // pred_check
      _
    $region10: #{att_decoding_block_layer.17} parent=5 // pred_check_branch
      %148 = sbr.rel (%p145) target = $region12
    $region11: #{att_decoding_block_layer.17} parent=5 // pred_region
      %s149 = ssub.s32 %s9, 1
      // Predicated region
      $region13: #{att_decoding_block_layer.17} parent=11 // pred_check
        %p150 = pneg %p107
      $region14: #{att_decoding_block_layer.17} parent=11 // pred_check_branch
        %152 = sbr.rel (%p150) target = $region16
      $region15: #{att_decoding_block_layer.17} parent=11 // pred_region
        _
      $region16: #{att_decoding_block_layer.17} parent=11 // pred_fallthru
        _
    $region12: #{att_decoding_block_layer.17} parent=5 // pred_fallthru
      _
    %p153 = scmp.lt.s32.totalorder %s9, 48
    // Predicated region
    $region17: #{att_decoding_block_layer.17} parent=5 // pred_check
      %p154 = pneg %p153
    $region18: #{att_decoding_block_layer.17} parent=5 // pred_check_branch
      %156 = sbr.rel (%p154) target = $region20
    $region19: #{att_decoding_block_layer.17} parent=5 // pred_region
      // Predicated region
      $region21: #{att_decoding_block_layer.17} parent=19 // pred_check
        %p157 = pneg %p54
      $region22: #{att_decoding_block_layer.17} parent=19 // pred_check_branch
        %159 = sbr.rel (%p157) target = $region24
      $region23: #{att_decoding_block_layer.17} parent=19 // pred_region
        %s160 = smul.u32 %s16, 10
        %s161 = sadd.s32 %s160, %s17
        %s162 = sadd.s32 %s161, %s18
        %p163 = scmp.lt.s32.totalorder %s162, 19
        %s164 = scalar_select %p163, %s162, 19
        %s165 = smul.addr %s164, 11
        %s166 = smul.addr %s165, 4
        %s167 = scalar_lea.vmem %s0, %s166
        %s168 = smul.u32 %s16, 10
        %s169 = sadd.s32 %s168, %s17
        %s170 = sadd.s32 %s169, %s18
      $region24: #{att_decoding_block_layer.17} parent=19 // pred_fallthru
        _
      // Predicated region
      $region25: #{att_decoding_block_layer.17} parent=19 // pred_check
        %p171 = pneg %p80
      $region26: #{att_decoding_block_layer.17} parent=19 // pred_check_branch
        %173 = sbr.rel (%p171) target = $region28
      $region27: #{att_decoding_block_layer.17} parent=19 // pred_region
        %p174 = scmp.lt.s32.totalorder %s18, 2
        %s175 = scalar_select %p174, %s18, 2
        %s176 = smul.addr %s175, 9
        %s177 = smul.addr %s176, 2
        %s178 = scalar_lea.vmem %s1, %s177
      $region28: #{att_decoding_block_layer.17} parent=19 // pred_fallthru
        _
    $region20: #{att_decoding_block_layer.17} parent=5 // pred_fallthru
      _
    %p179 = scmp.le.s32.totalorder 1, %s9
    %p180 = scmp.lt.s32.totalorder %s9, 49
    %p181 = pnand %p179, %p180
    %p182 = pneg %p181
    // Predicated region
    $region29: #{att_decoding_block_layer.17} parent=5 // pred_check
      _
    $region30: #{att_decoding_block_layer.17} parent=5 // pred_check_branch
      %184 = sbr.rel (%p181) target = $region32
    $region31: #{att_decoding_block_layer.17} parent=5 // pred_region
      %s185 = ssub.s32 %s9, 1
      %s186 = smul.u32 %s19, 10
      %s187 = sadd.s32 %s186, %s20
      %s188 = sadd.s32 %s187, %s21
      %p189 = scmp.lt.s32.totalorder %s188, 19
      %s190 = scalar_select %p189, %s188, 19
      %s191 = smul.addr %s190, 11
      %s192 = smul.addr %s191, 4
      %s193 = scalar_lea.vmem %s0, %s192
      %p194 = pneg %p60
      %p195 = pneg %p57
      %p196 = scmp.lt.s32.totalorder %s21, 2
      %s197 = scalar_select %p196, %s21, 2
      %s198 = smul.addr %s197, 9
      %s199 = smul.addr %s198, 2
      %s200 = scalar_lea.vmem %s1, %s199
      %p201 = pneg %p86
      %p202 = pneg %p83
      %p203 = pneg %p107
      %p204 = pneg %p104
      %p205 = pneg %p135
      %p206 = pneg %p132
      %p207 = scmp.lt.s32.totalorder %s19, 1
      %s208 = scalar_select %p207, %s19, 1
      %p209 = scmp.lt.s32.totalorder %s20, 7
      %s210 = scalar_select %p209, %s20, 7
      %s211 = smul.addr %s210, 8
      %s212 = smul.addr %s208, 64
      %s213 = sadd.s32 %s211, %s212
      %s214 = smul.addr %s213, 4
      %s215 = scalar_lea.vmem %s3, %s214
      %s216 = smul.u32 %s19, 10
      %s217 = sadd.s32 %s216, %s20
      %s218 = sadd.s32 %s217, %s21
      %p219 = scmp.lt.s32.totalorder %s218, 19
      %s220 = scalar_select %p219, %s218, 19
      %s221 = smul.addr %s220, 11
      %s222 = smul.addr %s221, 4
      %s223 = scalar_lea.vmem %s0, %s222
      %s224 = smul.u32 %s19, 10
      %s225 = sadd.s32 %s224, %s20
      %s226 = sadd.s32 %s225, %s21
      %p227 = scmp.lt.s32.totalorder %s21, 2
      %s228 = scalar_select %p227, %s21, 2
      %s229 = smul.addr %s228, 9
      %s230 = smul.addr %s229, 2
      %s231 = scalar_lea.vmem %s1, %s230
      %p232 = scmp.lt.s32.totalorder %s19, 1
      %s233 = scalar_select %p232, %s19, 1
      %p234 = scmp.lt.s32.totalorder %s20, 7
      %s235 = scalar_select %p234, %s20, 7
      %s236 = smul.addr %s235, 8
      %s237 = smul.addr %s233, 64
      %s238 = sadd.s32 %s236, %s237
      %s239 = smul.addr %s238, 4
      %s240 = scalar_lea.vmem %s3, %s239
      %p244 = scmp.eq.s32.totalorder %s21, 0
      // Predicated region
      $region33: #{att_decoding_block_layer.17} parent=31 // pred_check
        %p245 = pneg %p244
      $region34: #{att_decoding_block_layer.17} parent=31 // pred_check_branch
        %247 = sbr.rel (%p245) target = $region36
      $region35: #{att_decoding_block_layer.17} parent=31 // pred_region
        %vm248 = vcmask 31744
        %249 = vst.msk [vmem:[#allocation2] sm:$0xff] %vm248, 0.0
        %250 = vst.msk [vmem:[#allocation2 + $0x8] sm:$0xff] %vm248, 0.0
        %251 = vst.msk [vmem:[#allocation2 + $0x10] sm:$0xff] %vm248, 0.0
        %252 = vst.msk [vmem:[#allocation2 + $0x18] sm:$0xff] %vm248, 0.0
        %253 = vst.msk [vmem:[#allocation2 + $0x20] sm:$0xff] %vm248, 0.0
        %254 = vst.msk [vmem:[#allocation2 + $0x28] sm:$0xff] %vm248, 0.0
        %255 = vst.msk [vmem:[#allocation2 + $0x30] sm:$0xff] %vm248, 0.0
        %256 = vst.msk [vmem:[#allocation2 + $0x38] sm:$0xff] %vm248, 0.0
      $region36: #{att_decoding_block_layer.17} parent=31 // pred_fallthru
        _
      %v257 = vlaneseq
      %v258 = vshrl.u32 %v257, 7
      %v259 = vadd.s32 %v258, 8
      %v260 = vadd.s32 %v258, 16
      %v261 = vadd.s32 %v258, 24
      %v262 = vadd.s32 %v258, 32
      %v263 = vadd.s32 %v258, 40
      %v264 = vadd.s32 %v258, 48
      %v265 = vadd.s32 %v258, 56
      %vm266 = vcmp.lt.s32.totalorder %v258, 0
      %v267 = vsub.s32 0, %v258
      %v268 = vsel %vm266, %v267, %v258
      %v269 = vshrl.u32 %v268, 3
      %v270 = vand.u32 %v268, 7
      %v271 = vsub.s32 0, %v270
      %v272 = vsel %vm266, %v271, %v270
      %vm273 = vcmp.lt.s32.totalorder %v259, 0
      %v274 = vsub.s32 0, %v259
      %v275 = vsel %vm273, %v274, %v259
      %v276 = vshrl.u32 %v275, 3
      %v277 = vand.u32 %v275, 7
      %v278 = vsub.s32 0, %v277
      %v279 = vsel %vm273, %v278, %v277
      %vm280 = vcmp.lt.s32.totalorder %v260, 0
      %v281 = vsub.s32 0, %v260
      %v282 = vsel %vm280, %v281, %v260
      %v283 = vshrl.u32 %v282, 3
      %v284 = vand.u32 %v282, 7
      %v285 = vsub.s32 0, %v284
      %v286 = vsel %vm280, %v285, %v284
      %vm287 = vcmp.lt.s32.totalorder %v261, 0
      %v288 = vsub.s32 0, %v261
      %v289 = vsel %vm287, %v288, %v261
      %v290 = vshrl.u32 %v289, 3
      %v291 = vand.u32 %v289, 7
      %v292 = vsub.s32 0, %v291
      %v293 = vsel %vm287, %v292, %v291
      %vm294 = vcmp.lt.s32.totalorder %v262, 0
      %v295 = vsub.s32 0, %v262
      %v296 = vsel %vm294, %v295, %v262
      %v297 = vshrl.u32 %v296, 3
      %v298 = vand.u32 %v296, 7
      %v299 = vsub.s32 0, %v298
      %v300 = vsel %vm294, %v299, %v298
      %vm301 = vcmp.lt.s32.totalorder %v263, 0
      %v302 = vsub.s32 0, %v263
      %v303 = vsel %vm301, %v302, %v263
      %v304 = vshrl.u32 %v303, 3
      %v305 = vand.u32 %v303, 7
      %v306 = vsub.s32 0, %v305
      %v307 = vsel %vm301, %v306, %v305
      %vm308 = vcmp.lt.s32.totalorder %v264, 0
      %v309 = vsub.s32 0, %v264
      %v310 = vsel %vm308, %v309, %v264
      %v311 = vshrl.u32 %v310, 3
      %v312 = vand.u32 %v310, 7
      %v313 = vsub.s32 0, %v312
      %v314 = vsel %vm308, %v313, %v312
      %vm315 = vcmp.lt.s32.totalorder %v265, 0
      %v316 = vsub.s32 0, %v265
      %v317 = vsel %vm315, %v316, %v265
      %v318 = vshrl.u32 %v317, 3
      %v319 = vand.u32 %v317, 7
      %v320 = vsub.s32 0, %v319
      %v321 = vsel %vm315, %v320, %v319
      %vm322 = vcmp.ne.s32.totalorder %v272, 0
      %vm323 = vcmp.ne.s32.totalorder %v279, 0
      %vm324 = vcmp.ne.s32.totalorder %v286, 0
      %vm325 = vcmp.ne.s32.totalorder %v293, 0
      %vm326 = vcmp.ne.s32.totalorder %v300, 0
      %vm327 = vcmp.ne.s32.totalorder %v307, 0
      %vm328 = vcmp.ne.s32.totalorder %v314, 0
      %vm329 = vcmp.ne.s32.totalorder %v321, 0
      %vm330 = vcmp.lt.s32.totalorder %v272, 0
      %vm331 = vcmp.lt.s32.totalorder %v279, 0
      %vm332 = vcmp.lt.s32.totalorder %v286, 0
      %vm333 = vcmp.lt.s32.totalorder %v293, 0
      %vm334 = vcmp.lt.s32.totalorder %v300, 0
      %vm335 = vcmp.lt.s32.totalorder %v307, 0
      %vm336 = vcmp.lt.s32.totalorder %v314, 0
      %vm337 = vcmp.lt.s32.totalorder %v321, 0
      %vm338 = vmand %vm330, %vm322
      %vm339 = vmand %vm331, %vm323
      %vm340 = vmand %vm332, %vm324
      %vm341 = vmand %vm333, %vm325
      %vm342 = vmand %vm334, %vm326
      %vm343 = vmand %vm335, %vm327
      %vm344 = vmand %vm336, %vm328
      %vm345 = vmand %vm337, %vm329
      %v346 = vadd.s32 %v272, 8
      %v347 = vadd.s32 %v279, 8
      %v348 = vadd.s32 %v286, 8
      %v349 = vadd.s32 %v293, 8
      %v350 = vadd.s32 %v300, 8
      %v351 = vadd.s32 %v307, 8
      %v352 = vadd.s32 %v314, 8
      %v353 = vadd.s32 %v321, 8
      %v354 = vsel %vm338, %v346, %v272
      %v355 = vsel %vm339, %v347, %v279
      %v356 = vsel %vm340, %v348, %v286
      %v357 = vsel %vm341, %v349, %v293
      %v358 = vsel %vm342, %v350, %v300
      %v359 = vsel %vm343, %v351, %v307
      %v360 = vsel %vm344, %v352, %v314
      %v361 = vsel %vm345, %v353, %v321
      %v362 = vld [vmem:[%s223] sm:$0xf]
      %v363 = vld [vmem:[%s223 + $0x4] sm:$0xf]
      %v364 = vld [vmem:[%s223 + $0x8] sm:$0xf]
      %v365 = vld [vmem:[%s223 + $0xc] sm:$0xf]
      %v366 = vld [vmem:[%s223 + $0x10] sm:$0xf]
      %v367 = vld [vmem:[%s223 + $0x14] sm:$0xf]
      %v368 = vld [vmem:[%s223 + $0x18] sm:$0xf]
      %v369 = vld [vmem:[%s223 + $0x1c] sm:$0xf]
      %vm370 = vcmp.ge.s32.totalorder %v354, 1
      %vm371 = vcmp.ge.s32.totalorder %v355, 1
      %vm372 = vcmp.ge.s32.totalorder %v356, 1
      %vm373 = vcmp.ge.s32.totalorder %v357, 1
      %vm374 = vcmp.ge.s32.totalorder %v358, 1
      %vm375 = vcmp.ge.s32.totalorder %v359, 1
      %vm376 = vcmp.ge.s32.totalorder %v360, 1
      %vm377 = vcmp.ge.s32.totalorder %v361, 1
      %v378 = vsel %vm370, 1, 0
      %v379 = vsel %vm371, 1, 0
      %v380 = vsel %vm372, 1, 0
      %v381 = vsel %vm373, 1, 0
      %v382 = vsel %vm374, 1, 0
      %v383 = vsel %vm375, 1, 0
      %v384 = vsel %vm376, 1, 0
      %v385 = vsel %vm377, 1, 0
      %vm386 = vcmp.eq.s32.totalorder %v378, 1
      %vm387 = vcmp.eq.s32.totalorder %v379, 1
      %vm388 = vcmp.eq.s32.totalorder %v380, 1
      %vm389 = vcmp.eq.s32.totalorder %v381, 1
      %vm390 = vcmp.eq.s32.totalorder %v382, 1
      %vm391 = vcmp.eq.s32.totalorder %v383, 1
      %vm392 = vcmp.eq.s32.totalorder %v384, 1
      %vm393 = vcmp.eq.s32.totalorder %v385, 1
      %vm394 = vmpackc.low %vm386, %vm386
      %vm395 = vmpackc.low %vm387, %vm387
      %vm396 = vmpackc.low %vm388, %vm388
      %vm397 = vmpackc.low %vm389, %vm389
      %vm398 = vmpackc.low %vm390, %vm390
      %vm399 = vmpackc.low %vm391, %vm391
      %vm400 = vmpackc.low %vm392, %vm392
      %vm401 = vmpackc.low %vm393, %vm393
      %v402 = vsel %vm394, %v362, 0
      %v403 = vsel %vm395, %v363, 0
      %v404 = vsel %vm396, %v364, 0
      %v405 = vsel %vm397, %v365, 0
      %v406 = vsel %vm398, %v366, 0
      %v407 = vsel %vm399, %v367, 0
      %v408 = vsel %vm400, %v368, 0
      %v409 = vsel %vm401, %v369, 0
      %v410 = vld [vmem:[#allocation2] sm:$0xff]
      %v411 = vld [vmem:[#allocation2 + $0x8] sm:$0xff]
      %v412 = vld [vmem:[#allocation2 + $0x10] sm:$0xff]
      %v413 = vld [vmem:[#allocation2 + $0x18] sm:$0xff]
      %v414 = vld [vmem:[#allocation2 + $0x20] sm:$0xff]
      %v415 = vld [vmem:[#allocation2 + $0x28] sm:$0xff]
      %v416 = vld [vmem:[#allocation2 + $0x30] sm:$0xff]
      %v417 = vld [vmem:[#allocation2 + $0x38] sm:$0xff]
      %v418 = vld [vmem:[%s231] sm:$0x3]
      %v427 = vunpack.c.l.b16 %v402
      %v428 = vunpack.c.l.b16 %v403
      %v429 = vunpack.c.l.b16 %v404
      %v430 = vunpack.c.l.b16 %v405
      %v431 = vunpack.c.l.b16 %v406
      %v432 = vunpack.c.l.b16 %v407
      %v433 = vunpack.c.l.b16 %v408
      %v434 = vunpack.c.l.b16 %v409
      %v435 = vpack.c.b16 %v428, %v427
      %v436 = vpack.c.b16 %v430, %v429
      %v437 = vpack.c.b16 %v432, %v431
      %v438 = vpack.c.b16 %v434, %v433
      %vm439 = vcmask 31744
      %v441 = vsel %vm439, %v435, 0
      %v444 = vsel %vm439, %v436, 0
      %v447 = vsel %vm439, %v437, 0
      %v450 = vsel %vm439, %v438, 0
      %vm452 = vcmask 1041408
      %v454 = vsel %vm452, %v418, 0
      %456 = vmatprep.subr.bf16.mxu0 0
      %457 = vmatpush1.bf16.msra.mxu0 %v454
      %458 = vmatprep.subr.bf16.mxu0 0
      %459 = vmatpush1.bf16.msra.mxu0 0
      %460 = vmatprep.subr.bf16.mxu0 0
      %461 = vmatpush1.bf16.msra.mxu0 0
      %462 = vmatprep.subr.bf16.mxu0 0
      %463 = vmatpush1.bf16.msra.mxu0 0
      %464 = vmatprep.subr.bf16.mxu0 0
      %465 = vmatpush1.bf16.msra.mxu0 0
      %466 = vmatprep.subr.bf16.mxu0 0
      %467 = vmatpush1.bf16.msra.mxu0 0
      %468 = vmatprep.subr.bf16.mxu0 0
      %469 = vmatpush1.bf16.msra.mxu0 0
      %470 = vmatprep.subr.bf16.mxu0 0
      %471 = vmatpush1.bf16.msra.mxu0 0
      %472 = vmatprep.subr.bf16.mxu0 0
      %473 = vmatpush1.bf16.msra.mxu0 0
      %474 = vmatprep.subr.bf16.mxu0 0
      %475 = vmatpush1.bf16.msra.mxu0 0
      %476 = vmatprep.subr.bf16.mxu0 0
      %477 = vmatpush1.bf16.msra.mxu0 0
      %478 = vmatprep.subr.bf16.mxu0 0
      %479 = vmatpush1.bf16.msra.mxu0 0
      %480 = vmatprep.subr.bf16.mxu0 0
      %481 = vmatpush1.bf16.msra.mxu0 0
      %482 = vmatprep.subr.bf16.mxu0 0
      %483 = vmatpush1.bf16.msra.mxu0 0
      %484 = vmatprep.subr.bf16.mxu0 0
      %485 = vmatpush1.bf16.msra.mxu0 0
      %486 = vmatprep.subr.bf16.mxu0 0
      %487 = vmatpush1.bf16.msra.mxu0 0
      %488 = vmatprep.mubr.bf16.mxu0 0
      %489 = vmatmul.mubr.bf16.gmra.mrb[0].mxu0 %v441
      %v490 = vpop.f32.mrb[0].mxu0
      %v491 = vadd.f32 0.0, %v490
      %v492 = vpop.f32.mrb[0].mxu0
      %v493 = vpop.f32.mrb[0].mxu0
      %v494 = vadd.f32 0.0, %v493
      %v495 = vpop.f32.mrb[0].mxu0
      %496 = vmatprep.mubr.bf16.mxu0 0
      %497 = vmatmul.mubr.bf16.gmra.mrb[0].mxu0 %v444
      %v498 = vpop.f32.mrb[0].mxu0
      %v499 = vadd.f32 0.0, %v498
      %v500 = vpop.f32.mrb[0].mxu0
      %v501 = vpop.f32.mrb[0].mxu0
      %v502 = vadd.f32 0.0, %v501
      %v503 = vpop.f32.mrb[0].mxu0
      %504 = vmatprep.mubr.bf16.mxu0 0
      %505 = vmatmul.mubr.bf16.gmra.mrb[0].mxu0 %v447
      %v506 = vpop.f32.mrb[0].mxu0
      %v507 = vadd.f32 0.0, %v506
      %v508 = vpop.f32.mrb[0].mxu0
      %v509 = vpop.f32.mrb[0].mxu0
      %v510 = vadd.f32 0.0, %v509
      %v511 = vpop.f32.mrb[0].mxu0
      %512 = vmatprep.mubr.bf16.mxu0 0
      %513 = vmatmul.mubr.bf16.gmra.mrb[0].mxu0 %v450
      %v514 = vpop.f32.mrb[0].mxu0
      %v515 = vadd.f32 0.0, %v514
      %v516 = vpop.f32.mrb[0].mxu0
      %v517 = vpop.f32.mrb[0].mxu0
      %v518 = vadd.f32 0.0, %v517
      %v519 = vpop.f32.mrb[0].mxu0
      %520 = vdwg.mxu0
      %v521 = vadd.f32 %v410, %v491
      %v522 = vadd.f32 %v411, %v494
      %v523 = vadd.f32 %v412, %v499
      %v524 = vadd.f32 %v413, %v502
      %v525 = vadd.f32 %v414, %v507
      %v526 = vadd.f32 %v415, %v510
      %v527 = vadd.f32 %v416, %v515
      %v528 = vadd.f32 %v417, %v518
      %529 = vst.msk [vmem:[#allocation2] sm:$0xff] %vm439, %v521
      %530 = vst.msk [vmem:[#allocation2 + $0x8] sm:$0xff] %vm439, %v522
      %531 = vst.msk [vmem:[#allocation2 + $0x10] sm:$0xff] %vm439, %v523
      %532 = vst.msk [vmem:[#allocation2 + $0x18] sm:$0xff] %vm439, %v524
      %533 = vst.msk [vmem:[#allocation2 + $0x20] sm:$0xff] %vm439, %v525
      %534 = vst.msk [vmem:[#allocation2 + $0x28] sm:$0xff] %vm439, %v526
      %535 = vst.msk [vmem:[#allocation2 + $0x30] sm:$0xff] %vm439, %v527
      %536 = vst.msk [vmem:[#allocation2 + $0x38] sm:$0xff] %vm439, %v528
      %v537 = vld [vmem:[%s223] sm:$0xf]
      %v538 = vld [vmem:[%s223 + $0x4] sm:$0xf]
      %v539 = vld [vmem:[%s223 + $0x8] sm:$0xf]
      %v540 = vld [vmem:[%s223 + $0xc] sm:$0xf]
      %v541 = vld [vmem:[%s223 + $0x10] sm:$0xf]
      %v542 = vld [vmem:[%s223 + $0x14] sm:$0xf]
      %v543 = vld [vmem:[%s223 + $0x18] sm:$0xf]
      %v544 = vld [vmem:[%s223 + $0x1c] sm:$0xf]
      %v545 = vld [vmem:[%s223 + $0x20] sm:$0x1]
      %v546 = vld [vmem:[#allocation2] sm:$0xff]
      %v547 = vld [vmem:[#allocation2 + $0x8] sm:$0xff]
      %v548 = vld [vmem:[#allocation2 + $0x10] sm:$0xff]
      %v549 = vld [vmem:[#allocation2 + $0x18] sm:$0xff]
      %v550 = vld [vmem:[#allocation2 + $0x20] sm:$0xff]
      %v551 = vld [vmem:[#allocation2 + $0x28] sm:$0xff]
      %v552 = vld [vmem:[#allocation2 + $0x30] sm:$0xff]
      %v553 = vld [vmem:[#allocation2 + $0x38] sm:$0xff]
      %s554 = scalar_lea.vmem %s231, 2
      %v555 = vld [vmem:[%s554] sm:$0x3]
      %v565 = vunpack.c.l.b16 %v537
      %v566 = vunpack.c.l.b16 %v538
      %v567 = vunpack.c.l.b16 %v539
      %v568 = vunpack.c.l.b16 %v540
      %v569 = vunpack.c.l.b16 %v541
      %v570 = vunpack.c.l.b16 %v542
      %v571 = vunpack.c.l.b16 %v543
      %v572 = vunpack.c.l.b16 %v544
      %v573 = vunpack.c.l.b16 %v545
      %v574 = vpack.c.b16 %v566, %v565
      %v575 = vpack.c.b16 %v568, %v567
      %v576 = vpack.c.b16 %v570, %v569
      %v577 = vpack.c.b16 %v572, %v571
      %v578 = vpack.c.b16 %v573, %v573
      %vm579 = vsmask.f32 7424
      %v581 = vshrl.u32 %v574, 16
      %v583 = vshll.u32 %v574, 16
      %v585 = vrot.slane %v583, 1
      %v586 = vor.u32 %v581, %v585
      %v588 = vshll.u32 %v575, 16
      %v590 = vrot.slane %v588, 1
      %v591 = vsel %vm579, %v586, %v590
      %v592 = vshrl.u32 %v575, 16
      %v594 = vor.u32 %v592, %v590
      %v596 = vshll.u32 %v576, 16
      %v598 = vrot.slane %v596, 1
      %v599 = vsel %vm579, %v594, %v598
      %v600 = vshrl.u32 %v576, 16
      %v602 = vor.u32 %v600, %v598
      %v604 = vshll.u32 %v577, 16
      %v606 = vrot.slane %v604, 1
      %v607 = vsel %vm579, %v602, %v606
      %v608 = vshrl.u32 %v577, 16
      %v610 = vor.u32 %v608, %v606
      %v612 = vshll.u32 %v578, 16
      %v614 = vrot.slane %v612, 1
      %v615 = vsel %vm579, %v610, %v614
      %v617 = vsel %vm439, %v591, 0
      %v620 = vsel %vm439, %v599, 0
      %v623 = vsel %vm439, %v607, 0
      %v626 = vsel %vm439, %v615, 0
      %v629 = vsel %vm452, %v555, 0
      %631 = vmatprep.subr.bf16.mxu0 0
      %632 = vmatpush1.bf16.msra.mxu0 %v629
      %633 = vmatprep.subr.bf16.mxu0 0
      %634 = vmatpush1.bf16.msra.mxu0 0
      %635 = vmatprep.subr.bf16.mxu0 0
      %636 = vmatpush1.bf16.msra.mxu0 0
      %637 = vmatprep.subr.bf16.mxu0 0
      %638 = vmatpush1.bf16.msra.mxu0 0
      %639 = vmatprep.subr.bf16.mxu0 0
      %640 = vmatpush1.bf16.msra.mxu0 0
      %641 = vmatprep.subr.bf16.mxu0 0
      %642 = vmatpush1.bf16.msra.mxu0 0
      %643 = vmatprep.subr.bf16.mxu0 0
      %644 = vmatpush1.bf16.msra.mxu0 0
      %645 = vmatprep.subr.bf16.mxu0 0
      %646 = vmatpush1.bf16.msra.mxu0 0
      %647 = vmatprep.subr.bf16.mxu0 0
      %648 = vmatpush1.bf16.msra.mxu0 0
      %649 = vmatprep.subr.bf16.mxu0 0
      %650 = vmatpush1.bf16.msra.mxu0 0
      %651 = vmatprep.subr.bf16.mxu0 0
      %652 = vmatpush1.bf16.msra.mxu0 0
      %653 = vmatprep.subr.bf16.mxu0 0
      %654 = vmatpush1.bf16.msra.mxu0 0
      %655 = vmatprep.subr.bf16.mxu0 0
      %656 = vmatpush1.bf16.msra.mxu0 0
      %657 = vmatprep.subr.bf16.mxu0 0
      %658 = vmatpush1.bf16.msra.mxu0 0
      %659 = vmatprep.subr.bf16.mxu0 0
      %660 = vmatpush1.bf16.msra.mxu0 0
      %661 = vmatprep.subr.bf16.mxu0 0
      %662 = vmatpush1.bf16.msra.mxu0 0
      %663 = vmatprep.mubr.bf16.mxu0 0
      %664 = vmatmul.mubr.bf16.gmra.mrb[0].mxu0 %v617
      %v665 = vpop.f32.mrb[0].mxu0
      %v666 = vadd.f32 0.0, %v665
      %v667 = vpop.f32.mrb[0].mxu0
      %v668 = vpop.f32.mrb[0].mxu0
      %v669 = vadd.f32 0.0, %v668
      %v670 = vpop.f32.mrb[0].mxu0
      %671 = vmatprep.mubr.bf16.mxu0 0
      %672 = vmatmul.mubr.bf16.gmra.mrb[0].mxu0 %v620
      %v673 = vpop.f32.mrb[0].mxu0
      %v674 = vadd.f32 0.0, %v673
      %v675 = vpop.f32.mrb[0].mxu0
      %v676 = vpop.f32.mrb[0].mxu0
      %v677 = vadd.f32 0.0, %v676
      %v678 = vpop.f32.mrb[0].mxu0
      %679 = vmatprep.mubr.bf16.mxu0 0
      %680 = vmatmul.mubr.bf16.gmra.mrb[0].mxu0 %v623
      %v681 = vpop.f32.mrb[0].mxu0
      %v682 = vadd.f32 0.0, %v681
      %v683 = vpop.f32.mrb[0].mxu0
      %v684 = vpop.f32.mrb[0].mxu0
      %v685 = vadd.f32 0.0, %v684
      %v686 = vpop.f32.mrb[0].mxu0
      %687 = vmatprep.mubr.bf16.mxu0 0
      %688 = vmatmul.mubr.bf16.gmra.mrb[0].mxu0 %v626
      %v689 = vpop.f32.mrb[0].mxu0
      %v690 = vadd.f32 0.0, %v689
      %v691 = vpop.f32.mrb[0].mxu0
      %v692 = vpop.f32.mrb[0].mxu0
      %v693 = vadd.f32 0.0, %v692
      %v694 = vpop.f32.mrb[0].mxu0
      %695 = vdwg.mxu0
      %v696 = vadd.f32 %v546, %v666
      %v697 = vadd.f32 %v547, %v669
      %v698 = vadd.f32 %v548, %v674
      %v699 = vadd.f32 %v549, %v677
      %v700 = vadd.f32 %v550, %v682
      %v701 = vadd.f32 %v551, %v685
      %v702 = vadd.f32 %v552, %v690
      %v703 = vadd.f32 %v553, %v693
      %704 = vst.msk [vmem:[#allocation2] sm:$0xff] %vm439, %v696
      %705 = vst.msk [vmem:[#allocation2 + $0x8] sm:$0xff] %vm439, %v697
      %706 = vst.msk [vmem:[#allocation2 + $0x10] sm:$0xff] %vm439, %v698
      %707 = vst.msk [vmem:[#allocation2 + $0x18] sm:$0xff] %vm439, %v699
      %708 = vst.msk [vmem:[#allocation2 + $0x20] sm:$0xff] %vm439, %v700
      %709 = vst.msk [vmem:[#allocation2 + $0x28] sm:$0xff] %vm439, %v701
      %710 = vst.msk [vmem:[#allocation2 + $0x30] sm:$0xff] %vm439, %v702
      %711 = vst.msk [vmem:[#allocation2 + $0x38] sm:$0xff] %vm439, %v703
      %v712 = vld [vmem:[%s223] sm:$0xe]
      %v713 = vld [vmem:[%s223 + $0x4] sm:$0xf]
      %v714 = vld [vmem:[%s223 + $0x8] sm:$0xf]
      %v715 = vld [vmem:[%s223 + $0xc] sm:$0xf]
      %v716 = vld [vmem:[%s223 + $0x10] sm:$0xf]
      %v717 = vld [vmem:[%s223 + $0x14] sm:$0xf]
      %v718 = vld [vmem:[%s223 + $0x18] sm:$0xf]
      %v719 = vld [vmem:[%s223 + $0x1c] sm:$0xf]
      %v720 = vld [vmem:[%s223 + $0x20] sm:$0x1]
      %vm721 = vcmp.lt.s32.totalorder %v354, 7
      %vm722 = vcmp.lt.s32.totalorder %v355, 7
      %vm723 = vcmp.lt.s32.totalorder %v356, 7
      %vm724 = vcmp.lt.s32.totalorder %v357, 7
      %vm725 = vcmp.lt.s32.totalorder %v358, 7
      %vm726 = vcmp.lt.s32.totalorder %v359, 7
      %vm727 = vcmp.lt.s32.totalorder %v360, 7
      %vm728 = vcmp.lt.s32.totalorder %v361, 7
      %v729 = vsel %vm721, 1, 0
      %v730 = vsel %vm722, 1, 0
      %v731 = vsel %vm723, 1, 0
      %v732 = vsel %vm724, 1, 0
      %v733 = vsel %vm725, 1, 0
      %v734 = vsel %vm726, 1, 0
      %v735 = vsel %vm727, 1, 0
      %v736 = vsel %vm728, 1, 0
      %vm737 = vcmp.eq.s32.totalorder %v729, 1
      %vm738 = vcmp.eq.s32.totalorder %v730, 1
      %vm739 = vcmp.eq.s32.totalorder %v731, 1
      %vm740 = vcmp.eq.s32.totalorder %v732, 1
      %vm741 = vcmp.eq.s32.totalorder %v733, 1
      %vm742 = vcmp.eq.s32.totalorder %v734, 1
      %vm743 = vcmp.eq.s32.totalorder %v735, 1
      %vm744 = vcmp.eq.s32.totalorder %v736, 1
      %vm745 = vmpackc.low %vm737, %vm737
      %vm746 = vmpackc.low %vm738, %vm738
      %vm747 = vmpackc.low %vm739, %vm739
      %vm748 = vmpackc.low %vm740, %vm740
      %vm749 = vmpackc.low %vm741, %vm741
      %vm750 = vmpackc.low %vm742, %vm742
      %vm751 = vmpackc.low %vm743, %vm743
      %vm752 = vmpackc.low %vm744, %vm744
      %v753 = vsel %vm745, 65537, 0
      %v754 = vsel %vm746, 65537, 0
      %v755 = vsel %vm747, 65537, 0
      %v756 = vsel %vm748, 65537, 0
      %v757 = vsel %vm749, 65537, 0
      %v758 = vsel %vm750, 65537, 0
      %v759 = vsel %vm751, 65537, 0
      %v760 = vsel %vm752, 65537, 0
      %vm761 = vcmask 1040384
      %vm762 = vcmask 1044484
      %vm763 = vmor %vm761, %vm762
      %v764 = vrot.slane %v753, 7
      %v765 = vrot.slane %v764, 4
      %v766 = vrot.slane %v754, 7
      %v767 = vsel %vm763, %v765, %v766
      %v768 = vrot.slane %v766, 4
      %v769 = vrot.slane %v755, 7
      %v770 = vsel %vm763, %v768, %v769
      %v771 = vrot.slane %v769, 4
      %v772 = vrot.slane %v756, 7
      %v773 = vsel %vm763, %v771, %v772
      %v774 = vrot.slane %v772, 4
      %v775 = vrot.slane %v757, 7
      %v776 = vsel %vm763, %v774, %v775
      %v777 = vrot.slane %v775, 4
      %v778 = vrot.slane %v758, 7
      %v779 = vsel %vm763, %v777, %v778
      %v780 = vrot.slane %v778, 4
      %v781 = vrot.slane %v759, 7
      %v782 = vsel %vm763, %v780, %v781
      %v783 = vrot.slane %v781, 4
      %v784 = vrot.slane %v760, 7
      %v785 = vsel %vm763, %v783, %v784
      %v786 = vrot.slane %v784, 4
      %vm787 = vcmp.ne.s16.totalorder %v764, 0
      %vm788 = vcmp.ne.s16.totalorder %v767, 0
      %vm789 = vcmp.ne.s16.totalorder %v770, 0
      %vm790 = vcmp.ne.s16.totalorder %v773, 0
      %vm791 = vcmp.ne.s16.totalorder %v776, 0
      %vm792 = vcmp.ne.s16.totalorder %v779, 0
      %vm793 = vcmp.ne.s16.totalorder %v782, 0
      %vm794 = vcmp.ne.s16.totalorder %v785, 0
      %vm795 = vcmp.ne.s16.totalorder %v786, 0
      %v796 = vsel %vm787, %v712, 0
      %v797 = vsel %vm788, %v713, 0
      %v798 = vsel %vm789, %v714, 0
      %v799 = vsel %vm790, %v715, 0
      %v800 = vsel %vm791, %v716, 0
      %v801 = vsel %vm792, %v717, 0
      %v802 = vsel %vm793, %v718, 0
      %v803 = vsel %vm794, %v719, 0
      %v804 = vsel %vm795, %v720, 0
      %v805 = vld [vmem:[#allocation2] sm:$0xff]
      %v806 = vld [vmem:[#allocation2 + $0x8] sm:$0xff]
      %v807 = vld [vmem:[#allocation2 + $0x10] sm:$0xff]
      %v808 = vld [vmem:[#allocation2 + $0x18] sm:$0xff]
      %v809 = vld [vmem:[#allocation2 + $0x20] sm:$0xff]
      %v810 = vld [vmem:[#allocation2 + $0x28] sm:$0xff]
      %v811 = vld [vmem:[#allocation2 + $0x30] sm:$0xff]
      %v812 = vld [vmem:[#allocation2 + $0x38] sm:$0xff]
      %s813 = scalar_lea.vmem %s231, 4
      %v814 = vld [vmem:[%s813] sm:$0x3]
      %v824 = vunpack.c.l.b16 %v796
      %v825 = vunpack.c.l.b16 %v797
      %v826 = vunpack.c.l.b16 %v798
      %v827 = vunpack.c.l.b16 %v799
      %v828 = vunpack.c.l.b16 %v800
      %v829 = vunpack.c.l.b16 %v801
      %v830 = vunpack.c.l.b16 %v802
      %v831 = vunpack.c.l.b16 %v803
      %v832 = vunpack.c.l.b16 %v804
      %v833 = vpack.c.b16 %v825, %v824
      %v834 = vpack.c.b16 %v827, %v826
      %v835 = vpack.c.b16 %v829, %v828
      %v836 = vpack.c.b16 %v831, %v830
      %v837 = vpack.c.b16 %v832, %v832
      %vm838 = vcmask 1046528
      %v839 = vrot.slane %v833, 1
      %v840 = vrot.slane %v834, 1
      %v841 = vsel %vm838, %v839, %v840
      %v842 = vrot.slane %v835, 1
      %v843 = vsel %vm838, %v840, %v842
      %v844 = vrot.slane %v836, 1
      %v845 = vsel %vm838, %v842, %v844
      %v846 = vrot.slane %v837, 1
      %v847 = vsel %vm838, %v844, %v846
      %v849 = vsel %vm439, %v841, 0
      %v852 = vsel %vm439, %v843, 0
      %v855 = vsel %vm439, %v845, 0
      %v858 = vsel %vm439, %v847, 0
      %v861 = vsel %vm452, %v814, 0
      %863 = vmatprep.subr.bf16.mxu0 0
      %864 = vmatpush1.bf16.msra.mxu0 %v861
      %865 = vmatprep.subr.bf16.mxu0 0
      %866 = vmatpush1.bf16.msra.mxu0 0
      %867 = vmatprep.subr.bf16.mxu0 0
      %868 = vmatpush1.bf16.msra.mxu0 0
      %869 = vmatprep.subr.bf16.mxu0 0
      %870 = vmatpush1.bf16.msra.mxu0 0
      %871 = vmatprep.subr.bf16.mxu0 0
      %872 = vmatpush1.bf16.msra.mxu0 0
      %873 = vmatprep.subr.bf16.mxu0 0
      %874 = vmatpush1.bf16.msra.mxu0 0
      %875 = vmatprep.subr.bf16.mxu0 0
      %876 = vmatpush1.bf16.msra.mxu0 0
      %877 = vmatprep.subr.bf16.mxu0 0
      %878 = vmatpush1.bf16.msra.mxu0 0
      %879 = vmatprep.subr.bf16.mxu0 0
      %880 = vmatpush1.bf16.msra.mxu0 0
      %881 = vmatprep.subr.bf16.mxu0 0
      %882 = vmatpush1.bf16.msra.mxu0 0
      %883 = vmatprep.subr.bf16.mxu0 0
      %884 = vmatpush1.bf16.msra.mxu0 0
      %885 = vmatprep.subr.bf16.mxu0 0
      %886 = vmatpush1.bf16.msra.mxu0 0
      %887 = vmatprep.subr.bf16.mxu0 0
      %888 = vmatpush1.bf16.msra.mxu0 0
      %889 = vmatprep.subr.bf16.mxu0 0
      %890 = vmatpush1.bf16.msra.mxu0 0
      %891 = vmatprep.subr.bf16.mxu0 0
      %892 = vmatpush1.bf16.msra.mxu0 0
      %893 = vmatprep.subr.bf16.mxu0 0
      %894 = vmatpush1.bf16.msra.mxu0 0
      %895 = vmatprep.mubr.bf16.mxu0 0
      %896 = vmatmul.mubr.bf16.gmra.mrb[0].mxu0 %v849
      %v897 = vpop.f32.mrb[0].mxu0
      %v898 = vadd.f32 0.0, %v897
      %v899 = vpop.f32.mrb[0].mxu0
      %v900 = vpop.f32.mrb[0].mxu0
      %v901 = vadd.f32 0.0, %v900
      %v902 = vpop.f32.mrb[0].mxu0
      %903 = vmatprep.mubr.bf16.mxu0 0
      %904 = vmatmul.mubr.bf16.gmra.mrb[0].mxu0 %v852
      %v905 = vpop.f32.mrb[0].mxu0
      %v906 = vadd.f32 0.0, %v905
      %v907 = vpop.f32.mrb[0].mxu0
      %v908 = vpop.f32.mrb[0].mxu0
      %v909 = vadd.f32 0.0, %v908
      %v910 = vpop.f32.mrb[0].mxu0
      %911 = vmatprep.mubr.bf16.mxu0 0
      %912 = vmatmul.mubr.bf16.gmra.mrb[0].mxu0 %v855
      %v913 = vpop.f32.mrb[0].mxu0
      %v914 = vadd.f32 0.0, %v913
      %v915 = vpop.f32.mrb[0].mxu0
      %v916 = vpop.f32.mrb[0].mxu0
      %v917 = vadd.f32 0.0, %v916
      %v918 = vpop.f32.mrb[0].mxu0
      %919 = vmatprep.mubr.bf16.mxu0 0
      %920 = vmatmul.mubr.bf16.gmra.mrb[0].mxu0 %v858
      %v921 = vpop.f32.mrb[0].mxu0
      %v922 = vadd.f32 0.0, %v921
      %v923 = vpop.f32.mrb[0].mxu0
      %v924 = vpop.f32.mrb[0].mxu0
      %v925 = vadd.f32 0.0, %v924
      %v926 = vpop.f32.mrb[0].mxu0
      %927 = vdwg.mxu0
      %v928 = vadd.f32 %v805, %v898
      %v929 = vadd.f32 %v806, %v901
      %v930 = vadd.f32 %v807, %v906
      %v931 = vadd.f32 %v808, %v909
      %v932 = vadd.f32 %v809, %v914
      %v933 = vadd.f32 %v810, %v917
      %v934 = vadd.f32 %v811, %v922
      %v935 = vadd.f32 %v812, %v925
      %936 = vst.msk [vmem:[#allocation2] sm:$0xff] %vm439, %v928
      %937 = vst.msk [vmem:[#allocation2 + $0x8] sm:$0xff] %vm439, %v929
      %938 = vst.msk [vmem:[#allocation2 + $0x10] sm:$0xff] %vm439, %v930
      %939 = vst.msk [vmem:[#allocation2 + $0x18] sm:$0xff] %vm439, %v931
      %940 = vst.msk [vmem:[#allocation2 + $0x20] sm:$0xff] %vm439, %v932
      %941 = vst.msk [vmem:[#allocation2 + $0x28] sm:$0xff] %vm439, %v933
      %942 = vst.msk [vmem:[#allocation2 + $0x30] sm:$0xff] %vm439, %v934
      %943 = vst.msk [vmem:[#allocation2 + $0x38] sm:$0xff] %vm439, %v935
      %v944 = vld [vmem:[%s223 + $0x4] sm:$0xf]
      %v945 = vld [vmem:[%s223 + $0x8] sm:$0xf]
      %v946 = vld [vmem:[%s223 + $0xc] sm:$0xf]
      %v947 = vld [vmem:[%s223 + $0x10] sm:$0xf]
      %v948 = vld [vmem:[%s223 + $0x14] sm:$0xf]
      %v949 = vld [vmem:[%s223 + $0x18] sm:$0xf]
      %v950 = vld [vmem:[%s223 + $0x1c] sm:$0xf]
      %v951 = vld [vmem:[%s223 + $0x20] sm:$0xf]
      %v952 = vsel %vm394, %v944, 0
      %v953 = vsel %vm395, %v945, 0
      %v954 = vsel %vm396, %v946, 0
      %v955 = vsel %vm397, %v947, 0
      %v956 = vsel %vm398, %v948, 0
      %v957 = vsel %vm399, %v949, 0
      %v958 = vsel %vm400, %v950, 0
      %v959 = vsel %vm401, %v951, 0
      %v960 = vld [vmem:[#allocation2] sm:$0xff]
      %v961 = vld [vmem:[#allocation2 + $0x8] sm:$0xff]
      %v962 = vld [vmem:[#allocation2 + $0x10] sm:$0xff]
      %v963 = vld [vmem:[#allocation2 + $0x18] sm:$0xff]
      %v964 = vld [vmem:[#allocation2 + $0x20] sm:$0xff]
      %v965 = vld [vmem:[#allocation2 + $0x28] sm:$0xff]
      %v966 = vld [vmem:[#allocation2 + $0x30] sm:$0xff]
      %v967 = vld [vmem:[#allocation2 + $0x38] sm:$0xff]
      %s968 = scalar_lea.vmem %s231, 6
      %v969 = vld [vmem:[%s968] sm:$0x3]
      %v978 = vunpack.c.l.b16 %v952
      %v979 = vunpack.c.l.b16 %v953
      %v980 = vunpack.c.l.b16 %v954
      %v981 = vunpack.c.l.b16 %v955
      %v982 = vunpack.c.l.b16 %v956
      %v983 = vunpack.c.l.b16 %v957
      %v984 = vunpack.c.l.b16 %v958
      %v985 = vunpack.c.l.b16 %v959
      %v986 = vpack.c.b16 %v979, %v978
      %v987 = vpack.c.b16 %v981, %v980
      %v988 = vpack.c.b16 %v983, %v982
      %v989 = vpack.c.b16 %v985, %v984
      %v991 = vsel %vm439, %v986, 0
      %v994 = vsel %vm439, %v987, 0
      %v997 = vsel %vm439, %v988, 0
      %v1000 = vsel %vm439, %v989, 0
      %v1003 = vsel %vm452, %v969, 0
      %1005 = vmatprep.subr.bf16.mxu0 0
      %1006 = vmatpush1.bf16.msra.mxu0 %v1003
      %1007 = vmatprep.subr.bf16.mxu0 0
      %1008 = vmatpush1.bf16.msra.mxu0 0
      %1009 = vmatprep.subr.bf16.mxu0 0
      %1010 = vmatpush1.bf16.msra.mxu0 0
      %1011 = vmatprep.subr.bf16.mxu0 0
      %1012 = vmatpush1.bf16.msra.mxu0 0
      %1013 = vmatprep.subr.bf16.mxu0 0
      %1014 = vmatpush1.bf16.msra.mxu0 0
      %1015 = vmatprep.subr.bf16.mxu0 0
      %1016 = vmatpush1.bf16.msra.mxu0 0
      %1017 = vmatprep.subr.bf16.mxu0 0
      %1018 = vmatpush1.bf16.msra.mxu0 0
      %1019 = vmatprep.subr.bf16.mxu0 0
      %1020 = vmatpush1.bf16.msra.mxu0 0
      %1021 = vmatprep.subr.bf16.mxu0 0
      %1022 = vmatpush1.bf16.msra.mxu0 0
      %1023 = vmatprep.subr.bf16.mxu0 0
      %1024 = vmatpush1.bf16.msra.mxu0 0
      %1025 = vmatprep.subr.bf16.mxu0 0
      %1026 = vmatpush1.bf16.msra.mxu0 0
      %1027 = vmatprep.subr.bf16.mxu0 0
      %1028 = vmatpush1.bf16.msra.mxu0 0
      %1029 = vmatprep.subr.bf16.mxu0 0
      %1030 = vmatpush1.bf16.msra.mxu0 0
      %1031 = vmatprep.subr.bf16.mxu0 0
      %1032 = vmatpush1.bf16.msra.mxu0 0
      %1033 = vmatprep.subr.bf16.mxu0 0
      %1034 = vmatpush1.bf16.msra.mxu0 0
      %1035 = vmatprep.subr.bf16.mxu0 0
      %1036 = vmatpush1.bf16.msra.mxu0 0
      %1037 = vmatprep.mubr.bf16.mxu0 0
      %1038 = vmatmul.mubr.bf16.gmra.mrb[0].mxu0 %v991
      %v1039 = vpop.f32.mrb[0].mxu0
      %v1040 = vadd.f32 0.0, %v1039
      %v1041 = vpop.f32.mrb[0].mxu0
      %v1042 = vpop.f32.mrb[0].mxu0
      %v1043 = vadd.f32 0.0, %v1042
      %v1044 = vpop.f32.mrb[0].mxu0
      %1045 = vmatprep.mubr.bf16.mxu0 0
      %1046 = vmatmul.mubr.bf16.gmra.mrb[0].mxu0 %v994
      %v1047 = vpop.f32.mrb[0].mxu0
      %v1048 = vadd.f32 0.0, %v1047
      %v1049 = vpop.f32.mrb[0].mxu0
      %v1050 = vpop.f32.mrb[0].mxu0
      %v1051 = vadd.f32 0.0, %v1050
      %v1052 = vpop.f32.mrb[0].mxu0
      %1053 = vmatprep.mubr.bf16.mxu0 0
      %1054 = vmatmul.mubr.bf16.gmra.mrb[0].mxu0 %v997
      %v1055 = vpop.f32.mrb[0].mxu0
      %v1056 = vadd.f32 0.0, %v1055
      %v1057 = vpop.f32.mrb[0].mxu0
      %v1058 = vpop.f32.mrb[0].mxu0
      %v1059 = vadd.f32 0.0, %v1058
      %v1060 = vpop.f32.mrb[0].mxu0
      %1061 = vmatprep.mubr.bf16.mxu0 0
      %1062 = vmatmul.mubr.bf16.gmra.mrb[0].mxu0 %v1000
      %v1063 = vpop.f32.mrb[0].mxu0
      %v1064 = vadd.f32 0.0, %v1063
      %v1065 = vpop.f32.mrb[0].mxu0
      %v1066 = vpop.f32.mrb[0].mxu0
      %v1067 = vadd.f32 0.0, %v1066
      %v1068 = vpop.f32.mrb[0].mxu0
      %1069 = vdwg.mxu0
      %v1070 = vadd.f32 %v960, %v1040
      %v1071 = vadd.f32 %v961, %v1043
      %v1072 = vadd.f32 %v962, %v1048
      %v1073 = vadd.f32 %v963, %v1051
      %v1074 = vadd.f32 %v964, %v1056
      %v1075 = vadd.f32 %v965, %v1059
      %v1076 = vadd.f32 %v966, %v1064
      %v1077 = vadd.f32 %v967, %v1067
      %1078 = vst.msk [vmem:[#allocation2] sm:$0xff] %vm439, %v1070
      %1079 = vst.msk [vmem:[#allocation2 + $0x8] sm:$0xff] %vm439, %v1071
      %1080 = vst.msk [vmem:[#allocation2 + $0x10] sm:$0xff] %vm439, %v1072
      %1081 = vst.msk [vmem:[#allocation2 + $0x18] sm:$0xff] %vm439, %v1073
      %1082 = vst.msk [vmem:[#allocation2 + $0x20] sm:$0xff] %vm439, %v1074
      %1083 = vst.msk [vmem:[#allocation2 + $0x28] sm:$0xff] %vm439, %v1075
      %1084 = vst.msk [vmem:[#allocation2 + $0x30] sm:$0xff] %vm439, %v1076
      %1085 = vst.msk [vmem:[#allocation2 + $0x38] sm:$0xff] %vm439, %v1077
      %v1086 = vld [vmem:[%s223 + $0x4] sm:$0xf]
      %v1087 = vld [vmem:[%s223 + $0x8] sm:$0xf]
      %v1088 = vld [vmem:[%s223 + $0xc] sm:$0xf]
      %v1089 = vld [vmem:[%s223 + $0x10] sm:$0xf]
      %v1090 = vld [vmem:[%s223 + $0x14] sm:$0xf]
      %v1091 = vld [vmem:[%s223 + $0x18] sm:$0xf]
      %v1092 = vld [vmem:[%s223 + $0x1c] sm:$0xf]
      %v1093 = vld [vmem:[%s223 + $0x20] sm:$0xf]
      %v1094 = vld [vmem:[%s223 + $0x24] sm:$0x1]
      %v1095 = vld [vmem:[#allocation2] sm:$0xff]
      %v1096 = vld [vmem:[#allocation2 + $0x8] sm:$0xff]
      %v1097 = vld [vmem:[#allocation2 + $0x10] sm:$0xff]
      %v1098 = vld [vmem:[#allocation2 + $0x18] sm:$0xff]
      %v1099 = vld [vmem:[#allocation2 + $0x20] sm:$0xff]
      %v1100 = vld [vmem:[#allocation2 + $0x28] sm:$0xff]
      %v1101 = vld [vmem:[#allocation2 + $0x30] sm:$0xff]
      %v1102 = vld [vmem:[#allocation2 + $0x38] sm:$0xff]
      %s1103 = scalar_lea.vmem %s231, 8
      %v1104 = vld [vmem:[%s1103] sm:$0x3]
      %v1114 = vunpack.c.l.b16 %v1086
      %v1115 = vunpack.c.l.b16 %v1087
      %v1116 = vunpack.c.l.b16 %v1088
      %v1117 = vunpack.c.l.b16 %v1089
      %v1118 = vunpack.c.l.b16 %v1090
      %v1119 = vunpack.c.l.b16 %v1091
      %v1120 = vunpack.c.l.b16 %v1092
      %v1121 = vunpack.c.l.b16 %v1093
      %v1122 = vunpack.c.l.b16 %v1094
      %v1123 = vpack.c.b16 %v1115, %v1114
      %v1124 = vpack.c.b16 %v1117, %v1116
      %v1125 = vpack.c.b16 %v1119, %v1118
      %v1126 = vpack.c.b16 %v1121, %v1120
      %v1127 = vpack.c.b16 %v1122, %v1122
      %v1129 = vshrl.u32 %v1123, 16
      %v1131 = vshll.u32 %v1123, 16
      %v1133 = vrot.slane %v1131, 1
      %v1134 = vor.u32 %v1129, %v1133
      %v1136 = vshll.u32 %v1124, 16
      %v1138 = vrot.slane %v1136, 1
      %v1139 = vsel %vm579, %v1134, %v1138
      %v1140 = vshrl.u32 %v1124, 16
      %v1142 = vor.u32 %v1140, %v1138
      %v1144 = vshll.u32 %v1125, 16
      %v1146 = vrot.slane %v1144, 1
      %v1147 = vsel %vm579, %v1142, %v1146
      %v1148 = vshrl.u32 %v1125, 16
      %v1150 = vor.u32 %v1148, %v1146
      %v1152 = vshll.u32 %v1126, 16
      %v1154 = vrot.slane %v1152, 1
      %v1155 = vsel %vm579, %v1150, %v1154
      %v1156 = vshrl.u32 %v1126, 16
      %v1158 = vor.u32 %v1156, %v1154
      %v1160 = vshll.u32 %v1127, 16
      %v1162 = vrot.slane %v1160, 1
      %v1163 = vsel %vm579, %v1158, %v1162
      %v1165 = vsel %vm439, %v1139, 0
      %v1168 = vsel %vm439, %v1147, 0
      %v1171 = vsel %vm439, %v1155, 0
      %v1174 = vsel %vm439, %v1163, 0
      %v1177 = vsel %vm452, %v1104, 0
      %1179 = vmatprep.subr.bf16.mxu0 0
      %1180 = vmatpush1.bf16.msra.mxu0 %v1177
      %1181 = vmatprep.subr.bf16.mxu0 0
      %1182 = vmatpush1.bf16.msra.mxu0 0
      %1183 = vmatprep.subr.bf16.mxu0 0
      %1184 = vmatpush1.bf16.msra.mxu0 0
      %1185 = vmatprep.subr.bf16.mxu0 0
      %1186 = vmatpush1.bf16.msra.mxu0 0
      %1187 = vmatprep.subr.bf16.mxu0 0
      %1188 = vmatpush1.bf16.msra.mxu0 0
      %1189 = vmatprep.subr.bf16.mxu0 0
      %1190 = vmatpush1.bf16.msra.mxu0 0
      %1191 = vmatprep.subr.bf16.mxu0 0
      %1192 = vmatpush1.bf16.msra.mxu0 0
      %1193 = vmatprep.subr.bf16.mxu0 0
      %1194 = vmatpush1.bf16.msra.mxu0 0
      %1195 = vmatprep.subr.bf16.mxu0 0
      %1196 = vmatpush1.bf16.msra.mxu0 0
      %1197 = vmatprep.subr.bf16.mxu0 0
      %1198 = vmatpush1.bf16.msra.mxu0 0
      %1199 = vmatprep.subr.bf16.mxu0 0
      %1200 = vmatpush1.bf16.msra.mxu0 0
      %1201 = vmatprep.subr.bf16.mxu0 0
      %1202 = vmatpush1.bf16.msra.mxu0 0
      %1203 = vmatprep.subr.bf16.mxu0 0
      %1204 = vmatpush1.bf16.msra.mxu0 0
      %1205 = vmatprep.subr.bf16.mxu0 0
      %1206 = vmatpush1.bf16.msra.mxu0 0
      %1207 = vmatprep.subr.bf16.mxu0 0
      %1208 = vmatpush1.bf16.msra.mxu0 0
      %1209 = vmatprep.subr.bf16.mxu0 0
      %1210 = vmatpush1.bf16.msra.mxu0 0
      %1211 = vmatprep.mubr.bf16.mxu0 0
      %1212 = vmatmul.mubr.bf16.gmra.mrb[0].mxu0 %v1165
      %v1213 = vpop.f32.mrb[0].mxu0
      %v1214 = vadd.f32 0.0, %v1213
      %v1215 = vpop.f32.mrb[0].mxu0
      %v1216 = vpop.f32.mrb[0].mxu0
      %v1217 = vadd.f32 0.0, %v1216
      %v1218 = vpop.f32.mrb[0].mxu0
      %1219 = vmatprep.mubr.bf16.mxu0 0
      %1220 = vmatmul.mubr.bf16.gmra.mrb[0].mxu0 %v1168
      %v1221 = vpop.f32.mrb[0].mxu0
      %v1222 = vadd.f32 0.0, %v1221
      %v1223 = vpop.f32.mrb[0].mxu0
      %v1224 = vpop.f32.mrb[0].mxu0
      %v1225 = vadd.f32 0.0, %v1224
      %v1226 = vpop.f32.mrb[0].mxu0
      %1227 = vmatprep.mubr.bf16.mxu0 0
      %1228 = vmatmul.mubr.bf16.gmra.mrb[0].mxu0 %v1171
      %v1229 = vpop.f32.mrb[0].mxu0
      %v1230 = vadd.f32 0.0, %v1229
      %v1231 = vpop.f32.mrb[0].mxu0
      %v1232 = vpop.f32.mrb[0].mxu0
      %v1233 = vadd.f32 0.0, %v1232
      %v1234 = vpop.f32.mrb[0].mxu0
      %1235 = vmatprep.mubr.bf16.mxu0 0
      %1236 = vmatmul.mubr.bf16.gmra.mrb[0].mxu0 %v1174
      %v1237 = vpop.f32.mrb[0].mxu0
      %v1238 = vadd.f32 0.0, %v1237
      %v1239 = vpop.f32.mrb[0].mxu0
      %v1240 = vpop.f32.mrb[0].mxu0
      %v1241 = vadd.f32 0.0, %v1240
      %v1242 = vpop.f32.mrb[0].mxu0
      %1243 = vdwg.mxu0
      %v1244 = vadd.f32 %v1095, %v1214
      %v1245 = vadd.f32 %v1096, %v1217
      %v1246 = vadd.f32 %v1097, %v1222
      %v1247 = vadd.f32 %v1098, %v1225
      %v1248 = vadd.f32 %v1099, %v1230
      %v1249 = vadd.f32 %v1100, %v1233
      %v1250 = vadd.f32 %v1101, %v1238
      %v1251 = vadd.f32 %v1102, %v1241
      %1252 = vst.msk [vmem:[#allocation2] sm:$0xff] %vm439, %v1244
      %1253 = vst.msk [vmem:[#allocation2 + $0x8] sm:$0xff] %vm439, %v1245
      %1254 = vst.msk [vmem:[#allocation2 + $0x10] sm:$0xff] %vm439, %v1246
      %1255 = vst.msk [vmem:[#allocation2 + $0x18] sm:$0xff] %vm439, %v1247
      %1256 = vst.msk [vmem:[#allocation2 + $0x20] sm:$0xff] %vm439, %v1248
      %1257 = vst.msk [vmem:[#allocation2 + $0x28] sm:$0xff] %vm439, %v1249
      %1258 = vst.msk [vmem:[#allocation2 + $0x30] sm:$0xff] %vm439, %v1250
      %1259 = vst.msk [vmem:[#allocation2 + $0x38] sm:$0xff] %vm439, %v1251
      %v1260 = vld [vmem:[%s223 + $0x4] sm:$0xe]
      %v1261 = vld [vmem:[%s223 + $0x8] sm:$0xf]
      %v1262 = vld [vmem:[%s223 + $0xc] sm:$0xf]
      %v1263 = vld [vmem:[%s223 + $0x10] sm:$0xf]
      %v1264 = vld [vmem:[%s223 + $0x14] sm:$0xf]
      %v1265 = vld [vmem:[%s223 + $0x18] sm:$0xf]
      %v1266 = vld [vmem:[%s223 + $0x1c] sm:$0xf]
      %v1267 = vld [vmem:[%s223 + $0x20] sm:$0xf]
      %v1268 = vld [vmem:[%s223 + $0x24] sm:$0x1]
      %v1269 = vsel %vm787, %v1260, 0
      %v1270 = vsel %vm788, %v1261, 0
      %v1271 = vsel %vm789, %v1262, 0
      %v1272 = vsel %vm790, %v1263, 0
      %v1273 = vsel %vm791, %v1264, 0
      %v1274 = vsel %vm792, %v1265, 0
      %v1275 = vsel %vm793, %v1266, 0
      %v1276 = vsel %vm794, %v1267, 0
      %v1277 = vsel %vm795, %v1268, 0
      %v1278 = vld [vmem:[#allocation2] sm:$0xff]
      %v1279 = vld [vmem:[#allocation2 + $0x8] sm:$0xff]
      %v1280 = vld [vmem:[#allocation2 + $0x10] sm:$0xff]
      %v1281 = vld [vmem:[#allocation2 + $0x18] sm:$0xff]
      %v1282 = vld [vmem:[#allocation2 + $0x20] sm:$0xff]
      %v1283 = vld [vmem:[#allocation2 + $0x28] sm:$0xff]
      %v1284 = vld [vmem:[#allocation2 + $0x30] sm:$0xff]
      %v1285 = vld [vmem:[#allocation2 + $0x38] sm:$0xff]
      %s1286 = scalar_lea.vmem %s231, 10
      %v1287 = vld [vmem:[%s1286] sm:$0x3]
      %v1297 = vunpack.c.l.b16 %v1269
      %v1298 = vunpack.c.l.b16 %v1270
      %v1299 = vunpack.c.l.b16 %v1271
      %v1300 = vunpack.c.l.b16 %v1272
      %v1301 = vunpack.c.l.b16 %v1273
      %v1302 = vunpack.c.l.b16 %v1274
      %v1303 = vunpack.c.l.b16 %v1275
      %v1304 = vunpack.c.l.b16 %v1276
      %v1305 = vunpack.c.l.b16 %v1277
      %v1306 = vpack.c.b16 %v1298, %v1297
      %v1307 = vpack.c.b16 %v1300, %v1299
      %v1308 = vpack.c.b16 %v1302, %v1301
      %v1309 = vpack.c.b16 %v1304, %v1303
      %v1310 = vpack.c.b16 %v1305, %v1305
      %v1311 = vrot.slane %v1306, 1
      %v1312 = vrot.slane %v1307, 1
      %v1313 = vsel %vm838, %v1311, %v1312
      %v1314 = vrot.slane %v1308, 1
      %v1315 = vsel %vm838, %v1312, %v1314
      %v1316 = vrot.slane %v1309, 1
      %v1317 = vsel %vm838, %v1314, %v1316
      %v1318 = vrot.slane %v1310, 1
      %v1319 = vsel %vm838, %v1316, %v1318
      %v1321 = vsel %vm439, %v1313, 0
      %v1324 = vsel %vm439, %v1315, 0
      %v1327 = vsel %vm439, %v1317, 0
      %v1330 = vsel %vm439, %v1319, 0
      %v1333 = vsel %vm452, %v1287, 0
      %1335 = vmatprep.subr.bf16.mxu0 0
      %1336 = vmatpush1.bf16.msra.mxu0 %v1333
      %1337 = vmatprep.subr.bf16.mxu0 0
      %1338 = vmatpush1.bf16.msra.mxu0 0
      %1339 = vmatprep.subr.bf16.mxu0 0
      %1340 = vmatpush1.bf16.msra.mxu0 0
      %1341 = vmatprep.subr.bf16.mxu0 0
      %1342 = vmatpush1.bf16.msra.mxu0 0
      %1343 = vmatprep.subr.bf16.mxu0 0
      %1344 = vmatpush1.bf16.msra.mxu0 0
      %1345 = vmatprep.subr.bf16.mxu0 0
      %1346 = vmatpush1.bf16.msra.mxu0 0
      %1347 = vmatprep.subr.bf16.mxu0 0
      %1348 = vmatpush1.bf16.msra.mxu0 0
      %1349 = vmatprep.subr.bf16.mxu0 0
      %1350 = vmatpush1.bf16.msra.mxu0 0
      %1351 = vmatprep.subr.bf16.mxu0 0
      %1352 = vmatpush1.bf16.msra.mxu0 0
      %1353 = vmatprep.subr.bf16.mxu0 0
      %1354 = vmatpush1.bf16.msra.mxu0 0
      %1355 = vmatprep.subr.bf16.mxu0 0
      %1356 = vmatpush1.bf16.msra.mxu0 0
      %1357 = vmatprep.subr.bf16.mxu0 0
      %1358 = vmatpush1.bf16.msra.mxu0 0
      %1359 = vmatprep.subr.bf16.mxu0 0
      %1360 = vmatpush1.bf16.msra.mxu0 0
      %1361 = vmatprep.subr.bf16.mxu0 0
      %1362 = vmatpush1.bf16.msra.mxu0 0
      %1363 = vmatprep.subr.bf16.mxu0 0
      %1364 = vmatpush1.bf16.msra.mxu0 0
      %1365 = vmatprep.subr.bf16.mxu0 0
      %1366 = vmatpush1.bf16.msra.mxu0 0
      %1367 = vmatprep.mubr.bf16.mxu0 0
      %1368 = vmatmul.mubr.bf16.gmra.mrb[0].mxu0 %v1321
      %v1369 = vpop.f32.mrb[0].mxu0
      %v1370 = vadd.f32 0.0, %v1369
      %v1371 = vpop.f32.mrb[0].mxu0
      %v1372 = vpop.f32.mrb[0].mxu0
      %v1373 = vadd.f32 0.0, %v1372
      %v1374 = vpop.f32.mrb[0].mxu0
      %1375 = vmatprep.mubr.bf16.mxu0 0
      %1376 = vmatmul.mubr.bf16.gmra.mrb[0].mxu0 %v1324
      %v1377 = vpop.f32.mrb[0].mxu0
      %v1378 = vadd.f32 0.0, %v1377
      %v1379 = vpop.f32.mrb[0].mxu0
      %v1380 = vpop.f32.mrb[0].mxu0
      %v1381 = vadd.f32 0.0, %v1380
      %v1382 = vpop.f32.mrb[0].mxu0
      %1383 = vmatprep.mubr.bf16.mxu0 0
      %1384 = vmatmul.mubr.bf16.gmra.mrb[0].mxu0 %v1327
      %v1385 = vpop.f32.mrb[0].mxu0
      %v1386 = vadd.f32 0.0, %v1385
      %v1387 = vpop.f32.mrb[0].mxu0
      %v1388 = vpop.f32.mrb[0].mxu0
      %v1389 = vadd.f32 0.0, %v1388
      %v1390 = vpop.f32.mrb[0].mxu0
      %1391 = vmatprep.mubr.bf16.mxu0 0
      %1392 = vmatmul.mubr.bf16.gmra.mrb[0].mxu0 %v1330
      %v1393 = vpop.f32.mrb[0].mxu0
      %v1394 = vadd.f32 0.0, %v1393
      %v1395 = vpop.f32.mrb[0].mxu0
      %v1396 = vpop.f32.mrb[0].mxu0
      %v1397 = vadd.f32 0.0, %v1396
      %v1398 = vpop.f32.mrb[0].mxu0
      %1399 = vdwg.mxu0
      %v1400 = vadd.f32 %v1278, %v1370
      %v1401 = vadd.f32 %v1279, %v1373
      %v1402 = vadd.f32 %v1280, %v1378
      %v1403 = vadd.f32 %v1281, %v1381
      %v1404 = vadd.f32 %v1282, %v1386
      %v1405 = vadd.f32 %v1283, %v1389
      %v1406 = vadd.f32 %v1284, %v1394
      %v1407 = vadd.f32 %v1285, %v1397
      %1408 = vst.msk [vmem:[#allocation2] sm:$0xff] %vm439, %v1400
      %1409 = vst.msk [vmem:[#allocation2 + $0x8] sm:$0xff] %vm439, %v1401
      %1410 = vst.msk [vmem:[#allocation2 + $0x10] sm:$0xff] %vm439, %v1402
      %1411 = vst.msk [vmem:[#allocation2 + $0x18] sm:$0xff] %vm439, %v1403
      %1412 = vst.msk [vmem:[#allocation2 + $0x20] sm:$0xff] %vm439, %v1404
      %1413 = vst.msk [vmem:[#allocation2 + $0x28] sm:$0xff] %vm439, %v1405
      %1414 = vst.msk [vmem:[#allocation2 + $0x30] sm:$0xff] %vm439, %v1406
      %1415 = vst.msk [vmem:[#allocation2 + $0x38] sm:$0xff] %vm439, %v1407
      %v1416 = vld [vmem:[%s223 + $0x8] sm:$0xf]
      %v1417 = vld [vmem:[%s223 + $0xc] sm:$0xf]
      %v1418 = vld [vmem:[%s223 + $0x10] sm:$0xf]
      %v1419 = vld [vmem:[%s223 + $0x14] sm:$0xf]
      %v1420 = vld [vmem:[%s223 + $0x18] sm:$0xf]
      %v1421 = vld [vmem:[%s223 + $0x1c] sm:$0xf]
      %v1422 = vld [vmem:[%s223 + $0x20] sm:$0xf]
      %v1423 = vld [vmem:[%s223 + $0x24] sm:$0xf]
      %v1424 = vsel %vm394, %v1416, 0
      %v1425 = vsel %vm395, %v1417, 0
      %v1426 = vsel %vm396, %v1418, 0
      %v1427 = vsel %vm397, %v1419, 0
      %v1428 = vsel %vm398, %v1420, 0
      %v1429 = vsel %vm399, %v1421, 0
      %v1430 = vsel %vm400, %v1422, 0
      %v1431 = vsel %vm401, %v1423, 0
      %v1432 = vld [vmem:[#allocation2] sm:$0xff]
      %v1433 = vld [vmem:[#allocation2 + $0x8] sm:$0xff]
      %v1434 = vld [vmem:[#allocation2 + $0x10] sm:$0xff]
      %v1435 = vld [vmem:[#allocation2 + $0x18] sm:$0xff]
      %v1436 = vld [vmem:[#allocation2 + $0x20] sm:$0xff]
      %v1437 = vld [vmem:[#allocation2 + $0x28] sm:$0xff]
      %v1438 = vld [vmem:[#allocation2 + $0x30] sm:$0xff]
      %v1439 = vld [vmem:[#allocation2 + $0x38] sm:$0xff]
      %s1440 = scalar_lea.vmem %s231, 12
      %v1441 = vld [vmem:[%s1440] sm:$0x3]
      %v1450 = vunpack.c.l.b16 %v1424
      %v1451 = vunpack.c.l.b16 %v1425
      %v1452 = vunpack.c.l.b16 %v1426
      %v1453 = vunpack.c.l.b16 %v1427
      %v1454 = vunpack.c.l.b16 %v1428
      %v1455 = vunpack.c.l.b16 %v1429
      %v1456 = vunpack.c.l.b16 %v1430
      %v1457 = vunpack.c.l.b16 %v1431
      %v1458 = vpack.c.b16 %v1451, %v1450
      %v1459 = vpack.c.b16 %v1453, %v1452
      %v1460 = vpack.c.b16 %v1455, %v1454
      %v1461 = vpack.c.b16 %v1457, %v1456
      %v1463 = vsel %vm439, %v1458, 0
      %v1466 = vsel %vm439, %v1459, 0
      %v1469 = vsel %vm439, %v1460, 0
      %v1472 = vsel %vm439, %v1461, 0
      %v1475 = vsel %vm452, %v1441, 0
      %1477 = vmatprep.subr.bf16.mxu0 0
      %1478 = vmatpush1.bf16.msra.mxu0 %v1475
      %1479 = vmatprep.subr.bf16.mxu0 0
      %1480 = vmatpush1.bf16.msra.mxu0 0
      %1481 = vmatprep.subr.bf16.mxu0 0
      %1482 = vmatpush1.bf16.msra.mxu0 0
      %1483 = vmatprep.subr.bf16.mxu0 0
      %1484 = vmatpush1.bf16.msra.mxu0 0
      %1485 = vmatprep.subr.bf16.mxu0 0
      %1486 = vmatpush1.bf16.msra.mxu0 0
      %1487 = vmatprep.subr.bf16.mxu0 0
      %1488 = vmatpush1.bf16.msra.mxu0 0
      %1489 = vmatprep.subr.bf16.mxu0 0
      %1490 = vmatpush1.bf16.msra.mxu0 0
      %1491 = vmatprep.subr.bf16.mxu0 0
      %1492 = vmatpush1.bf16.msra.mxu0 0
      %1493 = vmatprep.subr.bf16.mxu0 0
      %1494 = vmatpush1.bf16.msra.mxu0 0
      %1495 = vmatprep.subr.bf16.mxu0 0
      %1496 = vmatpush1.bf16.msra.mxu0 0
      %1497 = vmatprep.subr.bf16.mxu0 0
      %1498 = vmatpush1.bf16.msra.mxu0 0
      %1499 = vmatprep.subr.bf16.mxu0 0
      %1500 = vmatpush1.bf16.msra.mxu0 0
      %1501 = vmatprep.subr.bf16.mxu0 0
      %1502 = vmatpush1.bf16.msra.mxu0 0
      %1503 = vmatprep.subr.bf16.mxu0 0
      %1504 = vmatpush1.bf16.msra.mxu0 0
      %1505 = vmatprep.subr.bf16.mxu0 0
      %1506 = vmatpush1.bf16.msra.mxu0 0
      %1507 = vmatprep.subr.bf16.mxu0 0
      %1508 = vmatpush1.bf16.msra.mxu0 0
      %1509 = vmatprep.mubr.bf16.mxu0 0
      %1510 = vmatmul.mubr.bf16.gmra.mrb[0].mxu0 %v1463
      %v1511 = vpop.f32.mrb[0].mxu0
      %v1512 = vadd.f32 0.0, %v1511
      %v1513 = vpop.f32.mrb[0].mxu0
      %v1514 = vpop.f32.mrb[0].mxu0
      %v1515 = vadd.f32 0.0, %v1514
      %v1516 = vpop.f32.mrb[0].mxu0
      %1517 = vmatprep.mubr.bf16.mxu0 0
      %1518 = vmatmul.mubr.bf16.gmra.mrb[0].mxu0 %v1466
      %v1519 = vpop.f32.mrb[0].mxu0
      %v1520 = vadd.f32 0.0, %v1519
      %v1521 = vpop.f32.mrb[0].mxu0
      %v1522 = vpop.f32.mrb[0].mxu0
      %v1523 = vadd.f32 0.0, %v1522
      %v1524 = vpop.f32.mrb[0].mxu0
      %1525 = vmatprep.mubr.bf16.mxu0 0
      %1526 = vmatmul.mubr.bf16.gmra.mrb[0].mxu0 %v1469
      %v1527 = vpop.f32.mrb[0].mxu0
      %v1528 = vadd.f32 0.0, %v1527
      %v1529 = vpop.f32.mrb[0].mxu0
      %v1530 = vpop.f32.mrb[0].mxu0
      %v1531 = vadd.f32 0.0, %v1530
      %v1532 = vpop.f32.mrb[0].mxu0
      %1533 = vmatprep.mubr.bf16.mxu0 0
      %1534 = vmatmul.mubr.bf16.gmra.mrb[0].mxu0 %v1472
      %v1535 = vpop.f32.mrb[0].mxu0
      %v1536 = vadd.f32 0.0, %v1535
      %v1537 = vpop.f32.mrb[0].mxu0
      %v1538 = vpop.f32.mrb[0].mxu0
      %v1539 = vadd.f32 0.0, %v1538
      %v1540 = vpop.f32.mrb[0].mxu0
      %1541 = vdwg.mxu0
      %v1542 = vadd.f32 %v1432, %v1512
      %v1543 = vadd.f32 %v1433, %v1515
      %v1544 = vadd.f32 %v1434, %v1520
      %v1545 = vadd.f32 %v1435, %v1523
      %v1546 = vadd.f32 %v1436, %v1528
      %v1547 = vadd.f32 %v1437, %v1531
      %v1548 = vadd.f32 %v1438, %v1536
      %v1549 = vadd.f32 %v1439, %v1539
      %1550 = vst.msk [vmem:[#allocation2] sm:$0xff] %vm439, %v1542
      %1551 = vst.msk [vmem:[#allocation2 + $0x8] sm:$0xff] %vm439, %v1543
      %1552 = vst.msk [vmem:[#allocation2 + $0x10] sm:$0xff] %vm439, %v1544
      %1553 = vst.msk [vmem:[#allocation2 + $0x18] sm:$0xff] %vm439, %v1545
      %1554 = vst.msk [vmem:[#allocation2 + $0x20] sm:$0xff] %vm439, %v1546
      %1555 = vst.msk [vmem:[#allocation2 + $0x28] sm:$0xff] %vm439, %v1547
      %1556 = vst.msk [vmem:[#allocation2 + $0x30] sm:$0xff] %vm439, %v1548
      %1557 = vst.msk [vmem:[#allocation2 + $0x38] sm:$0xff] %vm439, %v1549
      %v1558 = vld [vmem:[%s223 + $0x8] sm:$0xf]
      %v1559 = vld [vmem:[%s223 + $0xc] sm:$0xf]
      %v1560 = vld [vmem:[%s223 + $0x10] sm:$0xf]
      %v1561 = vld [vmem:[%s223 + $0x14] sm:$0xf]
      %v1562 = vld [vmem:[%s223 + $0x18] sm:$0xf]
      %v1563 = vld [vmem:[%s223 + $0x1c] sm:$0xf]
      %v1564 = vld [vmem:[%s223 + $0x20] sm:$0xf]
      %v1565 = vld [vmem:[%s223 + $0x24] sm:$0xf]
      %v1566 = vld [vmem:[%s223 + $0x28] sm:$0x1]
      %v1567 = vld [vmem:[#allocation2] sm:$0xff]
      %v1568 = vld [vmem:[#allocation2 + $0x8] sm:$0xff]
      %v1569 = vld [vmem:[#allocation2 + $0x10] sm:$0xff]
      %v1570 = vld [vmem:[#allocation2 + $0x18] sm:$0xff]
      %v1571 = vld [vmem:[#allocation2 + $0x20] sm:$0xff]
      %v1572 = vld [vmem:[#allocation2 + $0x28] sm:$0xff]
      %v1573 = vld [vmem:[#allocation2 + $0x30] sm:$0xff]
      %v1574 = vld [vmem:[#allocation2 + $0x38] sm:$0xff]
      %s1575 = scalar_lea.vmem %s231, 14
      %v1576 = vld [vmem:[%s1575] sm:$0x3]
      %v1586 = vunpack.c.l.b16 %v1558
      %v1587 = vunpack.c.l.b16 %v1559
      %v1588 = vunpack.c.l.b16 %v1560
      %v1589 = vunpack.c.l.b16 %v1561
      %v1590 = vunpack.c.l.b16 %v1562
      %v1591 = vunpack.c.l.b16 %v1563
      %v1592 = vunpack.c.l.b16 %v1564
      %v1593 = vunpack.c.l.b16 %v1565
      %v1594 = vunpack.c.l.b16 %v1566
      %v1595 = vpack.c.b16 %v1587, %v1586
      %v1596 = vpack.c.b16 %v1589, %v1588
      %v1597 = vpack.c.b16 %v1591, %v1590
      %v1598 = vpack.c.b16 %v1593, %v1592
      %v1599 = vpack.c.b16 %v1594, %v1594
      %v1601 = vshrl.u32 %v1595, 16
      %v1603 = vshll.u32 %v1595, 16
      %v1605 = vrot.slane %v1603, 1
      %v1606 = vor.u32 %v1601, %v1605
      %v1608 = vshll.u32 %v1596, 16
      %v1610 = vrot.slane %v1608, 1
      %v1611 = vsel %vm579, %v1606, %v1610
      %v1612 = vshrl.u32 %v1596, 16
      %v1614 = vor.u32 %v1612, %v1610
      %v1616 = vshll.u32 %v1597, 16
      %v1618 = vrot.slane %v1616, 1
      %v1619 = vsel %vm579, %v1614, %v1618
      %v1620 = vshrl.u32 %v1597, 16
      %v1622 = vor.u32 %v1620, %v1618
      %v1624 = vshll.u32 %v1598, 16
      %v1626 = vrot.slane %v1624, 1
      %v1627 = vsel %vm579, %v1622, %v1626
      %v1628 = vshrl.u32 %v1598, 16
      %v1630 = vor.u32 %v1628, %v1626
      %v1632 = vshll.u32 %v1599, 16
      %v1634 = vrot.slane %v1632, 1
      %v1635 = vsel %vm579, %v1630, %v1634
      %v1637 = vsel %vm439, %v1611, 0
      %v1640 = vsel %vm439, %v1619, 0
      %v1643 = vsel %vm439, %v1627, 0
      %v1646 = vsel %vm439, %v1635, 0
      %v1649 = vsel %vm452, %v1576, 0
      %1651 = vmatprep.subr.bf16.mxu0 0
      %1652 = vmatpush1.bf16.msra.mxu0 %v1649
      %1653 = vmatprep.subr.bf16.mxu0 0
      %1654 = vmatpush1.bf16.msra.mxu0 0
      %1655 = vmatprep.subr.bf16.mxu0 0
      %1656 = vmatpush1.bf16.msra.mxu0 0
      %1657 = vmatprep.subr.bf16.mxu0 0
      %1658 = vmatpush1.bf16.msra.mxu0 0
      %1659 = vmatprep.subr.bf16.mxu0 0
      %1660 = vmatpush1.bf16.msra.mxu0 0
      %1661 = vmatprep.subr.bf16.mxu0 0
      %1662 = vmatpush1.bf16.msra.mxu0 0
      %1663 = vmatprep.subr.bf16.mxu0 0
      %1664 = vmatpush1.bf16.msra.mxu0 0
      %1665 = vmatprep.subr.bf16.mxu0 0
      %1666 = vmatpush1.bf16.msra.mxu0 0
      %1667 = vmatprep.subr.bf16.mxu0 0
      %1668 = vmatpush1.bf16.msra.mxu0 0
      %1669 = vmatprep.subr.bf16.mxu0 0
      %1670 = vmatpush1.bf16.msra.mxu0 0
      %1671 = vmatprep.subr.bf16.mxu0 0
      %1672 = vmatpush1.bf16.msra.mxu0 0
      %1673 = vmatprep.subr.bf16.mxu0 0
      %1674 = vmatpush1.bf16.msra.mxu0 0
      %1675 = vmatprep.subr.bf16.mxu0 0
      %1676 = vmatpush1.bf16.msra.mxu0 0
      %1677 = vmatprep.subr.bf16.mxu0 0
      %1678 = vmatpush1.bf16.msra.mxu0 0
      %1679 = vmatprep.subr.bf16.mxu0 0
      %1680 = vmatpush1.bf16.msra.mxu0 0
      %1681 = vmatprep.subr.bf16.mxu0 0
      %1682 = vmatpush1.bf16.msra.mxu0 0
      %1683 = vmatprep.mubr.bf16.mxu0 0
      %1684 = vmatmul.mubr.bf16.gmra.mrb[0].mxu0 %v1637
      %v1685 = vpop.f32.mrb[0].mxu0
      %v1686 = vadd.f32 0.0, %v1685
      %v1687 = vpop.f32.mrb[0].mxu0
      %v1688 = vpop.f32.mrb[0].mxu0
      %v1689 = vadd.f32 0.0, %v1688
      %v1690 = vpop.f32.mrb[0].mxu0
      %1691 = vmatprep.mubr.bf16.mxu0 0
      %1692 = vmatmul.mubr.bf16.gmra.mrb[0].mxu0 %v1640
      %v1693 = vpop.f32.mrb[0].mxu0
      %v1694 = vadd.f32 0.0, %v1693
      %v1695 = vpop.f32.mrb[0].mxu0
      %v1696 = vpop.f32.mrb[0].mxu0
      %v1697 = vadd.f32 0.0, %v1696
      %v1698 = vpop.f32.mrb[0].mxu0
      %1699 = vmatprep.mubr.bf16.mxu0 0
      %1700 = vmatmul.mubr.bf16.gmra.mrb[0].mxu0 %v1643
      %v1701 = vpop.f32.mrb[0].mxu0
      %v1702 = vadd.f32 0.0, %v1701
      %v1703 = vpop.f32.mrb[0].mxu0
      %v1704 = vpop.f32.mrb[0].mxu0
      %v1705 = vadd.f32 0.0, %v1704
      %v1706 = vpop.f32.mrb[0].mxu0
      %1707 = vmatprep.mubr.bf16.mxu0 0
      %1708 = vmatmul.mubr.bf16.gmra.mrb[0].mxu0 %v1646
      %v1709 = vpop.f32.mrb[0].mxu0
      %v1710 = vadd.f32 0.0, %v1709
      %v1711 = vpop.f32.mrb[0].mxu0
      %v1712 = vpop.f32.mrb[0].mxu0
      %v1713 = vadd.f32 0.0, %v1712
      %v1714 = vpop.f32.mrb[0].mxu0
      %1715 = vdwg.mxu0
      %v1716 = vadd.f32 %v1567, %v1686
      %v1717 = vadd.f32 %v1568, %v1689
      %v1718 = vadd.f32 %v1569, %v1694
      %v1719 = vadd.f32 %v1570, %v1697
      %v1720 = vadd.f32 %v1571, %v1702
      %v1721 = vadd.f32 %v1572, %v1705
      %v1722 = vadd.f32 %v1573, %v1710
      %v1723 = vadd.f32 %v1574, %v1713
      %1724 = vst.msk [vmem:[#allocation2] sm:$0xff] %vm439, %v1716
      %1725 = vst.msk [vmem:[#allocation2 + $0x8] sm:$0xff] %vm439, %v1717
      %1726 = vst.msk [vmem:[#allocation2 + $0x10] sm:$0xff] %vm439, %v1718
      %1727 = vst.msk [vmem:[#allocation2 + $0x18] sm:$0xff] %vm439, %v1719
      %1728 = vst.msk [vmem:[#allocation2 + $0x20] sm:$0xff] %vm439, %v1720
      %1729 = vst.msk [vmem:[#allocation2 + $0x28] sm:$0xff] %vm439, %v1721
      %1730 = vst.msk [vmem:[#allocation2 + $0x30] sm:$0xff] %vm439, %v1722
      %1731 = vst.msk [vmem:[#allocation2 + $0x38] sm:$0xff] %vm439, %v1723
      %v1732 = vld [vmem:[%s223 + $0x8] sm:$0xe]
      %v1733 = vld [vmem:[%s223 + $0xc] sm:$0xf]
      %v1734 = vld [vmem:[%s223 + $0x10] sm:$0xf]
      %v1735 = vld [vmem:[%s223 + $0x14] sm:$0xf]
      %v1736 = vld [vmem:[%s223 + $0x18] sm:$0xf]
      %v1737 = vld [vmem:[%s223 + $0x1c] sm:$0xf]
      %v1738 = vld [vmem:[%s223 + $0x20] sm:$0xf]
      %v1739 = vld [vmem:[%s223 + $0x24] sm:$0xf]
      %v1740 = vld [vmem:[%s223 + $0x28] sm:$0x1]
      %v1741 = vsel %vm787, %v1732, 0
      %v1742 = vsel %vm788, %v1733, 0
      %v1743 = vsel %vm789, %v1734, 0
      %v1744 = vsel %vm790, %v1735, 0
      %v1745 = vsel %vm791, %v1736, 0
      %v1746 = vsel %vm792, %v1737, 0
      %v1747 = vsel %vm793, %v1738, 0
      %v1748 = vsel %vm794, %v1739, 0
      %v1749 = vsel %vm795, %v1740, 0
      %v1750 = vld [vmem:[#allocation2] sm:$0xff]
      %v1751 = vld [vmem:[#allocation2 + $0x8] sm:$0xff]
      %v1752 = vld [vmem:[#allocation2 + $0x10] sm:$0xff]
      %v1753 = vld [vmem:[#allocation2 + $0x18] sm:$0xff]
      %v1754 = vld [vmem:[#allocation2 + $0x20] sm:$0xff]
      %v1755 = vld [vmem:[#allocation2 + $0x28] sm:$0xff]
      %v1756 = vld [vmem:[#allocation2 + $0x30] sm:$0xff]
      %v1757 = vld [vmem:[#allocation2 + $0x38] sm:$0xff]
      %s1758 = scalar_lea.vmem %s231, 16
      %v1759 = vld [vmem:[%s1758] sm:$0x3]
      %v1769 = vunpack.c.l.b16 %v1741
      %v1770 = vunpack.c.l.b16 %v1742
      %v1771 = vunpack.c.l.b16 %v1743
      %v1772 = vunpack.c.l.b16 %v1744
      %v1773 = vunpack.c.l.b16 %v1745
      %v1774 = vunpack.c.l.b16 %v1746
      %v1775 = vunpack.c.l.b16 %v1747
      %v1776 = vunpack.c.l.b16 %v1748
      %v1777 = vunpack.c.l.b16 %v1749
      %v1778 = vpack.c.b16 %v1770, %v1769
      %v1779 = vpack.c.b16 %v1772, %v1771
      %v1780 = vpack.c.b16 %v1774, %v1773
      %v1781 = vpack.c.b16 %v1776, %v1775
      %v1782 = vpack.c.b16 %v1777, %v1777
      %v1783 = vrot.slane %v1778, 1
      %v1784 = vrot.slane %v1779, 1
      %v1785 = vsel %vm838, %v1783, %v1784
      %v1786 = vrot.slane %v1780, 1
      %v1787 = vsel %vm838, %v1784, %v1786
      %v1788 = vrot.slane %v1781, 1
      %v1789 = vsel %vm838, %v1786, %v1788
      %v1790 = vrot.slane %v1782, 1
      %v1791 = vsel %vm838, %v1788, %v1790
      %v1793 = vsel %vm439, %v1785, 0
      %v1796 = vsel %vm439, %v1787, 0
      %v1799 = vsel %vm439, %v1789, 0
      %v1802 = vsel %vm439, %v1791, 0
      %v1805 = vsel %vm452, %v1759, 0
      %1807 = vmatprep.subr.bf16.mxu0 0
      %1808 = vmatpush1.bf16.msra.mxu0 %v1805
      %1809 = vmatprep.subr.bf16.mxu0 0
      %1810 = vmatpush1.bf16.msra.mxu0 0
      %1811 = vmatprep.subr.bf16.mxu0 0
      %1812 = vmatpush1.bf16.msra.mxu0 0
      %1813 = vmatprep.subr.bf16.mxu0 0
      %1814 = vmatpush1.bf16.msra.mxu0 0
      %1815 = vmatprep.subr.bf16.mxu0 0
      %1816 = vmatpush1.bf16.msra.mxu0 0
      %1817 = vmatprep.subr.bf16.mxu0 0
      %1818 = vmatpush1.bf16.msra.mxu0 0
      %1819 = vmatprep.subr.bf16.mxu0 0
      %1820 = vmatpush1.bf16.msra.mxu0 0
      %1821 = vmatprep.subr.bf16.mxu0 0
      %1822 = vmatpush1.bf16.msra.mxu0 0
      %1823 = vmatprep.subr.bf16.mxu0 0
      %1824 = vmatpush1.bf16.msra.mxu0 0
      %1825 = vmatprep.subr.bf16.mxu0 0
      %1826 = vmatpush1.bf16.msra.mxu0 0
      %1827 = vmatprep.subr.bf16.mxu0 0
      %1828 = vmatpush1.bf16.msra.mxu0 0
      %1829 = vmatprep.subr.bf16.mxu0 0
      %1830 = vmatpush1.bf16.msra.mxu0 0
      %1831 = vmatprep.subr.bf16.mxu0 0
      %1832 = vmatpush1.bf16.msra.mxu0 0
      %1833 = vmatprep.subr.bf16.mxu0 0
      %1834 = vmatpush1.bf16.msra.mxu0 0
      %1835 = vmatprep.subr.bf16.mxu0 0
      %1836 = vmatpush1.bf16.msra.mxu0 0
      %1837 = vmatprep.subr.bf16.mxu0 0
      %1838 = vmatpush1.bf16.msra.mxu0 0
      %1839 = vmatprep.mubr.bf16.mxu0 0
      %1840 = vmatmul.mubr.bf16.gmra.mrb[0].mxu0 %v1793
      %v1841 = vpop.f32.mrb[0].mxu0
      %v1842 = vadd.f32 0.0, %v1841
      %v1843 = vpop.f32.mrb[0].mxu0
      %v1844 = vpop.f32.mrb[0].mxu0
      %v1845 = vadd.f32 0.0, %v1844
      %v1846 = vpop.f32.mrb[0].mxu0
      %1847 = vmatprep.mubr.bf16.mxu0 0
      %1848 = vmatmul.mubr.bf16.gmra.mrb[0].mxu0 %v1796
      %v1849 = vpop.f32.mrb[0].mxu0
      %v1850 = vadd.f32 0.0, %v1849
      %v1851 = vpop.f32.mrb[0].mxu0
      %v1852 = vpop.f32.mrb[0].mxu0
      %v1853 = vadd.f32 0.0, %v1852
      %v1854 = vpop.f32.mrb[0].mxu0
      %1855 = vmatprep.mubr.bf16.mxu0 0
      %1856 = vmatmul.mubr.bf16.gmra.mrb[0].mxu0 %v1799
      %v1857 = vpop.f32.mrb[0].mxu0
      %v1858 = vadd.f32 0.0, %v1857
      %v1859 = vpop.f32.mrb[0].mxu0
      %v1860 = vpop.f32.mrb[0].mxu0
      %v1861 = vadd.f32 0.0, %v1860
      %v1862 = vpop.f32.mrb[0].mxu0
      %1863 = vmatprep.mubr.bf16.mxu0 0
      %1864 = vmatmul.mubr.bf16.gmra.mrb[0].mxu0 %v1802
      %v1865 = vpop.f32.mrb[0].mxu0
      %v1866 = vadd.f32 0.0, %v1865
      %v1867 = vpop.f32.mrb[0].mxu0
      %v1868 = vpop.f32.mrb[0].mxu0
      %v1869 = vadd.f32 0.0, %v1868
      %v1870 = vpop.f32.mrb[0].mxu0
      %1871 = vdwg.mxu0
      %v1872 = vadd.f32 %v1750, %v1842
      %v1873 = vadd.f32 %v1751, %v1845
      %v1874 = vadd.f32 %v1752, %v1850
      %v1875 = vadd.f32 %v1753, %v1853
      %v1876 = vadd.f32 %v1754, %v1858
      %v1877 = vadd.f32 %v1755, %v1861
      %v1878 = vadd.f32 %v1756, %v1866
      %v1879 = vadd.f32 %v1757, %v1869
      %1880 = vst.msk [vmem:[#allocation2] sm:$0xff] %vm439, %v1872
      %1881 = vst.msk [vmem:[#allocation2 + $0x8] sm:$0xff] %vm439, %v1873
      %1882 = vst.msk [vmem:[#allocation2 + $0x10] sm:$0xff] %vm439, %v1874
      %1883 = vst.msk [vmem:[#allocation2 + $0x18] sm:$0xff] %vm439, %v1875
      %1884 = vst.msk [vmem:[#allocation2 + $0x20] sm:$0xff] %vm439, %v1876
      %1885 = vst.msk [vmem:[#allocation2 + $0x28] sm:$0xff] %vm439, %v1877
      %1886 = vst.msk [vmem:[#allocation2 + $0x30] sm:$0xff] %vm439, %v1878
      %1887 = vst.msk [vmem:[#allocation2 + $0x38] sm:$0xff] %vm439, %v1879
      %p1888 = scmp.eq.s32.totalorder %s21, 2
      // Predicated region
      $region37: #{att_decoding_block_layer.17} parent=31 // pred_check
        %p1889 = pneg %p1888
      $region38: #{att_decoding_block_layer.17} parent=31 // pred_check_branch
        %1891 = sbr.rel (%p1889) target = $region40
      $region39: #{att_decoding_block_layer.17} parent=31 // pred_region
        %v1892 = vld [vmem:[#allocation2] sm:$0xff]
        %v1893 = vld [vmem:[#allocation2 + $0x8] sm:$0xff]
        %v1894 = vld [vmem:[#allocation2 + $0x10] sm:$0xff]
        %v1895 = vld [vmem:[#allocation2 + $0x18] sm:$0xff]
        %v1896 = vld [vmem:[#allocation2 + $0x20] sm:$0xff]
        %v1897 = vld [vmem:[#allocation2 + $0x28] sm:$0xff]
        %v1898 = vld [vmem:[#allocation2 + $0x30] sm:$0xff]
        %v1899 = vld [vmem:[#allocation2 + $0x38] sm:$0xff]
        %v1900 = vld [vmem:[%s2] sm:$0x1]
        %v1902 = vlaneseq
        %v1903 = vshrl.u32 %v1902, 7
        %v1904 = vsub.s32 0, %v1903
        %v1905 = vrot.slane %v1900, %v1904
        %v1907 = vadd.f32 %v1892, %v1905
        %v1908 = vadd.f32 %v1893, %v1905
        %v1909 = vadd.f32 %v1894, %v1905
        %v1910 = vadd.f32 %v1895, %v1905
        %v1911 = vadd.f32 %v1896, %v1905
        %v1912 = vadd.f32 %v1897, %v1905
        %v1913 = vadd.f32 %v1898, %v1905
        %v1914 = vadd.f32 %v1899, %v1905
        %v1915 = vpack.c.bf16 %v1908, %v1907
        %v1916 = vpack.c.bf16 %v1910, %v1909
        %v1917 = vpack.c.bf16 %v1912, %v1911
        %v1918 = vpack.c.bf16 %v1914, %v1913
        %v1923 = vunpack.c.l.b16 %v1915
        %v1924 = vunpack.c.h.b16 %v1915
        %v1925 = vunpack.c.l.b16 %v1916
        %v1926 = vunpack.c.h.b16 %v1916
        %v1927 = vunpack.c.l.b16 %v1917
        %v1928 = vunpack.c.h.b16 %v1917
        %v1929 = vunpack.c.l.b16 %v1918
        %v1930 = vunpack.c.h.b16 %v1918
        %v1931 = vpack.c.b16 %v1923, %v1923
        %v1932 = vpack.c.b16 %v1924, %v1924
        %v1933 = vpack.c.b16 %v1925, %v1925
        %v1934 = vpack.c.b16 %v1926, %v1926
        %v1935 = vpack.c.b16 %v1927, %v1927
        %v1936 = vpack.c.b16 %v1928, %v1928
        %v1937 = vpack.c.b16 %v1929, %v1929
        %v1938 = vpack.c.b16 %v1930, %v1930
        %vm1947 = vcmask 27648
        %1948 = vst.msk [vmem:[%s240] sm:$0xf] %vm1947, %v1931
        %1949 = vst.msk [vmem:[%s240 + $0x4] sm:$0xf] %vm1947, %v1932
        %1950 = vst.msk [vmem:[%s240 + $0x8] sm:$0xf] %vm1947, %v1933
        %1951 = vst.msk [vmem:[%s240 + $0xc] sm:$0xf] %vm1947, %v1934
        %1952 = vst.msk [vmem:[%s240 + $0x10] sm:$0xf] %vm1947, %v1935
        %1953 = vst.msk [vmem:[%s240 + $0x14] sm:$0xf] %vm1947, %v1936
        %1954 = vst.msk [vmem:[%s240 + $0x18] sm:$0xf] %vm1947, %v1937
        %1955 = vst.msk [vmem:[%s240 + $0x1c] sm:$0xf] %vm1947, %v1938
      $region40: #{att_decoding_block_layer.17} parent=31 // pred_fallthru
        _
      %p1956 = scmp.lt.s32.totalorder %s19, 1
      %s1957 = scalar_select %p1956, %s19, 1
      %p1958 = scmp.lt.s32.totalorder %s20, 7
      %s1959 = scalar_select %p1958, %s20, 7
      %s1960 = smul.addr %s1959, 8
      %s1961 = smul.addr %s1957, 64
      %s1962 = sadd.s32 %s1960, %s1961
      %s1963 = smul.addr %s1962, 4
      %s1964 = scalar_lea.vmem %s3, %s1963
      // Predicated region
      $region41: #{att_decoding_block_layer.17} parent=31 // pred_check
        %p1965 = pneg %p132
      $region42: #{att_decoding_block_layer.17} parent=31 // pred_check_branch
        %1967 = sbr.rel (%p1965) target = $region44
      $region43: #{att_decoding_block_layer.17} parent=31 // pred_region
        _
      $region44: #{att_decoding_block_layer.17} parent=31 // pred_fallthru
        _
    $region32: #{att_decoding_block_layer.17} parent=5 // pred_fallthru
      _
    %p1968 = scmp.le.s32.totalorder 2, %s9
    // Predicated region
    $region45: #{att_decoding_block_layer.17} parent=5 // pred_check
      %p1969 = pneg %p1968
    $region46: #{att_decoding_block_layer.17} parent=5 // pred_check_branch
      %1971 = sbr.rel (%p1969) target = $region48
    $region47: #{att_decoding_block_layer.17} parent=5 // pred_region
      %s1972 = ssub.s32 %s9, 2
      // Predicated region
      $region49: #{att_decoding_block_layer.17} parent=47 // pred_check
        %p1973 = pneg %p138
      $region50: #{att_decoding_block_layer.17} parent=47 // pred_check_branch
        %1975 = sbr.rel (%p1973) target = $region52
      $region51: #{att_decoding_block_layer.17} parent=47 // pred_region
        %p1976 = scmp.lt.s32.totalorder %s22, 1
        %s1977 = scalar_select %p1976, %s22, 1
        %p1978 = scmp.lt.s32.totalorder %s23, 7
        %s1979 = scalar_select %p1978, %s23, 7
        %s1980 = smul.addr %s1979, 8
        %s1981 = smul.addr %s1977, 64
        %s1982 = sadd.s32 %s1980, %s1981
        %s1983 = smul.addr %s1982, 4
        %s1984 = scalar_lea.vmem %s3, %s1983
      $region52: #{att_decoding_block_layer.17} parent=47 // pred_fallthru
        _
    $region48: #{att_decoding_block_layer.17} parent=5 // pred_fallthru
      _
  $region6: #{att_decoding_block_layer.17} parent=0 // loop_footer
    %s13 = sadd.s32 1, %s9
  $region7: #{att_decoding_block_layer.17} parent=0 // loop_footer_branch
    %8 = sbr.rel target = $region3
  $region8: #{att_decoding_block_layer.17} parent=0 // loop_exit
    _

// kernel: att_decoding_block_layer.19
$region0: #{att_decoding_block_layer.19}
  #allocation0 [shape = 'u32[]', space=smem, size = 0x4, offset = 0x4, fixed_abs, tag = 'smem constant byte address 0x4 - core index']
  #allocation1 [shape = 'u32[144,128]{1,0:T(1,128)}', space=vmem, size = 0x12000, scoped, tag = 'internal scratch']
  #allocation2 [shape = 'f32[64,4]{1,0:T(8,128)}', space=vmem, size = 0x8000, scoped, tag = 'scratch operand']
  %s0 = inlined_call_operand.vmem [shape: bf16[20,82,4], index: 0, kind: input, shape index: {}]
  %s1 = inlined_call_operand.vmem [shape: bf16[3,9,4,4], index: 1, kind: input, shape index: {}]
  %s2 = inlined_call_operand.vmem [shape: f32[1,4], index: 2, kind: input, shape index: {}]
  %s3 = inlined_call_operand.vmem [shape: f32[2,8,64,4], index: 3, kind: input, shape index: {}]
  %s4 = inlined_call_operand.vmem [shape: f32[2,8,64,4], index: 4, kind: output, shape index: {}]
  %s5 = sld [smem:[#allocation0]]
  $region57: #{att_decoding_block_layer.19} parent=0
    _
  %s7 = ssub.s32 1, %s5
  %s8 = scalar_select 0, %s7, %s5
  loop: start=0, step=1, limit=50
  $region2: #{att_decoding_block_layer.19} parent=0 // loop_pre_header
    _
  $region3: #{att_decoding_block_layer.19} parent=0 // loop_header
    %s10 = sphi 0, %s14
    %p11 = scmp.ge.s32.totalorder %s10, 50
    %s17 = sphi 0, %s36
    %s18 = sphi 0, %s32
    %s19 = sphi 0, %s28
    %s20 = sphi 0, %s17
    %s21 = sphi 0, %s18
    %s22 = sphi 0, %s19
    %s23 = sphi 0, %s20
    %s24 = sphi 0, %s21
    %s25 = sphi 0, %s22
    %s45 = sphi 0, %s47
    %s48 = sphi 0, %s45
    %s49 = sphi 0, %s48
    %s65 = sphi 0, %s49
    %s71 = sphi 0, %s73
    %s74 = sphi 0, %s71
    %s75 = sphi 0, %s74
    %s91 = sphi 0, %s75
    %s95 = sphi 0, %s95
    %s97 = sphi 0, %s95
    %s98 = sphi 0, %s97
    %s112 = sphi 0, %s98
    %s120 = sphi 0, %s122
    %s123 = sphi 0, %s120
    %s124 = sphi 0, %s123
    %s140 = sphi 0, %s124
    %s148 = sphi 0, %s150
    %s151 = sphi 0, %s148
    %s152 = sphi 0, %s151
    %s168 = sphi 0, %s152
  $region4: #{att_decoding_block_layer.19} parent=0 // loop_header_branch
    %13 = sbr.rel (%p11) target = $region8
  $region5: #{att_decoding_block_layer.19} parent=0 // loop_body
    %s15 = ssub.s32 %s10, 1
    %s16 = ssub.s32 %s10, 2
    %s26 = sadd.s32 1, %s19
    %p27 = scmp.ge.s32.totalorder %s26, 3
    %s28 = scalar_select %p27, 0, %s26
    %s29 = sadd.s32 1, %s18
    %s30 = scalar_select %p27, %s29, %s18
    %p31 = scmp.ge.s32.totalorder %s30, 8
    %s32 = scalar_select %p31, 0, %s30
    %s33 = sadd.s32 1, %s17
    %s34 = scalar_select %p31, %s33, %s17
    %p35 = scmp.ge.s32.totalorder %s34, 2
    %s36 = scalar_select %p35, 0, %s34
    %s37 = smul.u32 %s17, 10
    %s38 = sadd.s32 %s37, %s18
    %s39 = sadd.s32 %s38, %s19
    %s40 = smul.u32 %s36, 10
    %s41 = sadd.s32 %s40, %s32
    %s42 = sadd.s32 %s41, %s28
    %s43 = ssub.s32 %s39, %s42
    %p44 = scmp.eq.s32.totalorder %s43, 0
    %s46 = sadd.s32 %s45, 1
    %s47 = scalar_select %p44, %s45, %s46
    %p50 = pneg %p44
    %p51 = scmp.eq.s32.totalorder %s10, 47
    %p52 = por %p50, %p51
    %p53 = scmp.ne.s32.totalorder %s45, %s48
    %p54 = scmp.eq.s32.totalorder %s10, 0
    %p55 = por %p53, %p54
    %p56 = scmp.ne.s32.totalorder %s45, %s48
    %p57 = scmp.eq.s32.totalorder %s15, 47
    %p58 = por %p56, %p57
    %p59 = scmp.ne.s32.totalorder %s48, %s49
    %p60 = scmp.eq.s32.totalorder %s15, 0
    %p61 = por %p59, %p60
    %p62 = scmp.ne.s32.totalorder %s48, %s49
    %p63 = scmp.eq.s32.totalorder %s16, 47
    %p64 = por %p62, %p63
    %p66 = scmp.ne.s32.totalorder %s49, %s65
    %p67 = scmp.eq.s32.totalorder %s16, 0
    %p68 = por %p66, %p67
    %s69 = ssub.s32 %s19, %s28
    %p70 = scmp.eq.s32.totalorder %s69, 0
    %s72 = sadd.s32 %s71, 1
    %s73 = scalar_select %p70, %s71, %s72
    %p76 = pneg %p70
    %p77 = scmp.eq.s32.totalorder %s10, 47
    %p78 = por %p76, %p77
    %p79 = scmp.ne.s32.totalorder %s71, %s74
    %p80 = scmp.eq.s32.totalorder %s10, 0
    %p81 = por %p79, %p80
    %p82 = scmp.ne.s32.totalorder %s71, %s74
    %p83 = scmp.eq.s32.totalorder %s15, 47
    %p84 = por %p82, %p83
    %p85 = scmp.ne.s32.totalorder %s74, %s75
    %p86 = scmp.eq.s32.totalorder %s15, 0
    %p87 = por %p85, %p86
    %p88 = scmp.ne.s32.totalorder %s74, %s75
    %p89 = scmp.eq.s32.totalorder %s16, 47
    %p90 = por %p88, %p89
    %p92 = scmp.ne.s32.totalorder %s75, %s91
    %p93 = scmp.eq.s32.totalorder %s16, 0
    %p94 = por %p92, %p93
    %s96 = sadd.s32 %s95, 1
    %p99 = scmp.eq.s32.totalorder %s10, 47
    %p100 = scmp.ne.s32.totalorder %s95, %s97
    %p101 = scmp.eq.s32.totalorder %s10, 0
    %p102 = por %p100, %p101
    %p103 = scmp.ne.s32.totalorder %s95, %s97
    %p104 = scmp.eq.s32.totalorder %s15, 47
    %p105 = por %p103, %p104
    %p106 = scmp.ne.s32.totalorder %s97, %s98
    %p107 = scmp.eq.s32.totalorder %s15, 0
    %p108 = por %p106, %p107
    %p109 = scmp.ne.s32.totalorder %s97, %s98
    %p110 = scmp.eq.s32.totalorder %s16, 47
    %p111 = por %p109, %p110
    %p113 = scmp.ne.s32.totalorder %s98, %s112
    %p114 = scmp.eq.s32.totalorder %s16, 0
    %p115 = por %p113, %p114
    %s116 = ssub.s32 %s17, %s36
    %s117 = ssub.s32 %s18, %s32
    %s118 = sor.u32 %s116, %s117
    %p119 = scmp.eq.s32.totalorder %s118, 0
    %s121 = sadd.s32 %s120, 1
    %s122 = scalar_select %p119, %s120, %s121
    %p125 = pneg %p119
    %p126 = scmp.eq.s32.totalorder %s10, 47
    %p127 = por %p125, %p126
    %p128 = scmp.ne.s32.totalorder %s120, %s123
    %p129 = scmp.eq.s32.totalorder %s10, 0
    %p130 = por %p128, %p129
    %p131 = scmp.ne.s32.totalorder %s120, %s123
    %p132 = scmp.eq.s32.totalorder %s15, 47
    %p133 = por %p131, %p132
    %p134 = scmp.ne.s32.totalorder %s123, %s124
    %p135 = scmp.eq.s32.totalorder %s15, 0
    %p136 = por %p134, %p135
    %p137 = scmp.ne.s32.totalorder %s123, %s124
    %p138 = scmp.eq.s32.totalorder %s16, 47
    %p139 = por %p137, %p138
    %p141 = scmp.ne.s32.totalorder %s124, %s140
    %p142 = scmp.eq.s32.totalorder %s16, 0
    %p143 = por %p141, %p142
    %s144 = ssub.s32 %s17, %s36
    %s145 = ssub.s32 %s18, %s32
    %s146 = sor.u32 %s144, %s145
    %p147 = scmp.eq.s32.totalorder %s146, 0
    %s149 = sadd.s32 %s148, 1
    %s150 = scalar_select %p147, %s148, %s149
    %p153 = pneg %p147
    %p154 = scmp.eq.s32.totalorder %s10, 47
    %p155 = por %p153, %p154
    %p156 = scmp.ne.s32.totalorder %s148, %s151
    %p157 = scmp.eq.s32.totalorder %s10, 0
    %p158 = por %p156, %p157
    %p159 = scmp.ne.s32.totalorder %s148, %s151
    %p160 = scmp.eq.s32.totalorder %s15, 47
    %p161 = por %p159, %p160
    %p162 = scmp.ne.s32.totalorder %s151, %s152
    %p163 = scmp.eq.s32.totalorder %s15, 0
    %p164 = por %p162, %p163
    %p165 = scmp.ne.s32.totalorder %s151, %s152
    %p166 = scmp.eq.s32.totalorder %s16, 47
    %p167 = por %p165, %p166
    %p169 = scmp.ne.s32.totalorder %s152, %s168
    %p170 = scmp.eq.s32.totalorder %s16, 0
    %p171 = por %p169, %p170
    %p172 = scmp.le.s32.totalorder 1, %s10
    %p173 = scmp.lt.s32.totalorder %s10, 49
    %p174 = pnand %p172, %p173
    %p175 = pneg %p174
    // Predicated region
    $region9: #{att_decoding_block_layer.19} parent=5 // pred_check
      _
    $region10: #{att_decoding_block_layer.19} parent=5 // pred_check_branch
      %177 = sbr.rel (%p174) target = $region12
    $region11: #{att_decoding_block_layer.19} parent=5 // pred_region
      %s178 = ssub.s32 %s10, 1
      // Predicated region
      $region13: #{att_decoding_block_layer.19} parent=11 // pred_check
        %p179 = pneg %p108
      $region14: #{att_decoding_block_layer.19} parent=11 // pred_check_branch
        %181 = sbr.rel (%p179) target = $region16
      $region15: #{att_decoding_block_layer.19} parent=11 // pred_region
        _
      $region16: #{att_decoding_block_layer.19} parent=11 // pred_fallthru
        _
    $region12: #{att_decoding_block_layer.19} parent=5 // pred_fallthru
      _
    %p182 = scmp.lt.s32.totalorder %s10, 48
    // Predicated region
    $region17: #{att_decoding_block_layer.19} parent=5 // pred_check
      %p183 = pneg %p182
    $region18: #{att_decoding_block_layer.19} parent=5 // pred_check_branch
      %185 = sbr.rel (%p183) target = $region20
    $region19: #{att_decoding_block_layer.19} parent=5 // pred_region
      // Predicated region
      $region21: #{att_decoding_block_layer.19} parent=19 // pred_check
        %p186 = pneg %p55
      $region22: #{att_decoding_block_layer.19} parent=19 // pred_check_branch
        %188 = sbr.rel (%p186) target = $region24
      $region23: #{att_decoding_block_layer.19} parent=19 // pred_region
        %s189 = smul.u32 %s17, 10
        %s190 = sadd.s32 %s189, %s18
        %s191 = sadd.s32 %s190, %s19
        %p192 = scmp.lt.s32.totalorder %s191, 19
        %s193 = scalar_select %p192, %s191, 19
        %s194 = smul.addr %s193, 11
        %s195 = smul.addr %s194, 4
        %s196 = scalar_lea.vmem %s0, %s195
        %s197 = smul.u32 %s17, 10
        %s198 = sadd.s32 %s197, %s18
        %s199 = sadd.s32 %s198, %s19
      $region24: #{att_decoding_block_layer.19} parent=19 // pred_fallthru
        _
      // Predicated region
      $region25: #{att_decoding_block_layer.19} parent=19 // pred_check
        %p200 = pneg %p81
      $region26: #{att_decoding_block_layer.19} parent=19 // pred_check_branch
        %202 = sbr.rel (%p200) target = $region28
      $region27: #{att_decoding_block_layer.19} parent=19 // pred_region
        %p203 = scmp.lt.s32.totalorder %s19, 2
        %s204 = scalar_select %p203, %s19, 2
        %s205 = smul.addr %s204, 9
        %s206 = smul.addr %s205, 2
        %s207 = scalar_lea.vmem %s1, %s206
      $region28: #{att_decoding_block_layer.19} parent=19 // pred_fallthru
        _
      // Predicated region
      $region29: #{att_decoding_block_layer.19} parent=19 // pred_check
        %p208 = pneg %p130
      $region30: #{att_decoding_block_layer.19} parent=19 // pred_check_branch
        %210 = sbr.rel (%p208) target = $region32
      $region31: #{att_decoding_block_layer.19} parent=19 // pred_region
        %p211 = scmp.lt.s32.totalorder %s17, 1
        %s212 = scalar_select %p211, %s17, 1
        %p213 = scmp.lt.s32.totalorder %s18, 7
        %s214 = scalar_select %p213, %s18, 7
        %s215 = smul.addr %s214, 8
        %s216 = smul.addr %s212, 64
        %s217 = sadd.s32 %s215, %s216
        %s218 = smul.addr %s217, 8
        %s219 = scalar_lea.vmem %s3, %s218
      $region32: #{att_decoding_block_layer.19} parent=19 // pred_fallthru
        _
    $region20: #{att_decoding_block_layer.19} parent=5 // pred_fallthru
      _
    %p220 = scmp.le.s32.totalorder 1, %s10
    %p221 = scmp.lt.s32.totalorder %s10, 49
    %p222 = pnand %p220, %p221
    %p223 = pneg %p222
    // Predicated region
    $region33: #{att_decoding_block_layer.19} parent=5 // pred_check
      _
    $region34: #{att_decoding_block_layer.19} parent=5 // pred_check_branch
      %225 = sbr.rel (%p222) target = $region36
    $region35: #{att_decoding_block_layer.19} parent=5 // pred_region
      %s226 = ssub.s32 %s10, 1
      %s227 = smul.u32 %s20, 10
      %s228 = sadd.s32 %s227, %s21
      %s229 = sadd.s32 %s228, %s22
      %p230 = scmp.lt.s32.totalorder %s229, 19
      %s231 = scalar_select %p230, %s229, 19
      %s232 = smul.addr %s231, 11
      %s233 = smul.addr %s232, 4
      %s234 = scalar_lea.vmem %s0, %s233
      %p235 = pneg %p61
      %p236 = pneg %p58
      %p237 = scmp.lt.s32.totalorder %s22, 2
      %s238 = scalar_select %p237, %s22, 2
      %s239 = smul.addr %s238, 9
      %s240 = smul.addr %s239, 2
      %s241 = scalar_lea.vmem %s1, %s240
      %p242 = pneg %p87
      %p243 = pneg %p84
      %p244 = pneg %p108
      %p245 = pneg %p105
      %p246 = scmp.lt.s32.totalorder %s20, 1
      %s247 = scalar_select %p246, %s20, 1
      %p248 = scmp.lt.s32.totalorder %s21, 7
      %s249 = scalar_select %p248, %s21, 7
      %s250 = smul.addr %s249, 8
      %s251 = smul.addr %s247, 64
      %s252 = sadd.s32 %s250, %s251
      %s253 = smul.addr %s252, 8
      %s254 = scalar_lea.vmem %s3, %s253
      %p255 = pneg %p136
      %p256 = pneg %p133
      %p257 = pneg %p164
      %p258 = pneg %p161
      %p259 = scmp.lt.s32.totalorder %s20, 1
      %s260 = scalar_select %p259, %s20, 1
      %p261 = scmp.lt.s32.totalorder %s21, 7
      %s262 = scalar_select %p261, %s21, 7
      %s263 = smul.addr %s262, 8
      %s264 = smul.addr %s260, 64
      %s265 = sadd.s32 %s263, %s264
      %s266 = smul.addr %s265, 8
      %s267 = scalar_lea.vmem %s4, %s266
      %s268 = smul.u32 %s20, 10
      %s269 = sadd.s32 %s268, %s21
      %s270 = sadd.s32 %s269, %s22
      %p271 = scmp.lt.s32.totalorder %s270, 19
      %s272 = scalar_select %p271, %s270, 19
      %s273 = smul.addr %s272, 11
      %s274 = smul.addr %s273, 4
      %s275 = scalar_lea.vmem %s0, %s274
      %s276 = smul.u32 %s20, 10
      %s277 = sadd.s32 %s276, %s21
      %s278 = sadd.s32 %s277, %s22
      %p279 = scmp.lt.s32.totalorder %s22, 2
      %s280 = scalar_select %p279, %s22, 2
      %s281 = smul.addr %s280, 9
      %s282 = smul.addr %s281, 2
      %s283 = scalar_lea.vmem %s1, %s282
      %p284 = scmp.lt.s32.totalorder %s20, 1
      %s285 = scalar_select %p284, %s20, 1
      %p286 = scmp.lt.s32.totalorder %s21, 7
      %s287 = scalar_select %p286, %s21, 7
      %s288 = smul.addr %s287, 8
      %s289 = smul.addr %s285, 64
      %s290 = sadd.s32 %s288, %s289
      %s291 = smul.addr %s290, 8
      %s292 = scalar_lea.vmem %s3, %s291
      %p293 = scmp.lt.s32.totalorder %s20, 1
      %s294 = scalar_select %p293, %s20, 1
      %p295 = scmp.lt.s32.totalorder %s21, 7
      %s296 = scalar_select %p295, %s21, 7
      %s297 = smul.addr %s296, 8
      %s298 = smul.addr %s294, 64
      %s299 = sadd.s32 %s297, %s298
      %s300 = smul.addr %s299, 8
      %s301 = scalar_lea.vmem %s4, %s300
      %p305 = scmp.eq.s32.totalorder %s22, 0
      // Predicated region
      $region37: #{att_decoding_block_layer.19} parent=35 // pred_check
        %p306 = pneg %p305
      $region38: #{att_decoding_block_layer.19} parent=35 // pred_check_branch
        %308 = sbr.rel (%p306) target = $region40
      $region39: #{att_decoding_block_layer.19} parent=35 // pred_region
        %vm309 = vcmask 31744
        %310 = vst.msk [vmem:[#allocation2] sm:$0xff] %vm309, 0.0
        %311 = vst.msk [vmem:[#allocation2 + $0x8] sm:$0xff] %vm309, 0.0
        %312 = vst.msk [vmem:[#allocation2 + $0x10] sm:$0xff] %vm309, 0.0
        %313 = vst.msk [vmem:[#allocation2 + $0x18] sm:$0xff] %vm309, 0.0
        %314 = vst.msk [vmem:[#allocation2 + $0x20] sm:$0xff] %vm309, 0.0
        %315 = vst.msk [vmem:[#allocation2 + $0x28] sm:$0xff] %vm309, 0.0
        %316 = vst.msk [vmem:[#allocation2 + $0x30] sm:$0xff] %vm309, 0.0
        %317 = vst.msk [vmem:[#allocation2 + $0x38] sm:$0xff] %vm309, 0.0
      $region40: #{att_decoding_block_layer.19} parent=35 // pred_fallthru
        _
      %v318 = vlaneseq
      %v319 = vshrl.u32 %v318, 7
      %v320 = vadd.s32 %v319, 8
      %v321 = vadd.s32 %v319, 16
      %v322 = vadd.s32 %v319, 24
      %v323 = vadd.s32 %v319, 32
      %v324 = vadd.s32 %v319, 40
      %v325 = vadd.s32 %v319, 48
      %v326 = vadd.s32 %v319, 56
      %vm327 = vcmp.lt.s32.totalorder %v319, 0
      %v328 = vsub.s32 0, %v319
      %v329 = vsel %vm327, %v328, %v319
      %v330 = vshrl.u32 %v329, 3
      %v331 = vand.u32 %v329, 7
      %v332 = vsub.s32 0, %v331
      %v333 = vsel %vm327, %v332, %v331
      %vm334 = vcmp.lt.s32.totalorder %v320, 0
      %v335 = vsub.s32 0, %v320
      %v336 = vsel %vm334, %v335, %v320
      %v337 = vshrl.u32 %v336, 3
      %v338 = vand.u32 %v336, 7
      %v339 = vsub.s32 0, %v338
      %v340 = vsel %vm334, %v339, %v338
      %vm341 = vcmp.lt.s32.totalorder %v321, 0
      %v342 = vsub.s32 0, %v321
      %v343 = vsel %vm341, %v342, %v321
      %v344 = vshrl.u32 %v343, 3
      %v345 = vand.u32 %v343, 7
      %v346 = vsub.s32 0, %v345
      %v347 = vsel %vm341, %v346, %v345
      %vm348 = vcmp.lt.s32.totalorder %v322, 0
      %v349 = vsub.s32 0, %v322
      %v350 = vsel %vm348, %v349, %v322
      %v351 = vshrl.u32 %v350, 3
      %v352 = vand.u32 %v350, 7
      %v353 = vsub.s32 0, %v352
      %v354 = vsel %vm348, %v353, %v352
      %vm355 = vcmp.lt.s32.totalorder %v323, 0
      %v356 = vsub.s32 0, %v323
      %v357 = vsel %vm355, %v356, %v323
      %v358 = vshrl.u32 %v357, 3
      %v359 = vand.u32 %v357, 7
      %v360 = vsub.s32 0, %v359
      %v361 = vsel %vm355, %v360, %v359
      %vm362 = vcmp.lt.s32.totalorder %v324, 0
      %v363 = vsub.s32 0, %v324
      %v364 = vsel %vm362, %v363, %v324
      %v365 = vshrl.u32 %v364, 3
      %v366 = vand.u32 %v364, 7
      %v367 = vsub.s32 0, %v366
      %v368 = vsel %vm362, %v367, %v366
      %vm369 = vcmp.lt.s32.totalorder %v325, 0
      %v370 = vsub.s32 0, %v325
      %v371 = vsel %vm369, %v370, %v325
      %v372 = vshrl.u32 %v371, 3
      %v373 = vand.u32 %v371, 7
      %v374 = vsub.s32 0, %v373
      %v375 = vsel %vm369, %v374, %v373
      %vm376 = vcmp.lt.s32.totalorder %v326, 0
      %v377 = vsub.s32 0, %v326
      %v378 = vsel %vm376, %v377, %v326
      %v379 = vshrl.u32 %v378, 3
      %v380 = vand.u32 %v378, 7
      %v381 = vsub.s32 0, %v380
      %v382 = vsel %vm376, %v381, %v380
      %vm383 = vcmp.ne.s32.totalorder %v333, 0
      %vm384 = vcmp.ne.s32.totalorder %v340, 0
      %vm385 = vcmp.ne.s32.totalorder %v347, 0
      %vm386 = vcmp.ne.s32.totalorder %v354, 0
      %vm387 = vcmp.ne.s32.totalorder %v361, 0
      %vm388 = vcmp.ne.s32.totalorder %v368, 0
      %vm389 = vcmp.ne.s32.totalorder %v375, 0
      %vm390 = vcmp.ne.s32.totalorder %v382, 0
      %vm391 = vcmp.lt.s32.totalorder %v333, 0
      %vm392 = vcmp.lt.s32.totalorder %v340, 0
      %vm393 = vcmp.lt.s32.totalorder %v347, 0
      %vm394 = vcmp.lt.s32.totalorder %v354, 0
      %vm395 = vcmp.lt.s32.totalorder %v361, 0
      %vm396 = vcmp.lt.s32.totalorder %v368, 0
      %vm397 = vcmp.lt.s32.totalorder %v375, 0
      %vm398 = vcmp.lt.s32.totalorder %v382, 0
      %vm399 = vmand %vm391, %vm383
      %vm400 = vmand %vm392, %vm384
      %vm401 = vmand %vm393, %vm385
      %vm402 = vmand %vm394, %vm386
      %vm403 = vmand %vm395, %vm387
      %vm404 = vmand %vm396, %vm388
      %vm405 = vmand %vm397, %vm389
      %vm406 = vmand %vm398, %vm390
      %v407 = vadd.s32 %v333, 8
      %v408 = vadd.s32 %v340, 8
      %v409 = vadd.s32 %v347, 8
      %v410 = vadd.s32 %v354, 8
      %v411 = vadd.s32 %v361, 8
      %v412 = vadd.s32 %v368, 8
      %v413 = vadd.s32 %v375, 8
      %v414 = vadd.s32 %v382, 8
      %v415 = vsel %vm399, %v407, %v333
      %v416 = vsel %vm400, %v408, %v340
      %v417 = vsel %vm401, %v409, %v347
      %v418 = vsel %vm402, %v410, %v354
      %v419 = vsel %vm403, %v411, %v361
      %v420 = vsel %vm404, %v412, %v368
      %v421 = vsel %vm405, %v413, %v375
      %v422 = vsel %vm406, %v414, %v382
      %v423 = vld [vmem:[%s275] sm:$0xf]
      %v424 = vld [vmem:[%s275 + $0x4] sm:$0xf]
      %v425 = vld [vmem:[%s275 + $0x8] sm:$0xf]
      %v426 = vld [vmem:[%s275 + $0xc] sm:$0xf]
      %v427 = vld [vmem:[%s275 + $0x10] sm:$0xf]
      %v428 = vld [vmem:[%s275 + $0x14] sm:$0xf]
      %v429 = vld [vmem:[%s275 + $0x18] sm:$0xf]
      %v430 = vld [vmem:[%s275 + $0x1c] sm:$0xf]
      %vm431 = vcmp.ge.s32.totalorder %v415, 1
      %vm432 = vcmp.ge.s32.totalorder %v416, 1
      %vm433 = vcmp.ge.s32.totalorder %v417, 1
      %vm434 = vcmp.ge.s32.totalorder %v418, 1
      %vm435 = vcmp.ge.s32.totalorder %v419, 1
      %vm436 = vcmp.ge.s32.totalorder %v420, 1
      %vm437 = vcmp.ge.s32.totalorder %v421, 1
      %vm438 = vcmp.ge.s32.totalorder %v422, 1
      %v439 = vsel %vm431, 1, 0
      %v440 = vsel %vm432, 1, 0
      %v441 = vsel %vm433, 1, 0
      %v442 = vsel %vm434, 1, 0
      %v443 = vsel %vm435, 1, 0
      %v444 = vsel %vm436, 1, 0
      %v445 = vsel %vm437, 1, 0
      %v446 = vsel %vm438, 1, 0
      %vm447 = vcmp.eq.s32.totalorder %v439, 1
      %vm448 = vcmp.eq.s32.totalorder %v440, 1
      %vm449 = vcmp.eq.s32.totalorder %v441, 1
      %vm450 = vcmp.eq.s32.totalorder %v442, 1
      %vm451 = vcmp.eq.s32.totalorder %v443, 1
      %vm452 = vcmp.eq.s32.totalorder %v444, 1
      %vm453 = vcmp.eq.s32.totalorder %v445, 1
      %vm454 = vcmp.eq.s32.totalorder %v446, 1
      %vm455 = vmpackc.low %vm447, %vm447
      %vm456 = vmpackc.low %vm448, %vm448
      %vm457 = vmpackc.low %vm449, %vm449
      %vm458 = vmpackc.low %vm450, %vm450
      %vm459 = vmpackc.low %vm451, %vm451
      %vm460 = vmpackc.low %vm452, %vm452
      %vm461 = vmpackc.low %vm453, %vm453
      %vm462 = vmpackc.low %vm454, %vm454
      %v463 = vsel %vm455, %v423, 0
      %v464 = vsel %vm456, %v424, 0
      %v465 = vsel %vm457, %v425, 0
      %v466 = vsel %vm458, %v426, 0
      %v467 = vsel %vm459, %v427, 0
      %v468 = vsel %vm460, %v428, 0
      %v469 = vsel %vm461, %v429, 0
      %v470 = vsel %vm462, %v430, 0
      %v471 = vld [vmem:[#allocation2] sm:$0xff]
      %v472 = vld [vmem:[#allocation2 + $0x8] sm:$0xff]
      %v473 = vld [vmem:[#allocation2 + $0x10] sm:$0xff]
      %v474 = vld [vmem:[#allocation2 + $0x18] sm:$0xff]
      %v475 = vld [vmem:[#allocation2 + $0x20] sm:$0xff]
      %v476 = vld [vmem:[#allocation2 + $0x28] sm:$0xff]
      %v477 = vld [vmem:[#allocation2 + $0x30] sm:$0xff]
      %v478 = vld [vmem:[#allocation2 + $0x38] sm:$0xff]
      %v479 = vld [vmem:[%s283] sm:$0x3]
      %v488 = vunpack.c.l.b16 %v463
      %v489 = vunpack.c.l.b16 %v464
      %v490 = vunpack.c.l.b16 %v465
      %v491 = vunpack.c.l.b16 %v466
      %v492 = vunpack.c.l.b16 %v467
      %v493 = vunpack.c.l.b16 %v468
      %v494 = vunpack.c.l.b16 %v469
      %v495 = vunpack.c.l.b16 %v470
      %v496 = vpack.c.b16 %v489, %v488
      %v497 = vpack.c.b16 %v491, %v490
      %v498 = vpack.c.b16 %v493, %v492
      %v499 = vpack.c.b16 %v495, %v494
      %vm500 = vcmask 31744
      %v502 = vsel %vm500, %v496, 0
      %v505 = vsel %vm500, %v497, 0
      %v508 = vsel %vm500, %v498, 0
      %v511 = vsel %vm500, %v499, 0
      %vm513 = vcmask 1041408
      %v515 = vsel %vm513, %v479, 0
      %517 = vmatprep.subr.bf16.mxu0 0
      %518 = vmatpush1.bf16.msra.mxu0 %v515
      %519 = vmatprep.subr.bf16.mxu0 0
      %520 = vmatpush1.bf16.msra.mxu0 0
      %521 = vmatprep.subr.bf16.mxu0 0
      %522 = vmatpush1.bf16.msra.mxu0 0
      %523 = vmatprep.subr.bf16.mxu0 0
      %524 = vmatpush1.bf16.msra.mxu0 0
      %525 = vmatprep.subr.bf16.mxu0 0
      %526 = vmatpush1.bf16.msra.mxu0 0
      %527 = vmatprep.subr.bf16.mxu0 0
      %528 = vmatpush1.bf16.msra.mxu0 0
      %529 = vmatprep.subr.bf16.mxu0 0
      %530 = vmatpush1.bf16.msra.mxu0 0
      %531 = vmatprep.subr.bf16.mxu0 0
      %532 = vmatpush1.bf16.msra.mxu0 0
      %533 = vmatprep.subr.bf16.mxu0 0
      %534 = vmatpush1.bf16.msra.mxu0 0
      %535 = vmatprep.subr.bf16.mxu0 0
      %536 = vmatpush1.bf16.msra.mxu0 0
      %537 = vmatprep.subr.bf16.mxu0 0
      %538 = vmatpush1.bf16.msra.mxu0 0
      %539 = vmatprep.subr.bf16.mxu0 0
      %540 = vmatpush1.bf16.msra.mxu0 0
      %541 = vmatprep.subr.bf16.mxu0 0
      %542 = vmatpush1.bf16.msra.mxu0 0
      %543 = vmatprep.subr.bf16.mxu0 0
      %544 = vmatpush1.bf16.msra.mxu0 0
      %545 = vmatprep.subr.bf16.mxu0 0
      %546 = vmatpush1.bf16.msra.mxu0 0
      %547 = vmatprep.subr.bf16.mxu0 0
      %548 = vmatpush1.bf16.msra.mxu0 0
      %549 = vmatprep.mubr.bf16.mxu0 0
      %550 = vmatmul.mubr.bf16.gmra.mrb[0].mxu0 %v502
      %v551 = vpop.f32.mrb[0].mxu0
      %v552 = vadd.f32 0.0, %v551
      %v553 = vpop.f32.mrb[0].mxu0
      %v554 = vpop.f32.mrb[0].mxu0
      %v555 = vadd.f32 0.0, %v554
      %v556 = vpop.f32.mrb[0].mxu0
      %557 = vmatprep.mubr.bf16.mxu0 0
      %558 = vmatmul.mubr.bf16.gmra.mrb[0].mxu0 %v505
      %v559 = vpop.f32.mrb[0].mxu0
      %v560 = vadd.f32 0.0, %v559
      %v561 = vpop.f32.mrb[0].mxu0
      %v562 = vpop.f32.mrb[0].mxu0
      %v563 = vadd.f32 0.0, %v562
      %v564 = vpop.f32.mrb[0].mxu0
      %565 = vmatprep.mubr.bf16.mxu0 0
      %566 = vmatmul.mubr.bf16.gmra.mrb[0].mxu0 %v508
      %v567 = vpop.f32.mrb[0].mxu0
      %v568 = vadd.f32 0.0, %v567
      %v569 = vpop.f32.mrb[0].mxu0
      %v570 = vpop.f32.mrb[0].mxu0
      %v571 = vadd.f32 0.0, %v570
      %v572 = vpop.f32.mrb[0].mxu0
      %573 = vmatprep.mubr.bf16.mxu0 0
      %574 = vmatmul.mubr.bf16.gmra.mrb[0].mxu0 %v511
      %v575 = vpop.f32.mrb[0].mxu0
      %v576 = vadd.f32 0.0, %v575
      %v577 = vpop.f32.mrb[0].mxu0
      %v578 = vpop.f32.mrb[0].mxu0
      %v579 = vadd.f32 0.0, %v578
      %v580 = vpop.f32.mrb[0].mxu0
      %581 = vdwg.mxu0
      %v582 = vadd.f32 %v471, %v552
      %v583 = vadd.f32 %v472, %v555
      %v584 = vadd.f32 %v473, %v560
      %v585 = vadd.f32 %v474, %v563
      %v586 = vadd.f32 %v475, %v568
      %v587 = vadd.f32 %v476, %v571
      %v588 = vadd.f32 %v477, %v576
      %v589 = vadd.f32 %v478, %v579
      %590 = vst.msk [vmem:[#allocation2] sm:$0xff] %vm500, %v582
      %591 = vst.msk [vmem:[#allocation2 + $0x8] sm:$0xff] %vm500, %v583
      %592 = vst.msk [vmem:[#allocation2 + $0x10] sm:$0xff] %vm500, %v584
      %593 = vst.msk [vmem:[#allocation2 + $0x18] sm:$0xff] %vm500, %v585
      %594 = vst.msk [vmem:[#allocation2 + $0x20] sm:$0xff] %vm500, %v586
      %595 = vst.msk [vmem:[#allocation2 + $0x28] sm:$0xff] %vm500, %v587
      %596 = vst.msk [vmem:[#allocation2 + $0x30] sm:$0xff] %vm500, %v588
      %597 = vst.msk [vmem:[#allocation2 + $0x38] sm:$0xff] %vm500, %v589
      %v598 = vld [vmem:[%s275] sm:$0xf]
      %v599 = vld [vmem:[%s275 + $0x4] sm:$0xf]
      %v600 = vld [vmem:[%s275 + $0x8] sm:$0xf]
      %v601 = vld [vmem:[%s275 + $0xc] sm:$0xf]
      %v602 = vld [vmem:[%s275 + $0x10] sm:$0xf]
      %v603 = vld [vmem:[%s275 + $0x14] sm:$0xf]
      %v604 = vld [vmem:[%s275 + $0x18] sm:$0xf]
      %v605 = vld [vmem:[%s275 + $0x1c] sm:$0xf]
      %v606 = vld [vmem:[%s275 + $0x20] sm:$0x1]
      %v607 = vld [vmem:[#allocation2] sm:$0xff]
      %v608 = vld [vmem:[#allocation2 + $0x8] sm:$0xff]
      %v609 = vld [vmem:[#allocation2 + $0x10] sm:$0xff]
      %v610 = vld [vmem:[#allocation2 + $0x18] sm:$0xff]
      %v611 = vld [vmem:[#allocation2 + $0x20] sm:$0xff]
      %v612 = vld [vmem:[#allocation2 + $0x28] sm:$0xff]
      %v613 = vld [vmem:[#allocation2 + $0x30] sm:$0xff]
      %v614 = vld [vmem:[#allocation2 + $0x38] sm:$0xff]
      %s615 = scalar_lea.vmem %s283, 2
      %v616 = vld [vmem:[%s615] sm:$0x3]
      %v626 = vunpack.c.l.b16 %v598
      %v627 = vunpack.c.l.b16 %v599
      %v628 = vunpack.c.l.b16 %v600
      %v629 = vunpack.c.l.b16 %v601
      %v630 = vunpack.c.l.b16 %v602
      %v631 = vunpack.c.l.b16 %v603
      %v632 = vunpack.c.l.b16 %v604
      %v633 = vunpack.c.l.b16 %v605
      %v634 = vunpack.c.l.b16 %v606
      %v635 = vpack.c.b16 %v627, %v626
      %v636 = vpack.c.b16 %v629, %v628
      %v637 = vpack.c.b16 %v631, %v630
      %v638 = vpack.c.b16 %v633, %v632
      %v639 = vpack.c.b16 %v634, %v634
      %vm640 = vsmask.f32 7424
      %v642 = vshrl.u32 %v635, 16
      %v644 = vshll.u32 %v635, 16
      %v646 = vrot.slane %v644, 1
      %v647 = vor.u32 %v642, %v646
      %v649 = vshll.u32 %v636, 16
      %v651 = vrot.slane %v649, 1
      %v652 = vsel %vm640, %v647, %v651
      %v653 = vshrl.u32 %v636, 16
      %v655 = vor.u32 %v653, %v651
      %v657 = vshll.u32 %v637, 16
      %v659 = vrot.slane %v657, 1
      %v660 = vsel %vm640, %v655, %v659
      %v661 = vshrl.u32 %v637, 16
      %v663 = vor.u32 %v661, %v659
      %v665 = vshll.u32 %v638, 16
      %v667 = vrot.slane %v665, 1
      %v668 = vsel %vm640, %v663, %v667
      %v669 = vshrl.u32 %v638, 16
      %v671 = vor.u32 %v669, %v667
      %v673 = vshll.u32 %v639, 16
      %v675 = vrot.slane %v673, 1
      %v676 = vsel %vm640, %v671, %v675
      %v678 = vsel %vm500, %v652, 0
      %v681 = vsel %vm500, %v660, 0
      %v684 = vsel %vm500, %v668, 0
      %v687 = vsel %vm500, %v676, 0
      %v690 = vsel %vm513, %v616, 0
      %692 = vmatprep.subr.bf16.mxu0 0
      %693 = vmatpush1.bf16.msra.mxu0 %v690
      %694 = vmatprep.subr.bf16.mxu0 0
      %695 = vmatpush1.bf16.msra.mxu0 0
      %696 = vmatprep.subr.bf16.mxu0 0
      %697 = vmatpush1.bf16.msra.mxu0 0
      %698 = vmatprep.subr.bf16.mxu0 0
      %699 = vmatpush1.bf16.msra.mxu0 0
      %700 = vmatprep.subr.bf16.mxu0 0
      %701 = vmatpush1.bf16.msra.mxu0 0
      %702 = vmatprep.subr.bf16.mxu0 0
      %703 = vmatpush1.bf16.msra.mxu0 0
      %704 = vmatprep.subr.bf16.mxu0 0
      %705 = vmatpush1.bf16.msra.mxu0 0
      %706 = vmatprep.subr.bf16.mxu0 0
      %707 = vmatpush1.bf16.msra.mxu0 0
      %708 = vmatprep.subr.bf16.mxu0 0
      %709 = vmatpush1.bf16.msra.mxu0 0
      %710 = vmatprep.subr.bf16.mxu0 0
      %711 = vmatpush1.bf16.msra.mxu0 0
      %712 = vmatprep.subr.bf16.mxu0 0
      %713 = vmatpush1.bf16.msra.mxu0 0
      %714 = vmatprep.subr.bf16.mxu0 0
      %715 = vmatpush1.bf16.msra.mxu0 0
      %716 = vmatprep.subr.bf16.mxu0 0
      %717 = vmatpush1.bf16.msra.mxu0 0
      %718 = vmatprep.subr.bf16.mxu0 0
      %719 = vmatpush1.bf16.msra.mxu0 0
      %720 = vmatprep.subr.bf16.mxu0 0
      %721 = vmatpush1.bf16.msra.mxu0 0
      %722 = vmatprep.subr.bf16.mxu0 0
      %723 = vmatpush1.bf16.msra.mxu0 0
      %724 = vmatprep.mubr.bf16.mxu0 0
      %725 = vmatmul.mubr.bf16.gmra.mrb[0].mxu0 %v678
      %v726 = vpop.f32.mrb[0].mxu0
      %v727 = vadd.f32 0.0, %v726
      %v728 = vpop.f32.mrb[0].mxu0
      %v729 = vpop.f32.mrb[0].mxu0
      %v730 = vadd.f32 0.0, %v729
      %v731 = vpop.f32.mrb[0].mxu0
      %732 = vmatprep.mubr.bf16.mxu0 0
      %733 = vmatmul.mubr.bf16.gmra.mrb[0].mxu0 %v681
      %v734 = vpop.f32.mrb[0].mxu0
      %v735 = vadd.f32 0.0, %v734
      %v736 = vpop.f32.mrb[0].mxu0
      %v737 = vpop.f32.mrb[0].mxu0
      %v738 = vadd.f32 0.0, %v737
      %v739 = vpop.f32.mrb[0].mxu0
      %740 = vmatprep.mubr.bf16.mxu0 0
      %741 = vmatmul.mubr.bf16.gmra.mrb[0].mxu0 %v684
      %v742 = vpop.f32.mrb[0].mxu0
      %v743 = vadd.f32 0.0, %v742
      %v744 = vpop.f32.mrb[0].mxu0
      %v745 = vpop.f32.mrb[0].mxu0
      %v746 = vadd.f32 0.0, %v745
      %v747 = vpop.f32.mrb[0].mxu0
      %748 = vmatprep.mubr.bf16.mxu0 0
      %749 = vmatmul.mubr.bf16.gmra.mrb[0].mxu0 %v687
      %v750 = vpop.f32.mrb[0].mxu0
      %v751 = vadd.f32 0.0, %v750
      %v752 = vpop.f32.mrb[0].mxu0
      %v753 = vpop.f32.mrb[0].mxu0
      %v754 = vadd.f32 0.0, %v753
      %v755 = vpop.f32.mrb[0].mxu0
      %756 = vdwg.mxu0
      %v757 = vadd.f32 %v607, %v727
      %v758 = vadd.f32 %v608, %v730
      %v759 = vadd.f32 %v609, %v735
      %v760 = vadd.f32 %v610, %v738
      %v761 = vadd.f32 %v611, %v743
      %v762 = vadd.f32 %v612, %v746
      %v763 = vadd.f32 %v613, %v751
      %v764 = vadd.f32 %v614, %v754
      %765 = vst.msk [vmem:[#allocation2] sm:$0xff] %vm500, %v757
      %766 = vst.msk [vmem:[#allocation2 + $0x8] sm:$0xff] %vm500, %v758
      %767 = vst.msk [vmem:[#allocation2 + $0x10] sm:$0xff] %vm500, %v759
      %768 = vst.msk [vmem:[#allocation2 + $0x18] sm:$0xff] %vm500, %v760
      %769 = vst.msk [vmem:[#allocation2 + $0x20] sm:$0xff] %vm500, %v761
      %770 = vst.msk [vmem:[#allocation2 + $0x28] sm:$0xff] %vm500, %v762
      %771 = vst.msk [vmem:[#allocation2 + $0x30] sm:$0xff] %vm500, %v763
      %772 = vst.msk [vmem:[#allocation2 + $0x38] sm:$0xff] %vm500, %v764
      %v773 = vld [vmem:[%s275] sm:$0xe]
      %v774 = vld [vmem:[%s275 + $0x4] sm:$0xf]
      %v775 = vld [vmem:[%s275 + $0x8] sm:$0xf]
      %v776 = vld [vmem:[%s275 + $0xc] sm:$0xf]
      %v777 = vld [vmem:[%s275 + $0x10] sm:$0xf]
      %v778 = vld [vmem:[%s275 + $0x14] sm:$0xf]
      %v779 = vld [vmem:[%s275 + $0x18] sm:$0xf]
      %v780 = vld [vmem:[%s275 + $0x1c] sm:$0xf]
      %v781 = vld [vmem:[%s275 + $0x20] sm:$0x1]
      %vm782 = vcmp.lt.s32.totalorder %v415, 7
      %vm783 = vcmp.lt.s32.totalorder %v416, 7
      %vm784 = vcmp.lt.s32.totalorder %v417, 7
      %vm785 = vcmp.lt.s32.totalorder %v418, 7
      %vm786 = vcmp.lt.s32.totalorder %v419, 7
      %vm787 = vcmp.lt.s32.totalorder %v420, 7
      %vm788 = vcmp.lt.s32.totalorder %v421, 7
      %vm789 = vcmp.lt.s32.totalorder %v422, 7
      %v790 = vsel %vm782, 1, 0
      %v791 = vsel %vm783, 1, 0
      %v792 = vsel %vm784, 1, 0
      %v793 = vsel %vm785, 1, 0
      %v794 = vsel %vm786, 1, 0
      %v795 = vsel %vm787, 1, 0
      %v796 = vsel %vm788, 1, 0
      %v797 = vsel %vm789, 1, 0
      %vm798 = vcmp.eq.s32.totalorder %v790, 1
      %vm799 = vcmp.eq.s32.totalorder %v791, 1
      %vm800 = vcmp.eq.s32.totalorder %v792, 1
      %vm801 = vcmp.eq.s32.totalorder %v793, 1
      %vm802 = vcmp.eq.s32.totalorder %v794, 1
      %vm803 = vcmp.eq.s32.totalorder %v795, 1
      %vm804 = vcmp.eq.s32.totalorder %v796, 1
      %vm805 = vcmp.eq.s32.totalorder %v797, 1
      %vm806 = vmpackc.low %vm798, %vm798
      %vm807 = vmpackc.low %vm799, %vm799
      %vm808 = vmpackc.low %vm800, %vm800
      %vm809 = vmpackc.low %vm801, %vm801
      %vm810 = vmpackc.low %vm802, %vm802
      %vm811 = vmpackc.low %vm803, %vm803
      %vm812 = vmpackc.low %vm804, %vm804
      %vm813 = vmpackc.low %vm805, %vm805
      %v814 = vsel %vm806, 65537, 0
      %v815 = vsel %vm807, 65537, 0
      %v816 = vsel %vm808, 65537, 0
      %v817 = vsel %vm809, 65537, 0
      %v818 = vsel %vm810, 65537, 0
      %v819 = vsel %vm811, 65537, 0
      %v820 = vsel %vm812, 65537, 0
      %v821 = vsel %vm813, 65537, 0
      %vm822 = vcmask 1040384
      %vm823 = vcmask 1044484
      %vm824 = vmor %vm822, %vm823
      %v825 = vrot.slane %v814, 7
      %v826 = vrot.slane %v825, 4
      %v827 = vrot.slane %v815, 7
      %v828 = vsel %vm824, %v826, %v827
      %v829 = vrot.slane %v827, 4
      %v830 = vrot.slane %v816, 7
      %v831 = vsel %vm824, %v829, %v830
      %v832 = vrot.slane %v830, 4
      %v833 = vrot.slane %v817, 7
      %v834 = vsel %vm824, %v832, %v833
      %v835 = vrot.slane %v833, 4
      %v836 = vrot.slane %v818, 7
      %v837 = vsel %vm824, %v835, %v836
      %v838 = vrot.slane %v836, 4
      %v839 = vrot.slane %v819, 7
      %v840 = vsel %vm824, %v838, %v839
      %v841 = vrot.slane %v839, 4
      %v842 = vrot.slane %v820, 7
      %v843 = vsel %vm824, %v841, %v842
      %v844 = vrot.slane %v842, 4
      %v845 = vrot.slane %v821, 7
      %v846 = vsel %vm824, %v844, %v845
      %v847 = vrot.slane %v845, 4
      %vm848 = vcmp.ne.s16.totalorder %v825, 0
      %vm849 = vcmp.ne.s16.totalorder %v828, 0
      %vm850 = vcmp.ne.s16.totalorder %v831, 0
      %vm851 = vcmp.ne.s16.totalorder %v834, 0
      %vm852 = vcmp.ne.s16.totalorder %v837, 0
      %vm853 = vcmp.ne.s16.totalorder %v840, 0
      %vm854 = vcmp.ne.s16.totalorder %v843, 0
      %vm855 = vcmp.ne.s16.totalorder %v846, 0
      %vm856 = vcmp.ne.s16.totalorder %v847, 0
      %v857 = vsel %vm848, %v773, 0
      %v858 = vsel %vm849, %v774, 0
      %v859 = vsel %vm850, %v775, 0
      %v860 = vsel %vm851, %v776, 0
      %v861 = vsel %vm852, %v777, 0
      %v862 = vsel %vm853, %v778, 0
      %v863 = vsel %vm854, %v779, 0
      %v864 = vsel %vm855, %v780, 0
      %v865 = vsel %vm856, %v781, 0
      %v866 = vld [vmem:[#allocation2] sm:$0xff]
      %v867 = vld [vmem:[#allocation2 + $0x8] sm:$0xff]
      %v868 = vld [vmem:[#allocation2 + $0x10] sm:$0xff]
      %v869 = vld [vmem:[#allocation2 + $0x18] sm:$0xff]
      %v870 = vld [vmem:[#allocation2 + $0x20] sm:$0xff]
      %v871 = vld [vmem:[#allocation2 + $0x28] sm:$0xff]
      %v872 = vld [vmem:[#allocation2 + $0x30] sm:$0xff]
      %v873 = vld [vmem:[#allocation2 + $0x38] sm:$0xff]
      %s874 = scalar_lea.vmem %s283, 4
      %v875 = vld [vmem:[%s874] sm:$0x3]
      %v885 = vunpack.c.l.b16 %v857
      %v886 = vunpack.c.l.b16 %v858
      %v887 = vunpack.c.l.b16 %v859
      %v888 = vunpack.c.l.b16 %v860
      %v889 = vunpack.c.l.b16 %v861
      %v890 = vunpack.c.l.b16 %v862
      %v891 = vunpack.c.l.b16 %v863
      %v892 = vunpack.c.l.b16 %v864
      %v893 = vunpack.c.l.b16 %v865
      %v894 = vpack.c.b16 %v886, %v885
      %v895 = vpack.c.b16 %v888, %v887
      %v896 = vpack.c.b16 %v890, %v889
      %v897 = vpack.c.b16 %v892, %v891
      %v898 = vpack.c.b16 %v893, %v893
      %vm899 = vcmask 1046528
      %v900 = vrot.slane %v894, 1
      %v901 = vrot.slane %v895, 1
      %v902 = vsel %vm899, %v900, %v901
      %v903 = vrot.slane %v896, 1
      %v904 = vsel %vm899, %v901, %v903
      %v905 = vrot.slane %v897, 1
      %v906 = vsel %vm899, %v903, %v905
      %v907 = vrot.slane %v898, 1
      %v908 = vsel %vm899, %v905, %v907
      %v910 = vsel %vm500, %v902, 0
      %v913 = vsel %vm500, %v904, 0
      %v916 = vsel %vm500, %v906, 0
      %v919 = vsel %vm500, %v908, 0
      %v922 = vsel %vm513, %v875, 0
      %924 = vmatprep.subr.bf16.mxu0 0
      %925 = vmatpush1.bf16.msra.mxu0 %v922
      %926 = vmatprep.subr.bf16.mxu0 0
      %927 = vmatpush1.bf16.msra.mxu0 0
      %928 = vmatprep.subr.bf16.mxu0 0
      %929 = vmatpush1.bf16.msra.mxu0 0
      %930 = vmatprep.subr.bf16.mxu0 0
      %931 = vmatpush1.bf16.msra.mxu0 0
      %932 = vmatprep.subr.bf16.mxu0 0
      %933 = vmatpush1.bf16.msra.mxu0 0
      %934 = vmatprep.subr.bf16.mxu0 0
      %935 = vmatpush1.bf16.msra.mxu0 0
      %936 = vmatprep.subr.bf16.mxu0 0
      %937 = vmatpush1.bf16.msra.mxu0 0
      %938 = vmatprep.subr.bf16.mxu0 0
      %939 = vmatpush1.bf16.msra.mxu0 0
      %940 = vmatprep.subr.bf16.mxu0 0
      %941 = vmatpush1.bf16.msra.mxu0 0
      %942 = vmatprep.subr.bf16.mxu0 0
      %943 = vmatpush1.bf16.msra.mxu0 0
      %944 = vmatprep.subr.bf16.mxu0 0
      %945 = vmatpush1.bf16.msra.mxu0 0
      %946 = vmatprep.subr.bf16.mxu0 0
      %947 = vmatpush1.bf16.msra.mxu0 0
      %948 = vmatprep.subr.bf16.mxu0 0
      %949 = vmatpush1.bf16.msra.mxu0 0
      %950 = vmatprep.subr.bf16.mxu0 0
      %951 = vmatpush1.bf16.msra.mxu0 0
      %952 = vmatprep.subr.bf16.mxu0 0
      %953 = vmatpush1.bf16.msra.mxu0 0
      %954 = vmatprep.subr.bf16.mxu0 0
      %955 = vmatpush1.bf16.msra.mxu0 0
      %956 = vmatprep.mubr.bf16.mxu0 0
      %957 = vmatmul.mubr.bf16.gmra.mrb[0].mxu0 %v910
      %v958 = vpop.f32.mrb[0].mxu0
      %v959 = vadd.f32 0.0, %v958
      %v960 = vpop.f32.mrb[0].mxu0
      %v961 = vpop.f32.mrb[0].mxu0
      %v962 = vadd.f32 0.0, %v961
      %v963 = vpop.f32.mrb[0].mxu0
      %964 = vmatprep.mubr.bf16.mxu0 0
      %965 = vmatmul.mubr.bf16.gmra.mrb[0].mxu0 %v913
      %v966 = vpop.f32.mrb[0].mxu0
      %v967 = vadd.f32 0.0, %v966
      %v968 = vpop.f32.mrb[0].mxu0
      %v969 = vpop.f32.mrb[0].mxu0
      %v970 = vadd.f32 0.0, %v969
      %v971 = vpop.f32.mrb[0].mxu0
      %972 = vmatprep.mubr.bf16.mxu0 0
      %973 = vmatmul.mubr.bf16.gmra.mrb[0].mxu0 %v916
      %v974 = vpop.f32.mrb[0].mxu0
      %v975 = vadd.f32 0.0, %v974
      %v976 = vpop.f32.mrb[0].mxu0
      %v977 = vpop.f32.mrb[0].mxu0
      %v978 = vadd.f32 0.0, %v977
      %v979 = vpop.f32.mrb[0].mxu0
      %980 = vmatprep.mubr.bf16.mxu0 0
      %981 = vmatmul.mubr.bf16.gmra.mrb[0].mxu0 %v919
      %v982 = vpop.f32.mrb[0].mxu0
      %v983 = vadd.f32 0.0, %v982
      %v984 = vpop.f32.mrb[0].mxu0
      %v985 = vpop.f32.mrb[0].mxu0
      %v986 = vadd.f32 0.0, %v985
      %v987 = vpop.f32.mrb[0].mxu0
      %988 = vdwg.mxu0
      %v989 = vadd.f32 %v866, %v959
      %v990 = vadd.f32 %v867, %v962
      %v991 = vadd.f32 %v868, %v967
      %v992 = vadd.f32 %v869, %v970
      %v993 = vadd.f32 %v870, %v975
      %v994 = vadd.f32 %v871, %v978
      %v995 = vadd.f32 %v872, %v983
      %v996 = vadd.f32 %v873, %v986
      %997 = vst.msk [vmem:[#allocation2] sm:$0xff] %vm500, %v989
      %998 = vst.msk [vmem:[#allocation2 + $0x8] sm:$0xff] %vm500, %v990
      %999 = vst.msk [vmem:[#allocation2 + $0x10] sm:$0xff] %vm500, %v991
      %1000 = vst.msk [vmem:[#allocation2 + $0x18] sm:$0xff] %vm500, %v992
      %1001 = vst.msk [vmem:[#allocation2 + $0x20] sm:$0xff] %vm500, %v993
      %1002 = vst.msk [vmem:[#allocation2 + $0x28] sm:$0xff] %vm500, %v994
      %1003 = vst.msk [vmem:[#allocation2 + $0x30] sm:$0xff] %vm500, %v995
      %1004 = vst.msk [vmem:[#allocation2 + $0x38] sm:$0xff] %vm500, %v996
      %v1005 = vld [vmem:[%s275 + $0x4] sm:$0xf]
      %v1006 = vld [vmem:[%s275 + $0x8] sm:$0xf]
      %v1007 = vld [vmem:[%s275 + $0xc] sm:$0xf]
      %v1008 = vld [vmem:[%s275 + $0x10] sm:$0xf]
      %v1009 = vld [vmem:[%s275 + $0x14] sm:$0xf]
      %v1010 = vld [vmem:[%s275 + $0x18] sm:$0xf]
      %v1011 = vld [vmem:[%s275 + $0x1c] sm:$0xf]
      %v1012 = vld [vmem:[%s275 + $0x20] sm:$0xf]
      %v1013 = vsel %vm455, %v1005, 0
      %v1014 = vsel %vm456, %v1006, 0
      %v1015 = vsel %vm457, %v1007, 0
      %v1016 = vsel %vm458, %v1008, 0
      %v1017 = vsel %vm459, %v1009, 0
      %v1018 = vsel %vm460, %v1010, 0
      %v1019 = vsel %vm461, %v1011, 0
      %v1020 = vsel %vm462, %v1012, 0
      %v1021 = vld [vmem:[#allocation2] sm:$0xff]
      %v1022 = vld [vmem:[#allocation2 + $0x8] sm:$0xff]
      %v1023 = vld [vmem:[#allocation2 + $0x10] sm:$0xff]
      %v1024 = vld [vmem:[#allocation2 + $0x18] sm:$0xff]
      %v1025 = vld [vmem:[#allocation2 + $0x20] sm:$0xff]
      %v1026 = vld [vmem:[#allocation2 + $0x28] sm:$0xff]
      %v1027 = vld [vmem:[#allocation2 + $0x30] sm:$0xff]
      %v1028 = vld [vmem:[#allocation2 + $0x38] sm:$0xff]
      %s1029 = scalar_lea.vmem %s283, 6
      %v1030 = vld [vmem:[%s1029] sm:$0x3]
      %v1039 = vunpack.c.l.b16 %v1013
      %v1040 = vunpack.c.l.b16 %v1014
      %v1041 = vunpack.c.l.b16 %v1015
      %v1042 = vunpack.c.l.b16 %v1016
      %v1043 = vunpack.c.l.b16 %v1017
      %v1044 = vunpack.c.l.b16 %v1018
      %v1045 = vunpack.c.l.b16 %v1019
      %v1046 = vunpack.c.l.b16 %v1020
      %v1047 = vpack.c.b16 %v1040, %v1039
      %v1048 = vpack.c.b16 %v1042, %v1041
      %v1049 = vpack.c.b16 %v1044, %v1043
      %v1050 = vpack.c.b16 %v1046, %v1045
      %v1052 = vsel %vm500, %v1047, 0
      %v1055 = vsel %vm500, %v1048, 0
      %v1058 = vsel %vm500, %v1049, 0
      %v1061 = vsel %vm500, %v1050, 0
      %v1064 = vsel %vm513, %v1030, 0
      %1066 = vmatprep.subr.bf16.mxu0 0
      %1067 = vmatpush1.bf16.msra.mxu0 %v1064
      %1068 = vmatprep.subr.bf16.mxu0 0
      %1069 = vmatpush1.bf16.msra.mxu0 0
      %1070 = vmatprep.subr.bf16.mxu0 0
      %1071 = vmatpush1.bf16.msra.mxu0 0
      %1072 = vmatprep.subr.bf16.mxu0 0
      %1073 = vmatpush1.bf16.msra.mxu0 0
      %1074 = vmatprep.subr.bf16.mxu0 0
      %1075 = vmatpush1.bf16.msra.mxu0 0
      %1076 = vmatprep.subr.bf16.mxu0 0
      %1077 = vmatpush1.bf16.msra.mxu0 0
      %1078 = vmatprep.subr.bf16.mxu0 0
      %1079 = vmatpush1.bf16.msra.mxu0 0
      %1080 = vmatprep.subr.bf16.mxu0 0
      %1081 = vmatpush1.bf16.msra.mxu0 0
      %1082 = vmatprep.subr.bf16.mxu0 0
      %1083 = vmatpush1.bf16.msra.mxu0 0
      %1084 = vmatprep.subr.bf16.mxu0 0
      %1085 = vmatpush1.bf16.msra.mxu0 0
      %1086 = vmatprep.subr.bf16.mxu0 0
      %1087 = vmatpush1.bf16.msra.mxu0 0
      %1088 = vmatprep.subr.bf16.mxu0 0
      %1089 = vmatpush1.bf16.msra.mxu0 0
      %1090 = vmatprep.subr.bf16.mxu0 0
      %1091 = vmatpush1.bf16.msra.mxu0 0
      %1092 = vmatprep.subr.bf16.mxu0 0
      %1093 = vmatpush1.bf16.msra.mxu0 0
      %1094 = vmatprep.subr.bf16.mxu0 0
      %1095 = vmatpush1.bf16.msra.mxu0 0
      %1096 = vmatprep.subr.bf16.mxu0 0
      %1097 = vmatpush1.bf16.msra.mxu0 0
      %1098 = vmatprep.mubr.bf16.mxu0 0
      %1099 = vmatmul.mubr.bf16.gmra.mrb[0].mxu0 %v1052
      %v1100 = vpop.f32.mrb[0].mxu0
      %v1101 = vadd.f32 0.0, %v1100
      %v1102 = vpop.f32.mrb[0].mxu0
      %v1103 = vpop.f32.mrb[0].mxu0
      %v1104 = vadd.f32 0.0, %v1103
      %v1105 = vpop.f32.mrb[0].mxu0
      %1106 = vmatprep.mubr.bf16.mxu0 0
      %1107 = vmatmul.mubr.bf16.gmra.mrb[0].mxu0 %v1055
      %v1108 = vpop.f32.mrb[0].mxu0
      %v1109 = vadd.f32 0.0, %v1108
      %v1110 = vpop.f32.mrb[0].mxu0
      %v1111 = vpop.f32.mrb[0].mxu0
      %v1112 = vadd.f32 0.0, %v1111
      %v1113 = vpop.f32.mrb[0].mxu0
      %1114 = vmatprep.mubr.bf16.mxu0 0
      %1115 = vmatmul.mubr.bf16.gmra.mrb[0].mxu0 %v1058
      %v1116 = vpop.f32.mrb[0].mxu0
      %v1117 = vadd.f32 0.0, %v1116
      %v1118 = vpop.f32.mrb[0].mxu0
      %v1119 = vpop.f32.mrb[0].mxu0
      %v1120 = vadd.f32 0.0, %v1119
      %v1121 = vpop.f32.mrb[0].mxu0
      %1122 = vmatprep.mubr.bf16.mxu0 0
      %1123 = vmatmul.mubr.bf16.gmra.mrb[0].mxu0 %v1061
      %v1124 = vpop.f32.mrb[0].mxu0
      %v1125 = vadd.f32 0.0, %v1124
      %v1126 = vpop.f32.mrb[0].mxu0
      %v1127 = vpop.f32.mrb[0].mxu0
      %v1128 = vadd.f32 0.0, %v1127
      %v1129 = vpop.f32.mrb[0].mxu0
      %1130 = vdwg.mxu0
      %v1131 = vadd.f32 %v1021, %v1101
      %v1132 = vadd.f32 %v1022, %v1104
      %v1133 = vadd.f32 %v1023, %v1109
      %v1134 = vadd.f32 %v1024, %v1112
      %v1135 = vadd.f32 %v1025, %v1117
      %v1136 = vadd.f32 %v1026, %v1120
      %v1137 = vadd.f32 %v1027, %v1125
      %v1138 = vadd.f32 %v1028, %v1128
      %1139 = vst.msk [vmem:[#allocation2] sm:$0xff] %vm500, %v1131
      %1140 = vst.msk [vmem:[#allocation2 + $0x8] sm:$0xff] %vm500, %v1132
      %1141 = vst.msk [vmem:[#allocation2 + $0x10] sm:$0xff] %vm500, %v1133
      %1142 = vst.msk [vmem:[#allocation2 + $0x18] sm:$0xff] %vm500, %v1134
      %1143 = vst.msk [vmem:[#allocation2 + $0x20] sm:$0xff] %vm500, %v1135
      %1144 = vst.msk [vmem:[#allocation2 + $0x28] sm:$0xff] %vm500, %v1136
      %1145 = vst.msk [vmem:[#allocation2 + $0x30] sm:$0xff] %vm500, %v1137
      %1146 = vst.msk [vmem:[#allocation2 + $0x38] sm:$0xff] %vm500, %v1138
      %v1147 = vld [vmem:[%s275 + $0x4] sm:$0xf]
      %v1148 = vld [vmem:[%s275 + $0x8] sm:$0xf]
      %v1149 = vld [vmem:[%s275 + $0xc] sm:$0xf]
      %v1150 = vld [vmem:[%s275 + $0x10] sm:$0xf]
      %v1151 = vld [vmem:[%s275 + $0x14] sm:$0xf]
      %v1152 = vld [vmem:[%s275 + $0x18] sm:$0xf]
      %v1153 = vld [vmem:[%s275 + $0x1c] sm:$0xf]
      %v1154 = vld [vmem:[%s275 + $0x20] sm:$0xf]
      %v1155 = vld [vmem:[%s275 + $0x24] sm:$0x1]
      %v1156 = vld [vmem:[#allocation2] sm:$0xff]
      %v1157 = vld [vmem:[#allocation2 + $0x8] sm:$0xff]
      %v1158 = vld [vmem:[#allocation2 + $0x10] sm:$0xff]
      %v1159 = vld [vmem:[#allocation2 + $0x18] sm:$0xff]
      %v1160 = vld [vmem:[#allocation2 + $0x20] sm:$0xff]
      %v1161 = vld [vmem:[#allocation2 + $0x28] sm:$0xff]
      %v1162 = vld [vmem:[#allocation2 + $0x30] sm:$0xff]
      %v1163 = vld [vmem:[#allocation2 + $0x38] sm:$0xff]
      %s1164 = scalar_lea.vmem %s283, 8
      %v1165 = vld [vmem:[%s1164] sm:$0x3]
      %v1175 = vunpack.c.l.b16 %v1147
      %v1176 = vunpack.c.l.b16 %v1148
      %v1177 = vunpack.c.l.b16 %v1149
      %v1178 = vunpack.c.l.b16 %v1150
      %v1179 = vunpack.c.l.b16 %v1151
      %v1180 = vunpack.c.l.b16 %v1152
      %v1181 = vunpack.c.l.b16 %v1153
      %v1182 = vunpack.c.l.b16 %v1154
      %v1183 = vunpack.c.l.b16 %v1155
      %v1184 = vpack.c.b16 %v1176, %v1175
      %v1185 = vpack.c.b16 %v1178, %v1177
      %v1186 = vpack.c.b16 %v1180, %v1179
      %v1187 = vpack.c.b16 %v1182, %v1181
      %v1188 = vpack.c.b16 %v1183, %v1183
      %v1190 = vshrl.u32 %v1184, 16
      %v1192 = vshll.u32 %v1184, 16
      %v1194 = vrot.slane %v1192, 1
      %v1195 = vor.u32 %v1190, %v1194
      %v1197 = vshll.u32 %v1185, 16
      %v1199 = vrot.slane %v1197, 1
      %v1200 = vsel %vm640, %v1195, %v1199
      %v1201 = vshrl.u32 %v1185, 16
      %v1203 = vor.u32 %v1201, %v1199
      %v1205 = vshll.u32 %v1186, 16
      %v1207 = vrot.slane %v1205, 1
      %v1208 = vsel %vm640, %v1203, %v1207
      %v1209 = vshrl.u32 %v1186, 16
      %v1211 = vor.u32 %v1209, %v1207
      %v1213 = vshll.u32 %v1187, 16
      %v1215 = vrot.slane %v1213, 1
      %v1216 = vsel %vm640, %v1211, %v1215
      %v1217 = vshrl.u32 %v1187, 16
      %v1219 = vor.u32 %v1217, %v1215
      %v1221 = vshll.u32 %v1188, 16
      %v1223 = vrot.slane %v1221, 1
      %v1224 = vsel %vm640, %v1219, %v1223
      %v1226 = vsel %vm500, %v1200, 0
      %v1229 = vsel %vm500, %v1208, 0
      %v1232 = vsel %vm500, %v1216, 0
      %v1235 = vsel %vm500, %v1224, 0
      %v1238 = vsel %vm513, %v1165, 0
      %1240 = vmatprep.subr.bf16.mxu0 0
      %1241 = vmatpush1.bf16.msra.mxu0 %v1238
      %1242 = vmatprep.subr.bf16.mxu0 0
      %1243 = vmatpush1.bf16.msra.mxu0 0
      %1244 = vmatprep.subr.bf16.mxu0 0
      %1245 = vmatpush1.bf16.msra.mxu0 0
      %1246 = vmatprep.subr.bf16.mxu0 0
      %1247 = vmatpush1.bf16.msra.mxu0 0
      %1248 = vmatprep.subr.bf16.mxu0 0
      %1249 = vmatpush1.bf16.msra.mxu0 0
      %1250 = vmatprep.subr.bf16.mxu0 0
      %1251 = vmatpush1.bf16.msra.mxu0 0
      %1252 = vmatprep.subr.bf16.mxu0 0
      %1253 = vmatpush1.bf16.msra.mxu0 0
      %1254 = vmatprep.subr.bf16.mxu0 0
      %1255 = vmatpush1.bf16.msra.mxu0 0
      %1256 = vmatprep.subr.bf16.mxu0 0
      %1257 = vmatpush1.bf16.msra.mxu0 0
      %1258 = vmatprep.subr.bf16.mxu0 0
      %1259 = vmatpush1.bf16.msra.mxu0 0
      %1260 = vmatprep.subr.bf16.mxu0 0
      %1261 = vmatpush1.bf16.msra.mxu0 0
      %1262 = vmatprep.subr.bf16.mxu0 0
      %1263 = vmatpush1.bf16.msra.mxu0 0
      %1264 = vmatprep.subr.bf16.mxu0 0
      %1265 = vmatpush1.bf16.msra.mxu0 0
      %1266 = vmatprep.subr.bf16.mxu0 0
      %1267 = vmatpush1.bf16.msra.mxu0 0
      %1268 = vmatprep.subr.bf16.mxu0 0
      %1269 = vmatpush1.bf16.msra.mxu0 0
      %1270 = vmatprep.subr.bf16.mxu0 0
      %1271 = vmatpush1.bf16.msra.mxu0 0
      %1272 = vmatprep.mubr.bf16.mxu0 0
      %1273 = vmatmul.mubr.bf16.gmra.mrb[0].mxu0 %v1226
      %v1274 = vpop.f32.mrb[0].mxu0
      %v1275 = vadd.f32 0.0, %v1274
      %v1276 = vpop.f32.mrb[0].mxu0
      %v1277 = vpop.f32.mrb[0].mxu0
      %v1278 = vadd.f32 0.0, %v1277
      %v1279 = vpop.f32.mrb[0].mxu0
      %1280 = vmatprep.mubr.bf16.mxu0 0
      %1281 = vmatmul.mubr.bf16.gmra.mrb[0].mxu0 %v1229
      %v1282 = vpop.f32.mrb[0].mxu0
      %v1283 = vadd.f32 0.0, %v1282
      %v1284 = vpop.f32.mrb[0].mxu0
      %v1285 = vpop.f32.mrb[0].mxu0
      %v1286 = vadd.f32 0.0, %v1285
      %v1287 = vpop.f32.mrb[0].mxu0
      %1288 = vmatprep.mubr.bf16.mxu0 0
      %1289 = vmatmul.mubr.bf16.gmra.mrb[0].mxu0 %v1232
      %v1290 = vpop.f32.mrb[0].mxu0
      %v1291 = vadd.f32 0.0, %v1290
      %v1292 = vpop.f32.mrb[0].mxu0
      %v1293 = vpop.f32.mrb[0].mxu0
      %v1294 = vadd.f32 0.0, %v1293
      %v1295 = vpop.f32.mrb[0].mxu0
      %1296 = vmatprep.mubr.bf16.mxu0 0
      %1297 = vmatmul.mubr.bf16.gmra.mrb[0].mxu0 %v1235
      %v1298 = vpop.f32.mrb[0].mxu0
      %v1299 = vadd.f32 0.0, %v1298
      %v1300 = vpop.f32.mrb[0].mxu0
      %v1301 = vpop.f32.mrb[0].mxu0
      %v1302 = vadd.f32 0.0, %v1301
      %v1303 = vpop.f32.mrb[0].mxu0
      %1304 = vdwg.mxu0
      %v1305 = vadd.f32 %v1156, %v1275
      %v1306 = vadd.f32 %v1157, %v1278
      %v1307 = vadd.f32 %v1158, %v1283
      %v1308 = vadd.f32 %v1159, %v1286
      %v1309 = vadd.f32 %v1160, %v1291
      %v1310 = vadd.f32 %v1161, %v1294
      %v1311 = vadd.f32 %v1162, %v1299
      %v1312 = vadd.f32 %v1163, %v1302
      %1313 = vst.msk [vmem:[#allocation2] sm:$0xff] %vm500, %v1305
      %1314 = vst.msk [vmem:[#allocation2 + $0x8] sm:$0xff] %vm500, %v1306
      %1315 = vst.msk [vmem:[#allocation2 + $0x10] sm:$0xff] %vm500, %v1307
      %1316 = vst.msk [vmem:[#allocation2 + $0x18] sm:$0xff] %vm500, %v1308
      %1317 = vst.msk [vmem:[#allocation2 + $0x20] sm:$0xff] %vm500, %v1309
      %1318 = vst.msk [vmem:[#allocation2 + $0x28] sm:$0xff] %vm500, %v1310
      %1319 = vst.msk [vmem:[#allocation2 + $0x30] sm:$0xff] %vm500, %v1311
      %1320 = vst.msk [vmem:[#allocation2 + $0x38] sm:$0xff] %vm500, %v1312
      %v1321 = vld [vmem:[%s275 + $0x4] sm:$0xe]
      %v1322 = vld [vmem:[%s275 + $0x8] sm:$0xf]
      %v1323 = vld [vmem:[%s275 + $0xc] sm:$0xf]
      %v1324 = vld [vmem:[%s275 + $0x10] sm:$0xf]
      %v1325 = vld [vmem:[%s275 + $0x14] sm:$0xf]
      %v1326 = vld [vmem:[%s275 + $0x18] sm:$0xf]
      %v1327 = vld [vmem:[%s275 + $0x1c] sm:$0xf]
      %v1328 = vld [vmem:[%s275 + $0x20] sm:$0xf]
      %v1329 = vld [vmem:[%s275 + $0x24] sm:$0x1]
      %v1330 = vsel %vm848, %v1321, 0
      %v1331 = vsel %vm849, %v1322, 0
      %v1332 = vsel %vm850, %v1323, 0
      %v1333 = vsel %vm851, %v1324, 0
      %v1334 = vsel %vm852, %v1325, 0
      %v1335 = vsel %vm853, %v1326, 0
      %v1336 = vsel %vm854, %v1327, 0
      %v1337 = vsel %vm855, %v1328, 0
      %v1338 = vsel %vm856, %v1329, 0
      %v1339 = vld [vmem:[#allocation2] sm:$0xff]
      %v1340 = vld [vmem:[#allocation2 + $0x8] sm:$0xff]
      %v1341 = vld [vmem:[#allocation2 + $0x10] sm:$0xff]
      %v1342 = vld [vmem:[#allocation2 + $0x18] sm:$0xff]
      %v1343 = vld [vmem:[#allocation2 + $0x20] sm:$0xff]
      %v1344 = vld [vmem:[#allocation2 + $0x28] sm:$0xff]
      %v1345 = vld [vmem:[#allocation2 + $0x30] sm:$0xff]
      %v1346 = vld [vmem:[#allocation2 + $0x38] sm:$0xff]
      %s1347 = scalar_lea.vmem %s283, 10
      %v1348 = vld [vmem:[%s1347] sm:$0x3]
      %v1358 = vunpack.c.l.b16 %v1330
      %v1359 = vunpack.c.l.b16 %v1331
      %v1360 = vunpack.c.l.b16 %v1332
      %v1361 = vunpack.c.l.b16 %v1333
      %v1362 = vunpack.c.l.b16 %v1334
      %v1363 = vunpack.c.l.b16 %v1335
      %v1364 = vunpack.c.l.b16 %v1336
      %v1365 = vunpack.c.l.b16 %v1337
      %v1366 = vunpack.c.l.b16 %v1338
      %v1367 = vpack.c.b16 %v1359, %v1358
      %v1368 = vpack.c.b16 %v1361, %v1360
      %v1369 = vpack.c.b16 %v1363, %v1362
      %v1370 = vpack.c.b16 %v1365, %v1364
      %v1371 = vpack.c.b16 %v1366, %v1366
      %v1372 = vrot.slane %v1367, 1
      %v1373 = vrot.slane %v1368, 1
      %v1374 = vsel %vm899, %v1372, %v1373
      %v1375 = vrot.slane %v1369, 1
      %v1376 = vsel %vm899, %v1373, %v1375
      %v1377 = vrot.slane %v1370, 1
      %v1378 = vsel %vm899, %v1375, %v1377
      %v1379 = vrot.slane %v1371, 1
      %v1380 = vsel %vm899, %v1377, %v1379
      %v1382 = vsel %vm500, %v1374, 0
      %v1385 = vsel %vm500, %v1376, 0
      %v1388 = vsel %vm500, %v1378, 0
      %v1391 = vsel %vm500, %v1380, 0
      %v1394 = vsel %vm513, %v1348, 0
      %1396 = vmatprep.subr.bf16.mxu0 0
      %1397 = vmatpush1.bf16.msra.mxu0 %v1394
      %1398 = vmatprep.subr.bf16.mxu0 0
      %1399 = vmatpush1.bf16.msra.mxu0 0
      %1400 = vmatprep.subr.bf16.mxu0 0
      %1401 = vmatpush1.bf16.msra.mxu0 0
      %1402 = vmatprep.subr.bf16.mxu0 0
      %1403 = vmatpush1.bf16.msra.mxu0 0
      %1404 = vmatprep.subr.bf16.mxu0 0
      %1405 = vmatpush1.bf16.msra.mxu0 0
      %1406 = vmatprep.subr.bf16.mxu0 0
      %1407 = vmatpush1.bf16.msra.mxu0 0
      %1408 = vmatprep.subr.bf16.mxu0 0
      %1409 = vmatpush1.bf16.msra.mxu0 0
      %1410 = vmatprep.subr.bf16.mxu0 0
      %1411 = vmatpush1.bf16.msra.mxu0 0
      %1412 = vmatprep.subr.bf16.mxu0 0
      %1413 = vmatpush1.bf16.msra.mxu0 0
      %1414 = vmatprep.subr.bf16.mxu0 0
      %1415 = vmatpush1.bf16.msra.mxu0 0
      %1416 = vmatprep.subr.bf16.mxu0 0
      %1417 = vmatpush1.bf16.msra.mxu0 0
      %1418 = vmatprep.subr.bf16.mxu0 0
      %1419 = vmatpush1.bf16.msra.mxu0 0
      %1420 = vmatprep.subr.bf16.mxu0 0
      %1421 = vmatpush1.bf16.msra.mxu0 0
      %1422 = vmatprep.subr.bf16.mxu0 0
      %1423 = vmatpush1.bf16.msra.mxu0 0
      %1424 = vmatprep.subr.bf16.mxu0 0
      %1425 = vmatpush1.bf16.msra.mxu0 0
      %1426 = vmatprep.subr.bf16.mxu0 0
      %1427 = vmatpush1.bf16.msra.mxu0 0
      %1428 = vmatprep.mubr.bf16.mxu0 0
      %1429 = vmatmul.mubr.bf16.gmra.mrb[0].mxu0 %v1382
      %v1430 = vpop.f32.mrb[0].mxu0
      %v1431 = vadd.f32 0.0, %v1430
      %v1432 = vpop.f32.mrb[0].mxu0
      %v1433 = vpop.f32.mrb[0].mxu0
      %v1434 = vadd.f32 0.0, %v1433
      %v1435 = vpop.f32.mrb[0].mxu0
      %1436 = vmatprep.mubr.bf16.mxu0 0
      %1437 = vmatmul.mubr.bf16.gmra.mrb[0].mxu0 %v1385
      %v1438 = vpop.f32.mrb[0].mxu0
      %v1439 = vadd.f32 0.0, %v1438
      %v1440 = vpop.f32.mrb[0].mxu0
      %v1441 = vpop.f32.mrb[0].mxu0
      %v1442 = vadd.f32 0.0, %v1441
      %v1443 = vpop.f32.mrb[0].mxu0
      %1444 = vmatprep.mubr.bf16.mxu0 0
      %1445 = vmatmul.mubr.bf16.gmra.mrb[0].mxu0 %v1388
      %v1446 = vpop.f32.mrb[0].mxu0
      %v1447 = vadd.f32 0.0, %v1446
      %v1448 = vpop.f32.mrb[0].mxu0
      %v1449 = vpop.f32.mrb[0].mxu0
      %v1450 = vadd.f32 0.0, %v1449
      %v1451 = vpop.f32.mrb[0].mxu0
      %1452 = vmatprep.mubr.bf16.mxu0 0
      %1453 = vmatmul.mubr.bf16.gmra.mrb[0].mxu0 %v1391
      %v1454 = vpop.f32.mrb[0].mxu0
      %v1455 = vadd.f32 0.0, %v1454
      %v1456 = vpop.f32.mrb[0].mxu0
      %v1457 = vpop.f32.mrb[0].mxu0
      %v1458 = vadd.f32 0.0, %v1457
      %v1459 = vpop.f32.mrb[0].mxu0
      %1460 = vdwg.mxu0
      %v1461 = vadd.f32 %v1339, %v1431
      %v1462 = vadd.f32 %v1340, %v1434
      %v1463 = vadd.f32 %v1341, %v1439
      %v1464 = vadd.f32 %v1342, %v1442
      %v1465 = vadd.f32 %v1343, %v1447
      %v1466 = vadd.f32 %v1344, %v1450
      %v1467 = vadd.f32 %v1345, %v1455
      %v1468 = vadd.f32 %v1346, %v1458
      %1469 = vst.msk [vmem:[#allocation2] sm:$0xff] %vm500, %v1461
      %1470 = vst.msk [vmem:[#allocation2 + $0x8] sm:$0xff] %vm500, %v1462
      %1471 = vst.msk [vmem:[#allocation2 + $0x10] sm:$0xff] %vm500, %v1463
      %1472 = vst.msk [vmem:[#allocation2 + $0x18] sm:$0xff] %vm500, %v1464
      %1473 = vst.msk [vmem:[#allocation2 + $0x20] sm:$0xff] %vm500, %v1465
      %1474 = vst.msk [vmem:[#allocation2 + $0x28] sm:$0xff] %vm500, %v1466
      %1475 = vst.msk [vmem:[#allocation2 + $0x30] sm:$0xff] %vm500, %v1467
      %1476 = vst.msk [vmem:[#allocation2 + $0x38] sm:$0xff] %vm500, %v1468
      %v1477 = vld [vmem:[%s275 + $0x8] sm:$0xf]
      %v1478 = vld [vmem:[%s275 + $0xc] sm:$0xf]
      %v1479 = vld [vmem:[%s275 + $0x10] sm:$0xf]
      %v1480 = vld [vmem:[%s275 + $0x14] sm:$0xf]
      %v1481 = vld [vmem:[%s275 + $0x18] sm:$0xf]
      %v1482 = vld [vmem:[%s275 + $0x1c] sm:$0xf]
      %v1483 = vld [vmem:[%s275 + $0x20] sm:$0xf]
      %v1484 = vld [vmem:[%s275 + $0x24] sm:$0xf]
      %v1485 = vsel %vm455, %v1477, 0
      %v1486 = vsel %vm456, %v1478, 0
      %v1487 = vsel %vm457, %v1479, 0
      %v1488 = vsel %vm458, %v1480, 0
      %v1489 = vsel %vm459, %v1481, 0
      %v1490 = vsel %vm460, %v1482, 0
      %v1491 = vsel %vm461, %v1483, 0
      %v1492 = vsel %vm462, %v1484, 0
      %v1493 = vld [vmem:[#allocation2] sm:$0xff]
      %v1494 = vld [vmem:[#allocation2 + $0x8] sm:$0xff]
      %v1495 = vld [vmem:[#allocation2 + $0x10] sm:$0xff]
      %v1496 = vld [vmem:[#allocation2 + $0x18] sm:$0xff]
      %v1497 = vld [vmem:[#allocation2 + $0x20] sm:$0xff]
      %v1498 = vld [vmem:[#allocation2 + $0x28] sm:$0xff]
      %v1499 = vld [vmem:[#allocation2 + $0x30] sm:$0xff]
      %v1500 = vld [vmem:[#allocation2 + $0x38] sm:$0xff]
      %s1501 = scalar_lea.vmem %s283, 12
      %v1502 = vld [vmem:[%s1501] sm:$0x3]
      %v1511 = vunpack.c.l.b16 %v1485
      %v1512 = vunpack.c.l.b16 %v1486
      %v1513 = vunpack.c.l.b16 %v1487
      %v1514 = vunpack.c.l.b16 %v1488
      %v1515 = vunpack.c.l.b16 %v1489
      %v1516 = vunpack.c.l.b16 %v1490
      %v1517 = vunpack.c.l.b16 %v1491
      %v1518 = vunpack.c.l.b16 %v1492
      %v1519 = vpack.c.b16 %v1512, %v1511
      %v1520 = vpack.c.b16 %v1514, %v1513
      %v1521 = vpack.c.b16 %v1516, %v1515
      %v1522 = vpack.c.b16 %v1518, %v1517
      %v1524 = vsel %vm500, %v1519, 0
      %v1527 = vsel %vm500, %v1520, 0
      %v1530 = vsel %vm500, %v1521, 0
      %v1533 = vsel %vm500, %v1522, 0
      %v1536 = vsel %vm513, %v1502, 0
      %1538 = vmatprep.subr.bf16.mxu0 0
      %1539 = vmatpush1.bf16.msra.mxu0 %v1536
      %1540 = vmatprep.subr.bf16.mxu0 0
      %1541 = vmatpush1.bf16.msra.mxu0 0
      %1542 = vmatprep.subr.bf16.mxu0 0
      %1543 = vmatpush1.bf16.msra.mxu0 0
      %1544 = vmatprep.subr.bf16.mxu0 0
      %1545 = vmatpush1.bf16.msra.mxu0 0
      %1546 = vmatprep.subr.bf16.mxu0 0
      %1547 = vmatpush1.bf16.msra.mxu0 0
      %1548 = vmatprep.subr.bf16.mxu0 0
      %1549 = vmatpush1.bf16.msra.mxu0 0
      %1550 = vmatprep.subr.bf16.mxu0 0
      %1551 = vmatpush1.bf16.msra.mxu0 0
      %1552 = vmatprep.subr.bf16.mxu0 0
      %1553 = vmatpush1.bf16.msra.mxu0 0
      %1554 = vmatprep.subr.bf16.mxu0 0
      %1555 = vmatpush1.bf16.msra.mxu0 0
      %1556 = vmatprep.subr.bf16.mxu0 0
      %1557 = vmatpush1.bf16.msra.mxu0 0
      %1558 = vmatprep.subr.bf16.mxu0 0
      %1559 = vmatpush1.bf16.msra.mxu0 0
      %1560 = vmatprep.subr.bf16.mxu0 0
      %1561 = vmatpush1.bf16.msra.mxu0 0
      %1562 = vmatprep.subr.bf16.mxu0 0
      %1563 = vmatpush1.bf16.msra.mxu0 0
      %1564 = vmatprep.subr.bf16.mxu0 0
      %1565 = vmatpush1.bf16.msra.mxu0 0
      %1566 = vmatprep.subr.bf16.mxu0 0
      %1567 = vmatpush1.bf16.msra.mxu0 0
      %1568 = vmatprep.subr.bf16.mxu0 0
      %1569 = vmatpush1.bf16.msra.mxu0 0
      %1570 = vmatprep.mubr.bf16.mxu0 0
      %1571 = vmatmul.mubr.bf16.gmra.mrb[0].mxu0 %v1524
      %v1572 = vpop.f32.mrb[0].mxu0
      %v1573 = vadd.f32 0.0, %v1572
      %v1574 = vpop.f32.mrb[0].mxu0
      %v1575 = vpop.f32.mrb[0].mxu0
      %v1576 = vadd.f32 0.0, %v1575
      %v1577 = vpop.f32.mrb[0].mxu0
      %1578 = vmatprep.mubr.bf16.mxu0 0
      %1579 = vmatmul.mubr.bf16.gmra.mrb[0].mxu0 %v1527
      %v1580 = vpop.f32.mrb[0].mxu0
      %v1581 = vadd.f32 0.0, %v1580
      %v1582 = vpop.f32.mrb[0].mxu0
      %v1583 = vpop.f32.mrb[0].mxu0
      %v1584 = vadd.f32 0.0, %v1583
      %v1585 = vpop.f32.mrb[0].mxu0
      %1586 = vmatprep.mubr.bf16.mxu0 0
      %1587 = vmatmul.mubr.bf16.gmra.mrb[0].mxu0 %v1530
      %v1588 = vpop.f32.mrb[0].mxu0
      %v1589 = vadd.f32 0.0, %v1588
      %v1590 = vpop.f32.mrb[0].mxu0
      %v1591 = vpop.f32.mrb[0].mxu0
      %v1592 = vadd.f32 0.0, %v1591
      %v1593 = vpop.f32.mrb[0].mxu0
      %1594 = vmatprep.mubr.bf16.mxu0 0
      %1595 = vmatmul.mubr.bf16.gmra.mrb[0].mxu0 %v1533
      %v1596 = vpop.f32.mrb[0].mxu0
      %v1597 = vadd.f32 0.0, %v1596
      %v1598 = vpop.f32.mrb[0].mxu0
      %v1599 = vpop.f32.mrb[0].mxu0
      %v1600 = vadd.f32 0.0, %v1599
      %v1601 = vpop.f32.mrb[0].mxu0
      %1602 = vdwg.mxu0
      %v1603 = vadd.f32 %v1493, %v1573
      %v1604 = vadd.f32 %v1494, %v1576
      %v1605 = vadd.f32 %v1495, %v1581
      %v1606 = vadd.f32 %v1496, %v1584
      %v1607 = vadd.f32 %v1497, %v1589
      %v1608 = vadd.f32 %v1498, %v1592
      %v1609 = vadd.f32 %v1499, %v1597
      %v1610 = vadd.f32 %v1500, %v1600
      %1611 = vst.msk [vmem:[#allocation2] sm:$0xff] %vm500, %v1603
      %1612 = vst.msk [vmem:[#allocation2 + $0x8] sm:$0xff] %vm500, %v1604
      %1613 = vst.msk [vmem:[#allocation2 + $0x10] sm:$0xff] %vm500, %v1605
      %1614 = vst.msk [vmem:[#allocation2 + $0x18] sm:$0xff] %vm500, %v1606
      %1615 = vst.msk [vmem:[#allocation2 + $0x20] sm:$0xff] %vm500, %v1607
      %1616 = vst.msk [vmem:[#allocation2 + $0x28] sm:$0xff] %vm500, %v1608
      %1617 = vst.msk [vmem:[#allocation2 + $0x30] sm:$0xff] %vm500, %v1609
      %1618 = vst.msk [vmem:[#allocation2 + $0x38] sm:$0xff] %vm500, %v1610
      %v1619 = vld [vmem:[%s275 + $0x8] sm:$0xf]
      %v1620 = vld [vmem:[%s275 + $0xc] sm:$0xf]
      %v1621 = vld [vmem:[%s275 + $0x10] sm:$0xf]
      %v1622 = vld [vmem:[%s275 + $0x14] sm:$0xf]
      %v1623 = vld [vmem:[%s275 + $0x18] sm:$0xf]
      %v1624 = vld [vmem:[%s275 + $0x1c] sm:$0xf]
      %v1625 = vld [vmem:[%s275 + $0x20] sm:$0xf]
      %v1626 = vld [vmem:[%s275 + $0x24] sm:$0xf]
      %v1627 = vld [vmem:[%s275 + $0x28] sm:$0x1]
      %v1628 = vld [vmem:[#allocation2] sm:$0xff]
      %v1629 = vld [vmem:[#allocation2 + $0x8] sm:$0xff]
      %v1630 = vld [vmem:[#allocation2 + $0x10] sm:$0xff]
      %v1631 = vld [vmem:[#allocation2 + $0x18] sm:$0xff]
      %v1632 = vld [vmem:[#allocation2 + $0x20] sm:$0xff]
      %v1633 = vld [vmem:[#allocation2 + $0x28] sm:$0xff]
      %v1634 = vld [vmem:[#allocation2 + $0x30] sm:$0xff]
      %v1635 = vld [vmem:[#allocation2 + $0x38] sm:$0xff]
      %s1636 = scalar_lea.vmem %s283, 14
      %v1637 = vld [vmem:[%s1636] sm:$0x3]
      %v1647 = vunpack.c.l.b16 %v1619
      %v1648 = vunpack.c.l.b16 %v1620
      %v1649 = vunpack.c.l.b16 %v1621
      %v1650 = vunpack.c.l.b16 %v1622
      %v1651 = vunpack.c.l.b16 %v1623
      %v1652 = vunpack.c.l.b16 %v1624
      %v1653 = vunpack.c.l.b16 %v1625
      %v1654 = vunpack.c.l.b16 %v1626
      %v1655 = vunpack.c.l.b16 %v1627
      %v1656 = vpack.c.b16 %v1648, %v1647
      %v1657 = vpack.c.b16 %v1650, %v1649
      %v1658 = vpack.c.b16 %v1652, %v1651
      %v1659 = vpack.c.b16 %v1654, %v1653
      %v1660 = vpack.c.b16 %v1655, %v1655
      %v1662 = vshrl.u32 %v1656, 16
      %v1664 = vshll.u32 %v1656, 16
      %v1666 = vrot.slane %v1664, 1
      %v1667 = vor.u32 %v1662, %v1666
      %v1669 = vshll.u32 %v1657, 16
      %v1671 = vrot.slane %v1669, 1
      %v1672 = vsel %vm640, %v1667, %v1671
      %v1673 = vshrl.u32 %v1657, 16
      %v1675 = vor.u32 %v1673, %v1671
      %v1677 = vshll.u32 %v1658, 16
      %v1679 = vrot.slane %v1677, 1
      %v1680 = vsel %vm640, %v1675, %v1679
      %v1681 = vshrl.u32 %v1658, 16
      %v1683 = vor.u32 %v1681, %v1679
      %v1685 = vshll.u32 %v1659, 16
      %v1687 = vrot.slane %v1685, 1
      %v1688 = vsel %vm640, %v1683, %v1687
      %v1689 = vshrl.u32 %v1659, 16
      %v1691 = vor.u32 %v1689, %v1687
      %v1693 = vshll.u32 %v1660, 16
      %v1695 = vrot.slane %v1693, 1
      %v1696 = vsel %vm640, %v1691, %v1695
      %v1698 = vsel %vm500, %v1672, 0
      %v1701 = vsel %vm500, %v1680, 0
      %v1704 = vsel %vm500, %v1688, 0
      %v1707 = vsel %vm500, %v1696, 0
      %v1710 = vsel %vm513, %v1637, 0
      %1712 = vmatprep.subr.bf16.mxu0 0
      %1713 = vmatpush1.bf16.msra.mxu0 %v1710
      %1714 = vmatprep.subr.bf16.mxu0 0
      %1715 = vmatpush1.bf16.msra.mxu0 0
      %1716 = vmatprep.subr.bf16.mxu0 0
      %1717 = vmatpush1.bf16.msra.mxu0 0
      %1718 = vmatprep.subr.bf16.mxu0 0
      %1719 = vmatpush1.bf16.msra.mxu0 0
      %1720 = vmatprep.subr.bf16.mxu0 0
      %1721 = vmatpush1.bf16.msra.mxu0 0
      %1722 = vmatprep.subr.bf16.mxu0 0
      %1723 = vmatpush1.bf16.msra.mxu0 0
      %1724 = vmatprep.subr.bf16.mxu0 0
      %1725 = vmatpush1.bf16.msra.mxu0 0
      %1726 = vmatprep.subr.bf16.mxu0 0
      %1727 = vmatpush1.bf16.msra.mxu0 0
      %1728 = vmatprep.subr.bf16.mxu0 0
      %1729 = vmatpush1.bf16.msra.mxu0 0
      %1730 = vmatprep.subr.bf16.mxu0 0
      %1731 = vmatpush1.bf16.msra.mxu0 0
      %1732 = vmatprep.subr.bf16.mxu0 0
      %1733 = vmatpush1.bf16.msra.mxu0 0
      %1734 = vmatprep.subr.bf16.mxu0 0
      %1735 = vmatpush1.bf16.msra.mxu0 0
      %1736 = vmatprep.subr.bf16.mxu0 0
      %1737 = vmatpush1.bf16.msra.mxu0 0
      %1738 = vmatprep.subr.bf16.mxu0 0
      %1739 = vmatpush1.bf16.msra.mxu0 0
      %1740 = vmatprep.subr.bf16.mxu0 0
      %1741 = vmatpush1.bf16.msra.mxu0 0
      %1742 = vmatprep.subr.bf16.mxu0 0
      %1743 = vmatpush1.bf16.msra.mxu0 0
      %1744 = vmatprep.mubr.bf16.mxu0 0
      %1745 = vmatmul.mubr.bf16.gmra.mrb[0].mxu0 %v1698
      %v1746 = vpop.f32.mrb[0].mxu0
      %v1747 = vadd.f32 0.0, %v1746
      %v1748 = vpop.f32.mrb[0].mxu0
      %v1749 = vpop.f32.mrb[0].mxu0
      %v1750 = vadd.f32 0.0, %v1749
      %v1751 = vpop.f32.mrb[0].mxu0
      %1752 = vmatprep.mubr.bf16.mxu0 0
      %1753 = vmatmul.mubr.bf16.gmra.mrb[0].mxu0 %v1701
      %v1754 = vpop.f32.mrb[0].mxu0
      %v1755 = vadd.f32 0.0, %v1754
      %v1756 = vpop.f32.mrb[0].mxu0
      %v1757 = vpop.f32.mrb[0].mxu0
      %v1758 = vadd.f32 0.0, %v1757
      %v1759 = vpop.f32.mrb[0].mxu0
      %1760 = vmatprep.mubr.bf16.mxu0 0
      %1761 = vmatmul.mubr.bf16.gmra.mrb[0].mxu0 %v1704
      %v1762 = vpop.f32.mrb[0].mxu0
      %v1763 = vadd.f32 0.0, %v1762
      %v1764 = vpop.f32.mrb[0].mxu0
      %v1765 = vpop.f32.mrb[0].mxu0
      %v1766 = vadd.f32 0.0, %v1765
      %v1767 = vpop.f32.mrb[0].mxu0
      %1768 = vmatprep.mubr.bf16.mxu0 0
      %1769 = vmatmul.mubr.bf16.gmra.mrb[0].mxu0 %v1707
      %v1770 = vpop.f32.mrb[0].mxu0
      %v1771 = vadd.f32 0.0, %v1770
      %v1772 = vpop.f32.mrb[0].mxu0
      %v1773 = vpop.f32.mrb[0].mxu0
      %v1774 = vadd.f32 0.0, %v1773
      %v1775 = vpop.f32.mrb[0].mxu0
      %1776 = vdwg.mxu0
      %v1777 = vadd.f32 %v1628, %v1747
      %v1778 = vadd.f32 %v1629, %v1750
      %v1779 = vadd.f32 %v1630, %v1755
      %v1780 = vadd.f32 %v1631, %v1758
      %v1781 = vadd.f32 %v1632, %v1763
      %v1782 = vadd.f32 %v1633, %v1766
      %v1783 = vadd.f32 %v1634, %v1771
      %v1784 = vadd.f32 %v1635, %v1774
      %1785 = vst.msk [vmem:[#allocation2] sm:$0xff] %vm500, %v1777
      %1786 = vst.msk [vmem:[#allocation2 + $0x8] sm:$0xff] %vm500, %v1778
      %1787 = vst.msk [vmem:[#allocation2 + $0x10] sm:$0xff] %vm500, %v1779
      %1788 = vst.msk [vmem:[#allocation2 + $0x18] sm:$0xff] %vm500, %v1780
      %1789 = vst.msk [vmem:[#allocation2 + $0x20] sm:$0xff] %vm500, %v1781
      %1790 = vst.msk [vmem:[#allocation2 + $0x28] sm:$0xff] %vm500, %v1782
      %1791 = vst.msk [vmem:[#allocation2 + $0x30] sm:$0xff] %vm500, %v1783
      %1792 = vst.msk [vmem:[#allocation2 + $0x38] sm:$0xff] %vm500, %v1784
      %v1793 = vld [vmem:[%s275 + $0x8] sm:$0xe]
      %v1794 = vld [vmem:[%s275 + $0xc] sm:$0xf]
      %v1795 = vld [vmem:[%s275 + $0x10] sm:$0xf]
      %v1796 = vld [vmem:[%s275 + $0x14] sm:$0xf]
      %v1797 = vld [vmem:[%s275 + $0x18] sm:$0xf]
      %v1798 = vld [vmem:[%s275 + $0x1c] sm:$0xf]
      %v1799 = vld [vmem:[%s275 + $0x20] sm:$0xf]
      %v1800 = vld [vmem:[%s275 + $0x24] sm:$0xf]
      %v1801 = vld [vmem:[%s275 + $0x28] sm:$0x1]
      %v1802 = vsel %vm848, %v1793, 0
      %v1803 = vsel %vm849, %v1794, 0
      %v1804 = vsel %vm850, %v1795, 0
      %v1805 = vsel %vm851, %v1796, 0
      %v1806 = vsel %vm852, %v1797, 0
      %v1807 = vsel %vm853, %v1798, 0
      %v1808 = vsel %vm854, %v1799, 0
      %v1809 = vsel %vm855, %v1800, 0
      %v1810 = vsel %vm856, %v1801, 0
      %v1811 = vld [vmem:[#allocation2] sm:$0xff]
      %v1812 = vld [vmem:[#allocation2 + $0x8] sm:$0xff]
      %v1813 = vld [vmem:[#allocation2 + $0x10] sm:$0xff]
      %v1814 = vld [vmem:[#allocation2 + $0x18] sm:$0xff]
      %v1815 = vld [vmem:[#allocation2 + $0x20] sm:$0xff]
      %v1816 = vld [vmem:[#allocation2 + $0x28] sm:$0xff]
      %v1817 = vld [vmem:[#allocation2 + $0x30] sm:$0xff]
      %v1818 = vld [vmem:[#allocation2 + $0x38] sm:$0xff]
      %s1819 = scalar_lea.vmem %s283, 16
      %v1820 = vld [vmem:[%s1819] sm:$0x3]
      %v1830 = vunpack.c.l.b16 %v1802
      %v1831 = vunpack.c.l.b16 %v1803
      %v1832 = vunpack.c.l.b16 %v1804
      %v1833 = vunpack.c.l.b16 %v1805
      %v1834 = vunpack.c.l.b16 %v1806
      %v1835 = vunpack.c.l.b16 %v1807
      %v1836 = vunpack.c.l.b16 %v1808
      %v1837 = vunpack.c.l.b16 %v1809
      %v1838 = vunpack.c.l.b16 %v1810
      %v1839 = vpack.c.b16 %v1831, %v1830
      %v1840 = vpack.c.b16 %v1833, %v1832
      %v1841 = vpack.c.b16 %v1835, %v1834
      %v1842 = vpack.c.b16 %v1837, %v1836
      %v1843 = vpack.c.b16 %v1838, %v1838
      %v1844 = vrot.slane %v1839, 1
      %v1845 = vrot.slane %v1840, 1
      %v1846 = vsel %vm899, %v1844, %v1845
      %v1847 = vrot.slane %v1841, 1
      %v1848 = vsel %vm899, %v1845, %v1847
      %v1849 = vrot.slane %v1842, 1
      %v1850 = vsel %vm899, %v1847, %v1849
      %v1851 = vrot.slane %v1843, 1
      %v1852 = vsel %vm899, %v1849, %v1851
      %v1854 = vsel %vm500, %v1846, 0
      %v1857 = vsel %vm500, %v1848, 0
      %v1860 = vsel %vm500, %v1850, 0
      %v1863 = vsel %vm500, %v1852, 0
      %v1866 = vsel %vm513, %v1820, 0
      %1868 = vmatprep.subr.bf16.mxu0 0
      %1869 = vmatpush1.bf16.msra.mxu0 %v1866
      %1870 = vmatprep.subr.bf16.mxu0 0
      %1871 = vmatpush1.bf16.msra.mxu0 0
      %1872 = vmatprep.subr.bf16.mxu0 0
      %1873 = vmatpush1.bf16.msra.mxu0 0
      %1874 = vmatprep.subr.bf16.mxu0 0
      %1875 = vmatpush1.bf16.msra.mxu0 0
      %1876 = vmatprep.subr.bf16.mxu0 0
      %1877 = vmatpush1.bf16.msra.mxu0 0
      %1878 = vmatprep.subr.bf16.mxu0 0
      %1879 = vmatpush1.bf16.msra.mxu0 0
      %1880 = vmatprep.subr.bf16.mxu0 0
      %1881 = vmatpush1.bf16.msra.mxu0 0
      %1882 = vmatprep.subr.bf16.mxu0 0
      %1883 = vmatpush1.bf16.msra.mxu0 0
      %1884 = vmatprep.subr.bf16.mxu0 0
      %1885 = vmatpush1.bf16.msra.mxu0 0
      %1886 = vmatprep.subr.bf16.mxu0 0
      %1887 = vmatpush1.bf16.msra.mxu0 0
      %1888 = vmatprep.subr.bf16.mxu0 0
      %1889 = vmatpush1.bf16.msra.mxu0 0
      %1890 = vmatprep.subr.bf16.mxu0 0
      %1891 = vmatpush1.bf16.msra.mxu0 0
      %1892 = vmatprep.subr.bf16.mxu0 0
      %1893 = vmatpush1.bf16.msra.mxu0 0
      %1894 = vmatprep.subr.bf16.mxu0 0
      %1895 = vmatpush1.bf16.msra.mxu0 0
      %1896 = vmatprep.subr.bf16.mxu0 0
      %1897 = vmatpush1.bf16.msra.mxu0 0
      %1898 = vmatprep.subr.bf16.mxu0 0
      %1899 = vmatpush1.bf16.msra.mxu0 0
      %1900 = vmatprep.mubr.bf16.mxu0 0
      %1901 = vmatmul.mubr.bf16.gmra.mrb[0].mxu0 %v1854
      %v1902 = vpop.f32.mrb[0].mxu0
      %v1903 = vadd.f32 0.0, %v1902
      %v1904 = vpop.f32.mrb[0].mxu0
      %v1905 = vpop.f32.mrb[0].mxu0
      %v1906 = vadd.f32 0.0, %v1905
      %v1907 = vpop.f32.mrb[0].mxu0
      %1908 = vmatprep.mubr.bf16.mxu0 0
      %1909 = vmatmul.mubr.bf16.gmra.mrb[0].mxu0 %v1857
      %v1910 = vpop.f32.mrb[0].mxu0
      %v1911 = vadd.f32 0.0, %v1910
      %v1912 = vpop.f32.mrb[0].mxu0
      %v1913 = vpop.f32.mrb[0].mxu0
      %v1914 = vadd.f32 0.0, %v1913
      %v1915 = vpop.f32.mrb[0].mxu0
      %1916 = vmatprep.mubr.bf16.mxu0 0
      %1917 = vmatmul.mubr.bf16.gmra.mrb[0].mxu0 %v1860
      %v1918 = vpop.f32.mrb[0].mxu0
      %v1919 = vadd.f32 0.0, %v1918
      %v1920 = vpop.f32.mrb[0].mxu0
      %v1921 = vpop.f32.mrb[0].mxu0
      %v1922 = vadd.f32 0.0, %v1921
      %v1923 = vpop.f32.mrb[0].mxu0
      %1924 = vmatprep.mubr.bf16.mxu0 0
      %1925 = vmatmul.mubr.bf16.gmra.mrb[0].mxu0 %v1863
      %v1926 = vpop.f32.mrb[0].mxu0
      %v1927 = vadd.f32 0.0, %v1926
      %v1928 = vpop.f32.mrb[0].mxu0
      %v1929 = vpop.f32.mrb[0].mxu0
      %v1930 = vadd.f32 0.0, %v1929
      %v1931 = vpop.f32.mrb[0].mxu0
      %1932 = vdwg.mxu0
      %v1933 = vadd.f32 %v1811, %v1903
      %v1934 = vadd.f32 %v1812, %v1906
      %v1935 = vadd.f32 %v1813, %v1911
      %v1936 = vadd.f32 %v1814, %v1914
      %v1937 = vadd.f32 %v1815, %v1919
      %v1938 = vadd.f32 %v1816, %v1922
      %v1939 = vadd.f32 %v1817, %v1927
      %v1940 = vadd.f32 %v1818, %v1930
      %1941 = vst.msk [vmem:[#allocation2] sm:$0xff] %vm500, %v1933
      %1942 = vst.msk [vmem:[#allocation2 + $0x8] sm:$0xff] %vm500, %v1934
      %1943 = vst.msk [vmem:[#allocation2 + $0x10] sm:$0xff] %vm500, %v1935
      %1944 = vst.msk [vmem:[#allocation2 + $0x18] sm:$0xff] %vm500, %v1936
      %1945 = vst.msk [vmem:[#allocation2 + $0x20] sm:$0xff] %vm500, %v1937
      %1946 = vst.msk [vmem:[#allocation2 + $0x28] sm:$0xff] %vm500, %v1938
      %1947 = vst.msk [vmem:[#allocation2 + $0x30] sm:$0xff] %vm500, %v1939
      %1948 = vst.msk [vmem:[#allocation2 + $0x38] sm:$0xff] %vm500, %v1940
      %p1949 = scmp.eq.s32.totalorder %s22, 2
      // Predicated region
      $region41: #{att_decoding_block_layer.19} parent=35 // pred_check
        %p1950 = pneg %p1949
      $region42: #{att_decoding_block_layer.19} parent=35 // pred_check_branch
        %1952 = sbr.rel (%p1950) target = $region44
      $region43: #{att_decoding_block_layer.19} parent=35 // pred_region
        %v1953 = vld [vmem:[#allocation2] sm:$0xff]
        %v1954 = vld [vmem:[#allocation2 + $0x8] sm:$0xff]
        %v1955 = vld [vmem:[#allocation2 + $0x10] sm:$0xff]
        %v1956 = vld [vmem:[#allocation2 + $0x18] sm:$0xff]
        %v1957 = vld [vmem:[#allocation2 + $0x20] sm:$0xff]
        %v1958 = vld [vmem:[#allocation2 + $0x28] sm:$0xff]
        %v1959 = vld [vmem:[#allocation2 + $0x30] sm:$0xff]
        %v1960 = vld [vmem:[#allocation2 + $0x38] sm:$0xff]
        %v1961 = vld [vmem:[%s2] sm:$0x1]
        %v1963 = vlaneseq
        %v1964 = vshrl.u32 %v1963, 7
        %v1965 = vsub.s32 0, %v1964
        %v1966 = vrot.slane %v1961, %v1965
        %v1968 = vadd.f32 %v1953, %v1966
        %v1969 = vadd.f32 %v1954, %v1966
        %v1970 = vadd.f32 %v1955, %v1966
        %v1971 = vadd.f32 %v1956, %v1966
        %v1972 = vadd.f32 %v1957, %v1966
        %v1973 = vadd.f32 %v1958, %v1966
        %v1974 = vadd.f32 %v1959, %v1966
        %v1975 = vadd.f32 %v1960, %v1966
        %v1976 = vld [vmem:[%s292] sm:$0xff]
        %v1977 = vld [vmem:[%s292 + $0x8] sm:$0xff]
        %v1978 = vld [vmem:[%s292 + $0x10] sm:$0xff]
        %v1979 = vld [vmem:[%s292 + $0x18] sm:$0xff]
        %v1980 = vld [vmem:[%s292 + $0x20] sm:$0xff]
        %v1981 = vld [vmem:[%s292 + $0x28] sm:$0xff]
        %v1982 = vld [vmem:[%s292 + $0x30] sm:$0xff]
        %v1983 = vld [vmem:[%s292 + $0x38] sm:$0xff]
        %v1984 = vadd.f32 %v1968, %v1976
        %v1985 = vadd.f32 %v1969, %v1977
        %v1986 = vadd.f32 %v1970, %v1978
        %v1987 = vadd.f32 %v1971, %v1979
        %v1988 = vadd.f32 %v1972, %v1980
        %v1989 = vadd.f32 %v1973, %v1981
        %v1990 = vadd.f32 %v1974, %v1982
        %v1991 = vadd.f32 %v1975, %v1983
        %1992 = vst.msk [vmem:[%s301] sm:$0xff] %vm500, %v1984
        %1993 = vst.msk [vmem:[%s301 + $0x8] sm:$0xff] %vm500, %v1985
        %1994 = vst.msk [vmem:[%s301 + $0x10] sm:$0xff] %vm500, %v1986
        %1995 = vst.msk [vmem:[%s301 + $0x18] sm:$0xff] %vm500, %v1987
        %1996 = vst.msk [vmem:[%s301 + $0x20] sm:$0xff] %vm500, %v1988
        %1997 = vst.msk [vmem:[%s301 + $0x28] sm:$0xff] %vm500, %v1989
        %1998 = vst.msk [vmem:[%s301 + $0x30] sm:$0xff] %vm500, %v1990
        %1999 = vst.msk [vmem:[%s301 + $0x38] sm:$0xff] %vm500, %v1991
      $region44: #{att_decoding_block_layer.19} parent=35 // pred_fallthru
        _
      %p2000 = scmp.lt.s32.totalorder %s20, 1
      %s2001 = scalar_select %p2000, %s20, 1
      %p2002 = scmp.lt.s32.totalorder %s21, 7
      %s2003 = scalar_select %p2002, %s21, 7
      %s2004 = smul.addr %s2003, 8
      %s2005 = smul.addr %s2001, 64
      %s2006 = sadd.s32 %s2004, %s2005
      %s2007 = smul.addr %s2006, 8
      %s2008 = scalar_lea.vmem %s4, %s2007
      // Predicated region
      $region45: #{att_decoding_block_layer.19} parent=35 // pred_check
        %p2009 = pneg %p161
      $region46: #{att_decoding_block_layer.19} parent=35 // pred_check_branch
        %2011 = sbr.rel (%p2009) target = $region48
      $region47: #{att_decoding_block_layer.19} parent=35 // pred_region
        _
      $region48: #{att_decoding_block_layer.19} parent=35 // pred_fallthru
        _
    $region36: #{att_decoding_block_layer.19} parent=5 // pred_fallthru
      _
    %p2012 = scmp.le.s32.totalorder 2, %s10
    // Predicated region
    $region49: #{att_decoding_block_layer.19} parent=5 // pred_check
      %p2013 = pneg %p2012
    $region50: #{att_decoding_block_layer.19} parent=5 // pred_check_branch
      %2015 = sbr.rel (%p2013) target = $region52
    $region51: #{att_decoding_block_layer.19} parent=5 // pred_region
      %s2016 = ssub.s32 %s10, 2
      // Predicated region
      $region53: #{att_decoding_block_layer.19} parent=51 // pred_check
        %p2017 = pneg %p167
      $region54: #{att_decoding_block_layer.19} parent=51 // pred_check_branch
        %2019 = sbr.rel (%p2017) target = $region56
      $region55: #{att_decoding_block_layer.19} parent=51 // pred_region
        %p2020 = scmp.lt.s32.totalorder %s23, 1
        %s2021 = scalar_select %p2020, %s23, 1
        %p2022 = scmp.lt.s32.totalorder %s24, 7
        %s2023 = scalar_select %p2022, %s24, 7
        %s2024 = smul.addr %s2023, 8
        %s2025 = smul.addr %s2021, 64
        %s2026 = sadd.s32 %s2024, %s2025
        %s2027 = smul.addr %s2026, 8
        %s2028 = scalar_lea.vmem %s4, %s2027
      $region56: #{att_decoding_block_layer.19} parent=51 // pred_fallthru
        _
    $region52: #{att_decoding_block_layer.19} parent=5 // pred_fallthru
      _
  $region6: #{att_decoding_block_layer.19} parent=0 // loop_footer
    %s14 = sadd.s32 1, %s10
  $region7: #{att_decoding_block_layer.19} parent=0 // loop_footer_branch
    %9 = sbr.rel target = $region3
  $region8: #{att_decoding_block_layer.19} parent=0 // loop_exit
    _

</llo_original>
